<compile_context>
chip_gen: v6e
topology: v6e:2x2x1
jax: 0.10.0
libtpu: 0.0.40
codegen_flags: <defaults>
</compile_context>

<pallas_src>
import math
from functools import partial

import jax
import jax.numpy as jnp
from jax import lax
from jax.experimental import pallas as pl
from jax.experimental.pallas import tpu as pltpu

_VMEM_LIMIT = 32 * 1024 * 1024   # safe on v5e/v6e (128 MiB phys) and v7x (64 MiB phys)
_LN_EPS = 1e-5                   # torch.nn.LayerNorm default


def _tile(dim, target, align):
    """Largest tile <= target that divides `dim` and is `align`-aligned;
    falls back to the full dimension (always legal for BlockSpec)."""
    if dim <= target:
        return dim
    t = (target // align) * align
    while t >= align:
        if dim % t == 0:
            return t
        t -= align
    return dim


# ----------------------------------------------------------------------------
# Kernel 1: linear (x @ w + b, optional fused ReLU), whole-K contraction.
# Used for the fused QKV projection and the LM head (K = embed dim here).
# ----------------------------------------------------------------------------
def _linear_kernel(x_ref, w_ref, b_ref, o_ref, *, relu):
    y = jnp.dot(x_ref[...], w_ref[...], preferred_element_type=jnp.float32)
    y = y + b_ref[...].astype(jnp.float32)
    if relu:
        y = jnp.maximum(y, 0.0)
    o_ref[...] = y.astype(o_ref.dtype)


def pallas_linear(x, w, b, *, relu=False, out_dtype=None, bm=256, bn=512):
    M, K = x.shape
    K2, N = w.shape
    assert K == K2 and b.shape == (N,)
    tm, tn = _tile(M, bm, 8), _tile(N, bn, 128)
    grid = (M // tm, N // tn)
    out_dtype = out_dtype if out_dtype is not None else x.dtype
    return pl.pallas_call(
        partial(_linear_kernel, relu=relu),
        out_shape=jax.ShapeDtypeStruct((M, N), out_dtype),
        grid=grid,
        in_specs=[
            pl.BlockSpec((tm, K), lambda i, j: (i, 0)),
            pl.BlockSpec((K, tn), lambda i, j: (0, j)),
            pl.BlockSpec((1, tn), lambda i, j: (0, j)),
        ],
        out_specs=pl.BlockSpec((tm, tn), lambda i, j: (i, j)),
        compiler_params=pltpu.CompilerParams(
            dimension_semantics=("parallel", "parallel"),
            vmem_limit_bytes=_VMEM_LIMIT),
    )(x, w, b.reshape(1, N))


# ----------------------------------------------------------------------------
# Kernel 2: (token embedding + positional encoding) add + input LayerNorm, fused.
# ----------------------------------------------------------------------------
def _embed_pe_ln_kernel(e_ref, pe_ref, g_ref, b_ref, o_ref):
    x = e_ref[0].astype(jnp.float32) + pe_ref[...].astype(jnp.float32)
    mean = jnp.mean(x, axis=-1, keepdims=True)
    xc = x - mean
    var = jnp.mean(xc * xc, axis=-1, keepdims=True)
    inv = lax.rsqrt(var + _LN_EPS)
    o_ref[0] = (xc * inv * g_ref[...].astype(jnp.float32)
                + b_ref[...].astype(jnp.float32)).astype(o_ref.dtype)


def pallas_embed_pe_ln(emb, pe, gamma, beta, *, bs=256):
    B, S, D = emb.shape
    ts = _tile(S, bs, 8)
    return pl.pallas_call(
        _embed_pe_ln_kernel,
        out_shape=jax.ShapeDtypeStruct((B, S, D), emb.dtype),
        grid=(B, S // ts),
        in_specs=[
            pl.BlockSpec((1, ts, D), lambda b, s: (b, s, 0)),
            pl.BlockSpec((ts, D), lambda b, s: (s, 0)),
            pl.BlockSpec((1, D), lambda b, s: (0, 0)),
            pl.BlockSpec((1, D), lambda b, s: (0, 0)),
        ],
        out_specs=pl.BlockSpec((1, ts, D), lambda b, s: (b, s, 0)),
        compiler_params=pltpu.CompilerParams(
            dimension_semantics=("parallel", "parallel"),
            vmem_limit_bytes=_VMEM_LIMIT),
    )(emb, pe, gamma.reshape(1, D), beta.reshape(1, D))


# ----------------------------------------------------------------------------
# Kernel 3: masked multi-head self-attention + Wo projection + residual + LN1,
# fully fused.  Grid = (batch, q row-tiles); the whole key/value sequence is
# resident per step (S is small), so the softmax is single-pass (no online
# rescale, no accumulator scratch, no masked sub-vreg stores).  The per-head
# results are merged through the Wo matmul itself (Wo passed as (H, dh, D)),
# so all stores stay lane-dense (tq, D).
# ----------------------------------------------------------------------------
def _attn_wo_ln_kernel(q_ref, k_ref, v_ref, bias_ref, x_ref, wo_ref, bo_ref,
                       g_ref, bt_ref, o_ref, *, heads):
    q = q_ref[0]            # (tq, D) bf16; 1/sqrt(dh) already folded into W_q
    k = k_ref[0]            # (S, D)  bf16
    v = v_ref[0]            # (S, D)  bf16
    bias = bias_ref[0]      # (1, S)  f32 additive mask bias (0 keep, -1e9 drop)
    tq, D = q.shape
    dh = D // heads

    # TODO(synk): DecoderStack source not provided; only the externally supplied
    # key-padding mask is applied (masked_fill(mask == 0, -1e9)), no implicit
    # causal mask -- matching the previous reference semantics.
    y = jnp.zeros((tq, D), jnp.float32)
    for h in range(heads):          # small static loop; dh=32 underfills the MXU
        lo = h * dh                 # regardless, and no refs are sliced/stored here
        q_h = q[:, lo:lo + dh]
        k_h = k[:, lo:lo + dh]
        v_h = v[:, lo:lo + dh]
        # scores (tq, S), f32 accumulation on the MXU
        s = lax.dot_general(q_h, k_h, (((1,), (1,)), ((), ())),
                            preferred_element_type=jnp.float32)
        s = s + bias
        m = jnp.max(s, axis=-1, keepdims=True)
        p = jnp.exp(s - m)
        l = jnp.sum(p, axis=-1, keepdims=True)
        p = p / l                                        # exact softmax denom
        ctx_h = jnp.dot(p.astype(v.dtype), v_h,
                        preferred_element_type=jnp.float32)       # (tq, dh)
        # head-merge fused into the output projection: full-lane accumulation
        y = y + jnp.dot(ctx_h.astype(v.dtype), wo_ref[h],
                        preferred_element_type=jnp.float32)        # (tq, D)

    # bias + residual + LayerNorm1 epilogue (dropout is identity in eval mode)
    y = y + bo_ref[...].astype(jnp.float32) + x_ref[0].astype(jnp.float32)
    mean = jnp.mean(y, axis=-1, keepdims=True)
    yc = y - mean
    var = jnp.mean(yc * yc, axis=-1, keepdims=True)
    inv = lax.rsqrt(var + _LN_EPS)
    o_ref[0] = (yc * inv * g_ref[...].astype(jnp.float32)
                + bt_ref[...].astype(jnp.float32)).astype(o_ref.dtype)


def pallas_attention_wo_ln(qkv, bias, x_resid, wo, bo, gamma, beta, *,
                           heads, bq=128):
    """qkv: (B, S, 3*D) fused projection output; bias: (B, 1, S) additive mask;
    x_resid: (B, S, D) residual input; wo/bo + LN1 params fused in-kernel."""
    B, S, D3 = qkv.shape
    D = D3 // 3
    assert D % heads == 0
    dh = D // heads
    tq = _tile(S, bq, 8)
    wo_r = wo.reshape(heads, dh, D)   # head-major view of the output projection

    if D % 128 == 0:
        # Read Q/K/V directly out of the fused slab via the last-axis block
        # index (0/1/2) -- no JAX-level split or transpose between kernels.
        q_in = k_in = v_in = qkv
        q_spec = pl.BlockSpec((1, tq, D), lambda b, qi: (b, qi, 0))
        k_spec = pl.BlockSpec((1, S, D), lambda b, qi: (b, 0, 1))
        v_spec = pl.BlockSpec((1, S, D), lambda b, qi: (b, 0, 2))
    else:
        # Fallback for lane-unfriendly embed dims: split in plain JAX.
        q_in, k_in, v_in = jnp.split(qkv, 3, axis=-1)
        q_spec = pl.BlockSpec((1, tq, D), lambda b, qi: (b, qi, 0))
        k_spec = pl.BlockSpec((1, S, D), lambda b, qi: (b, 0, 0))
        v_spec = pl.BlockSpec((1, S, D), lambda b, qi: (b, 0, 0))

    return pl.pallas_call(
        partial(_attn_wo_ln_kernel, heads=heads),
        out_shape=jax.ShapeDtypeStruct((B, S, D), x_resid.dtype),
        grid=(B, S // tq),
        in_specs=[q_spec, k_spec, v_spec,
                  pl.BlockSpec((1, 1, S), lambda b, qi: (b, 0, 0)),
                  pl.BlockSpec((1, tq, D), lambda b, qi: (b, qi, 0)),
                  pl.BlockSpec((heads, dh, D), lambda b, qi: (0, 0, 0)),
                  pl.BlockSpec((1, D), lambda b, qi: (0, 0)),
                  pl.BlockSpec((1, D), lambda b, qi: (0, 0)),
                  pl.BlockSpec((1, D), lambda b, qi: (0, 0))],
        out_specs=pl.BlockSpec((1, tq, D), lambda b, qi: (b, qi, 0)),
        compiler_params=pltpu.CompilerParams(
            dimension_semantics=("parallel", "parallel"),
            vmem_limit_bytes=_VMEM_LIMIT),
    )(q_in, k_in, v_in, bias, x_resid, wo_r, bo.reshape(1, D),
      gamma.reshape(1, D), beta.reshape(1, D))


# ----------------------------------------------------------------------------
# Kernel 4: fused feed-forward block:
#   h = relu(x @ w1 + b1);  y = LN(h @ w2 + b2 + x)
# The (tm, FF) intermediate lives only in a VMEM scratch (never hits HBM);
# the FFN input doubles as the residual, so it is DMA'd once.
# ----------------------------------------------------------------------------
def _ffn_ln_kernel(x_ref, w1_ref, b1_ref, w2_ref, b2_ref, g_ref, bt_ref,
                   o_ref, h_ref):
    h = jnp.dot(x_ref[...], w1_ref[...], preferred_element_type=jnp.float32)
    h = jnp.maximum(h + b1_ref[...].astype(jnp.float32), 0.0)
    h_ref[...] = h.astype(h_ref.dtype)
    y = jnp.dot(h_ref[...], w2_ref[...], preferred_element_type=jnp.float32)
    y = y + b2_ref[...].astype(jnp.float32) + x_ref[...].astype(jnp.float32)
    mean = jnp.mean(y, axis=-1, keepdims=True)
    yc = y - mean
    var = jnp.mean(yc * yc, axis=-1, keepdims=True)
    inv = lax.rsqrt(var + _LN_EPS)
    o_ref[...] = (yc * inv * g_ref[...].astype(jnp.float32)
                  + bt_ref[...].astype(jnp.float32)).astype(o_ref.dtype)


def pallas_ffn_ln(x, w1, b1, w2, b2, gamma, beta, *, bm=128):
    M, D = x.shape
    D1, FF = w1.shape
    FF2, D2 = w2.shape
    assert D == D1 and FF == FF2 and D == D2
    tm = _tile(M, bm, 8)
    return pl.pallas_call(
        _ffn_ln_kernel,
        out_shape=jax.ShapeDtypeStruct((M, D), x.dtype),
        grid=(M // tm,),
        in_specs=[
            pl.BlockSpec((tm, D), lambda i: (i, 0)),
            pl.BlockSpec((D, FF), lambda i: (0, 0)),
            pl.BlockSpec((1, FF), lambda i: (0, 0)),
            pl.BlockSpec((FF, D), lambda i: (0, 0)),
            pl.BlockSpec((1, D), lambda i: (0, 0)),
            pl.BlockSpec((1, D), lambda i: (0, 0)),
            pl.BlockSpec((1, D), lambda i: (0, 0)),
        ],
        out_specs=pl.BlockSpec((tm, D), lambda i: (i, 0)),
        scratch_shapes=[pltpu.VMEM((tm, FF), x.dtype)],
        compiler_params=pltpu.CompilerParams(
            dimension_semantics=("parallel",),
            vmem_limit_bytes=_VMEM_LIMIT),
    )(x, w1, b1.reshape(1, FF), w2, b2.reshape(1, D),
      gamma.reshape(1, D), beta.reshape(1, D))


# ----------------------------------------------------------------------------
# Model (parameters + forward orchestration)
# ----------------------------------------------------------------------------
def sinusoidal_positional_encoding(max_len, dim):
    pos = jnp.arange(max_len, dtype=jnp.float32)[:, None]
    i = jnp.arange(0, dim, 2, dtype=jnp.float32)[None, :]
    div = jnp.exp(-math.log(10000.0) * i / dim)
    pe = jnp.zeros((max_len, dim), jnp.float32)
    pe = pe.at[:, 0::2].set(jnp.sin(pos * div))
    pe = pe.at[:, 1::2].set(jnp.cos(pos * div))
    return pe


def init_linear(key, fan_in, fan_out):
    kw, kb = jax.random.split(key)
    bound = 1.0 / math.sqrt(fan_in)
    w = jax.random.uniform(kw, (fan_in, fan_out), jnp.float32, -bound, bound)
    b = jax.random.uniform(kb, (fan_out,), jnp.float32, -bound, bound)
    return w, b


def init_params(key, vocab, embed, layers, heads, ff, max_seq):
    keys = jax.random.split(key, 3 + layers)
    scale = 1.0 / math.sqrt(embed // heads)
    params = {
        "tok_emb": jax.random.normal(keys[0], (vocab, embed),
                                     jnp.float32).astype(jnp.bfloat16),
        "pe": sinusoidal_positional_encoding(max_seq, embed),
        "ln_in_g": jnp.ones((embed,), jnp.float32),
        "ln_in_b": jnp.zeros((embed,), jnp.float32),
        "layers": [],
    }
    for l in range(layers):
        lk = jax.random.split(keys[2 + l], 4)
        w_qkv, b_qkv = init_linear(lk[0], embed, 3 * embed)   # fused Q|K|V
        # fold the 1/sqrt(head_dim) softmax scale into the Q projection (f32)
        w_qkv = w_qkv.at[:, :embed].multiply(scale)
        b_qkv = b_qkv.at[:embed].multiply(scale)
        wo, bo = init_linear(lk[1], embed, embed)
        w1, b1 = init_linear(lk[2], embed, ff)
        w2, b2 = init_linear(lk[3], ff, embed)
        params["layers"].append({
            # weights bf16 for the MXU; biases stay f32 (added to f32 accum)
            "w_qkv": w_qkv.astype(jnp.bfloat16), "b_qkv": b_qkv,
            "wo": wo.astype(jnp.bfloat16), "bo": bo,
            "w1": w1.astype(jnp.bfloat16), "b1": b1,
            "w2": w2.astype(jnp.bfloat16), "b2": b2,
            "ln1_g": jnp.ones((embed,), jnp.float32),
            "ln1_b": jnp.zeros((embed,), jnp.float32),
            "ln2_g": jnp.ones((embed,), jnp.float32),
            "ln2_b": jnp.zeros((embed,), jnp.float32),
        })
    lm_w, lm_b = init_linear(keys[1], embed, vocab)
    params["lm_w"] = lm_w.astype(jnp.bfloat16)
    params["lm_b"] = lm_b
    return params


def decoder_layer(p, x, bias, heads):
    B, S, D = x.shape
    x2d = x.reshape(B * S, D)
    # fused Q|K|V projection: one whole-K matmul, activation read from HBM once
    qkv = pallas_linear(x2d, p["w_qkv"], p["b_qkv"]).reshape(B, S, 3 * D)
    # masked MHA + Wo + residual + LN1, all in one kernel
    y1 = pallas_attention_wo_ln(qkv, bias, x, p["wo"], p["bo"],
                                p["ln1_g"], p["ln1_b"], heads=heads)
    # FFN1 (+bias+ReLU) + FFN2 (+bias) + residual + LN2, all in one kernel
    y2 = pallas_ffn_ln(y1.reshape(B * S, D), p["w1"], p["b1"],
                       p["w2"], p["b2"], p["ln2_g"], p["ln2_b"])
    return y2.reshape(B, S, D)


def language_model_forward(params, tokens, mask, *, heads):
    B, S = tokens.shape
    D = params["tok_emb"].shape[1]
    # token embedding gather stays in plain JAX; PE add + input LN fused in Pallas
    emb = jnp.take(params["tok_emb"], tokens, axis=0)            # (B, S, D) bf16
    x = pallas_embed_pe_ln(emb, params["pe"][:S],
                           params["ln_in_g"], params["ln_in_b"])
    # additive mask bias: 0 where mask==1, -1e9 where mask==0 (key padding mask)
    bias = ((mask.astype(jnp.float32) - 1.0) * 1e9).reshape(B, 1, S)
    for lp in params["layers"]:
        x = decoder_layer(lp, x, bias, heads)
    # LM head: whole-K matmul tiled over (rows, vocab), f32 logits
    logits = pallas_linear(x.reshape(B * S, D), params["lm_w"], params["lm_b"],
                           out_dtype=jnp.float32)
    return logits.reshape(B, S, params["lm_w"].shape[1])


# ----------------------------------------------------------------------------
if __name__ == "__main__":
    VOCAB = 256
    EMBED = 128        # multiple of 128 -> lane-dense activations / MXU tiles
    HEADS = 4          # head_dim = 32
    LAYERS = 2
    FF = 4 * EMBED
    MAX_SEQ = 256
    BATCH, SEQ = 2, 256

    key = jax.random.PRNGKey(0)
    kp, kt = jax.random.split(key)
    params = init_params(kp, VOCAB, EMBED, LAYERS, HEADS, FF, MAX_SEQ)

    tokens = jax.random.randint(kt, (BATCH, SEQ), 0, VOCAB, dtype=jnp.int32)
    mask = jnp.ones((BATCH, SEQ), dtype=jnp.float32)
    mask = mask.at[1, -32:].set(0.0)   # pad out the tail of batch element 1

    fwd = jax.jit(partial(language_model_forward, heads=HEADS))
    logits = fwd(params, tokens, mask)
    jax.block_until_ready(logits)

    assert logits.shape == (BATCH, SEQ, VOCAB)
    assert logits.dtype == jnp.float32
    assert bool(jnp.all(jnp.isfinite(logits)))
    print("KERNEL_OK")
</pallas_src>

<mosaic_0001>
module attributes {stable_mosaic.version = 11 : i64} {
  func.func @_embed_pe_ln_kernel(%arg0: i32, %arg1: i32, %arg2: memref<1x256x128xbf16, #tpu.memory_space<vmem>>, %arg3: memref<256x128xf32, #tpu.memory_space<vmem>>, %arg4: memref<1x128xf32, #tpu.memory_space<vmem>>, %arg5: memref<1x128xf32, #tpu.memory_space<vmem>>, %arg6: memref<1x256x128xbf16, #tpu.memory_space<vmem>>) attributes {dimension_semantics = [#tpu.dimension_semantics<parallel>, #tpu.dimension_semantics<parallel>], iteration_bounds = array<i64: 2, 1>, scalar_prefetch = 0 : i64, scratch_operands = 0 : i64, tpu.core_type = #tpu.core_type<tc>, window_params = [{transform_indices = @transform_0, window_bounds = array<i64: 1, 256, 128>}, {transform_indices = @transform_1, window_bounds = array<i64: 256, 128>}, {pipeline_mode = #tpu.pipeline_mode<synchronous>, transform_indices = @transform_2, window_bounds = array<i64: 1, 128>}, {pipeline_mode = #tpu.pipeline_mode<synchronous>, transform_indices = @transform_3, window_bounds = array<i64: 1, 128>}, {transform_indices = @transform_4, window_bounds = array<i64: 1, 256, 128>}]} {
    %c0 = arith.constant 0 : index
    %c0_0 = arith.constant 0 : index
    %c0_1 = arith.constant 0 : index
    %0 = vector.load %arg2[%c0, %c0_0, %c0_1] : memref<1x256x128xbf16, #tpu.memory_space<vmem>>, vector<1x256x128xbf16>
    %1 = vector.shape_cast %0 : vector<1x256x128xbf16> to vector<256x128xbf16>
    %2 = arith.extf %1 : vector<256x128xbf16> to vector<256x128xf32>
    %c0_2 = arith.constant 0 : index
    %c0_3 = arith.constant 0 : index
    %3 = vector.load %arg3[%c0_2, %c0_3] : memref<256x128xf32, #tpu.memory_space<vmem>>, vector<256x128xf32>
    %4 = arith.addf %2, %3 : vector<256x128xf32>
    %cst = arith.constant dense<0.000000e+00> : vector<256xf32>
    %5 = vector.multi_reduction <add>, %4, %cst [1] : vector<256x128xf32> to vector<256xf32>
    %6 = vector.shape_cast %5 : vector<256xf32> to vector<256x1xf32>
    %cst_4 = arith.constant 1.280000e+02 : f32
    %7 = vector.broadcast %cst_4 : f32 to vector<256x1xf32>
    %8 = arith.divf %6, %7 : vector<256x1xf32>
    %9 = vector.broadcast %8 : vector<256x1xf32> to vector<256x128xf32>
    %10 = arith.subf %4, %9 : vector<256x128xf32>
    %11 = arith.mulf %10, %10 : vector<256x128xf32>
    %cst_5 = arith.constant dense<0.000000e+00> : vector<256xf32>
    %12 = vector.multi_reduction <add>, %11, %cst_5 [1] : vector<256x128xf32> to vector<256xf32>
    %13 = vector.shape_cast %12 : vector<256xf32> to vector<256x1xf32>
    %cst_6 = arith.constant 1.280000e+02 : f32
    %14 = vector.broadcast %cst_6 : f32 to vector<256x1xf32>
    %15 = arith.divf %13, %14 : vector<256x1xf32>
    %cst_7 = arith.constant 9.99999974E-6 : f32
    %16 = vector.broadcast %cst_7 : f32 to vector<256x1xf32>
    %17 = arith.addf %15, %16 : vector<256x1xf32>
    %18 = math.rsqrt %17 : vector<256x1xf32>
    %19 = vector.broadcast %18 : vector<256x1xf32> to vector<256x128xf32>
    %20 = arith.mulf %10, %19 : vector<256x128xf32>
    %c0_8 = arith.constant 0 : index
    %c0_9 = arith.constant 0 : index
    %21 = vector.load %arg4[%c0_8, %c0_9] : memref<1x128xf32, #tpu.memory_space<vmem>>, vector<1x128xf32>
    %22 = vector.broadcast %21 : vector<1x128xf32> to vector<256x128xf32>
    %23 = arith.mulf %20, %22 : vector<256x128xf32>
    %c0_10 = arith.constant 0 : index
    %c0_11 = arith.constant 0 : index
    %24 = vector.load %arg5[%c0_10, %c0_11] : memref<1x128xf32, #tpu.memory_space<vmem>>, vector<1x128xf32>
    %25 = vector.broadcast %24 : vector<1x128xf32> to vector<256x128xf32>
    %26 = arith.addf %23, %25 : vector<256x128xf32>
    %27 = arith.truncf %26 : vector<256x128xf32> to vector<256x128xbf16>
    %c0_12 = arith.constant 0 : index
    %c0_13 = arith.constant 0 : index
    %c0_14 = arith.constant 0 : index
    %28 = vector.load %arg6[%c0_12, %c0_13, %c0_14] : memref<1x256x128xbf16, #tpu.memory_space<vmem>>, vector<1x256x128xbf16>
    %29 = vector.shape_cast %28 : vector<1x256x128xbf16> to vector<256x128xbf16>
    %30 = vector.shape_cast %27 : vector<256x128xbf16> to vector<1x256x128xbf16>
    tpu.vector_store %arg6[%c0_12, %c0_13, %c0_14], %30 {strides = array<i32>} : memref<1x256x128xbf16, #tpu.memory_space<vmem>>, vector<1x256x128xbf16>,
    return
  }
  func.func @transform_0(%arg0: i32, %arg1: i32) -> (i32, i32, i32) {
    %c0_i32 = arith.constant 0 : i32
    %c0_i32_0 = arith.constant 0 : i32
    return %arg0, %arg1, %c0_i32 : i32, i32, i32
  }
  func.func @transform_1(%arg0: i32, %arg1: i32) -> (i32, i32) {
    %c0_i32 = arith.constant 0 : i32
    %c0_i32_0 = arith.constant 0 : i32
    return %arg1, %c0_i32 : i32, i32
  }
  func.func @transform_2(%arg0: i32, %arg1: i32) -> (i32, i32) {
    %c0_i32 = arith.constant 0 : i32
    %c0_i32_0 = arith.constant 0 : i32
    %c0_i32_1 = arith.constant 0 : i32
    return %c0_i32, %c0_i32_0 : i32, i32
  }
  func.func @transform_3(%arg0: i32, %arg1: i32) -> (i32, i32) {
    %c0_i32 = arith.constant 0 : i32
    %c0_i32_0 = arith.constant 0 : i32
    %c0_i32_1 = arith.constant 0 : i32
    return %c0_i32, %c0_i32_0 : i32, i32
  }
  func.func @transform_4(%arg0: i32, %arg1: i32) -> (i32, i32, i32) {
    %c0_i32 = arith.constant 0 : i32
    %c0_i32_0 = arith.constant 0 : i32
    return %arg0, %arg1, %c0_i32 : i32, i32, i32
  }
}

module attributes {stable_mosaic.version = 11 : i64} {
  func.func @_linear_kernel(%arg0: i32, %arg1: i32, %arg2: memref<256x128xbf16, #tpu.memory_space<vmem>>, %arg3: memref<128x384xbf16, #tpu.memory_space<vmem>>, %arg4: memref<1x384xf32, #tpu.memory_space<vmem>>, %arg5: memref<256x384xbf16, #tpu.memory_space<vmem>>) attributes {dimension_semantics = [#tpu.dimension_semantics<parallel>, #tpu.dimension_semantics<parallel>], iteration_bounds = array<i64: 2, 1>, scalar_prefetch = 0 : i64, scratch_operands = 0 : i64, tpu.core_type = #tpu.core_type<tc>, window_params = [{transform_indices = @transform_0, window_bounds = array<i64: 256, 128>}, {transform_indices = @transform_1, window_bounds = array<i64: 128, 384>}, {transform_indices = @transform_2, window_bounds = array<i64: 1, 384>}, {transform_indices = @transform_3, window_bounds = array<i64: 256, 384>}]} {
    %c0 = arith.constant 0 : index
    %c0_0 = arith.constant 0 : index
    %0 = vector.load %arg2[%c0, %c0_0] : memref<256x128xbf16, #tpu.memory_space<vmem>>, vector<256x128xbf16>
    %c0_1 = arith.constant 0 : index
    %c0_2 = arith.constant 0 : index
    %1 = vector.load %arg3[%c0_1, %c0_2] : memref<128x384xbf16, #tpu.memory_space<vmem>>, vector<128x384xbf16>
    %cst = arith.constant dense<0.000000e+00> : vector<256x384xf32>
    %2 = tpu.matmul %0, %1, %cst {dimension_numbers = #tpu.dot_dimension_numbers<[1], [0], [0], [1], [0, 0, 1, 1], [], []>} : vector<256x128xbf16>, vector<128x384xbf16>, vector<256x384xf32> -> vector<256x384xf32>
    %c0_3 = arith.constant 0 : index
    %c0_4 = arith.constant 0 : index
    %3 = vector.load %arg4[%c0_3, %c0_4] : memref<1x384xf32, #tpu.memory_space<vmem>>, vector<1x384xf32>
    %4 = vector.broadcast %3 : vector<1x384xf32> to vector<256x384xf32>
    %5 = arith.addf %2, %4 : vector<256x384xf32>
    %6 = arith.truncf %5 : vector<256x384xf32> to vector<256x384xbf16>
    %c0_5 = arith.constant 0 : index
    %c0_6 = arith.constant 0 : index
    %7 = vector.load %arg5[%c0_5, %c0_6] : memref<256x384xbf16, #tpu.memory_space<vmem>>, vector<256x384xbf16>
    tpu.vector_store %arg5[%c0_5, %c0_6], %6 {strides = array<i32>} : memref<256x384xbf16, #tpu.memory_space<vmem>>, vector<256x384xbf16>,
    return
  }
  func.func @transform_0(%arg0: i32, %arg1: i32) -> (i32, i32) {
    %c0_i32 = arith.constant 0 : i32
    %c0_i32_0 = arith.constant 0 : i32
    return %arg0, %c0_i32 : i32, i32
  }
  func.func @transform_1(%arg0: i32, %arg1: i32) -> (i32, i32) {
    %c0_i32 = arith.constant 0 : i32
    %c0_i32_0 = arith.constant 0 : i32
    return %c0_i32, %arg1 : i32, i32
  }
  func.func @transform_2(%arg0: i32, %arg1: i32) -> (i32, i32) {
    %c0_i32 = arith.constant 0 : i32
    %c0_i32_0 = arith.constant 0 : i32
    return %c0_i32, %arg1 : i32, i32
  }
  func.func @transform_3(%arg0: i32, %arg1: i32) -> (i32, i32) {
    %c0_i32 = arith.constant 0 : i32
    return %arg0, %arg1 : i32, i32
  }
}

module attributes {stable_mosaic.version = 11 : i64} {
  func.func @_attn_wo_ln_kernel(%arg0: i32, %arg1: i32, %arg2: memref<1x128x128xbf16, #tpu.memory_space<vmem>>, %arg3: memref<1x256x128xbf16, #tpu.memory_space<vmem>>, %arg4: memref<1x256x128xbf16, #tpu.memory_space<vmem>>, %arg5: memref<1x1x256xf32, #tpu.memory_space<vmem>>, %arg6: memref<1x128x128xbf16, #tpu.memory_space<vmem>>, %arg7: memref<4x32x128xbf16, #tpu.memory_space<vmem>>, %arg8: memref<1x128xf32, #tpu.memory_space<vmem>>, %arg9: memref<1x128xf32, #tpu.memory_space<vmem>>, %arg10: memref<1x128xf32, #tpu.memory_space<vmem>>, %arg11: memref<1x128x128xbf16, #tpu.memory_space<vmem>>) attributes {dimension_semantics = [#tpu.dimension_semantics<parallel>, #tpu.dimension_semantics<parallel>], iteration_bounds = array<i64: 2, 2>, scalar_prefetch = 0 : i64, scratch_operands = 0 : i64, tpu.core_type = #tpu.core_type<tc>, window_params = [{transform_indices = @transform_0, window_bounds = array<i64: 1, 128, 128>}, {transform_indices = @transform_1, window_bounds = array<i64: 1, 256, 128>}, {transform_indices = @transform_2, window_bounds = array<i64: 1, 256, 128>}, {transform_indices = @transform_3, window_bounds = array<i64: 1, 1, 256>}, {transform_indices = @transform_4, window_bounds = array<i64: 1, 128, 128>}, {pipeline_mode = #tpu.pipeline_mode<synchronous>, transform_indices = @transform_5, window_bounds = array<i64: 4, 32, 128>}, {pipeline_mode = #tpu.pipeline_mode<synchronous>, transform_indices = @transform_6, window_bounds = array<i64: 1, 128>}, {pipeline_mode = #tpu.pipeline_mode<synchronous>, transform_indices = @transform_7, window_bounds = array<i64: 1, 128>}, {pipeline_mode = #tpu.pipeline_mode<synchronous>, transform_indices = @transform_8, window_bounds = array<i64: 1, 128>}, {transform_indices = @transform_9, window_bounds = array<i64: 1, 128, 128>}]} {
    %c0 = arith.constant 0 : index
    %c0_0 = arith.constant 0 : index
    %c0_1 = arith.constant 0 : index
    %0 = vector.load %arg2[%c0, %c0_0, %c0_1] : memref<1x128x128xbf16, #tpu.memory_space<vmem>>, vector<1x128x128xbf16>
    %1 = vector.shape_cast %0 : vector<1x128x128xbf16> to vector<128x128xbf16>
    %c0_2 = arith.constant 0 : index
    %c0_3 = arith.constant 0 : index
    %c0_4 = arith.constant 0 : index
    %2 = vector.load %arg3[%c0_2, %c0_3, %c0_4] : memref<1x256x128xbf16, #tpu.memory_space<vmem>>, vector<1x256x128xbf16>
    %3 = vector.shape_cast %2 : vector<1x256x128xbf16> to vector<256x128xbf16>
    %c0_5 = arith.constant 0 : index
    %c0_6 = arith.constant 0 : index
    %c0_7 = arith.constant 0 : index
    %4 = vector.load %arg4[%c0_5, %c0_6, %c0_7] : memref<1x256x128xbf16, #tpu.memory_space<vmem>>, vector<1x256x128xbf16>
    %5 = vector.shape_cast %4 : vector<1x256x128xbf16> to vector<256x128xbf16>
    %c0_8 = arith.constant 0 : index
    %c0_9 = arith.constant 0 : index
    %c0_10 = arith.constant 0 : index
    %6 = vector.load %arg5[%c0_8, %c0_9, %c0_10] : memref<1x1x256xf32, #tpu.memory_space<vmem>>, vector<1x1x256xf32>
    %7 = vector.shape_cast %6 : vector<1x1x256xf32> to vector<1x256xf32>
    %cst = arith.constant 0.000000e+00 : f32
    %8 = vector.broadcast %cst : f32 to vector<128x128xf32>
    %9 = vector.extract_strided_slice %1 {offsets = [0, 0], sizes = [128, 32], strides = [1, 1]} : vector<128x128xbf16> to vector<128x32xbf16>
    %10 = vector.extract_strided_slice %3 {offsets = [0, 0], sizes = [256, 32], strides = [1, 1]} : vector<256x128xbf16> to vector<256x32xbf16>
    %11 = vector.extract_strided_slice %5 {offsets = [0, 0], sizes = [256, 32], strides = [1, 1]} : vector<256x128xbf16> to vector<256x32xbf16>
    %cst_11 = arith.constant dense<0.000000e+00> : vector<128x256xf32>
    %12 = tpu.matmul %9, %10, %cst_11 {dimension_numbers = #tpu.dot_dimension_numbers<[1], [1], [0], [0], [0, 0, 1, 0], [], []>} : vector<128x32xbf16>, vector<256x32xbf16>, vector<128x256xf32> -> vector<128x256xf32>
    %13 = vector.broadcast %7 : vector<1x256xf32> to vector<128x256xf32>
    %14 = arith.addf %12, %13 : vector<128x256xf32>
    %cst_12 = arith.constant dense<0xFF800000> : vector<128xf32>
    %15 = vector.multi_reduction <maximumf>, %14, %cst_12 [1] : vector<128x256xf32> to vector<128xf32>
    %16 = vector.shape_cast %15 : vector<128xf32> to vector<128x1xf32>
    %17 = vector.broadcast %16 : vector<128x1xf32> to vector<128x256xf32>
    %18 = arith.subf %14, %17 : vector<128x256xf32>
    %19 = math.exp %18 : vector<128x256xf32>
    %cst_13 = arith.constant dense<0.000000e+00> : vector<128xf32>
    %20 = vector.multi_reduction <add>, %19, %cst_13 [1] : vector<128x256xf32> to vector<128xf32>
    %21 = vector.shape_cast %20 : vector<128xf32> to vector<128x1xf32>
    %22 = vector.broadcast %21 : vector<128x1xf32> to vector<128x256xf32>
    %23 = arith.divf %19, %22 : vector<128x256xf32>
    %24 = arith.truncf %23 : vector<128x256xf32> to vector<128x256xbf16>
    %cst_14 = arith.constant dense<0.000000e+00> : vector<128x32xf32>
    %25 = tpu.matmul %24, %11, %cst_14 {dimension_numbers = #tpu.dot_dimension_numbers<[1], [0], [0], [1], [0, 0, 1, 1], [], []>} : vector<128x256xbf16>, vector<256x32xbf16>, vector<128x32xf32> -> vector<128x32xf32>
    %26 = arith.truncf %25 : vector<128x32xf32> to vector<128x32xbf16>
    %c0_15 = arith.constant 0 : index
    %c0_16 = arith.constant 0 : index
    %c0_17 = arith.constant 0 : index
    %27 = vector.load %arg7[%c0_15, %c0_16, %c0_17] : memref<4x32x128xbf16, #tpu.memory_space<vmem>>, vector<1x32x128xbf16>
    %28 = vector.shape_cast %27 : vector<1x32x128xbf16> to vector<32x128xbf16>
    %cst_18 = arith.constant dense<0.000000e+00> : vector<128x128xf32>
    %29 = tpu.matmul %26, %28, %cst_18 {dimension_numbers = #tpu.dot_dimension_numbers<[1], [0], [0], [1], [0, 0, 1, 1], [], []>} : vector<128x32xbf16>, vector<32x128xbf16>, vector<128x128xf32> -> vector<128x128xf32>
    %30 = arith.addf %8, %29 : vector<128x128xf32>
    %31 = vector.extract_strided_slice %1 {offsets = [0, 32], sizes = [128, 32], strides = [1, 1]} : vector<128x128xbf16> to vector<128x32xbf16>
    %32 = vector.extract_strided_slice %3 {offsets = [0, 32], sizes = [256, 32], strides = [1, 1]} : vector<256x128xbf16> to vector<256x32xbf16>
    %33 = vector.extract_strided_slice %5 {offsets = [0, 32], sizes = [256, 32], strides = [1, 1]} : vector<256x128xbf16> to vector<256x32xbf16>
    %cst_19 = arith.constant dense<0.000000e+00> : vector<128x256xf32>
    %34 = tpu.matmul %31, %32, %cst_19 {dimension_numbers = #tpu.dot_dimension_numbers<[1], [1], [0], [0], [0, 0, 1, 0], [], []>} : vector<128x32xbf16>, vector<256x32xbf16>, vector<128x256xf32> -> vector<128x256xf32>
    %35 = vector.broadcast %7 : vector<1x256xf32> to vector<128x256xf32>
    %36 = arith.addf %34, %35 : vector<128x256xf32>
    %cst_20 = arith.constant dense<0xFF800000> : vector<128xf32>
    %37 = vector.multi_reduction <maximumf>, %36, %cst_20 [1] : vector<128x256xf32> to vector<128xf32>
    %38 = vector.shape_cast %37 : vector<128xf32> to vector<128x1xf32>
    %39 = vector.broadcast %38 : vector<128x1xf32> to vector<128x256xf32>
    %40 = arith.subf %36, %39 : vector<128x256xf32>
    %41 = math.exp %40 : vector<128x256xf32>
    %cst_21 = arith.constant dense<0.000000e+00> : vector<128xf32>
    %42 = vector.multi_reduction <add>, %41, %cst_21 [1] : vector<128x256xf32> to vector<128xf32>
    %43 = vector.shape_cast %42 : vector<128xf32> to vector<128x1xf32>
    %44 = vector.broadcast %43 : vector<128x1xf32> to vector<128x256xf32>
    %45 = arith.divf %41, %44 : vector<128x256xf32>
    %46 = arith.truncf %45 : vector<128x256xf32> to vector<128x256xbf16>
    %cst_22 = arith.constant dense<0.000000e+00> : vector<128x32xf32>
    %47 = tpu.matmul %46, %33, %cst_22 {dimension_numbers = #tpu.dot_dimension_numbers<[1], [0], [0], [1], [0, 0, 1, 1], [], []>} : vector<128x256xbf16>, vector<256x32xbf16>, vector<128x32xf32> -> vector<128x32xf32>
    %48 = arith.truncf %47 : vector<128x32xf32> to vector<128x32xbf16>
    %c1 = arith.constant 1 : index
    %c0_23 = arith.constant 0 : index
    %c0_24 = arith.constant 0 : index
    %49 = vector.load %arg7[%c1, %c0_23, %c0_24] : memref<4x32x128xbf16, #tpu.memory_space<vmem>>, vector<1x32x128xbf16>
    %50 = vector.shape_cast %49 : vector<1x32x128xbf16> to vector<32x128xbf16>
    %cst_25 = arith.constant dense<0.000000e+00> : vector<128x128xf32>
    %51 = tpu.matmul %48, %50, %cst_25 {dimension_numbers = #tpu.dot_dimension_numbers<[1], [0], [0], [1], [0, 0, 1, 1], [], []>} : vector<128x32xbf16>, vector<32x128xbf16>, vector<128x128xf32> -> vector<128x128xf32>
    %52 = arith.addf %30, %51 : vector<128x128xf32>
    %53 = vector.extract_strided_slice %1 {offsets = [0, 64], sizes = [128, 32], strides = [1, 1]} : vector<128x128xbf16> to vector<128x32xbf16>
    %54 = vector.extract_strided_slice %3 {offsets = [0, 64], sizes = [256, 32], strides = [1, 1]} : vector<256x128xbf16> to vector<256x32xbf16>
    %55 = vector.extract_strided_slice %5 {offsets = [0, 64], sizes = [256, 32], strides = [1, 1]} : vector<256x128xbf16> to vector<256x32xbf16>
    %cst_26 = arith.constant dense<0.000000e+00> : vector<128x256xf32>
    %56 = tpu.matmul %53, %54, %cst_26 {dimension_numbers = #tpu.dot_dimension_numbers<[1], [1], [0], [0], [0, 0, 1, 0], [], []>} : vector<128x32xbf16>, vector<256x32xbf16>, vector<128x256xf32> -> vector<128x256xf32>
    %57 = vector.broadcast %7 : vector<1x256xf32> to vector<128x256xf32>
    %58 = arith.addf %56, %57 : vector<128x256xf32>
    %cst_27 = arith.constant dense<0xFF800000> : vector<128xf32>
    %59 = vector.multi_reduction <maximumf>, %58, %cst_27 [1] : vector<128x256xf32> to vector<128xf32>
    %60 = vector.shape_cast %59 : vector<128xf32> to vector<128x1xf32>
    %61 = vector.broadcast %60 : vector<128x1xf32> to vector<128x256xf32>
    %62 = arith.subf %58, %61 : vector<128x256xf32>
    %63 = math.exp %62 : vector<128x256xf32>
    %cst_28 = arith.constant dense<0.000000e+00> : vector<128xf32>
    %64 = vector.multi_reduction <add>, %63, %cst_28 [1] : vector<128x256xf32> to vector<128xf32>
    %65 = vector.shape_cast %64 : vector<128xf32> to vector<128x1xf32>
    %66 = vector.broadcast %65 : vector<128x1xf32> to vector<128x256xf32>
    %67 = arith.divf %63, %66 : vector<128x256xf32>
    %68 = arith.truncf %67 : vector<128x256xf32> to vector<128x256xbf16>
    %cst_29 = arith.constant dense<0.000000e+00> : vector<128x32xf32>
    %69 = tpu.matmul %68, %55, %cst_29 {dimension_numbers = #tpu.dot_dimension_numbers<[1], [0], [0], [1], [0, 0, 1, 1], [], []>} : vector<128x256xbf16>, vector<256x32xbf16>, vector<128x32xf32> -> vector<128x32xf32>
    %70 = arith.truncf %69 : vector<128x32xf32> to vector<128x32xbf16>
    %c2 = arith.constant 2 : index
    %c0_30 = arith.constant 0 : index
    %c0_31 = arith.constant 0 : index
    %71 = vector.load %arg7[%c2, %c0_30, %c0_31] : memref<4x32x128xbf16, #tpu.memory_space<vmem>>, vector<1x32x128xbf16>
    %72 = vector.shape_cast %71 : vector<1x32x128xbf16> to vector<32x128xbf16>
    %cst_32 = arith.constant dense<0.000000e+00> : vector<128x128xf32>
    %73 = tpu.matmul %70, %72, %cst_32 {dimension_numbers = #tpu.dot_dimension_numbers<[1], [0], [0], [1], [0, 0, 1, 1], [], []>} : vector<128x32xbf16>, vector<32x128xbf16>, vector<128x128xf32> -> vector<128x128xf32>
    %74 = arith.addf %52, %73 : vector<128x128xf32>
    %75 = vector.extract_strided_slice %1 {offsets = [0, 96], sizes = [128, 32], strides = [1, 1]} : vector<128x128xbf16> to vector<128x32xbf16>
    %76 = vector.extract_strided_slice %3 {offsets = [0, 96], sizes = [256, 32], strides = [1, 1]} : vector<256x128xbf16> to vector<256x32xbf16>
    %77 = vector.extract_strided_slice %5 {offsets = [0, 96], sizes = [256, 32], strides = [1, 1]} : vector<256x128xbf16> to vector<256x32xbf16>
    %cst_33 = arith.constant dense<0.000000e+00> : vector<128x256xf32>
    %78 = tpu.matmul %75, %76, %cst_33 {dimension_numbers = #tpu.dot_dimension_numbers<[1], [1], [0], [0], [0, 0, 1, 0], [], []>} : vector<128x32xbf16>, vector<256x32xbf16>, vector<128x256xf32> -> vector<128x256xf32>
    %79 = vector.broadcast %7 : vector<1x256xf32> to vector<128x256xf32>
    %80 = arith.addf %78, %79 : vector<128x256xf32>
    %cst_34 = arith.constant dense<0xFF800000> : vector<128xf32>
    %81 = vector.multi_reduction <maximumf>, %80, %cst_34 [1] : vector<128x256xf32> to vector<128xf32>
    %82 = vector.shape_cast %81 : vector<128xf32> to vector<128x1xf32>
    %83 = vector.broadcast %82 : vector<128x1xf32> to vector<128x256xf32>
    %84 = arith.subf %80, %83 : vector<128x256xf32>
    %85 = math.exp %84 : vector<128x256xf32>
    %cst_35 = arith.constant dense<0.000000e+00> : vector<128xf32>
    %86 = vector.multi_reduction <add>, %85, %cst_35 [1] : vector<128x256xf32> to vector<128xf32>
    %87 = vector.shape_cast %86 : vector<128xf32> to vector<128x1xf32>
    %88 = vector.broadcast %87 : vector<128x1xf32> to vector<128x256xf32>
    %89 = arith.divf %85, %88 : vector<128x256xf32>
    %90 = arith.truncf %89 : vector<128x256xf32> to vector<128x256xbf16>
    %cst_36 = arith.constant dense<0.000000e+00> : vector<128x32xf32>
    %91 = tpu.matmul %90, %77, %cst_36 {dimension_numbers = #tpu.dot_dimension_numbers<[1], [0], [0], [1], [0, 0, 1, 1], [], []>} : vector<128x256xbf16>, vector<256x32xbf16>, vector<128x32xf32> -> vector<128x32xf32>
    %92 = arith.truncf %91 : vector<128x32xf32> to vector<128x32xbf16>
    %c3 = arith.constant 3 : index
    %c0_37 = arith.constant 0 : index
    %c0_38 = arith.constant 0 : index
    %93 = vector.load %arg7[%c3, %c0_37, %c0_38] : memref<4x32x128xbf16, #tpu.memory_space<vmem>>, vector<1x32x128xbf16>
    %94 = vector.shape_cast %93 : vector<1x32x128xbf16> to vector<32x128xbf16>
    %cst_39 = arith.constant dense<0.000000e+00> : vector<128x128xf32>
    %95 = tpu.matmul %92, %94, %cst_39 {dimension_numbers = #tpu.dot_dimension_numbers<[1], [0], [0], [1], [0, 0, 1, 1], [], []>} : vector<128x32xbf16>, vector<32x128xbf16>, vector<128x128xf32> -> vector<128x128xf32>
    %96 = arith.addf %74, %95 : vector<128x128xf32>
    %c0_40 = arith.constant 0 : index
    %c0_41 = arith.constant 0 : index
    %97 = vector.load %arg8[%c0_40, %c0_41] : memref<1x128xf32, #tpu.memory_space<vmem>>, vector<1x128xf32>
    %98 = vector.broadcast %97 : vector<1x128xf32> to vector<128x128xf32>
    %99 = arith.addf %96, %98 : vector<128x128xf32>
    %c0_42 = arith.constant 0 : index
    %c0_43 = arith.constant 0 : index
    %c0_44 = arith.constant 0 : index
    %100 = vector.load %arg6[%c0_42, %c0_43, %c0_44] : memref<1x128x128xbf16, #tpu.memory_space<vmem>>, vector<1x128x128xbf16>
    %101 = vector.shape_cast %100 : vector<1x128x128xbf16> to vector<128x128xbf16>
    %102 = arith.extf %101 : vector<128x128xbf16> to vector<128x128xf32>
    %103 = arith.addf %99, %102 : vector<128x128xf32>
    %cst_45 = arith.constant dense<0.000000e+00> : vector<128xf32>
    %104 = vector.multi_reduction <add>, %103, %cst_45 [1] : vector<128x128xf32> to vector<128xf32>
    %105 = vector.shape_cast %104 : vector<128xf32> to vector<128x1xf32>
    %cst_46 = arith.constant 1.280000e+02 : f32
    %106 = vector.broadcast %cst_46 : f32 to vector<128x1xf32>
    %107 = arith.divf %105, %106 : vector<128x1xf32>
    %108 = vector.broadcast %107 : vector<128x1xf32> to vector<128x128xf32>
    %109 = arith.subf %103, %108 : vector<128x128xf32>
    %110 = arith.mulf %109, %109 : vector<128x128xf32>
    %cst_47 = arith.constant dense<0.000000e+00> : vector<128xf32>
    %111 = vector.multi_reduction <add>, %110, %cst_47 [1] : vector<128x128xf32> to vector<128xf32>
    %112 = vector.shape_cast %111 : vector<128xf32> to vector<128x1xf32>
    %cst_48 = arith.constant 1.280000e+02 : f32
    %113 = vector.broadcast %cst_48 : f32 to vector<128x1xf32>
    %114 = arith.divf %112, %113 : vector<128x1xf32>
    %cst_49 = arith.constant 9.99999974E-6 : f32
    %115 = vector.broadcast %cst_49 : f32 to vector<128x1xf32>
    %116 = arith.addf %114, %115 : vector<128x1xf32>
    %117 = math.rsqrt %116 : vector<128x1xf32>
    %118 = vector.broadcast %117 : vector<128x1xf32> to vector<128x128xf32>
    %119 = arith.mulf %109, %118 : vector<128x128xf32>
    %c0_50 = arith.constant 0 : index
    %c0_51 = arith.constant 0 : index
    %120 = vector.load %arg9[%c0_50, %c0_51] : memref<1x128xf32, #tpu.memory_space<vmem>>, vector<1x128xf32>
    %121 = vector.broadcast %120 : vector<1x128xf32> to vector<128x128xf32>
    %122 = arith.mulf %119, %121 : vector<128x128xf32>
    %c0_52 = arith.constant 0 : index
    %c0_53 = arith.constant 0 : index
    %123 = vector.load %arg10[%c0_52, %c0_53] : memref<1x128xf32, #tpu.memory_space<vmem>>, vector<1x128xf32>
    %124 = vector.broadcast %123 : vector<1x128xf32> to vector<128x128xf32>
    %125 = arith.addf %122, %124 : vector<128x128xf32>
    %126 = arith.truncf %125 : vector<128x128xf32> to vector<128x128xbf16>
    %c0_54 = arith.constant 0 : index
    %c0_55 = arith.constant 0 : index
    %c0_56 = arith.constant 0 : index
    %127 = vector.load %arg11[%c0_54, %c0_55, %c0_56] : memref<1x128x128xbf16, #tpu.memory_space<vmem>>, vector<1x128x128xbf16>
    %128 = vector.shape_cast %127 : vector<1x128x128xbf16> to vector<128x128xbf16>
    %129 = vector.shape_cast %126 : vector<128x128xbf16> to vector<1x128x128xbf16>
    tpu.vector_store %arg11[%c0_54, %c0_55, %c0_56], %129 {strides = array<i32>} : memref<1x128x128xbf16, #tpu.memory_space<vmem>>, vector<1x128x128xbf16>,
    return
  }
  func.func @transform_0(%arg0: i32, %arg1: i32) -> (i32, i32, i32) {
    %c0_i32 = arith.constant 0 : i32
    %c0_i32_0 = arith.constant 0 : i32
    return %arg0, %arg1, %c0_i32 : i32, i32, i32
  }
  func.func @transform_1(%arg0: i32, %arg1: i32) -> (i32, i32, i32) {
    %c0_i32 = arith.constant 0 : i32
    %c1_i32 = arith.constant 1 : i32
    %c0_i32_0 = arith.constant 0 : i32
    return %arg0, %c0_i32, %c1_i32 : i32, i32, i32
  }
  func.func @transform_2(%arg0: i32, %arg1: i32) -> (i32, i32, i32) {
    %c0_i32 = arith.constant 0 : i32
    %c2_i32 = arith.constant 2 : i32
    %c0_i32_0 = arith.constant 0 : i32
    return %arg0, %c0_i32, %c2_i32 : i32, i32, i32
  }
  func.func @transform_3(%arg0: i32, %arg1: i32) -> (i32, i32, i32) {
    %c0_i32 = arith.constant 0 : i32
    %c0_i32_0 = arith.constant 0 : i32
    %c0_i32_1 = arith.constant 0 : i32
    return %arg0, %c0_i32, %c0_i32_0 : i32, i32, i32
  }
  func.func @transform_4(%arg0: i32, %arg1: i32) -> (i32, i32, i32) {
    %c0_i32 = arith.constant 0 : i32
    %c0_i32_0 = arith.constant 0 : i32
    return %arg0, %arg1, %c0_i32 : i32, i32, i32
  }
  func.func @transform_5(%arg0: i32, %arg1: i32) -> (i32, i32, i32) {
    %c0_i32 = arith.constant 0 : i32
    %c0_i32_0 = arith.constant 0 : i32
    %c0_i32_1 = arith.constant 0 : i32
    %c0_i32_2 = arith.constant 0 : i32
    return %c0_i32, %c0_i32_0, %c0_i32_1 : i32, i32, i32
  }
  func.func @transform_6(%arg0: i32, %arg1: i32) -> (i32, i32) {
    %c0_i32 = arith.constant 0 : i32
    %c0_i32_0 = arith.constant 0 : i32
    %c0_i32_1 = arith.constant 0 : i32
    return %c0_i32, %c0_i32_0 : i32, i32
  }
  func.func @transform_7(%arg0: i32, %arg1: i32) -> (i32, i32) {
    %c0_i32 = arith.constant 0 : i32
    %c0_i32_0 = arith.constant 0 : i32
    %c0_i32_1 = arith.constant 0 : i32
    return %c0_i32, %c0_i32_0 : i32, i32
  }
  func.func @transform_8(%arg0: i32, %arg1: i32) -> (i32, i32) {
    %c0_i32 = arith.constant 0 : i32
    %c0_i32_0 = arith.constant 0 : i32
    %c0_i32_1 = arith.constant 0 : i32
    return %c0_i32, %c0_i32_0 : i32, i32
  }
  func.func @transform_9(%arg0: i32, %arg1: i32) -> (i32, i32, i32) {
    %c0_i32 = arith.constant 0 : i32
    %c0_i32_0 = arith.constant 0 : i32
    return %arg0, %arg1, %c0_i32 : i32, i32, i32
  }
}

module attributes {stable_mosaic.version = 11 : i64} {
  func.func @_ffn_ln_kernel(%arg0: i32, %arg1: memref<128x128xbf16, #tpu.memory_space<vmem>>, %arg2: memref<128x512xbf16, #tpu.memory_space<vmem>>, %arg3: memref<1x512xf32, #tpu.memory_space<vmem>>, %arg4: memref<512x128xbf16, #tpu.memory_space<vmem>>, %arg5: memref<1x128xf32, #tpu.memory_space<vmem>>, %arg6: memref<1x128xf32, #tpu.memory_space<vmem>>, %arg7: memref<1x128xf32, #tpu.memory_space<vmem>>, %arg8: memref<128x128xbf16, #tpu.memory_space<vmem>>, %arg9: memref<128x512xbf16, #tpu.memory_space<vmem>>) attributes {dimension_semantics = [#tpu.dimension_semantics<parallel>], iteration_bounds = array<i64: 4>, scalar_prefetch = 0 : i64, scratch_operands = 1 : i64, tpu.core_type = #tpu.core_type<tc>, window_params = [{transform_indices = @transform_0, window_bounds = array<i64: 128, 128>}, {pipeline_mode = #tpu.pipeline_mode<synchronous>, transform_indices = @transform_1, window_bounds = array<i64: 128, 512>}, {pipeline_mode = #tpu.pipeline_mode<synchronous>, transform_indices = @transform_2, window_bounds = array<i64: 1, 512>}, {pipeline_mode = #tpu.pipeline_mode<synchronous>, transform_indices = @transform_3, window_bounds = array<i64: 512, 128>}, {pipeline_mode = #tpu.pipeline_mode<synchronous>, transform_indices = @transform_4, window_bounds = array<i64: 1, 128>}, {pipeline_mode = #tpu.pipeline_mode<synchronous>, transform_indices = @transform_5, window_bounds = array<i64: 1, 128>}, {pipeline_mode = #tpu.pipeline_mode<synchronous>, transform_indices = @transform_6, window_bounds = array<i64: 1, 128>}, {transform_indices = @transform_7, window_bounds = array<i64: 128, 128>}]} {
    %c0 = arith.constant 0 : index
    %c0_0 = arith.constant 0 : index
    %0 = vector.load %arg1[%c0, %c0_0] : memref<128x128xbf16, #tpu.memory_space<vmem>>, vector<128x128xbf16>
    %c0_1 = arith.constant 0 : index
    %c0_2 = arith.constant 0 : index
    %1 = vector.load %arg2[%c0_1, %c0_2] : memref<128x512xbf16, #tpu.memory_space<vmem>>, vector<128x512xbf16>
    %cst = arith.constant dense<0.000000e+00> : vector<128x512xf32>
    %2 = tpu.matmul %0, %1, %cst {dimension_numbers = #tpu.dot_dimension_numbers<[1], [0], [0], [1], [0, 0, 1, 1], [], []>} : vector<128x128xbf16>, vector<128x512xbf16>, vector<128x512xf32> -> vector<128x512xf32>
    %c0_3 = arith.constant 0 : index
    %c0_4 = arith.constant 0 : index
    %3 = vector.load %arg3[%c0_3, %c0_4] : memref<1x512xf32, #tpu.memory_space<vmem>>, vector<1x512xf32>
    %4 = vector.broadcast %3 : vector<1x512xf32> to vector<128x512xf32>
    %5 = arith.addf %2, %4 : vector<128x512xf32>
    %cst_5 = arith.constant 0.000000e+00 : f32
    %6 = vector.broadcast %cst_5 : f32 to vector<128x512xf32>
    %7 = arith.maximumf %5, %6 : vector<128x512xf32>
    %8 = arith.truncf %7 : vector<128x512xf32> to vector<128x512xbf16>
    %c0_6 = arith.constant 0 : index
    %c0_7 = arith.constant 0 : index
    %9 = vector.load %arg9[%c0_6, %c0_7] : memref<128x512xbf16, #tpu.memory_space<vmem>>, vector<128x512xbf16>
    tpu.vector_store %arg9[%c0_6, %c0_7], %8 {strides = array<i32>} : memref<128x512xbf16, #tpu.memory_space<vmem>>, vector<128x512xbf16>,
    %c0_8 = arith.constant 0 : index
    %c0_9 = arith.constant 0 : index
    %10 = vector.load %arg9[%c0_8, %c0_9] : memref<128x512xbf16, #tpu.memory_space<vmem>>, vector<128x512xbf16>
    %c0_10 = arith.constant 0 : index
    %c0_11 = arith.constant 0 : index
    %11 = vector.load %arg4[%c0_10, %c0_11] : memref<512x128xbf16, #tpu.memory_space<vmem>>, vector<512x128xbf16>
    %cst_12 = arith.constant dense<0.000000e+00> : vector<128x128xf32>
    %12 = tpu.matmul %10, %11, %cst_12 {dimension_numbers = #tpu.dot_dimension_numbers<[1], [0], [0], [1], [0, 0, 1, 1], [], []>} : vector<128x512xbf16>, vector<512x128xbf16>, vector<128x128xf32> -> vector<128x128xf32>
    %c0_13 = arith.constant 0 : index
    %c0_14 = arith.constant 0 : index
    %13 = vector.load %arg5[%c0_13, %c0_14] : memref<1x128xf32, #tpu.memory_space<vmem>>, vector<1x128xf32>
    %14 = vector.broadcast %13 : vector<1x128xf32> to vector<128x128xf32>
    %15 = arith.addf %12, %14 : vector<128x128xf32>
    %c0_15 = arith.constant 0 : index
    %c0_16 = arith.constant 0 : index
    %16 = vector.load %arg1[%c0_15, %c0_16] : memref<128x128xbf16, #tpu.memory_space<vmem>>, vector<128x128xbf16>
    %17 = arith.extf %16 : vector<128x128xbf16> to vector<128x128xf32>
    %18 = arith.addf %15, %17 : vector<128x128xf32>
    %cst_17 = arith.constant dense<0.000000e+00> : vector<128xf32>
    %19 = vector.multi_reduction <add>, %18, %cst_17 [1] : vector<128x128xf32> to vector<128xf32>
    %20 = vector.shape_cast %19 : vector<128xf32> to vector<128x1xf32>
    %cst_18 = arith.constant 1.280000e+02 : f32
    %21 = vector.broadcast %cst_18 : f32 to vector<128x1xf32>
    %22 = arith.divf %20, %21 : vector<128x1xf32>
    %23 = vector.broadcast %22 : vector<128x1xf32> to vector<128x128xf32>
    %24 = arith.subf %18, %23 : vector<128x128xf32>
    %25 = arith.mulf %24, %24 : vector<128x128xf32>
    %cst_19 = arith.constant dense<0.000000e+00> : vector<128xf32>
    %26 = vector.multi_reduction <add>, %25, %cst_19 [1] : vector<128x128xf32> to vector<128xf32>
    %27 = vector.shape_cast %26 : vector<128xf32> to vector<128x1xf32>
    %cst_20 = arith.constant 1.280000e+02 : f32
    %28 = vector.broadcast %cst_20 : f32 to vector<128x1xf32>
    %29 = arith.divf %27, %28 : vector<128x1xf32>
    %cst_21 = arith.constant 9.99999974E-6 : f32
    %30 = vector.broadcast %cst_21 : f32 to vector<128x1xf32>
    %31 = arith.addf %29, %30 : vector<128x1xf32>
    %32 = math.rsqrt %31 : vector<128x1xf32>
    %33 = vector.broadcast %32 : vector<128x1xf32> to vector<128x128xf32>
    %34 = arith.mulf %24, %33 : vector<128x128xf32>
    %c0_22 = arith.constant 0 : index
    %c0_23 = arith.constant 0 : index
    %35 = vector.load %arg6[%c0_22, %c0_23] : memref<1x128xf32, #tpu.memory_space<vmem>>, vector<1x128xf32>
    %36 = vector.broadcast %35 : vector<1x128xf32> to vector<128x128xf32>
    %37 = arith.mulf %34, %36 : vector<128x128xf32>
    %c0_24 = arith.constant 0 : index
    %c0_25 = arith.constant 0 : index
    %38 = vector.load %arg7[%c0_24, %c0_25] : memref<1x128xf32, #tpu.memory_space<vmem>>, vector<1x128xf32>
    %39 = vector.broadcast %38 : vector<1x128xf32> to vector<128x128xf32>
    %40 = arith.addf %37, %39 : vector<128x128xf32>
    %41 = arith.truncf %40 : vector<128x128xf32> to vector<128x128xbf16>
    %c0_26 = arith.constant 0 : index
    %c0_27 = arith.constant 0 : index
    %42 = vector.load %arg8[%c0_26, %c0_27] : memref<128x128xbf16, #tpu.memory_space<vmem>>, vector<128x128xbf16>
    tpu.vector_store %arg8[%c0_26, %c0_27], %41 {strides = array<i32>} : memref<128x128xbf16, #tpu.memory_space<vmem>>, vector<128x128xbf16>,
    return
  }
  func.func @transform_0(%arg0: i32) -> (i32, i32) {
    %c0_i32 = arith.constant 0 : i32
    %c0_i32_0 = arith.constant 0 : i32
    return %arg0, %c0_i32 : i32, i32
  }
  func.func @transform_1(%arg0: i32) -> (i32, i32) {
    %c0_i32 = arith.constant 0 : i32
    %c0_i32_0 = arith.constant 0 : i32
    %c0_i32_1 = arith.constant 0 : i32
    return %c0_i32, %c0_i32_0 : i32, i32
  }
  func.func @transform_2(%arg0: i32) -> (i32, i32) {
    %c0_i32 = arith.constant 0 : i32
    %c0_i32_0 = arith.constant 0 : i32
    %c0_i32_1 = arith.constant 0 : i32
    return %c0_i32, %c0_i32_0 : i32, i32
  }
  func.func @transform_3(%arg0: i32) -> (i32, i32) {
    %c0_i32 = arith.constant 0 : i32
    %c0_i32_0 = arith.constant 0 : i32
    %c0_i32_1 = arith.constant 0 : i32
    return %c0_i32, %c0_i32_0 : i32, i32
  }
  func.func @transform_4(%arg0: i32) -> (i32, i32) {
    %c0_i32 = arith.constant 0 : i32
    %c0_i32_0 = arith.constant 0 : i32
    %c0_i32_1 = arith.constant 0 : i32
    return %c0_i32, %c0_i32_0 : i32, i32
  }
  func.func @transform_5(%arg0: i32) -> (i32, i32) {
    %c0_i32 = arith.constant 0 : i32
    %c0_i32_0 = arith.constant 0 : i32
    %c0_i32_1 = arith.constant 0 : i32
    return %c0_i32, %c0_i32_0 : i32, i32
  }
  func.func @transform_6(%arg0: i32) -> (i32, i32) {
    %c0_i32 = arith.constant 0 : i32
    %c0_i32_0 = arith.constant 0 : i32
    %c0_i32_1 = arith.constant 0 : i32
    return %c0_i32, %c0_i32_0 : i32, i32
  }
  func.func @transform_7(%arg0: i32) -> (i32, i32) {
    %c0_i32 = arith.constant 0 : i32
    %c0_i32_0 = arith.constant 0 : i32
    return %arg0, %c0_i32 : i32, i32
  }
}

module attributes {stable_mosaic.version = 11 : i64} {
  func.func @_linear_kernel(%arg0: i32, %arg1: i32, %arg2: memref<256x128xbf16, #tpu.memory_space<vmem>>, %arg3: memref<128x256xbf16, #tpu.memory_space<vmem>>, %arg4: memref<1x256xf32, #tpu.memory_space<vmem>>, %arg5: memref<256x256xf32, #tpu.memory_space<vmem>>) attributes {dimension_semantics = [#tpu.dimension_semantics<parallel>, #tpu.dimension_semantics<parallel>], iteration_bounds = array<i64: 2, 1>, scalar_prefetch = 0 : i64, scratch_operands = 0 : i64, tpu.core_type = #tpu.core_type<tc>, window_params = [{transform_indices = @transform_0, window_bounds = array<i64: 256, 128>}, {transform_indices = @transform_1, window_bounds = array<i64: 128, 256>}, {transform_indices = @transform_2, window_bounds = array<i64: 1, 256>}, {transform_indices = @transform_3, window_bounds = array<i64: 256, 256>}]} {
    %c0 = arith.constant 0 : index
    %c0_0 = arith.constant 0 : index
    %0 = vector.load %arg2[%c0, %c0_0] : memref<256x128xbf16, #tpu.memory_space<vmem>>, vector<256x128xbf16>
    %c0_1 = arith.constant 0 : index
    %c0_2 = arith.constant 0 : index
    %1 = vector.load %arg3[%c0_1, %c0_2] : memref<128x256xbf16, #tpu.memory_space<vmem>>, vector<128x256xbf16>
    %cst = arith.constant dense<0.000000e+00> : vector<256x256xf32>
    %2 = tpu.matmul %0, %1, %cst {dimension_numbers = #tpu.dot_dimension_numbers<[1], [0], [0], [1], [0, 0, 1, 1], [], []>} : vector<256x128xbf16>, vector<128x256xbf16>, vector<256x256xf32> -> vector<256x256xf32>
    %c0_3 = arith.constant 0 : index
    %c0_4 = arith.constant 0 : index
    %3 = vector.load %arg4[%c0_3, %c0_4] : memref<1x256xf32, #tpu.memory_space<vmem>>, vector<1x256xf32>
    %4 = vector.broadcast %3 : vector<1x256xf32> to vector<256x256xf32>
    %5 = arith.addf %2, %4 : vector<256x256xf32>
    %c0_5 = arith.constant 0 : index
    %c0_6 = arith.constant 0 : index
    %6 = vector.load %arg5[%c0_5, %c0_6] : memref<256x256xf32, #tpu.memory_space<vmem>>, vector<256x256xf32>
    tpu.vector_store %arg5[%c0_5, %c0_6], %5 {strides = array<i32>} : memref<256x256xf32, #tpu.memory_space<vmem>>, vector<256x256xf32>,
    return
  }
  func.func @transform_0(%arg0: i32, %arg1: i32) -> (i32, i32) {
    %c0_i32 = arith.constant 0 : i32
    %c0_i32_0 = arith.constant 0 : i32
    return %arg0, %c0_i32 : i32, i32
  }
  func.func @transform_1(%arg0: i32, %arg1: i32) -> (i32, i32) {
    %c0_i32 = arith.constant 0 : i32
    %c0_i32_0 = arith.constant 0 : i32
    return %c0_i32, %arg1 : i32, i32
  }
  func.func @transform_2(%arg0: i32, %arg1: i32) -> (i32, i32) {
    %c0_i32 = arith.constant 0 : i32
    %c0_i32_0 = arith.constant 0 : i32
    return %c0_i32, %arg1 : i32, i32
  }
  func.func @transform_3(%arg0: i32, %arg1: i32) -> (i32, i32) {
    %c0_i32 = arith.constant 0 : i32
    return %arg0, %arg1 : i32, i32
  }
}

</mosaic_0001>

<llo_original>
// kernel: language_model_forward.8
$region0: #{language_model_forward.8}
  #allocation0 [shape = 'u32[]', space=smem, size = 0x4, offset = 0x4, fixed_abs, tag = 'smem constant byte address 0x4 - core index']
  #allocation1 [shape = 'u32[144,128]{1,0:T(1,128)}', space=vmem, size = 0x12000, scoped, tag = 'internal scratch']
  %s0 = inlined_call_operand.vmem [shape: bf16[2,256,128], index: 0, kind: input, shape index: {}]
  %s1 = inlined_call_operand.vmem [shape: f32[256,128], index: 1, kind: input, shape index: {}]
  %s2 = inlined_call_operand.vmem [shape: f32[1,128], index: 2, kind: input, shape index: {}]
  %s3 = inlined_call_operand.vmem [shape: f32[1,128], index: 3, kind: input, shape index: {}]
  %s4 = inlined_call_operand.vmem [shape: bf16[2,256,128], index: 4, kind: output, shape index: {}]
  %s5 = sld [smem:[#allocation0]]
  $region49: #{language_model_forward.8} parent=0
    _
  %s7 = ssub.s32 1, %s5
  %s8 = scalar_select 0, %s7, %s5
  loop: start=0, step=1, limit=4
  $region2: #{language_model_forward.8} parent=0 // loop_pre_header
    _
  $region3: #{language_model_forward.8} parent=0 // loop_header
    %s10 = sphi 0, %s14
    %p11 = scmp.ge.s32.totalorder %s10, 4
    %s17 = sphi 0, %s29
    %s18 = sphi 0, %s25
    %s19 = sphi 0, %s17
    %s20 = sphi 0, %s18
    %s21 = sphi 0, %s19
    %s22 = sphi 0, %s20
    %s34 = sphi 0, %s36
    %s37 = sphi 0, %s34
    %s38 = sphi 0, %s37
    %s54 = sphi 0, %s38
    %s60 = sphi 0, %s62
    %s63 = sphi 0, %s60
    %s64 = sphi 0, %s63
    %s80 = sphi 0, %s64
    %s84 = sphi 0, %s84
    %s86 = sphi 0, %s84
    %s87 = sphi 0, %s86
    %s101 = sphi 0, %s87
    %s105 = sphi 0, %s105
    %s107 = sphi 0, %s105
    %s108 = sphi 0, %s107
    %s122 = sphi 0, %s108
    %s130 = sphi 0, %s132
    %s133 = sphi 0, %s130
    %s134 = sphi 0, %s133
    %s150 = sphi 0, %s134
  $region4: #{language_model_forward.8} parent=0 // loop_header_branch
    %13 = sbr.rel (%p11) target = $region8
  $region5: #{language_model_forward.8} parent=0 // loop_body
    %s15 = ssub.s32 %s10, 1
    %s16 = ssub.s32 %s10, 2
    %s23 = sadd.s32 1, %s18
    %p24 = scmp.ge.s32.totalorder %s23, 1
    %s25 = scalar_select %p24, 0, %s23
    %s26 = sadd.s32 1, %s17
    %s27 = scalar_select %p24, %s26, %s17
    %p28 = scmp.ge.s32.totalorder %s27, 2
    %s29 = scalar_select %p28, 0, %s27
    %s30 = ssub.s32 %s17, %s29
    %s31 = ssub.s32 %s18, %s25
    %s32 = sor.u32 %s30, %s31
    %p33 = scmp.eq.s32.totalorder %s32, 0
    %s35 = sadd.s32 %s34, 1
    %s36 = scalar_select %p33, %s34, %s35
    %p39 = pneg %p33
    %p40 = scmp.eq.s32.totalorder %s10, 1
    %p41 = por %p39, %p40
    %p42 = scmp.ne.s32.totalorder %s34, %s37
    %p43 = scmp.eq.s32.totalorder %s10, 0
    %p44 = por %p42, %p43
    %p45 = scmp.ne.s32.totalorder %s34, %s37
    %p46 = scmp.eq.s32.totalorder %s15, 1
    %p47 = por %p45, %p46
    %p48 = scmp.ne.s32.totalorder %s37, %s38
    %p49 = scmp.eq.s32.totalorder %s15, 0
    %p50 = por %p48, %p49
    %p51 = scmp.ne.s32.totalorder %s37, %s38
    %p52 = scmp.eq.s32.totalorder %s16, 1
    %p53 = por %p51, %p52
    %p55 = scmp.ne.s32.totalorder %s38, %s54
    %p56 = scmp.eq.s32.totalorder %s16, 0
    %p57 = por %p55, %p56
    %s58 = ssub.s32 %s18, %s25
    %p59 = scmp.eq.s32.totalorder %s58, 0
    %s61 = sadd.s32 %s60, 1
    %s62 = scalar_select %p59, %s60, %s61
    %p65 = pneg %p59
    %p66 = scmp.eq.s32.totalorder %s10, 1
    %p67 = por %p65, %p66
    %p68 = scmp.ne.s32.totalorder %s60, %s63
    %p69 = scmp.eq.s32.totalorder %s10, 0
    %p70 = por %p68, %p69
    %p71 = scmp.ne.s32.totalorder %s60, %s63
    %p72 = scmp.eq.s32.totalorder %s15, 1
    %p73 = por %p71, %p72
    %p74 = scmp.ne.s32.totalorder %s63, %s64
    %p75 = scmp.eq.s32.totalorder %s15, 0
    %p76 = por %p74, %p75
    %p77 = scmp.ne.s32.totalorder %s63, %s64
    %p78 = scmp.eq.s32.totalorder %s16, 1
    %p79 = por %p77, %p78
    %p81 = scmp.ne.s32.totalorder %s64, %s80
    %p82 = scmp.eq.s32.totalorder %s16, 0
    %p83 = por %p81, %p82
    %s85 = sadd.s32 %s84, 1
    %p88 = scmp.eq.s32.totalorder %s10, 1
    %p89 = scmp.ne.s32.totalorder %s84, %s86
    %p90 = scmp.eq.s32.totalorder %s10, 0
    %p91 = por %p89, %p90
    %p92 = scmp.ne.s32.totalorder %s84, %s86
    %p93 = scmp.eq.s32.totalorder %s15, 1
    %p94 = por %p92, %p93
    %p95 = scmp.ne.s32.totalorder %s86, %s87
    %p96 = scmp.eq.s32.totalorder %s15, 0
    %p97 = por %p95, %p96
    %p98 = scmp.ne.s32.totalorder %s86, %s87
    %p99 = scmp.eq.s32.totalorder %s16, 1
    %p100 = por %p98, %p99
    %p102 = scmp.ne.s32.totalorder %s87, %s101
    %p103 = scmp.eq.s32.totalorder %s16, 0
    %p104 = por %p102, %p103
    %s106 = sadd.s32 %s105, 1
    %p109 = scmp.eq.s32.totalorder %s10, 1
    %p110 = scmp.ne.s32.totalorder %s105, %s107
    %p111 = scmp.eq.s32.totalorder %s10, 0
    %p112 = por %p110, %p111
    %p113 = scmp.ne.s32.totalorder %s105, %s107
    %p114 = scmp.eq.s32.totalorder %s15, 1
    %p115 = por %p113, %p114
    %p116 = scmp.ne.s32.totalorder %s107, %s108
    %p117 = scmp.eq.s32.totalorder %s15, 0
    %p118 = por %p116, %p117
    %p119 = scmp.ne.s32.totalorder %s107, %s108
    %p120 = scmp.eq.s32.totalorder %s16, 1
    %p121 = por %p119, %p120
    %p123 = scmp.ne.s32.totalorder %s108, %s122
    %p124 = scmp.eq.s32.totalorder %s16, 0
    %p125 = por %p123, %p124
    %s126 = ssub.s32 %s17, %s29
    %s127 = ssub.s32 %s18, %s25
    %s128 = sor.u32 %s126, %s127
    %p129 = scmp.eq.s32.totalorder %s128, 0
    %s131 = sadd.s32 %s130, 1
    %s132 = scalar_select %p129, %s130, %s131
    %p135 = pneg %p129
    %p136 = scmp.eq.s32.totalorder %s10, 1
    %p137 = por %p135, %p136
    %p138 = scmp.ne.s32.totalorder %s130, %s133
    %p139 = scmp.eq.s32.totalorder %s10, 0
    %p140 = por %p138, %p139
    %p141 = scmp.ne.s32.totalorder %s130, %s133
    %p142 = scmp.eq.s32.totalorder %s15, 1
    %p143 = por %p141, %p142
    %p144 = scmp.ne.s32.totalorder %s133, %s134
    %p145 = scmp.eq.s32.totalorder %s15, 0
    %p146 = por %p144, %p145
    %p147 = scmp.ne.s32.totalorder %s133, %s134
    %p148 = scmp.eq.s32.totalorder %s16, 1
    %p149 = por %p147, %p148
    %p151 = scmp.ne.s32.totalorder %s134, %s150
    %p152 = scmp.eq.s32.totalorder %s16, 0
    %p153 = por %p151, %p152
    %p154 = scmp.le.s32.totalorder 1, %s10
    %p155 = scmp.lt.s32.totalorder %s10, 3
    %p156 = pnand %p154, %p155
    %p157 = pneg %p156
    // Predicated region
    $region9: #{language_model_forward.8} parent=5 // pred_check
      _
    $region10: #{language_model_forward.8} parent=5 // pred_check_branch
      %159 = sbr.rel (%p156) target = $region12
    $region11: #{language_model_forward.8} parent=5 // pred_region
      %s160 = ssub.s32 %s10, 1
      // Predicated region
      $region13: #{language_model_forward.8} parent=11 // pred_check
        %p161 = pneg %p76
      $region14: #{language_model_forward.8} parent=11 // pred_check_branch
        %163 = sbr.rel (%p161) target = $region16
      $region15: #{language_model_forward.8} parent=11 // pred_region
        %s164 = smul.u32 32, %s20
        %p165 = scmp.lt.s32.totalorder %s164, 31
        %s166 = scalar_select %p165, %s164, 31
        %s167 = smul.addr %s166, 8
        %s168 = scalar_lea.vmem %s1, %s167
        %s169 = smul.u32 32, %s20
      $region16: #{language_model_forward.8} parent=11 // pred_fallthru
        _
      // Predicated region
      $region17: #{language_model_forward.8} parent=11 // pred_check
        %p170 = pneg %p97
      $region18: #{language_model_forward.8} parent=11 // pred_check_branch
        %172 = sbr.rel (%p170) target = $region20
      $region19: #{language_model_forward.8} parent=11 // pred_region
        _
      $region20: #{language_model_forward.8} parent=11 // pred_fallthru
        _
      // Predicated region
      $region21: #{language_model_forward.8} parent=11 // pred_check
        %p173 = pneg %p118
      $region22: #{language_model_forward.8} parent=11 // pred_check_branch
        %175 = sbr.rel (%p173) target = $region24
      $region23: #{language_model_forward.8} parent=11 // pred_region
        _
      $region24: #{language_model_forward.8} parent=11 // pred_fallthru
        _
    $region12: #{language_model_forward.8} parent=5 // pred_fallthru
      _
    %p176 = scmp.lt.s32.totalorder %s10, 2
    // Predicated region
    $region25: #{language_model_forward.8} parent=5 // pred_check
      %p177 = pneg %p176
    $region26: #{language_model_forward.8} parent=5 // pred_check_branch
      %179 = sbr.rel (%p177) target = $region28
    $region27: #{language_model_forward.8} parent=5 // pred_region
      // Predicated region
      $region29: #{language_model_forward.8} parent=27 // pred_check
        %p180 = pneg %p44
      $region30: #{language_model_forward.8} parent=27 // pred_check_branch
        %182 = sbr.rel (%p180) target = $region32
      $region31: #{language_model_forward.8} parent=27 // pred_region
        %s183 = smul.u32 32, %s18
        %p184 = scmp.lt.s32.totalorder %s17, 1
        %s185 = scalar_select %p184, %s17, 1
        %p186 = scmp.lt.s32.totalorder %s183, 31
        %s187 = scalar_select %p186, %s183, 31
        %s188 = smul.addr %s185, 32
        %s189 = sadd.s32 %s187, %s188
        %s190 = smul.addr %s189, 4
        %s191 = scalar_lea.vmem %s0, %s190
        %s192 = smul.u32 32, %s18
      $region32: #{language_model_forward.8} parent=27 // pred_fallthru
        _
    $region28: #{language_model_forward.8} parent=5 // pred_fallthru
      _
    %p193 = scmp.le.s32.totalorder 1, %s10
    %p194 = scmp.lt.s32.totalorder %s10, 3
    %p195 = pnand %p193, %p194
    %p196 = pneg %p195
    // Predicated region
    $region33: #{language_model_forward.8} parent=5 // pred_check
      _
    $region34: #{language_model_forward.8} parent=5 // pred_check_branch
      %198 = sbr.rel (%p195) target = $region36
    $region35: #{language_model_forward.8} parent=5 // pred_region
      %s199 = ssub.s32 %s10, 1
      %s200 = smul.u32 32, %s20
      %p201 = scmp.lt.s32.totalorder %s19, 1
      %s202 = scalar_select %p201, %s19, 1
      %p203 = scmp.lt.s32.totalorder %s200, 31
      %s204 = scalar_select %p203, %s200, 31
      %s205 = smul.addr %s202, 32
      %s206 = sadd.s32 %s204, %s205
      %s207 = smul.addr %s206, 4
      %s208 = scalar_lea.vmem %s0, %s207
      %p209 = pneg %p50
      %p210 = pneg %p47
      %s211 = smul.u32 32, %s20
      %p212 = scmp.lt.s32.totalorder %s211, 31
      %s213 = scalar_select %p212, %s211, 31
      %s214 = smul.addr %s213, 8
      %s215 = scalar_lea.vmem %s1, %s214
      %p216 = pneg %p76
      %p217 = pneg %p73
      %p218 = pneg %p97
      %p219 = pneg %p94
      %p220 = pneg %p118
      %p221 = pneg %p115
      %p222 = pneg %p146
      %p223 = pneg %p143
      %s224 = smul.u32 32, %s20
      %p225 = scmp.lt.s32.totalorder %s19, 1
      %s226 = scalar_select %p225, %s19, 1
      %p227 = scmp.lt.s32.totalorder %s224, 31
      %s228 = scalar_select %p227, %s224, 31
      %s229 = smul.addr %s226, 32
      %s230 = sadd.s32 %s228, %s229
      %s231 = smul.addr %s230, 4
      %s232 = scalar_lea.vmem %s4, %s231
      %s233 = smul.u32 32, %s20
      %p234 = scmp.lt.s32.totalorder %s19, 1
      %s235 = scalar_select %p234, %s19, 1
      %p236 = scmp.lt.s32.totalorder %s233, 31
      %s237 = scalar_select %p236, %s233, 31
      %s238 = smul.addr %s235, 32
      %s239 = sadd.s32 %s237, %s238
      %s240 = smul.addr %s239, 4
      %s241 = scalar_lea.vmem %s0, %s240
      %s242 = smul.u32 32, %s20
      %s243 = smul.u32 32, %s20
      %p244 = scmp.lt.s32.totalorder %s243, 31
      %s245 = scalar_select %p244, %s243, 31
      %s246 = smul.addr %s245, 8
      %s247 = scalar_lea.vmem %s1, %s246
      %s248 = smul.u32 32, %s20
      %s249 = smul.u32 32, %s20
      %p250 = scmp.lt.s32.totalorder %s19, 1
      %s251 = scalar_select %p250, %s19, 1
      %p252 = scmp.lt.s32.totalorder %s249, 31
      %s253 = scalar_select %p252, %s249, 31
      %s254 = smul.addr %s251, 32
      %s255 = sadd.s32 %s253, %s254
      %s256 = smul.addr %s255, 4
      %s257 = scalar_lea.vmem %s4, %s256
      %s258 = smul.u32 32, %s20
      %v259 = vld [vmem:[%s241] sm:$0xf]
      %v260 = vld [vmem:[%s241 + $0x4] sm:$0xf]
      %v261 = vld [vmem:[%s241 + $0x8] sm:$0xf]
      %v262 = vld [vmem:[%s241 + $0xc] sm:$0xf]
      %v263 = vld [vmem:[%s241 + $0x10] sm:$0xf]
      %v264 = vld [vmem:[%s241 + $0x14] sm:$0xf]
      %v265 = vld [vmem:[%s241 + $0x18] sm:$0xf]
      %v266 = vld [vmem:[%s241 + $0x1c] sm:$0xf]
      %v267 = vld [vmem:[%s241 + $0x20] sm:$0xf]
      %v268 = vld [vmem:[%s241 + $0x24] sm:$0xf]
      %v269 = vld [vmem:[%s241 + $0x28] sm:$0xf]
      %v270 = vld [vmem:[%s241 + $0x2c] sm:$0xf]
      %v271 = vld [vmem:[%s241 + $0x30] sm:$0xf]
      %v272 = vld [vmem:[%s241 + $0x34] sm:$0xf]
      %v273 = vld [vmem:[%s241 + $0x38] sm:$0xf]
      %v274 = vld [vmem:[%s241 + $0x3c] sm:$0xf]
      %v275 = vld [vmem:[%s241 + $0x40] sm:$0xf]
      %v276 = vld [vmem:[%s241 + $0x44] sm:$0xf]
      %v277 = vld [vmem:[%s241 + $0x48] sm:$0xf]
      %v278 = vld [vmem:[%s241 + $0x4c] sm:$0xf]
      %v279 = vld [vmem:[%s241 + $0x50] sm:$0xf]
      %v280 = vld [vmem:[%s241 + $0x54] sm:$0xf]
      %v281 = vld [vmem:[%s241 + $0x58] sm:$0xf]
      %v282 = vld [vmem:[%s241 + $0x5c] sm:$0xf]
      %v283 = vld [vmem:[%s241 + $0x60] sm:$0xf]
      %v284 = vld [vmem:[%s241 + $0x64] sm:$0xf]
      %v285 = vld [vmem:[%s241 + $0x68] sm:$0xf]
      %v286 = vld [vmem:[%s241 + $0x6c] sm:$0xf]
      %v287 = vld [vmem:[%s241 + $0x70] sm:$0xf]
      %v288 = vld [vmem:[%s241 + $0x74] sm:$0xf]
      %v289 = vld [vmem:[%s241 + $0x78] sm:$0xf]
      %v290 = vld [vmem:[%s241 + $0x7c] sm:$0xf]
      %v291 = vunpack.c.l.bf16 %v259
      %v292 = vunpack.c.l.bf16 %v260
      %v293 = vunpack.c.l.bf16 %v261
      %v294 = vunpack.c.l.bf16 %v262
      %v295 = vunpack.c.l.bf16 %v263
      %v296 = vunpack.c.l.bf16 %v264
      %v297 = vunpack.c.l.bf16 %v265
      %v298 = vunpack.c.l.bf16 %v266
      %v299 = vunpack.c.l.bf16 %v267
      %v300 = vunpack.c.l.bf16 %v268
      %v301 = vunpack.c.l.bf16 %v269
      %v302 = vunpack.c.l.bf16 %v270
      %v303 = vunpack.c.l.bf16 %v271
      %v304 = vunpack.c.l.bf16 %v272
      %v305 = vunpack.c.l.bf16 %v273
      %v306 = vunpack.c.l.bf16 %v274
      %v307 = vunpack.c.l.bf16 %v275
      %v308 = vunpack.c.l.bf16 %v276
      %v309 = vunpack.c.l.bf16 %v277
      %v310 = vunpack.c.l.bf16 %v278
      %v311 = vunpack.c.l.bf16 %v279
      %v312 = vunpack.c.l.bf16 %v280
      %v313 = vunpack.c.l.bf16 %v281
      %v314 = vunpack.c.l.bf16 %v282
      %v315 = vunpack.c.l.bf16 %v283
      %v316 = vunpack.c.l.bf16 %v284
      %v317 = vunpack.c.l.bf16 %v285
      %v318 = vunpack.c.l.bf16 %v286
      %v319 = vunpack.c.l.bf16 %v287
      %v320 = vunpack.c.l.bf16 %v288
      %v321 = vunpack.c.l.bf16 %v289
      %v322 = vunpack.c.l.bf16 %v290
      %v323 = vld [vmem:[%s247] sm:$0xff]
      %v324 = vld [vmem:[%s247 + $0x8] sm:$0xff]
      %v325 = vld [vmem:[%s247 + $0x10] sm:$0xff]
      %v326 = vld [vmem:[%s247 + $0x18] sm:$0xff]
      %v327 = vld [vmem:[%s247 + $0x20] sm:$0xff]
      %v328 = vld [vmem:[%s247 + $0x28] sm:$0xff]
      %v329 = vld [vmem:[%s247 + $0x30] sm:$0xff]
      %v330 = vld [vmem:[%s247 + $0x38] sm:$0xff]
      %v331 = vld [vmem:[%s247 + $0x40] sm:$0xff]
      %v332 = vld [vmem:[%s247 + $0x48] sm:$0xff]
      %v333 = vld [vmem:[%s247 + $0x50] sm:$0xff]
      %v334 = vld [vmem:[%s247 + $0x58] sm:$0xff]
      %v335 = vld [vmem:[%s247 + $0x60] sm:$0xff]
      %v336 = vld [vmem:[%s247 + $0x68] sm:$0xff]
      %v337 = vld [vmem:[%s247 + $0x70] sm:$0xff]
      %v338 = vld [vmem:[%s247 + $0x78] sm:$0xff]
      %v339 = vld [vmem:[%s247 + $0x80] sm:$0xff]
      %v340 = vld [vmem:[%s247 + $0x88] sm:$0xff]
      %v341 = vld [vmem:[%s247 + $0x90] sm:$0xff]
      %v342 = vld [vmem:[%s247 + $0x98] sm:$0xff]
      %v343 = vld [vmem:[%s247 + $0xa0] sm:$0xff]
      %v344 = vld [vmem:[%s247 + $0xa8] sm:$0xff]
      %v345 = vld [vmem:[%s247 + $0xb0] sm:$0xff]
      %v346 = vld [vmem:[%s247 + $0xb8] sm:$0xff]
      %v347 = vld [vmem:[%s247 + $0xc0] sm:$0xff]
      %v348 = vld [vmem:[%s247 + $0xc8] sm:$0xff]
      %v349 = vld [vmem:[%s247 + $0xd0] sm:$0xff]
      %v350 = vld [vmem:[%s247 + $0xd8] sm:$0xff]
      %v351 = vld [vmem:[%s247 + $0xe0] sm:$0xff]
      %v352 = vld [vmem:[%s247 + $0xe8] sm:$0xff]
      %v353 = vld [vmem:[%s247 + $0xf0] sm:$0xff]
      %v354 = vld [vmem:[%s247 + $0xf8] sm:$0xff]
      %v355 = vadd.f32 %v291, %v323
      %v356 = vadd.f32 %v292, %v324
      %v357 = vadd.f32 %v293, %v325
      %v358 = vadd.f32 %v294, %v326
      %v359 = vadd.f32 %v295, %v327
      %v360 = vadd.f32 %v296, %v328
      %v361 = vadd.f32 %v297, %v329
      %v362 = vadd.f32 %v298, %v330
      %v363 = vadd.f32 %v299, %v331
      %v364 = vadd.f32 %v300, %v332
      %v365 = vadd.f32 %v301, %v333
      %v366 = vadd.f32 %v302, %v334
      %v367 = vadd.f32 %v303, %v335
      %v368 = vadd.f32 %v304, %v336
      %v369 = vadd.f32 %v305, %v337
      %v370 = vadd.f32 %v306, %v338
      %v371 = vadd.f32 %v307, %v339
      %v372 = vadd.f32 %v308, %v340
      %v373 = vadd.f32 %v309, %v341
      %v374 = vadd.f32 %v310, %v342
      %v375 = vadd.f32 %v311, %v343
      %v376 = vadd.f32 %v312, %v344
      %v377 = vadd.f32 %v313, %v345
      %v378 = vadd.f32 %v314, %v346
      %v379 = vadd.f32 %v315, %v347
      %v380 = vadd.f32 %v316, %v348
      %v381 = vadd.f32 %v317, %v349
      %v382 = vadd.f32 %v318, %v350
      %v383 = vadd.f32 %v319, %v351
      %v384 = vadd.f32 %v320, %v352
      %v385 = vadd.f32 %v321, %v353
      %v386 = vadd.f32 %v322, %v354
      %387 = vadd.xlane.f32.xlu0 %v355
      %v388 = vpop.xlane.xlu0 %387
      %389 = vadd.xlane.f32.xlu0 %v356
      %v390 = vpop.xlane.xlu0 %389
      %391 = vadd.xlane.f32.xlu0 %v357
      %v392 = vpop.xlane.xlu0 %391
      %393 = vadd.xlane.f32.xlu0 %v358
      %v394 = vpop.xlane.xlu0 %393
      %395 = vadd.xlane.f32.xlu0 %v359
      %v396 = vpop.xlane.xlu0 %395
      %397 = vadd.xlane.f32.xlu0 %v360
      %v398 = vpop.xlane.xlu0 %397
      %399 = vadd.xlane.f32.xlu0 %v361
      %v400 = vpop.xlane.xlu0 %399
      %401 = vadd.xlane.f32.xlu0 %v362
      %v402 = vpop.xlane.xlu0 %401
      %403 = vadd.xlane.f32.xlu0 %v363
      %v404 = vpop.xlane.xlu0 %403
      %405 = vadd.xlane.f32.xlu0 %v364
      %v406 = vpop.xlane.xlu0 %405
      %407 = vadd.xlane.f32.xlu0 %v365
      %v408 = vpop.xlane.xlu0 %407
      %409 = vadd.xlane.f32.xlu0 %v366
      %v410 = vpop.xlane.xlu0 %409
      %411 = vadd.xlane.f32.xlu0 %v367
      %v412 = vpop.xlane.xlu0 %411
      %413 = vadd.xlane.f32.xlu0 %v368
      %v414 = vpop.xlane.xlu0 %413
      %415 = vadd.xlane.f32.xlu0 %v369
      %v416 = vpop.xlane.xlu0 %415
      %417 = vadd.xlane.f32.xlu0 %v370
      %v418 = vpop.xlane.xlu0 %417
      %419 = vadd.xlane.f32.xlu0 %v371
      %v420 = vpop.xlane.xlu0 %419
      %421 = vadd.xlane.f32.xlu0 %v372
      %v422 = vpop.xlane.xlu0 %421
      %423 = vadd.xlane.f32.xlu0 %v373
      %v424 = vpop.xlane.xlu0 %423
      %425 = vadd.xlane.f32.xlu0 %v374
      %v426 = vpop.xlane.xlu0 %425
      %427 = vadd.xlane.f32.xlu0 %v375
      %v428 = vpop.xlane.xlu0 %427
      %429 = vadd.xlane.f32.xlu0 %v376
      %v430 = vpop.xlane.xlu0 %429
      %431 = vadd.xlane.f32.xlu0 %v377
      %v432 = vpop.xlane.xlu0 %431
      %433 = vadd.xlane.f32.xlu0 %v378
      %v434 = vpop.xlane.xlu0 %433
      %435 = vadd.xlane.f32.xlu0 %v379
      %v436 = vpop.xlane.xlu0 %435
      %437 = vadd.xlane.f32.xlu0 %v380
      %v438 = vpop.xlane.xlu0 %437
      %439 = vadd.xlane.f32.xlu0 %v381
      %v440 = vpop.xlane.xlu0 %439
      %441 = vadd.xlane.f32.xlu0 %v382
      %v442 = vpop.xlane.xlu0 %441
      %443 = vadd.xlane.f32.xlu0 %v383
      %v444 = vpop.xlane.xlu0 %443
      %445 = vadd.xlane.f32.xlu0 %v384
      %v446 = vpop.xlane.xlu0 %445
      %447 = vadd.xlane.f32.xlu0 %v385
      %v448 = vpop.xlane.xlu0 %447
      %449 = vadd.xlane.f32.xlu0 %v386
      %v450 = vpop.xlane.xlu0 %449
      %v451 = vrcp.pop 128.0
      %v452 = vmul.f32 %v388, %v451
      %v453 = vmul.f32 %v390, %v451
      %v454 = vmul.f32 %v392, %v451
      %v455 = vmul.f32 %v394, %v451
      %v456 = vmul.f32 %v396, %v451
      %v457 = vmul.f32 %v398, %v451
      %v458 = vmul.f32 %v400, %v451
      %v459 = vmul.f32 %v402, %v451
      %v460 = vmul.f32 %v404, %v451
      %v461 = vmul.f32 %v406, %v451
      %v462 = vmul.f32 %v408, %v451
      %v463 = vmul.f32 %v410, %v451
      %v464 = vmul.f32 %v412, %v451
      %v465 = vmul.f32 %v414, %v451
      %v466 = vmul.f32 %v416, %v451
      %v467 = vmul.f32 %v418, %v451
      %v468 = vmul.f32 %v420, %v451
      %v469 = vmul.f32 %v422, %v451
      %v470 = vmul.f32 %v424, %v451
      %v471 = vmul.f32 %v426, %v451
      %v472 = vmul.f32 %v428, %v451
      %v473 = vmul.f32 %v430, %v451
      %v474 = vmul.f32 %v432, %v451
      %v475 = vmul.f32 %v434, %v451
      %v476 = vmul.f32 %v436, %v451
      %v477 = vmul.f32 %v438, %v451
      %v478 = vmul.f32 %v440, %v451
      %v479 = vmul.f32 %v442, %v451
      %v480 = vmul.f32 %v444, %v451
      %v481 = vmul.f32 %v446, %v451
      %v482 = vmul.f32 %v448, %v451
      %v483 = vmul.f32 %v450, %v451
      %v484 = vsub.f32 %v355, %v452
      %v485 = vsub.f32 %v356, %v453
      %v486 = vsub.f32 %v357, %v454
      %v487 = vsub.f32 %v358, %v455
      %v488 = vsub.f32 %v359, %v456
      %v489 = vsub.f32 %v360, %v457
      %v490 = vsub.f32 %v361, %v458
      %v491 = vsub.f32 %v362, %v459
      %v492 = vsub.f32 %v363, %v460
      %v493 = vsub.f32 %v364, %v461
      %v494 = vsub.f32 %v365, %v462
      %v495 = vsub.f32 %v366, %v463
      %v496 = vsub.f32 %v367, %v464
      %v497 = vsub.f32 %v368, %v465
      %v498 = vsub.f32 %v369, %v466
      %v499 = vsub.f32 %v370, %v467
      %v500 = vsub.f32 %v371, %v468
      %v501 = vsub.f32 %v372, %v469
      %v502 = vsub.f32 %v373, %v470
      %v503 = vsub.f32 %v374, %v471
      %v504 = vsub.f32 %v375, %v472
      %v505 = vsub.f32 %v376, %v473
      %v506 = vsub.f32 %v377, %v474
      %v507 = vsub.f32 %v378, %v475
      %v508 = vsub.f32 %v379, %v476
      %v509 = vsub.f32 %v380, %v477
      %v510 = vsub.f32 %v381, %v478
      %v511 = vsub.f32 %v382, %v479
      %v512 = vsub.f32 %v383, %v480
      %v513 = vsub.f32 %v384, %v481
      %v514 = vsub.f32 %v385, %v482
      %v515 = vsub.f32 %v386, %v483
      %v516 = vmul.f32 %v484, %v484
      %v517 = vmul.f32 %v485, %v485
      %v518 = vmul.f32 %v486, %v486
      %v519 = vmul.f32 %v487, %v487
      %v520 = vmul.f32 %v488, %v488
      %v521 = vmul.f32 %v489, %v489
      %v522 = vmul.f32 %v490, %v490
      %v523 = vmul.f32 %v491, %v491
      %v524 = vmul.f32 %v492, %v492
      %v525 = vmul.f32 %v493, %v493
      %v526 = vmul.f32 %v494, %v494
      %v527 = vmul.f32 %v495, %v495
      %v528 = vmul.f32 %v496, %v496
      %v529 = vmul.f32 %v497, %v497
      %v530 = vmul.f32 %v498, %v498
      %v531 = vmul.f32 %v499, %v499
      %v532 = vmul.f32 %v500, %v500
      %v533 = vmul.f32 %v501, %v501
      %v534 = vmul.f32 %v502, %v502
      %v535 = vmul.f32 %v503, %v503
      %v536 = vmul.f32 %v504, %v504
      %v537 = vmul.f32 %v505, %v505
      %v538 = vmul.f32 %v506, %v506
      %v539 = vmul.f32 %v507, %v507
      %v540 = vmul.f32 %v508, %v508
      %v541 = vmul.f32 %v509, %v509
      %v542 = vmul.f32 %v510, %v510
      %v543 = vmul.f32 %v511, %v511
      %v544 = vmul.f32 %v512, %v512
      %v545 = vmul.f32 %v513, %v513
      %v546 = vmul.f32 %v514, %v514
      %v547 = vmul.f32 %v515, %v515
      %548 = vadd.xlane.f32.xlu0 %v516
      %v549 = vpop.xlane.xlu0 %548
      %550 = vadd.xlane.f32.xlu0 %v517
      %v551 = vpop.xlane.xlu0 %550
      %552 = vadd.xlane.f32.xlu0 %v518
      %v553 = vpop.xlane.xlu0 %552
      %554 = vadd.xlane.f32.xlu0 %v519
      %v555 = vpop.xlane.xlu0 %554
      %556 = vadd.xlane.f32.xlu0 %v520
      %v557 = vpop.xlane.xlu0 %556
      %558 = vadd.xlane.f32.xlu0 %v521
      %v559 = vpop.xlane.xlu0 %558
      %560 = vadd.xlane.f32.xlu0 %v522
      %v561 = vpop.xlane.xlu0 %560
      %562 = vadd.xlane.f32.xlu0 %v523
      %v563 = vpop.xlane.xlu0 %562
      %564 = vadd.xlane.f32.xlu0 %v524
      %v565 = vpop.xlane.xlu0 %564
      %566 = vadd.xlane.f32.xlu0 %v525
      %v567 = vpop.xlane.xlu0 %566
      %568 = vadd.xlane.f32.xlu0 %v526
      %v569 = vpop.xlane.xlu0 %568
      %570 = vadd.xlane.f32.xlu0 %v527
      %v571 = vpop.xlane.xlu0 %570
      %572 = vadd.xlane.f32.xlu0 %v528
      %v573 = vpop.xlane.xlu0 %572
      %574 = vadd.xlane.f32.xlu0 %v529
      %v575 = vpop.xlane.xlu0 %574
      %576 = vadd.xlane.f32.xlu0 %v530
      %v577 = vpop.xlane.xlu0 %576
      %578 = vadd.xlane.f32.xlu0 %v531
      %v579 = vpop.xlane.xlu0 %578
      %580 = vadd.xlane.f32.xlu0 %v532
      %v581 = vpop.xlane.xlu0 %580
      %582 = vadd.xlane.f32.xlu0 %v533
      %v583 = vpop.xlane.xlu0 %582
      %584 = vadd.xlane.f32.xlu0 %v534
      %v585 = vpop.xlane.xlu0 %584
      %586 = vadd.xlane.f32.xlu0 %v535
      %v587 = vpop.xlane.xlu0 %586
      %588 = vadd.xlane.f32.xlu0 %v536
      %v589 = vpop.xlane.xlu0 %588
      %590 = vadd.xlane.f32.xlu0 %v537
      %v591 = vpop.xlane.xlu0 %590
      %592 = vadd.xlane.f32.xlu0 %v538
      %v593 = vpop.xlane.xlu0 %592
      %594 = vadd.xlane.f32.xlu0 %v539
      %v595 = vpop.xlane.xlu0 %594
      %596 = vadd.xlane.f32.xlu0 %v540
      %v597 = vpop.xlane.xlu0 %596
      %598 = vadd.xlane.f32.xlu0 %v541
      %v599 = vpop.xlane.xlu0 %598
      %600 = vadd.xlane.f32.xlu0 %v542
      %v601 = vpop.xlane.xlu0 %600
      %602 = vadd.xlane.f32.xlu0 %v543
      %v603 = vpop.xlane.xlu0 %602
      %604 = vadd.xlane.f32.xlu0 %v544
      %v605 = vpop.xlane.xlu0 %604
      %606 = vadd.xlane.f32.xlu0 %v545
      %v607 = vpop.xlane.xlu0 %606
      %608 = vadd.xlane.f32.xlu0 %v546
      %v609 = vpop.xlane.xlu0 %608
      %610 = vadd.xlane.f32.xlu0 %v547
      %v611 = vpop.xlane.xlu0 %610
      %v612 = vmul.f32 %v549, %v451
      %v613 = vmul.f32 %v551, %v451
      %v614 = vmul.f32 %v553, %v451
      %v615 = vmul.f32 %v555, %v451
      %v616 = vmul.f32 %v557, %v451
      %v617 = vmul.f32 %v559, %v451
      %v618 = vmul.f32 %v561, %v451
      %v619 = vmul.f32 %v563, %v451
      %v620 = vmul.f32 %v565, %v451
      %v621 = vmul.f32 %v567, %v451
      %v622 = vmul.f32 %v569, %v451
      %v623 = vmul.f32 %v571, %v451
      %v624 = vmul.f32 %v573, %v451
      %v625 = vmul.f32 %v575, %v451
      %v626 = vmul.f32 %v577, %v451
      %v627 = vmul.f32 %v579, %v451
      %v628 = vmul.f32 %v581, %v451
      %v629 = vmul.f32 %v583, %v451
      %v630 = vmul.f32 %v585, %v451
      %v631 = vmul.f32 %v587, %v451
      %v632 = vmul.f32 %v589, %v451
      %v633 = vmul.f32 %v591, %v451
      %v634 = vmul.f32 %v593, %v451
      %v635 = vmul.f32 %v595, %v451
      %v636 = vmul.f32 %v597, %v451
      %v637 = vmul.f32 %v599, %v451
      %v638 = vmul.f32 %v601, %v451
      %v639 = vmul.f32 %v603, %v451
      %v640 = vmul.f32 %v605, %v451
      %v641 = vmul.f32 %v607, %v451
      %v642 = vmul.f32 %v609, %v451
      %v643 = vmul.f32 %v611, %v451
      %v644 = vadd.f32 %v612, 1e-05
      %v645 = vadd.f32 %v613, 1e-05
      %v646 = vadd.f32 %v614, 1e-05
      %v647 = vadd.f32 %v615, 1e-05
      %v648 = vadd.f32 %v616, 1e-05
      %v649 = vadd.f32 %v617, 1e-05
      %v650 = vadd.f32 %v618, 1e-05
      %v651 = vadd.f32 %v619, 1e-05
      %v652 = vadd.f32 %v620, 1e-05
      %v653 = vadd.f32 %v621, 1e-05
      %v654 = vadd.f32 %v622, 1e-05
      %v655 = vadd.f32 %v623, 1e-05
      %v656 = vadd.f32 %v624, 1e-05
      %v657 = vadd.f32 %v625, 1e-05
      %v658 = vadd.f32 %v626, 1e-05
      %v659 = vadd.f32 %v627, 1e-05
      %v660 = vadd.f32 %v628, 1e-05
      %v661 = vadd.f32 %v629, 1e-05
      %v662 = vadd.f32 %v630, 1e-05
      %v663 = vadd.f32 %v631, 1e-05
      %v664 = vadd.f32 %v632, 1e-05
      %v665 = vadd.f32 %v633, 1e-05
      %v666 = vadd.f32 %v634, 1e-05
      %v667 = vadd.f32 %v635, 1e-05
      %v668 = vadd.f32 %v636, 1e-05
      %v669 = vadd.f32 %v637, 1e-05
      %v670 = vadd.f32 %v638, 1e-05
      %v671 = vadd.f32 %v639, 1e-05
      %v672 = vadd.f32 %v640, 1e-05
      %v673 = vadd.f32 %v641, 1e-05
      %v674 = vadd.f32 %v642, 1e-05
      %v675 = vadd.f32 %v643, 1e-05
      %v676 = vrsqrt.pop %v644
      %v677 = vrsqrt.pop %v645
      %v678 = vrsqrt.pop %v646
      %v679 = vrsqrt.pop %v647
      %v680 = vrsqrt.pop %v648
      %v681 = vrsqrt.pop %v649
      %v682 = vrsqrt.pop %v650
      %v683 = vrsqrt.pop %v651
      %v684 = vrsqrt.pop %v652
      %v685 = vrsqrt.pop %v653
      %v686 = vrsqrt.pop %v654
      %v687 = vrsqrt.pop %v655
      %v688 = vrsqrt.pop %v656
      %v689 = vrsqrt.pop %v657
      %v690 = vrsqrt.pop %v658
      %v691 = vrsqrt.pop %v659
      %v692 = vrsqrt.pop %v660
      %v693 = vrsqrt.pop %v661
      %v694 = vrsqrt.pop %v662
      %v695 = vrsqrt.pop %v663
      %v696 = vrsqrt.pop %v664
      %v697 = vrsqrt.pop %v665
      %v698 = vrsqrt.pop %v666
      %v699 = vrsqrt.pop %v667
      %v700 = vrsqrt.pop %v668
      %v701 = vrsqrt.pop %v669
      %v702 = vrsqrt.pop %v670
      %v703 = vrsqrt.pop %v671
      %v704 = vrsqrt.pop %v672
      %v705 = vrsqrt.pop %v673
      %v706 = vrsqrt.pop %v674
      %v707 = vrsqrt.pop %v675
      %v708 = vmul.f32 %v484, %v676
      %v709 = vmul.f32 %v485, %v677
      %v710 = vmul.f32 %v486, %v678
      %v711 = vmul.f32 %v487, %v679
      %v712 = vmul.f32 %v488, %v680
      %v713 = vmul.f32 %v489, %v681
      %v714 = vmul.f32 %v490, %v682
      %v715 = vmul.f32 %v491, %v683
      %v716 = vmul.f32 %v492, %v684
      %v717 = vmul.f32 %v493, %v685
      %v718 = vmul.f32 %v494, %v686
      %v719 = vmul.f32 %v495, %v687
      %v720 = vmul.f32 %v496, %v688
      %v721 = vmul.f32 %v497, %v689
      %v722 = vmul.f32 %v498, %v690
      %v723 = vmul.f32 %v499, %v691
      %v724 = vmul.f32 %v500, %v692
      %v725 = vmul.f32 %v501, %v693
      %v726 = vmul.f32 %v502, %v694
      %v727 = vmul.f32 %v503, %v695
      %v728 = vmul.f32 %v504, %v696
      %v729 = vmul.f32 %v505, %v697
      %v730 = vmul.f32 %v506, %v698
      %v731 = vmul.f32 %v507, %v699
      %v732 = vmul.f32 %v508, %v700
      %v733 = vmul.f32 %v509, %v701
      %v734 = vmul.f32 %v510, %v702
      %v735 = vmul.f32 %v511, %v703
      %v736 = vmul.f32 %v512, %v704
      %v737 = vmul.f32 %v513, %v705
      %v738 = vmul.f32 %v514, %v706
      %v739 = vmul.f32 %v515, %v707
      %v740 = vld [vmem:[%s2] sm:$0x1]
      %v742 = vlaneseq
      %v743 = vshrl.u32 %v742, 7
      %v744 = vsub.s32 0, %v743
      %v745 = vrot.slane %v740, %v744
      %v747 = vmul.f32 %v708, %v745
      %v748 = vmul.f32 %v709, %v745
      %v749 = vmul.f32 %v710, %v745
      %v750 = vmul.f32 %v711, %v745
      %v751 = vmul.f32 %v712, %v745
      %v752 = vmul.f32 %v713, %v745
      %v753 = vmul.f32 %v714, %v745
      %v754 = vmul.f32 %v715, %v745
      %v755 = vmul.f32 %v716, %v745
      %v756 = vmul.f32 %v717, %v745
      %v757 = vmul.f32 %v718, %v745
      %v758 = vmul.f32 %v719, %v745
      %v759 = vmul.f32 %v720, %v745
      %v760 = vmul.f32 %v721, %v745
      %v761 = vmul.f32 %v722, %v745
      %v762 = vmul.f32 %v723, %v745
      %v763 = vmul.f32 %v724, %v745
      %v764 = vmul.f32 %v725, %v745
      %v765 = vmul.f32 %v726, %v745
      %v766 = vmul.f32 %v727, %v745
      %v767 = vmul.f32 %v728, %v745
      %v768 = vmul.f32 %v729, %v745
      %v769 = vmul.f32 %v730, %v745
      %v770 = vmul.f32 %v731, %v745
      %v771 = vmul.f32 %v732, %v745
      %v772 = vmul.f32 %v733, %v745
      %v773 = vmul.f32 %v734, %v745
      %v774 = vmul.f32 %v735, %v745
      %v775 = vmul.f32 %v736, %v745
      %v776 = vmul.f32 %v737, %v745
      %v777 = vmul.f32 %v738, %v745
      %v778 = vmul.f32 %v739, %v745
      %v779 = vld [vmem:[%s3] sm:$0x1]
      %v781 = vlaneseq
      %v782 = vshrl.u32 %v781, 7
      %v783 = vsub.s32 0, %v782
      %v784 = vrot.slane %v779, %v783
      %v786 = vadd.f32 %v747, %v784
      %v787 = vadd.f32 %v748, %v784
      %v788 = vadd.f32 %v749, %v784
      %v789 = vadd.f32 %v750, %v784
      %v790 = vadd.f32 %v751, %v784
      %v791 = vadd.f32 %v752, %v784
      %v792 = vadd.f32 %v753, %v784
      %v793 = vadd.f32 %v754, %v784
      %v794 = vadd.f32 %v755, %v784
      %v795 = vadd.f32 %v756, %v784
      %v796 = vadd.f32 %v757, %v784
      %v797 = vadd.f32 %v758, %v784
      %v798 = vadd.f32 %v759, %v784
      %v799 = vadd.f32 %v760, %v784
      %v800 = vadd.f32 %v761, %v784
      %v801 = vadd.f32 %v762, %v784
      %v802 = vadd.f32 %v763, %v784
      %v803 = vadd.f32 %v764, %v784
      %v804 = vadd.f32 %v765, %v784
      %v805 = vadd.f32 %v766, %v784
      %v806 = vadd.f32 %v767, %v784
      %v807 = vadd.f32 %v768, %v784
      %v808 = vadd.f32 %v769, %v784
      %v809 = vadd.f32 %v770, %v784
      %v810 = vadd.f32 %v771, %v784
      %v811 = vadd.f32 %v772, %v784
      %v812 = vadd.f32 %v773, %v784
      %v813 = vadd.f32 %v774, %v784
      %v814 = vadd.f32 %v775, %v784
      %v815 = vadd.f32 %v776, %v784
      %v816 = vadd.f32 %v777, %v784
      %v817 = vadd.f32 %v778, %v784
      %v818 = vpack.c.bf16 %v787, %v786
      %v819 = vpack.c.bf16 %v789, %v788
      %v820 = vpack.c.bf16 %v791, %v790
      %v821 = vpack.c.bf16 %v793, %v792
      %v822 = vpack.c.bf16 %v795, %v794
      %v823 = vpack.c.bf16 %v797, %v796
      %v824 = vpack.c.bf16 %v799, %v798
      %v825 = vpack.c.bf16 %v801, %v800
      %v826 = vpack.c.bf16 %v803, %v802
      %v827 = vpack.c.bf16 %v805, %v804
      %v828 = vpack.c.bf16 %v807, %v806
      %v829 = vpack.c.bf16 %v809, %v808
      %v830 = vpack.c.bf16 %v811, %v810
      %v831 = vpack.c.bf16 %v813, %v812
      %v832 = vpack.c.bf16 %v815, %v814
      %v833 = vpack.c.bf16 %v817, %v816
      %v850 = vunpack.c.l.b16 %v818
      %v851 = vunpack.c.h.b16 %v818
      %v852 = vunpack.c.l.b16 %v819
      %v853 = vunpack.c.h.b16 %v819
      %v854 = vunpack.c.l.b16 %v820
      %v855 = vunpack.c.h.b16 %v820
      %v856 = vunpack.c.l.b16 %v821
      %v857 = vunpack.c.h.b16 %v821
      %v858 = vunpack.c.l.b16 %v822
      %v859 = vunpack.c.h.b16 %v822
      %v860 = vunpack.c.l.b16 %v823
      %v861 = vunpack.c.h.b16 %v823
      %v862 = vunpack.c.l.b16 %v824
      %v863 = vunpack.c.h.b16 %v824
      %v864 = vunpack.c.l.b16 %v825
      %v865 = vunpack.c.h.b16 %v825
      %v866 = vunpack.c.l.b16 %v826
      %v867 = vunpack.c.h.b16 %v826
      %v868 = vunpack.c.l.b16 %v827
      %v869 = vunpack.c.h.b16 %v827
      %v870 = vunpack.c.l.b16 %v828
      %v871 = vunpack.c.h.b16 %v828
      %v872 = vunpack.c.l.b16 %v829
      %v873 = vunpack.c.h.b16 %v829
      %v874 = vunpack.c.l.b16 %v830
      %v875 = vunpack.c.h.b16 %v830
      %v876 = vunpack.c.l.b16 %v831
      %v877 = vunpack.c.h.b16 %v831
      %v878 = vunpack.c.l.b16 %v832
      %v879 = vunpack.c.h.b16 %v832
      %v880 = vunpack.c.l.b16 %v833
      %v881 = vunpack.c.h.b16 %v833
      %v882 = vpack.c.b16 %v850, %v850
      %v883 = vpack.c.b16 %v851, %v851
      %v884 = vpack.c.b16 %v852, %v852
      %v885 = vpack.c.b16 %v853, %v853
      %v886 = vpack.c.b16 %v854, %v854
      %v887 = vpack.c.b16 %v855, %v855
      %v888 = vpack.c.b16 %v856, %v856
      %v889 = vpack.c.b16 %v857, %v857
      %v890 = vpack.c.b16 %v858, %v858
      %v891 = vpack.c.b16 %v859, %v859
      %v892 = vpack.c.b16 %v860, %v860
      %v893 = vpack.c.b16 %v861, %v861
      %v894 = vpack.c.b16 %v862, %v862
      %v895 = vpack.c.b16 %v863, %v863
      %v896 = vpack.c.b16 %v864, %v864
      %v897 = vpack.c.b16 %v865, %v865
      %v898 = vpack.c.b16 %v866, %v866
      %v899 = vpack.c.b16 %v867, %v867
      %v900 = vpack.c.b16 %v868, %v868
      %v901 = vpack.c.b16 %v869, %v869
      %v902 = vpack.c.b16 %v870, %v870
      %v903 = vpack.c.b16 %v871, %v871
      %v904 = vpack.c.b16 %v872, %v872
      %v905 = vpack.c.b16 %v873, %v873
      %v906 = vpack.c.b16 %v874, %v874
      %v907 = vpack.c.b16 %v875, %v875
      %v908 = vpack.c.b16 %v876, %v876
      %v909 = vpack.c.b16 %v877, %v877
      %v910 = vpack.c.b16 %v878, %v878
      %v911 = vpack.c.b16 %v879, %v879
      %v912 = vpack.c.b16 %v880, %v880
      %v913 = vpack.c.b16 %v881, %v881
      %946 = vst [vmem:[%s257] sm:$0xf] %v882
      %947 = vst [vmem:[%s257 + $0x4] sm:$0xf] %v883
      %948 = vst [vmem:[%s257 + $0x8] sm:$0xf] %v884
      %949 = vst [vmem:[%s257 + $0xc] sm:$0xf] %v885
      %950 = vst [vmem:[%s257 + $0x10] sm:$0xf] %v886
      %951 = vst [vmem:[%s257 + $0x14] sm:$0xf] %v887
      %952 = vst [vmem:[%s257 + $0x18] sm:$0xf] %v888
      %953 = vst [vmem:[%s257 + $0x1c] sm:$0xf] %v889
      %954 = vst [vmem:[%s257 + $0x20] sm:$0xf] %v890
      %955 = vst [vmem:[%s257 + $0x24] sm:$0xf] %v891
      %956 = vst [vmem:[%s257 + $0x28] sm:$0xf] %v892
      %957 = vst [vmem:[%s257 + $0x2c] sm:$0xf] %v893
      %958 = vst [vmem:[%s257 + $0x30] sm:$0xf] %v894
      %959 = vst [vmem:[%s257 + $0x34] sm:$0xf] %v895
      %960 = vst [vmem:[%s257 + $0x38] sm:$0xf] %v896
      %961 = vst [vmem:[%s257 + $0x3c] sm:$0xf] %v897
      %962 = vst [vmem:[%s257 + $0x40] sm:$0xf] %v898
      %963 = vst [vmem:[%s257 + $0x44] sm:$0xf] %v899
      %964 = vst [vmem:[%s257 + $0x48] sm:$0xf] %v900
      %965 = vst [vmem:[%s257 + $0x4c] sm:$0xf] %v901
      %966 = vst [vmem:[%s257 + $0x50] sm:$0xf] %v902
      %967 = vst [vmem:[%s257 + $0x54] sm:$0xf] %v903
      %968 = vst [vmem:[%s257 + $0x58] sm:$0xf] %v904
      %969 = vst [vmem:[%s257 + $0x5c] sm:$0xf] %v905
      %970 = vst [vmem:[%s257 + $0x60] sm:$0xf] %v906
      %971 = vst [vmem:[%s257 + $0x64] sm:$0xf] %v907
      %972 = vst [vmem:[%s257 + $0x68] sm:$0xf] %v908
      %973 = vst [vmem:[%s257 + $0x6c] sm:$0xf] %v909
      %974 = vst [vmem:[%s257 + $0x70] sm:$0xf] %v910
      %975 = vst [vmem:[%s257 + $0x74] sm:$0xf] %v911
      %976 = vst [vmem:[%s257 + $0x78] sm:$0xf] %v912
      %977 = vst [vmem:[%s257 + $0x7c] sm:$0xf] %v913
      %s978 = smul.u32 32, %s20
      %p979 = scmp.lt.s32.totalorder %s19, 1
      %s980 = scalar_select %p979, %s19, 1
      %p981 = scmp.lt.s32.totalorder %s978, 31
      %s982 = scalar_select %p981, %s978, 31
      %s983 = smul.addr %s980, 32
      %s984 = sadd.s32 %s982, %s983
      %s985 = smul.addr %s984, 4
      %s986 = scalar_lea.vmem %s4, %s985
      // Predicated region
      $region37: #{language_model_forward.8} parent=35 // pred_check
        %p987 = pneg %p143
      $region38: #{language_model_forward.8} parent=35 // pred_check_branch
        %989 = sbr.rel (%p987) target = $region40
      $region39: #{language_model_forward.8} parent=35 // pred_region
        %s990 = smul.u32 32, %s20
      $region40: #{language_model_forward.8} parent=35 // pred_fallthru
        _
    $region36: #{language_model_forward.8} parent=5 // pred_fallthru
      _
    %p991 = scmp.le.s32.totalorder 2, %s10
    // Predicated region
    $region41: #{language_model_forward.8} parent=5 // pred_check
      %p992 = pneg %p991
    $region42: #{language_model_forward.8} parent=5 // pred_check_branch
      %994 = sbr.rel (%p992) target = $region44
    $region43: #{language_model_forward.8} parent=5 // pred_region
      %s995 = ssub.s32 %s10, 2
      // Predicated region
      $region45: #{language_model_forward.8} parent=43 // pred_check
        %p996 = pneg %p149
      $region46: #{language_model_forward.8} parent=43 // pred_check_branch
        %998 = sbr.rel (%p996) target = $region48
      $region47: #{language_model_forward.8} parent=43 // pred_region
        %s999 = smul.u32 32, %s22
        %p1000 = scmp.lt.s32.totalorder %s21, 1
        %s1001 = scalar_select %p1000, %s21, 1
        %p1002 = scmp.lt.s32.totalorder %s999, 31
        %s1003 = scalar_select %p1002, %s999, 31
        %s1004 = smul.addr %s1001, 32
        %s1005 = sadd.s32 %s1003, %s1004
        %s1006 = smul.addr %s1005, 4
        %s1007 = scalar_lea.vmem %s4, %s1006
      $region48: #{language_model_forward.8} parent=43 // pred_fallthru
        _
    $region44: #{language_model_forward.8} parent=5 // pred_fallthru
      _
  $region6: #{language_model_forward.8} parent=0 // loop_footer
    %s14 = sadd.s32 1, %s10
  $region7: #{language_model_forward.8} parent=0 // loop_footer_branch
    %9 = sbr.rel target = $region3
  $region8: #{language_model_forward.8} parent=0 // loop_exit
    _

// kernel: language_model_forward.9
$region0: #{language_model_forward.9}
  #allocation0 [shape = 'u32[]', space=smem, size = 0x4, offset = 0x4, fixed_abs, tag = 'smem constant byte address 0x4 - core index']
  #allocation1 [shape = 'u32[144,128]{1,0:T(1,128)}', space=vmem, size = 0x12000, scoped, tag = 'internal scratch']
  %s0 = inlined_call_operand.vmem [shape: bf16[512,128], index: 0, kind: input, shape index: {}]
  %s1 = inlined_call_operand.vmem [shape: bf16[128,384], index: 1, kind: input, shape index: {}]
  %s2 = inlined_call_operand.vmem [shape: f32[1,384], index: 2, kind: input, shape index: {}]
  %s3 = inlined_call_operand.vmem [shape: bf16[512,384], index: 3, kind: output, shape index: {}]
  %s4 = sld [smem:[#allocation0]]
  $region45: #{language_model_forward.9} parent=0
    _
  %s6 = ssub.s32 1, %s4
  %s7 = scalar_select 0, %s6, %s4
  loop: start=0, step=1, limit=4
  $region2: #{language_model_forward.9} parent=0 // loop_pre_header
    _
  $region3: #{language_model_forward.9} parent=0 // loop_header
    %s9 = sphi 0, %s13
    %p10 = scmp.ge.s32.totalorder %s9, 4
    %s16 = sphi 0, %s28
    %s17 = sphi 0, %s24
    %s18 = sphi 0, %s16
    %s19 = sphi 0, %s17
    %s20 = sphi 0, %s18
    %s21 = sphi 0, %s19
    %s31 = sphi 0, %s33
    %s34 = sphi 0, %s31
    %s35 = sphi 0, %s34
    %s51 = sphi 0, %s35
    %s57 = sphi 0, %s59
    %s60 = sphi 0, %s57
    %s61 = sphi 0, %s60
    %s77 = sphi 0, %s61
    %s83 = sphi 0, %s85
    %s86 = sphi 0, %s83
    %s87 = sphi 0, %s86
    %s103 = sphi 0, %s87
    %s111 = sphi 0, %s113
    %s114 = sphi 0, %s111
    %s115 = sphi 0, %s114
    %s131 = sphi 0, %s115
  $region4: #{language_model_forward.9} parent=0 // loop_header_branch
    %12 = sbr.rel (%p10) target = $region8
  $region5: #{language_model_forward.9} parent=0 // loop_body
    %s14 = ssub.s32 %s9, 1
    %s15 = ssub.s32 %s9, 2
    %s22 = sadd.s32 1, %s17
    %p23 = scmp.ge.s32.totalorder %s22, 1
    %s24 = scalar_select %p23, 0, %s22
    %s25 = sadd.s32 1, %s16
    %s26 = scalar_select %p23, %s25, %s16
    %p27 = scmp.ge.s32.totalorder %s26, 2
    %s28 = scalar_select %p27, 0, %s26
    %s29 = ssub.s32 %s16, %s28
    %p30 = scmp.eq.s32.totalorder %s29, 0
    %s32 = sadd.s32 %s31, 1
    %s33 = scalar_select %p30, %s31, %s32
    %p36 = pneg %p30
    %p37 = scmp.eq.s32.totalorder %s9, 1
    %p38 = por %p36, %p37
    %p39 = scmp.ne.s32.totalorder %s31, %s34
    %p40 = scmp.eq.s32.totalorder %s9, 0
    %p41 = por %p39, %p40
    %p42 = scmp.ne.s32.totalorder %s31, %s34
    %p43 = scmp.eq.s32.totalorder %s14, 1
    %p44 = por %p42, %p43
    %p45 = scmp.ne.s32.totalorder %s34, %s35
    %p46 = scmp.eq.s32.totalorder %s14, 0
    %p47 = por %p45, %p46
    %p48 = scmp.ne.s32.totalorder %s34, %s35
    %p49 = scmp.eq.s32.totalorder %s15, 1
    %p50 = por %p48, %p49
    %p52 = scmp.ne.s32.totalorder %s35, %s51
    %p53 = scmp.eq.s32.totalorder %s15, 0
    %p54 = por %p52, %p53
    %s55 = ssub.s32 %s17, %s24
    %p56 = scmp.eq.s32.totalorder %s55, 0
    %s58 = sadd.s32 %s57, 1
    %s59 = scalar_select %p56, %s57, %s58
    %p62 = pneg %p56
    %p63 = scmp.eq.s32.totalorder %s9, 1
    %p64 = por %p62, %p63
    %p65 = scmp.ne.s32.totalorder %s57, %s60
    %p66 = scmp.eq.s32.totalorder %s9, 0
    %p67 = por %p65, %p66
    %p68 = scmp.ne.s32.totalorder %s57, %s60
    %p69 = scmp.eq.s32.totalorder %s14, 1
    %p70 = por %p68, %p69
    %p71 = scmp.ne.s32.totalorder %s60, %s61
    %p72 = scmp.eq.s32.totalorder %s14, 0
    %p73 = por %p71, %p72
    %p74 = scmp.ne.s32.totalorder %s60, %s61
    %p75 = scmp.eq.s32.totalorder %s15, 1
    %p76 = por %p74, %p75
    %p78 = scmp.ne.s32.totalorder %s61, %s77
    %p79 = scmp.eq.s32.totalorder %s15, 0
    %p80 = por %p78, %p79
    %s81 = ssub.s32 %s17, %s24
    %p82 = scmp.eq.s32.totalorder %s81, 0
    %s84 = sadd.s32 %s83, 1
    %s85 = scalar_select %p82, %s83, %s84
    %p88 = pneg %p82
    %p89 = scmp.eq.s32.totalorder %s9, 1
    %p90 = por %p88, %p89
    %p91 = scmp.ne.s32.totalorder %s83, %s86
    %p92 = scmp.eq.s32.totalorder %s9, 0
    %p93 = por %p91, %p92
    %p94 = scmp.ne.s32.totalorder %s83, %s86
    %p95 = scmp.eq.s32.totalorder %s14, 1
    %p96 = por %p94, %p95
    %p97 = scmp.ne.s32.totalorder %s86, %s87
    %p98 = scmp.eq.s32.totalorder %s14, 0
    %p99 = por %p97, %p98
    %p100 = scmp.ne.s32.totalorder %s86, %s87
    %p101 = scmp.eq.s32.totalorder %s15, 1
    %p102 = por %p100, %p101
    %p104 = scmp.ne.s32.totalorder %s87, %s103
    %p105 = scmp.eq.s32.totalorder %s15, 0
    %p106 = por %p104, %p105
    %s107 = ssub.s32 %s16, %s28
    %s108 = ssub.s32 %s17, %s24
    %s109 = sor.u32 %s107, %s108
    %p110 = scmp.eq.s32.totalorder %s109, 0
    %s112 = sadd.s32 %s111, 1
    %s113 = scalar_select %p110, %s111, %s112
    %p116 = pneg %p110
    %p117 = scmp.eq.s32.totalorder %s9, 1
    %p118 = por %p116, %p117
    %p119 = scmp.ne.s32.totalorder %s111, %s114
    %p120 = scmp.eq.s32.totalorder %s9, 0
    %p121 = por %p119, %p120
    %p122 = scmp.ne.s32.totalorder %s111, %s114
    %p123 = scmp.eq.s32.totalorder %s14, 1
    %p124 = por %p122, %p123
    %p125 = scmp.ne.s32.totalorder %s114, %s115
    %p126 = scmp.eq.s32.totalorder %s14, 0
    %p127 = por %p125, %p126
    %p128 = scmp.ne.s32.totalorder %s114, %s115
    %p129 = scmp.eq.s32.totalorder %s15, 1
    %p130 = por %p128, %p129
    %p132 = scmp.ne.s32.totalorder %s115, %s131
    %p133 = scmp.eq.s32.totalorder %s15, 0
    %p134 = por %p132, %p133
    %p135 = scmp.le.s32.totalorder 1, %s9
    %p136 = scmp.lt.s32.totalorder %s9, 3
    %p137 = pnand %p135, %p136
    %p138 = pneg %p137
    // Predicated region
    $region9: #{language_model_forward.9} parent=5 // pred_check
      _
    $region10: #{language_model_forward.9} parent=5 // pred_check_branch
      %140 = sbr.rel (%p137) target = $region12
    $region11: #{language_model_forward.9} parent=5 // pred_region
      %s141 = ssub.s32 %s9, 1
      // Predicated region
      $region13: #{language_model_forward.9} parent=11 // pred_check
        %p142 = pneg %p73
      $region14: #{language_model_forward.9} parent=11 // pred_check_branch
        %144 = sbr.rel (%p142) target = $region16
      $region15: #{language_model_forward.9} parent=11 // pred_region
        %s145 = smul.u32 3, %s19
        %p146 = scmp.lt.s32.totalorder %s145, 2
        %s147 = scalar_select %p146, %s145, 2
        %s148 = smul.addr %s147, 4
        %s149 = scalar_lea.vmem %s1, %s148
        %s150 = smul.u32 3, %s19
      $region16: #{language_model_forward.9} parent=11 // pred_fallthru
        _
      // Predicated region
      $region17: #{language_model_forward.9} parent=11 // pred_check
        %p151 = pneg %p99
      $region18: #{language_model_forward.9} parent=11 // pred_check_branch
        %153 = sbr.rel (%p151) target = $region20
      $region19: #{language_model_forward.9} parent=11 // pred_region
        %s154 = smul.u32 3, %s19
        %p155 = scmp.lt.s32.totalorder %s154, 2
        %s156 = scalar_select %p155, %s154, 2
        %s157 = scalar_lea.vmem %s2, %s156
        %s158 = smul.u32 3, %s19
      $region20: #{language_model_forward.9} parent=11 // pred_fallthru
        _
    $region12: #{language_model_forward.9} parent=5 // pred_fallthru
      _
    %p159 = scmp.lt.s32.totalorder %s9, 2
    // Predicated region
    $region21: #{language_model_forward.9} parent=5 // pred_check
      %p160 = pneg %p159
    $region22: #{language_model_forward.9} parent=5 // pred_check_branch
      %162 = sbr.rel (%p160) target = $region24
    $region23: #{language_model_forward.9} parent=5 // pred_region
      // Predicated region
      $region25: #{language_model_forward.9} parent=23 // pred_check
        %p163 = pneg %p41
      $region26: #{language_model_forward.9} parent=23 // pred_check_branch
        %165 = sbr.rel (%p163) target = $region28
      $region27: #{language_model_forward.9} parent=23 // pred_region
        %s166 = smul.u32 32, %s16
        %p167 = scmp.lt.s32.totalorder %s166, 63
        %s168 = scalar_select %p167, %s166, 63
        %s169 = smul.addr %s168, 4
        %s170 = scalar_lea.vmem %s0, %s169
        %s171 = smul.u32 32, %s16
      $region28: #{language_model_forward.9} parent=23 // pred_fallthru
        _
    $region24: #{language_model_forward.9} parent=5 // pred_fallthru
      _
    %p172 = scmp.le.s32.totalorder 1, %s9
    %p173 = scmp.lt.s32.totalorder %s9, 3
    %p174 = pnand %p172, %p173
    %p175 = pneg %p174
    // Predicated region
    $region29: #{language_model_forward.9} parent=5 // pred_check
      _
    $region30: #{language_model_forward.9} parent=5 // pred_check_branch
      %177 = sbr.rel (%p174) target = $region32
    $region31: #{language_model_forward.9} parent=5 // pred_region
      %s178 = ssub.s32 %s9, 1
      %s179 = smul.u32 32, %s18
      %p180 = scmp.lt.s32.totalorder %s179, 63
      %s181 = scalar_select %p180, %s179, 63
      %s182 = smul.addr %s181, 4
      %s183 = scalar_lea.vmem %s0, %s182
      %p184 = pneg %p47
      %p185 = pneg %p44
      %s186 = smul.u32 3, %s19
      %p187 = scmp.lt.s32.totalorder %s186, 2
      %s188 = scalar_select %p187, %s186, 2
      %s189 = smul.addr %s188, 4
      %s190 = scalar_lea.vmem %s1, %s189
      %p191 = pneg %p73
      %p192 = pneg %p70
      %s193 = smul.u32 3, %s19
      %p194 = scmp.lt.s32.totalorder %s193, 2
      %s195 = scalar_select %p194, %s193, 2
      %s196 = scalar_lea.vmem %s2, %s195
      %p197 = pneg %p99
      %p198 = pneg %p96
      %p199 = pneg %p127
      %p200 = pneg %p124
      %s201 = smul.u32 32, %s18
      %s202 = smul.u32 3, %s19
      %p203 = scmp.lt.s32.totalorder %s201, 63
      %s204 = scalar_select %p203, %s201, 63
      %p205 = scmp.lt.s32.totalorder %s202, 2
      %s206 = scalar_select %p205, %s202, 2
      %s207 = smul.addr %s204, 3
      %s208 = sadd.s32 %s206, %s207
      %s209 = smul.addr %s208, 4
      %s210 = scalar_lea.vmem %s3, %s209
      %s211 = smul.u32 32, %s18
      %p212 = scmp.lt.s32.totalorder %s211, 63
      %s213 = scalar_select %p212, %s211, 63
      %s214 = smul.addr %s213, 4
      %s215 = scalar_lea.vmem %s0, %s214
      %s216 = smul.u32 32, %s18
      %s217 = smul.u32 3, %s19
      %p218 = scmp.lt.s32.totalorder %s217, 2
      %s219 = scalar_select %p218, %s217, 2
      %s220 = smul.addr %s219, 4
      %s221 = scalar_lea.vmem %s1, %s220
      %s222 = smul.u32 3, %s19
      %s223 = smul.u32 3, %s19
      %p224 = scmp.lt.s32.totalorder %s223, 2
      %s225 = scalar_select %p224, %s223, 2
      %s226 = scalar_lea.vmem %s2, %s225
      %s227 = smul.u32 3, %s19
      %s228 = smul.u32 32, %s18
      %s229 = smul.u32 3, %s19
      %p230 = scmp.lt.s32.totalorder %s228, 63
      %s231 = scalar_select %p230, %s228, 63
      %p232 = scmp.lt.s32.totalorder %s229, 2
      %s233 = scalar_select %p232, %s229, 2
      %s234 = smul.addr %s231, 3
      %s235 = sadd.s32 %s233, %s234
      %s236 = smul.addr %s235, 4
      %s237 = scalar_lea.vmem %s3, %s236
      %s238 = smul.u32 32, %s18
      %s239 = smul.u32 3, %s19
      %v241 = vld [vmem:[%s215] sm:$0xf]
      %v242 = vld [vmem:[%s215 + $0x4] sm:$0xf]
      %v243 = vld [vmem:[%s215 + $0x8] sm:$0xf]
      %v244 = vld [vmem:[%s215 + $0xc] sm:$0xf]
      %v245 = vld [vmem:[%s215 + $0x10] sm:$0xf]
      %v246 = vld [vmem:[%s215 + $0x14] sm:$0xf]
      %v247 = vld [vmem:[%s215 + $0x18] sm:$0xf]
      %v248 = vld [vmem:[%s215 + $0x1c] sm:$0xf]
      %v249 = vld [vmem:[%s215 + $0x20] sm:$0xf]
      %v250 = vld [vmem:[%s215 + $0x24] sm:$0xf]
      %v251 = vld [vmem:[%s215 + $0x28] sm:$0xf]
      %v252 = vld [vmem:[%s215 + $0x2c] sm:$0xf]
      %v253 = vld [vmem:[%s215 + $0x30] sm:$0xf]
      %v254 = vld [vmem:[%s215 + $0x34] sm:$0xf]
      %v255 = vld [vmem:[%s215 + $0x38] sm:$0xf]
      %v256 = vld [vmem:[%s215 + $0x3c] sm:$0xf]
      %v257 = vld [vmem:[%s215 + $0x40] sm:$0xf]
      %v258 = vld [vmem:[%s215 + $0x44] sm:$0xf]
      %v259 = vld [vmem:[%s215 + $0x48] sm:$0xf]
      %v260 = vld [vmem:[%s215 + $0x4c] sm:$0xf]
      %v261 = vld [vmem:[%s215 + $0x50] sm:$0xf]
      %v262 = vld [vmem:[%s215 + $0x54] sm:$0xf]
      %v263 = vld [vmem:[%s215 + $0x58] sm:$0xf]
      %v264 = vld [vmem:[%s215 + $0x5c] sm:$0xf]
      %v265 = vld [vmem:[%s215 + $0x60] sm:$0xf]
      %v266 = vld [vmem:[%s215 + $0x64] sm:$0xf]
      %v267 = vld [vmem:[%s215 + $0x68] sm:$0xf]
      %v268 = vld [vmem:[%s215 + $0x6c] sm:$0xf]
      %v269 = vld [vmem:[%s215 + $0x70] sm:$0xf]
      %v270 = vld [vmem:[%s215 + $0x74] sm:$0xf]
      %v271 = vld [vmem:[%s215 + $0x78] sm:$0xf]
      %v272 = vld [vmem:[%s215 + $0x7c] sm:$0xf]
      %v273 = vld [vmem:[%s221] sm:$0xff]
      %v274 = vld [vmem:[%s221 + $0x8] sm:$0xf]
      %v275 = vld [vmem:[%s221 + $0xc] sm:$0xff]
      %v276 = vld [vmem:[%s221 + $0x14] sm:$0xf]
      %v277 = vld [vmem:[%s221 + $0x18] sm:$0xff]
      %v278 = vld [vmem:[%s221 + $0x20] sm:$0xf]
      %v279 = vld [vmem:[%s221 + $0x24] sm:$0xff]
      %v280 = vld [vmem:[%s221 + $0x2c] sm:$0xf]
      %v281 = vld [vmem:[%s221 + $0x30] sm:$0xff]
      %v282 = vld [vmem:[%s221 + $0x38] sm:$0xf]
      %v283 = vld [vmem:[%s221 + $0x3c] sm:$0xff]
      %v284 = vld [vmem:[%s221 + $0x44] sm:$0xf]
      %v285 = vld [vmem:[%s221 + $0x48] sm:$0xff]
      %v286 = vld [vmem:[%s221 + $0x50] sm:$0xf]
      %v287 = vld [vmem:[%s221 + $0x54] sm:$0xff]
      %v288 = vld [vmem:[%s221 + $0x5c] sm:$0xf]
      %v289 = vld [vmem:[%s221 + $0x60] sm:$0xff]
      %v290 = vld [vmem:[%s221 + $0x68] sm:$0xf]
      %v291 = vld [vmem:[%s221 + $0x6c] sm:$0xff]
      %v292 = vld [vmem:[%s221 + $0x74] sm:$0xf]
      %v293 = vld [vmem:[%s221 + $0x78] sm:$0xff]
      %v294 = vld [vmem:[%s221 + $0x80] sm:$0xf]
      %v295 = vld [vmem:[%s221 + $0x84] sm:$0xff]
      %v296 = vld [vmem:[%s221 + $0x8c] sm:$0xf]
      %v297 = vld [vmem:[%s221 + $0x90] sm:$0xff]
      %v298 = vld [vmem:[%s221 + $0x98] sm:$0xf]
      %v299 = vld [vmem:[%s221 + $0x9c] sm:$0xff]
      %v300 = vld [vmem:[%s221 + $0xa4] sm:$0xf]
      %v301 = vld [vmem:[%s221 + $0xa8] sm:$0xff]
      %v302 = vld [vmem:[%s221 + $0xb0] sm:$0xf]
      %v303 = vld [vmem:[%s221 + $0xb4] sm:$0xff]
      %v304 = vld [vmem:[%s221 + $0xbc] sm:$0xf]
      %v305 = vld [vmem:[%s226] sm:$0x7]
      %v307 = vlaneseq
      %v308 = vshrl.u32 %v307, 7
      %v309 = vsub.s32 0, %v308
      %v310 = vrot.slane %v305, %v309
      %v311 = vlaneseq
      %v312 = vshrl.u32 %v311, 7
      %v313 = vsub.s32 1, %v312
      %v314 = vrot.slane %v305, %v313
      %v315 = vlaneseq
      %v316 = vshrl.u32 %v315, 7
      %v317 = vsub.s32 2, %v316
      %v318 = vrot.slane %v305, %v317
      %v354 = vunpack.c.l.b16 %v241
      %v355 = vunpack.c.l.b16 %v242
      %v356 = vunpack.c.l.b16 %v243
      %v357 = vunpack.c.l.b16 %v244
      %v358 = vunpack.c.l.b16 %v245
      %v359 = vunpack.c.l.b16 %v246
      %v360 = vunpack.c.l.b16 %v247
      %v361 = vunpack.c.l.b16 %v248
      %v362 = vunpack.c.l.b16 %v249
      %v363 = vunpack.c.l.b16 %v250
      %v364 = vunpack.c.l.b16 %v251
      %v365 = vunpack.c.l.b16 %v252
      %v366 = vunpack.c.l.b16 %v253
      %v367 = vunpack.c.l.b16 %v254
      %v368 = vunpack.c.l.b16 %v255
      %v369 = vunpack.c.l.b16 %v256
      %v370 = vunpack.c.l.b16 %v257
      %v371 = vunpack.c.l.b16 %v258
      %v372 = vunpack.c.l.b16 %v259
      %v373 = vunpack.c.l.b16 %v260
      %v374 = vunpack.c.l.b16 %v261
      %v375 = vunpack.c.l.b16 %v262
      %v376 = vunpack.c.l.b16 %v263
      %v377 = vunpack.c.l.b16 %v264
      %v378 = vunpack.c.l.b16 %v265
      %v379 = vunpack.c.l.b16 %v266
      %v380 = vunpack.c.l.b16 %v267
      %v381 = vunpack.c.l.b16 %v268
      %v382 = vunpack.c.l.b16 %v269
      %v383 = vunpack.c.l.b16 %v270
      %v384 = vunpack.c.l.b16 %v271
      %v385 = vunpack.c.l.b16 %v272
      %v386 = vpack.c.b16 %v355, %v354
      %v387 = vpack.c.b16 %v357, %v356
      %v388 = vpack.c.b16 %v359, %v358
      %v389 = vpack.c.b16 %v361, %v360
      %v390 = vpack.c.b16 %v363, %v362
      %v391 = vpack.c.b16 %v365, %v364
      %v392 = vpack.c.b16 %v367, %v366
      %v393 = vpack.c.b16 %v369, %v368
      %v394 = vpack.c.b16 %v371, %v370
      %v395 = vpack.c.b16 %v373, %v372
      %v396 = vpack.c.b16 %v375, %v374
      %v397 = vpack.c.b16 %v377, %v376
      %v398 = vpack.c.b16 %v379, %v378
      %v399 = vpack.c.b16 %v381, %v380
      %v400 = vpack.c.b16 %v383, %v382
      %v401 = vpack.c.b16 %v385, %v384
      %v450 = vunpack.c.l.b16 %v273
      %v451 = vunpack.c.h.b16 %v273
      %v452 = vunpack.c.l.b16 %v274
      %v453 = vunpack.c.l.b16 %v275
      %v454 = vunpack.c.h.b16 %v275
      %v455 = vunpack.c.l.b16 %v276
      %v456 = vunpack.c.l.b16 %v277
      %v457 = vunpack.c.h.b16 %v277
      %v458 = vunpack.c.l.b16 %v278
      %v459 = vunpack.c.l.b16 %v279
      %v460 = vunpack.c.h.b16 %v279
      %v461 = vunpack.c.l.b16 %v280
      %v462 = vunpack.c.l.b16 %v281
      %v463 = vunpack.c.h.b16 %v281
      %v464 = vunpack.c.l.b16 %v282
      %v465 = vunpack.c.l.b16 %v283
      %v466 = vunpack.c.h.b16 %v283
      %v467 = vunpack.c.l.b16 %v284
      %v468 = vunpack.c.l.b16 %v285
      %v469 = vunpack.c.h.b16 %v285
      %v470 = vunpack.c.l.b16 %v286
      %v471 = vunpack.c.l.b16 %v287
      %v472 = vunpack.c.h.b16 %v287
      %v473 = vunpack.c.l.b16 %v288
      %v474 = vunpack.c.l.b16 %v289
      %v475 = vunpack.c.h.b16 %v289
      %v476 = vunpack.c.l.b16 %v290
      %v477 = vunpack.c.l.b16 %v291
      %v478 = vunpack.c.h.b16 %v291
      %v479 = vunpack.c.l.b16 %v292
      %v480 = vunpack.c.l.b16 %v293
      %v481 = vunpack.c.h.b16 %v293
      %v482 = vunpack.c.l.b16 %v294
      %v483 = vunpack.c.l.b16 %v295
      %v484 = vunpack.c.h.b16 %v295
      %v485 = vunpack.c.l.b16 %v296
      %v486 = vunpack.c.l.b16 %v297
      %v487 = vunpack.c.h.b16 %v297
      %v488 = vunpack.c.l.b16 %v298
      %v489 = vunpack.c.l.b16 %v299
      %v490 = vunpack.c.h.b16 %v299
      %v491 = vunpack.c.l.b16 %v300
      %v492 = vunpack.c.l.b16 %v301
      %v493 = vunpack.c.h.b16 %v301
      %v494 = vunpack.c.l.b16 %v302
      %v495 = vunpack.c.l.b16 %v303
      %v496 = vunpack.c.h.b16 %v303
      %v497 = vunpack.c.l.b16 %v304
      %v498 = vpack.c.b16 %v453, %v450
      %v499 = vpack.c.b16 %v454, %v451
      %v500 = vpack.c.b16 %v455, %v452
      %v501 = vpack.c.b16 %v459, %v456
      %v502 = vpack.c.b16 %v460, %v457
      %v503 = vpack.c.b16 %v461, %v458
      %v504 = vpack.c.b16 %v465, %v462
      %v505 = vpack.c.b16 %v466, %v463
      %v506 = vpack.c.b16 %v467, %v464
      %v507 = vpack.c.b16 %v471, %v468
      %v508 = vpack.c.b16 %v472, %v469
      %v509 = vpack.c.b16 %v473, %v470
      %v510 = vpack.c.b16 %v477, %v474
      %v511 = vpack.c.b16 %v478, %v475
      %v512 = vpack.c.b16 %v479, %v476
      %v513 = vpack.c.b16 %v483, %v480
      %v514 = vpack.c.b16 %v484, %v481
      %v515 = vpack.c.b16 %v485, %v482
      %v516 = vpack.c.b16 %v489, %v486
      %v517 = vpack.c.b16 %v490, %v487
      %v518 = vpack.c.b16 %v491, %v488
      %v519 = vpack.c.b16 %v495, %v492
      %v520 = vpack.c.b16 %v496, %v493
      %v521 = vpack.c.b16 %v497, %v494
      %546 = vmatprep.subr.bf16.mxu0 %v520
      %547 = vmatpush1.bf16.msra.mxu0 %v519
      %548 = vmatprep.subr.bf16.mxu0 %v517
      %549 = vmatpush1.bf16.msra.mxu0 %v516
      %550 = vmatprep.subr.bf16.mxu0 %v514
      %551 = vmatpush1.bf16.msra.mxu0 %v513
      %552 = vmatprep.subr.bf16.mxu0 %v511
      %553 = vmatpush1.bf16.msra.mxu0 %v510
      %554 = vmatprep.subr.bf16.mxu0 %v508
      %555 = vmatpush1.bf16.msra.mxu0 %v507
      %556 = vmatprep.subr.bf16.mxu0 %v505
      %557 = vmatpush1.bf16.msra.mxu0 %v504
      %558 = vmatprep.subr.bf16.mxu0 %v502
      %559 = vmatpush1.bf16.msra.mxu0 %v501
      %560 = vmatprep.subr.bf16.mxu0 %v499
      %561 = vmatpush1.bf16.msra.mxu0 %v498
      %562 = vmatprep.subr.bf16.mxu0 0
      %563 = vmatpush2.bf16.msra.mxu0 0
      %564 = vmatprep.subr.bf16.mxu0 0
      %565 = vmatpush2.bf16.msra.mxu0 0
      %566 = vmatprep.subr.bf16.mxu0 0
      %567 = vmatpush2.bf16.msra.mxu0 0
      %568 = vmatprep.subr.bf16.mxu0 0
      %569 = vmatpush2.bf16.msra.mxu0 0
      %570 = vmatprep.subr.bf16.mxu0 0
      %571 = vmatpush2.bf16.msra.mxu0 0
      %572 = vmatprep.subr.bf16.mxu0 0
      %573 = vmatpush2.bf16.msra.mxu0 0
      %574 = vmatprep.subr.bf16.mxu0 0
      %575 = vmatpush2.bf16.msra.mxu0 0
      %576 = vmatprep.subr.bf16.mxu0 0
      %577 = vmatpush2.bf16.msra.mxu0 0
      %578 = vmatprep.mubr.bf16.mxu0 0
      %579 = vmatmul.mubr.bf16.gmra.mxu0 %v386
      %v580 = vpop.f32.mrf.mxu0
      %v581 = vadd.f32 %v310, %v580
      %v582 = vpop.f32.mrf.mxu0
      %v583 = vadd.f32 %v314, %v582
      %v584 = vpop.f32.mrf.mxu0
      %v585 = vadd.f32 %v310, %v584
      %v586 = vpop.f32.mrf.mxu0
      %v587 = vadd.f32 %v314, %v586
      %588 = vmatprep.mubr.bf16.mxu0 0
      %589 = vmatmul.mubr.bf16.gmra.mxu0 %v387
      %v590 = vpop.f32.mrf.mxu0
      %v591 = vadd.f32 %v310, %v590
      %v592 = vpop.f32.mrf.mxu0
      %v593 = vadd.f32 %v314, %v592
      %v594 = vpop.f32.mrf.mxu0
      %v595 = vadd.f32 %v310, %v594
      %v596 = vpop.f32.mrf.mxu0
      %v597 = vadd.f32 %v314, %v596
      %598 = vmatprep.mubr.bf16.mxu0 0
      %599 = vmatmul.mubr.bf16.gmra.mxu0 %v388
      %v600 = vpop.f32.mrf.mxu0
      %v601 = vadd.f32 %v310, %v600
      %v602 = vpop.f32.mrf.mxu0
      %v603 = vadd.f32 %v314, %v602
      %v604 = vpop.f32.mrf.mxu0
      %v605 = vadd.f32 %v310, %v604
      %v606 = vpop.f32.mrf.mxu0
      %v607 = vadd.f32 %v314, %v606
      %608 = vmatprep.mubr.bf16.mxu0 0
      %609 = vmatmul.mubr.bf16.gmra.mxu0 %v389
      %v610 = vpop.f32.mrf.mxu0
      %v611 = vadd.f32 %v310, %v610
      %v612 = vpop.f32.mrf.mxu0
      %v613 = vadd.f32 %v314, %v612
      %v614 = vpop.f32.mrf.mxu0
      %v615 = vadd.f32 %v310, %v614
      %v616 = vpop.f32.mrf.mxu0
      %v617 = vadd.f32 %v314, %v616
      %618 = vmatprep.mubr.bf16.mxu0 0
      %619 = vmatmul.mubr.bf16.gmra.mxu0 %v390
      %v620 = vpop.f32.mrf.mxu0
      %v621 = vadd.f32 %v310, %v620
      %v622 = vpop.f32.mrf.mxu0
      %v623 = vadd.f32 %v314, %v622
      %v624 = vpop.f32.mrf.mxu0
      %v625 = vadd.f32 %v310, %v624
      %v626 = vpop.f32.mrf.mxu0
      %v627 = vadd.f32 %v314, %v626
      %628 = vmatprep.mubr.bf16.mxu0 0
      %629 = vmatmul.mubr.bf16.gmra.mxu0 %v391
      %v630 = vpop.f32.mrf.mxu0
      %v631 = vadd.f32 %v310, %v630
      %v632 = vpop.f32.mrf.mxu0
      %v633 = vadd.f32 %v314, %v632
      %v634 = vpop.f32.mrf.mxu0
      %v635 = vadd.f32 %v310, %v634
      %v636 = vpop.f32.mrf.mxu0
      %v637 = vadd.f32 %v314, %v636
      %638 = vmatprep.mubr.bf16.mxu0 0
      %639 = vmatmul.mubr.bf16.gmra.mxu0 %v392
      %v640 = vpop.f32.mrf.mxu0
      %v641 = vadd.f32 %v310, %v640
      %v642 = vpop.f32.mrf.mxu0
      %v643 = vadd.f32 %v314, %v642
      %v644 = vpop.f32.mrf.mxu0
      %v645 = vadd.f32 %v310, %v644
      %v646 = vpop.f32.mrf.mxu0
      %v647 = vadd.f32 %v314, %v646
      %648 = vmatprep.mubr.bf16.mxu0 0
      %649 = vmatmul.mubr.bf16.gmra.mxu0 %v393
      %v650 = vpop.f32.mrf.mxu0
      %v651 = vadd.f32 %v310, %v650
      %v652 = vpop.f32.mrf.mxu0
      %v653 = vadd.f32 %v314, %v652
      %v654 = vpop.f32.mrf.mxu0
      %v655 = vadd.f32 %v310, %v654
      %v656 = vpop.f32.mrf.mxu0
      %v657 = vadd.f32 %v314, %v656
      %658 = vmatprep.mubr.bf16.mxu0 0
      %659 = vmatmul.mubr.bf16.gmra.mxu0 %v394
      %v660 = vpop.f32.mrf.mxu0
      %v661 = vadd.f32 %v310, %v660
      %v662 = vpop.f32.mrf.mxu0
      %v663 = vadd.f32 %v314, %v662
      %v664 = vpop.f32.mrf.mxu0
      %v665 = vadd.f32 %v310, %v664
      %v666 = vpop.f32.mrf.mxu0
      %v667 = vadd.f32 %v314, %v666
      %668 = vmatprep.mubr.bf16.mxu0 0
      %669 = vmatmul.mubr.bf16.gmra.mxu0 %v395
      %v670 = vpop.f32.mrf.mxu0
      %v671 = vadd.f32 %v310, %v670
      %v672 = vpop.f32.mrf.mxu0
      %v673 = vadd.f32 %v314, %v672
      %v674 = vpop.f32.mrf.mxu0
      %v675 = vadd.f32 %v310, %v674
      %v676 = vpop.f32.mrf.mxu0
      %v677 = vadd.f32 %v314, %v676
      %678 = vmatprep.mubr.bf16.mxu0 0
      %679 = vmatmul.mubr.bf16.gmra.mxu0 %v396
      %v680 = vpop.f32.mrf.mxu0
      %v681 = vadd.f32 %v310, %v680
      %v682 = vpop.f32.mrf.mxu0
      %v683 = vadd.f32 %v314, %v682
      %v684 = vpop.f32.mrf.mxu0
      %v685 = vadd.f32 %v310, %v684
      %v686 = vpop.f32.mrf.mxu0
      %v687 = vadd.f32 %v314, %v686
      %688 = vmatprep.mubr.bf16.mxu0 0
      %689 = vmatmul.mubr.bf16.gmra.mxu0 %v397
      %v690 = vpop.f32.mrf.mxu0
      %v691 = vadd.f32 %v310, %v690
      %v692 = vpop.f32.mrf.mxu0
      %v693 = vadd.f32 %v314, %v692
      %v694 = vpop.f32.mrf.mxu0
      %v695 = vadd.f32 %v310, %v694
      %v696 = vpop.f32.mrf.mxu0
      %v697 = vadd.f32 %v314, %v696
      %698 = vmatprep.mubr.bf16.mxu0 0
      %699 = vmatmul.mubr.bf16.gmra.mxu0 %v398
      %v700 = vpop.f32.mrf.mxu0
      %v701 = vadd.f32 %v310, %v700
      %v702 = vpop.f32.mrf.mxu0
      %v703 = vadd.f32 %v314, %v702
      %v704 = vpop.f32.mrf.mxu0
      %v705 = vadd.f32 %v310, %v704
      %v706 = vpop.f32.mrf.mxu0
      %v707 = vadd.f32 %v314, %v706
      %708 = vmatprep.mubr.bf16.mxu0 0
      %709 = vmatmul.mubr.bf16.gmra.mxu0 %v399
      %v710 = vpop.f32.mrf.mxu0
      %v711 = vadd.f32 %v310, %v710
      %v712 = vpop.f32.mrf.mxu0
      %v713 = vadd.f32 %v314, %v712
      %v714 = vpop.f32.mrf.mxu0
      %v715 = vadd.f32 %v310, %v714
      %v716 = vpop.f32.mrf.mxu0
      %v717 = vadd.f32 %v314, %v716
      %718 = vmatprep.mubr.bf16.mxu0 0
      %719 = vmatmul.mubr.bf16.gmra.mxu0 %v400
      %v720 = vpop.f32.mrf.mxu0
      %v721 = vadd.f32 %v310, %v720
      %v722 = vpop.f32.mrf.mxu0
      %v723 = vadd.f32 %v314, %v722
      %v724 = vpop.f32.mrf.mxu0
      %v725 = vadd.f32 %v310, %v724
      %v726 = vpop.f32.mrf.mxu0
      %v727 = vadd.f32 %v314, %v726
      %728 = vmatprep.mubr.bf16.mxu0 0
      %729 = vmatmul.mubr.bf16.gmra.mxu0 %v401
      %v730 = vpop.f32.mrf.mxu0
      %v731 = vadd.f32 %v310, %v730
      %v732 = vpop.f32.mrf.mxu0
      %v733 = vadd.f32 %v314, %v732
      %v734 = vpop.f32.mrf.mxu0
      %v735 = vadd.f32 %v310, %v734
      %v736 = vpop.f32.mrf.mxu0
      %v737 = vadd.f32 %v314, %v736
      %738 = vdwg.mxu0
      %739 = vmatprep.subr.bf16.mxu0 0
      %740 = vmatpush1.bf16.msra.mxu0 %v521
      %741 = vmatprep.subr.bf16.mxu0 0
      %742 = vmatpush1.bf16.msra.mxu0 %v518
      %743 = vmatprep.subr.bf16.mxu0 0
      %744 = vmatpush1.bf16.msra.mxu0 %v515
      %745 = vmatprep.subr.bf16.mxu0 0
      %746 = vmatpush1.bf16.msra.mxu0 %v512
      %747 = vmatprep.subr.bf16.mxu0 0
      %748 = vmatpush1.bf16.msra.mxu0 %v509
      %749 = vmatprep.subr.bf16.mxu0 0
      %750 = vmatpush1.bf16.msra.mxu0 %v506
      %751 = vmatprep.subr.bf16.mxu0 0
      %752 = vmatpush1.bf16.msra.mxu0 %v503
      %753 = vmatprep.subr.bf16.mxu0 0
      %754 = vmatpush1.bf16.msra.mxu0 %v500
      %755 = vmatprep.subr.bf16.mxu0 0
      %756 = vmatpush2.bf16.msra.mxu0 0
      %757 = vmatprep.subr.bf16.mxu0 0
      %758 = vmatpush2.bf16.msra.mxu0 0
      %759 = vmatprep.subr.bf16.mxu0 0
      %760 = vmatpush2.bf16.msra.mxu0 0
      %761 = vmatprep.subr.bf16.mxu0 0
      %762 = vmatpush2.bf16.msra.mxu0 0
      %763 = vmatprep.subr.bf16.mxu0 0
      %764 = vmatpush2.bf16.msra.mxu0 0
      %765 = vmatprep.subr.bf16.mxu0 0
      %766 = vmatpush2.bf16.msra.mxu0 0
      %767 = vmatprep.subr.bf16.mxu0 0
      %768 = vmatpush2.bf16.msra.mxu0 0
      %769 = vmatprep.subr.bf16.mxu0 0
      %770 = vmatpush2.bf16.msra.mxu0 0
      %771 = vmatprep.mubr.bf16.mxu0 0
      %772 = vmatmul.mubr.bf16.gmra.mxu0 %v386
      %v773 = vpop.f32.mrf.mxu0
      %v774 = vadd.f32 %v318, %v773
      %v775 = vpop.f32.mrf.mxu0
      %v776 = vpop.f32.mrf.mxu0
      %v777 = vadd.f32 %v318, %v776
      %v778 = vpop.f32.mrf.mxu0
      %779 = vmatprep.mubr.bf16.mxu0 0
      %780 = vmatmul.mubr.bf16.gmra.mxu0 %v387
      %v781 = vpop.f32.mrf.mxu0
      %v782 = vadd.f32 %v318, %v781
      %v783 = vpop.f32.mrf.mxu0
      %v784 = vpop.f32.mrf.mxu0
      %v785 = vadd.f32 %v318, %v784
      %v786 = vpop.f32.mrf.mxu0
      %787 = vmatprep.mubr.bf16.mxu0 0
      %788 = vmatmul.mubr.bf16.gmra.mxu0 %v388
      %v789 = vpop.f32.mrf.mxu0
      %v790 = vadd.f32 %v318, %v789
      %v791 = vpop.f32.mrf.mxu0
      %v792 = vpop.f32.mrf.mxu0
      %v793 = vadd.f32 %v318, %v792
      %v794 = vpop.f32.mrf.mxu0
      %795 = vmatprep.mubr.bf16.mxu0 0
      %796 = vmatmul.mubr.bf16.gmra.mxu0 %v389
      %v797 = vpop.f32.mrf.mxu0
      %v798 = vadd.f32 %v318, %v797
      %v799 = vpop.f32.mrf.mxu0
      %v800 = vpop.f32.mrf.mxu0
      %v801 = vadd.f32 %v318, %v800
      %v802 = vpop.f32.mrf.mxu0
      %803 = vmatprep.mubr.bf16.mxu0 0
      %804 = vmatmul.mubr.bf16.gmra.mxu0 %v390
      %v805 = vpop.f32.mrf.mxu0
      %v806 = vadd.f32 %v318, %v805
      %v807 = vpop.f32.mrf.mxu0
      %v808 = vpop.f32.mrf.mxu0
      %v809 = vadd.f32 %v318, %v808
      %v810 = vpop.f32.mrf.mxu0
      %811 = vmatprep.mubr.bf16.mxu0 0
      %812 = vmatmul.mubr.bf16.gmra.mxu0 %v391
      %v813 = vpop.f32.mrf.mxu0
      %v814 = vadd.f32 %v318, %v813
      %v815 = vpop.f32.mrf.mxu0
      %v816 = vpop.f32.mrf.mxu0
      %v817 = vadd.f32 %v318, %v816
      %v818 = vpop.f32.mrf.mxu0
      %819 = vmatprep.mubr.bf16.mxu0 0
      %820 = vmatmul.mubr.bf16.gmra.mxu0 %v392
      %v821 = vpop.f32.mrf.mxu0
      %v822 = vadd.f32 %v318, %v821
      %v823 = vpop.f32.mrf.mxu0
      %v824 = vpop.f32.mrf.mxu0
      %v825 = vadd.f32 %v318, %v824
      %v826 = vpop.f32.mrf.mxu0
      %827 = vmatprep.mubr.bf16.mxu0 0
      %828 = vmatmul.mubr.bf16.gmra.mxu0 %v393
      %v829 = vpop.f32.mrf.mxu0
      %v830 = vadd.f32 %v318, %v829
      %v831 = vpop.f32.mrf.mxu0
      %v832 = vpop.f32.mrf.mxu0
      %v833 = vadd.f32 %v318, %v832
      %v834 = vpop.f32.mrf.mxu0
      %835 = vmatprep.mubr.bf16.mxu0 0
      %836 = vmatmul.mubr.bf16.gmra.mxu0 %v394
      %v837 = vpop.f32.mrf.mxu0
      %v838 = vadd.f32 %v318, %v837
      %v839 = vpop.f32.mrf.mxu0
      %v840 = vpop.f32.mrf.mxu0
      %v841 = vadd.f32 %v318, %v840
      %v842 = vpop.f32.mrf.mxu0
      %843 = vmatprep.mubr.bf16.mxu0 0
      %844 = vmatmul.mubr.bf16.gmra.mxu0 %v395
      %v845 = vpop.f32.mrf.mxu0
      %v846 = vadd.f32 %v318, %v845
      %v847 = vpop.f32.mrf.mxu0
      %v848 = vpop.f32.mrf.mxu0
      %v849 = vadd.f32 %v318, %v848
      %v850 = vpop.f32.mrf.mxu0
      %851 = vmatprep.mubr.bf16.mxu0 0
      %852 = vmatmul.mubr.bf16.gmra.mxu0 %v396
      %v853 = vpop.f32.mrf.mxu0
      %v854 = vadd.f32 %v318, %v853
      %v855 = vpop.f32.mrf.mxu0
      %v856 = vpop.f32.mrf.mxu0
      %v857 = vadd.f32 %v318, %v856
      %v858 = vpop.f32.mrf.mxu0
      %859 = vmatprep.mubr.bf16.mxu0 0
      %860 = vmatmul.mubr.bf16.gmra.mxu0 %v397
      %v861 = vpop.f32.mrf.mxu0
      %v862 = vadd.f32 %v318, %v861
      %v863 = vpop.f32.mrf.mxu0
      %v864 = vpop.f32.mrf.mxu0
      %v865 = vadd.f32 %v318, %v864
      %v866 = vpop.f32.mrf.mxu0
      %867 = vmatprep.mubr.bf16.mxu0 0
      %868 = vmatmul.mubr.bf16.gmra.mxu0 %v398
      %v869 = vpop.f32.mrf.mxu0
      %v870 = vadd.f32 %v318, %v869
      %v871 = vpop.f32.mrf.mxu0
      %v872 = vpop.f32.mrf.mxu0
      %v873 = vadd.f32 %v318, %v872
      %v874 = vpop.f32.mrf.mxu0
      %875 = vmatprep.mubr.bf16.mxu0 0
      %876 = vmatmul.mubr.bf16.gmra.mxu0 %v399
      %v877 = vpop.f32.mrf.mxu0
      %v878 = vadd.f32 %v318, %v877
      %v879 = vpop.f32.mrf.mxu0
      %v880 = vpop.f32.mrf.mxu0
      %v881 = vadd.f32 %v318, %v880
      %v882 = vpop.f32.mrf.mxu0
      %883 = vmatprep.mubr.bf16.mxu0 0
      %884 = vmatmul.mubr.bf16.gmra.mxu0 %v400
      %v885 = vpop.f32.mrf.mxu0
      %v886 = vadd.f32 %v318, %v885
      %v887 = vpop.f32.mrf.mxu0
      %v888 = vpop.f32.mrf.mxu0
      %v889 = vadd.f32 %v318, %v888
      %v890 = vpop.f32.mrf.mxu0
      %891 = vmatprep.mubr.bf16.mxu0 0
      %892 = vmatmul.mubr.bf16.gmra.mxu0 %v401
      %v893 = vpop.f32.mrf.mxu0
      %v894 = vadd.f32 %v318, %v893
      %v895 = vpop.f32.mrf.mxu0
      %v896 = vpop.f32.mrf.mxu0
      %v897 = vadd.f32 %v318, %v896
      %v898 = vpop.f32.mrf.mxu0
      %899 = vdwg.mxu0
      %v900 = vpack.c.bf16 %v585, %v581
      %v901 = vpack.c.bf16 %v587, %v583
      %v902 = vpack.c.bf16 %v777, %v774
      %v903 = vpack.c.bf16 %v595, %v591
      %v904 = vpack.c.bf16 %v597, %v593
      %v905 = vpack.c.bf16 %v785, %v782
      %v906 = vpack.c.bf16 %v605, %v601
      %v907 = vpack.c.bf16 %v607, %v603
      %v908 = vpack.c.bf16 %v793, %v790
      %v909 = vpack.c.bf16 %v615, %v611
      %v910 = vpack.c.bf16 %v617, %v613
      %v911 = vpack.c.bf16 %v801, %v798
      %v912 = vpack.c.bf16 %v625, %v621
      %v913 = vpack.c.bf16 %v627, %v623
      %v914 = vpack.c.bf16 %v809, %v806
      %v915 = vpack.c.bf16 %v635, %v631
      %v916 = vpack.c.bf16 %v637, %v633
      %v917 = vpack.c.bf16 %v817, %v814
      %v918 = vpack.c.bf16 %v645, %v641
      %v919 = vpack.c.bf16 %v647, %v643
      %v920 = vpack.c.bf16 %v825, %v822
      %v921 = vpack.c.bf16 %v655, %v651
      %v922 = vpack.c.bf16 %v657, %v653
      %v923 = vpack.c.bf16 %v833, %v830
      %v924 = vpack.c.bf16 %v665, %v661
      %v925 = vpack.c.bf16 %v667, %v663
      %v926 = vpack.c.bf16 %v841, %v838
      %v927 = vpack.c.bf16 %v675, %v671
      %v928 = vpack.c.bf16 %v677, %v673
      %v929 = vpack.c.bf16 %v849, %v846
      %v930 = vpack.c.bf16 %v685, %v681
      %v931 = vpack.c.bf16 %v687, %v683
      %v932 = vpack.c.bf16 %v857, %v854
      %v933 = vpack.c.bf16 %v695, %v691
      %v934 = vpack.c.bf16 %v697, %v693
      %v935 = vpack.c.bf16 %v865, %v862
      %v936 = vpack.c.bf16 %v705, %v701
      %v937 = vpack.c.bf16 %v707, %v703
      %v938 = vpack.c.bf16 %v873, %v870
      %v939 = vpack.c.bf16 %v715, %v711
      %v940 = vpack.c.bf16 %v717, %v713
      %v941 = vpack.c.bf16 %v881, %v878
      %v942 = vpack.c.bf16 %v725, %v721
      %v943 = vpack.c.bf16 %v727, %v723
      %v944 = vpack.c.bf16 %v889, %v886
      %v945 = vpack.c.bf16 %v735, %v731
      %v946 = vpack.c.bf16 %v737, %v733
      %v947 = vpack.c.bf16 %v897, %v894
      %v996 = vunpack.c.l.b16 %v900
      %v997 = vunpack.c.l.b16 %v901
      %v998 = vunpack.c.l.b16 %v902
      %v999 = vunpack.c.h.b16 %v900
      %v1000 = vunpack.c.h.b16 %v901
      %v1001 = vunpack.c.h.b16 %v902
      %v1002 = vunpack.c.l.b16 %v903
      %v1003 = vunpack.c.l.b16 %v904
      %v1004 = vunpack.c.l.b16 %v905
      %v1005 = vunpack.c.h.b16 %v903
      %v1006 = vunpack.c.h.b16 %v904
      %v1007 = vunpack.c.h.b16 %v905
      %v1008 = vunpack.c.l.b16 %v906
      %v1009 = vunpack.c.l.b16 %v907
      %v1010 = vunpack.c.l.b16 %v908
      %v1011 = vunpack.c.h.b16 %v906
      %v1012 = vunpack.c.h.b16 %v907
      %v1013 = vunpack.c.h.b16 %v908
      %v1014 = vunpack.c.l.b16 %v909
      %v1015 = vunpack.c.l.b16 %v910
      %v1016 = vunpack.c.l.b16 %v911
      %v1017 = vunpack.c.h.b16 %v909
      %v1018 = vunpack.c.h.b16 %v910
      %v1019 = vunpack.c.h.b16 %v911
      %v1020 = vunpack.c.l.b16 %v912
      %v1021 = vunpack.c.l.b16 %v913
      %v1022 = vunpack.c.l.b16 %v914
      %v1023 = vunpack.c.h.b16 %v912
      %v1024 = vunpack.c.h.b16 %v913
      %v1025 = vunpack.c.h.b16 %v914
      %v1026 = vunpack.c.l.b16 %v915
      %v1027 = vunpack.c.l.b16 %v916
      %v1028 = vunpack.c.l.b16 %v917
      %v1029 = vunpack.c.h.b16 %v915
      %v1030 = vunpack.c.h.b16 %v916
      %v1031 = vunpack.c.h.b16 %v917
      %v1032 = vunpack.c.l.b16 %v918
      %v1033 = vunpack.c.l.b16 %v919
      %v1034 = vunpack.c.l.b16 %v920
      %v1035 = vunpack.c.h.b16 %v918
      %v1036 = vunpack.c.h.b16 %v919
      %v1037 = vunpack.c.h.b16 %v920
      %v1038 = vunpack.c.l.b16 %v921
      %v1039 = vunpack.c.l.b16 %v922
      %v1040 = vunpack.c.l.b16 %v923
      %v1041 = vunpack.c.h.b16 %v921
      %v1042 = vunpack.c.h.b16 %v922
      %v1043 = vunpack.c.h.b16 %v923
      %v1044 = vunpack.c.l.b16 %v924
      %v1045 = vunpack.c.l.b16 %v925
      %v1046 = vunpack.c.l.b16 %v926
      %v1047 = vunpack.c.h.b16 %v924
      %v1048 = vunpack.c.h.b16 %v925
      %v1049 = vunpack.c.h.b16 %v926
      %v1050 = vunpack.c.l.b16 %v927
      %v1051 = vunpack.c.l.b16 %v928
      %v1052 = vunpack.c.l.b16 %v929
      %v1053 = vunpack.c.h.b16 %v927
      %v1054 = vunpack.c.h.b16 %v928
      %v1055 = vunpack.c.h.b16 %v929
      %v1056 = vunpack.c.l.b16 %v930
      %v1057 = vunpack.c.l.b16 %v931
      %v1058 = vunpack.c.l.b16 %v932
      %v1059 = vunpack.c.h.b16 %v930
      %v1060 = vunpack.c.h.b16 %v931
      %v1061 = vunpack.c.h.b16 %v932
      %v1062 = vunpack.c.l.b16 %v933
      %v1063 = vunpack.c.l.b16 %v934
      %v1064 = vunpack.c.l.b16 %v935
      %v1065 = vunpack.c.h.b16 %v933
      %v1066 = vunpack.c.h.b16 %v934
      %v1067 = vunpack.c.h.b16 %v935
      %v1068 = vunpack.c.l.b16 %v936
      %v1069 = vunpack.c.l.b16 %v937
      %v1070 = vunpack.c.l.b16 %v938
      %v1071 = vunpack.c.h.b16 %v936
      %v1072 = vunpack.c.h.b16 %v937
      %v1073 = vunpack.c.h.b16 %v938
      %v1074 = vunpack.c.l.b16 %v939
      %v1075 = vunpack.c.l.b16 %v940
      %v1076 = vunpack.c.l.b16 %v941
      %v1077 = vunpack.c.h.b16 %v939
      %v1078 = vunpack.c.h.b16 %v940
      %v1079 = vunpack.c.h.b16 %v941
      %v1080 = vunpack.c.l.b16 %v942
      %v1081 = vunpack.c.l.b16 %v943
      %v1082 = vunpack.c.l.b16 %v944
      %v1083 = vunpack.c.h.b16 %v942
      %v1084 = vunpack.c.h.b16 %v943
      %v1085 = vunpack.c.h.b16 %v944
      %v1086 = vunpack.c.l.b16 %v945
      %v1087 = vunpack.c.l.b16 %v946
      %v1088 = vunpack.c.l.b16 %v947
      %v1089 = vunpack.c.h.b16 %v945
      %v1090 = vunpack.c.h.b16 %v946
      %v1091 = vunpack.c.h.b16 %v947
      %v1092 = vpack.c.b16 %v997, %v996
      %v1093 = vpack.c.b16 %v998, %v998
      %v1094 = vpack.c.b16 %v1000, %v999
      %v1095 = vpack.c.b16 %v1001, %v1001
      %v1096 = vpack.c.b16 %v1003, %v1002
      %v1097 = vpack.c.b16 %v1004, %v1004
      %v1098 = vpack.c.b16 %v1006, %v1005
      %v1099 = vpack.c.b16 %v1007, %v1007
      %v1100 = vpack.c.b16 %v1009, %v1008
      %v1101 = vpack.c.b16 %v1010, %v1010
      %v1102 = vpack.c.b16 %v1012, %v1011
      %v1103 = vpack.c.b16 %v1013, %v1013
      %v1104 = vpack.c.b16 %v1015, %v1014
      %v1105 = vpack.c.b16 %v1016, %v1016
      %v1106 = vpack.c.b16 %v1018, %v1017
      %v1107 = vpack.c.b16 %v1019, %v1019
      %v1108 = vpack.c.b16 %v1021, %v1020
      %v1109 = vpack.c.b16 %v1022, %v1022
      %v1110 = vpack.c.b16 %v1024, %v1023
      %v1111 = vpack.c.b16 %v1025, %v1025
      %v1112 = vpack.c.b16 %v1027, %v1026
      %v1113 = vpack.c.b16 %v1028, %v1028
      %v1114 = vpack.c.b16 %v1030, %v1029
      %v1115 = vpack.c.b16 %v1031, %v1031
      %v1116 = vpack.c.b16 %v1033, %v1032
      %v1117 = vpack.c.b16 %v1034, %v1034
      %v1118 = vpack.c.b16 %v1036, %v1035
      %v1119 = vpack.c.b16 %v1037, %v1037
      %v1120 = vpack.c.b16 %v1039, %v1038
      %v1121 = vpack.c.b16 %v1040, %v1040
      %v1122 = vpack.c.b16 %v1042, %v1041
      %v1123 = vpack.c.b16 %v1043, %v1043
      %v1124 = vpack.c.b16 %v1045, %v1044
      %v1125 = vpack.c.b16 %v1046, %v1046
      %v1126 = vpack.c.b16 %v1048, %v1047
      %v1127 = vpack.c.b16 %v1049, %v1049
      %v1128 = vpack.c.b16 %v1051, %v1050
      %v1129 = vpack.c.b16 %v1052, %v1052
      %v1130 = vpack.c.b16 %v1054, %v1053
      %v1131 = vpack.c.b16 %v1055, %v1055
      %v1132 = vpack.c.b16 %v1057, %v1056
      %v1133 = vpack.c.b16 %v1058, %v1058
      %v1134 = vpack.c.b16 %v1060, %v1059
      %v1135 = vpack.c.b16 %v1061, %v1061
      %v1136 = vpack.c.b16 %v1063, %v1062
      %v1137 = vpack.c.b16 %v1064, %v1064
      %v1138 = vpack.c.b16 %v1066, %v1065
      %v1139 = vpack.c.b16 %v1067, %v1067
      %v1140 = vpack.c.b16 %v1069, %v1068
      %v1141 = vpack.c.b16 %v1070, %v1070
      %v1142 = vpack.c.b16 %v1072, %v1071
      %v1143 = vpack.c.b16 %v1073, %v1073
      %v1144 = vpack.c.b16 %v1075, %v1074
      %v1145 = vpack.c.b16 %v1076, %v1076
      %v1146 = vpack.c.b16 %v1078, %v1077
      %v1147 = vpack.c.b16 %v1079, %v1079
      %v1148 = vpack.c.b16 %v1081, %v1080
      %v1149 = vpack.c.b16 %v1082, %v1082
      %v1150 = vpack.c.b16 %v1084, %v1083
      %v1151 = vpack.c.b16 %v1085, %v1085
      %v1152 = vpack.c.b16 %v1087, %v1086
      %v1153 = vpack.c.b16 %v1088, %v1088
      %v1154 = vpack.c.b16 %v1090, %v1089
      %v1155 = vpack.c.b16 %v1091, %v1091
      %1220 = vst [vmem:[%s237] sm:$0xff] %v1092
      %1221 = vst [vmem:[%s237 + $0x8] sm:$0xf] %v1093
      %1222 = vst [vmem:[%s237 + $0xc] sm:$0xff] %v1094
      %1223 = vst [vmem:[%s237 + $0x14] sm:$0xf] %v1095
      %1224 = vst [vmem:[%s237 + $0x18] sm:$0xff] %v1096
      %1225 = vst [vmem:[%s237 + $0x20] sm:$0xf] %v1097
      %1226 = vst [vmem:[%s237 + $0x24] sm:$0xff] %v1098
      %1227 = vst [vmem:[%s237 + $0x2c] sm:$0xf] %v1099
      %1228 = vst [vmem:[%s237 + $0x30] sm:$0xff] %v1100
      %1229 = vst [vmem:[%s237 + $0x38] sm:$0xf] %v1101
      %1230 = vst [vmem:[%s237 + $0x3c] sm:$0xff] %v1102
      %1231 = vst [vmem:[%s237 + $0x44] sm:$0xf] %v1103
      %1232 = vst [vmem:[%s237 + $0x48] sm:$0xff] %v1104
      %1233 = vst [vmem:[%s237 + $0x50] sm:$0xf] %v1105
      %1234 = vst [vmem:[%s237 + $0x54] sm:$0xff] %v1106
      %1235 = vst [vmem:[%s237 + $0x5c] sm:$0xf] %v1107
      %1236 = vst [vmem:[%s237 + $0x60] sm:$0xff] %v1108
      %1237 = vst [vmem:[%s237 + $0x68] sm:$0xf] %v1109
      %1238 = vst [vmem:[%s237 + $0x6c] sm:$0xff] %v1110
      %1239 = vst [vmem:[%s237 + $0x74] sm:$0xf] %v1111
      %1240 = vst [vmem:[%s237 + $0x78] sm:$0xff] %v1112
      %1241 = vst [vmem:[%s237 + $0x80] sm:$0xf] %v1113
      %1242 = vst [vmem:[%s237 + $0x84] sm:$0xff] %v1114
      %1243 = vst [vmem:[%s237 + $0x8c] sm:$0xf] %v1115
      %1244 = vst [vmem:[%s237 + $0x90] sm:$0xff] %v1116
      %1245 = vst [vmem:[%s237 + $0x98] sm:$0xf] %v1117
      %1246 = vst [vmem:[%s237 + $0x9c] sm:$0xff] %v1118
      %1247 = vst [vmem:[%s237 + $0xa4] sm:$0xf] %v1119
      %1248 = vst [vmem:[%s237 + $0xa8] sm:$0xff] %v1120
      %1249 = vst [vmem:[%s237 + $0xb0] sm:$0xf] %v1121
      %1250 = vst [vmem:[%s237 + $0xb4] sm:$0xff] %v1122
      %1251 = vst [vmem:[%s237 + $0xbc] sm:$0xf] %v1123
      %1252 = vst [vmem:[%s237 + $0xc0] sm:$0xff] %v1124
      %1253 = vst [vmem:[%s237 + $0xc8] sm:$0xf] %v1125
      %1254 = vst [vmem:[%s237 + $0xcc] sm:$0xff] %v1126
      %1255 = vst [vmem:[%s237 + $0xd4] sm:$0xf] %v1127
      %1256 = vst [vmem:[%s237 + $0xd8] sm:$0xff] %v1128
      %1257 = vst [vmem:[%s237 + $0xe0] sm:$0xf] %v1129
      %1258 = vst [vmem:[%s237 + $0xe4] sm:$0xff] %v1130
      %1259 = vst [vmem:[%s237 + $0xec] sm:$0xf] %v1131
      %1260 = vst [vmem:[%s237 + $0xf0] sm:$0xff] %v1132
      %1261 = vst [vmem:[%s237 + $0xf8] sm:$0xf] %v1133
      %1262 = vst [vmem:[%s237 + $0xfc] sm:$0xff] %v1134
      %1263 = vst [vmem:[%s237 + $0x104] sm:$0xf] %v1135
      %1264 = vst [vmem:[%s237 + $0x108] sm:$0xff] %v1136
      %1265 = vst [vmem:[%s237 + $0x110] sm:$0xf] %v1137
      %1266 = vst [vmem:[%s237 + $0x114] sm:$0xff] %v1138
      %1267 = vst [vmem:[%s237 + $0x11c] sm:$0xf] %v1139
      %1268 = vst [vmem:[%s237 + $0x120] sm:$0xff] %v1140
      %1269 = vst [vmem:[%s237 + $0x128] sm:$0xf] %v1141
      %1270 = vst [vmem:[%s237 + $0x12c] sm:$0xff] %v1142
      %1271 = vst [vmem:[%s237 + $0x134] sm:$0xf] %v1143
      %1272 = vst [vmem:[%s237 + $0x138] sm:$0xff] %v1144
      %1273 = vst [vmem:[%s237 + $0x140] sm:$0xf] %v1145
      %1274 = vst [vmem:[%s237 + $0x144] sm:$0xff] %v1146
      %1275 = vst [vmem:[%s237 + $0x14c] sm:$0xf] %v1147
      %1276 = vst [vmem:[%s237 + $0x150] sm:$0xff] %v1148
      %1277 = vst [vmem:[%s237 + $0x158] sm:$0xf] %v1149
      %1278 = vst [vmem:[%s237 + $0x15c] sm:$0xff] %v1150
      %1279 = vst [vmem:[%s237 + $0x164] sm:$0xf] %v1151
      %1280 = vst [vmem:[%s237 + $0x168] sm:$0xff] %v1152
      %1281 = vst [vmem:[%s237 + $0x170] sm:$0xf] %v1153
      %1282 = vst [vmem:[%s237 + $0x174] sm:$0xff] %v1154
      %1283 = vst [vmem:[%s237 + $0x17c] sm:$0xf] %v1155
      %s1284 = smul.u32 32, %s18
      %s1285 = smul.u32 3, %s19
      %p1286 = scmp.lt.s32.totalorder %s1284, 63
      %s1287 = scalar_select %p1286, %s1284, 63
      %p1288 = scmp.lt.s32.totalorder %s1285, 2
      %s1289 = scalar_select %p1288, %s1285, 2
      %s1290 = smul.addr %s1287, 3
      %s1291 = sadd.s32 %s1289, %s1290
      %s1292 = smul.addr %s1291, 4
      %s1293 = scalar_lea.vmem %s3, %s1292
      // Predicated region
      $region33: #{language_model_forward.9} parent=31 // pred_check
        %p1294 = pneg %p124
      $region34: #{language_model_forward.9} parent=31 // pred_check_branch
        %1296 = sbr.rel (%p1294) target = $region36
      $region35: #{language_model_forward.9} parent=31 // pred_region
        %s1297 = smul.u32 32, %s18
        %s1298 = smul.u32 3, %s19
      $region36: #{language_model_forward.9} parent=31 // pred_fallthru
        _
    $region32: #{language_model_forward.9} parent=5 // pred_fallthru
      _
    %p1299 = scmp.le.s32.totalorder 2, %s9
    // Predicated region
    $region37: #{language_model_forward.9} parent=5 // pred_check
      %p1300 = pneg %p1299
    $region38: #{language_model_forward.9} parent=5 // pred_check_branch
      %1302 = sbr.rel (%p1300) target = $region40
    $region39: #{language_model_forward.9} parent=5 // pred_region
      %s1303 = ssub.s32 %s9, 2
      // Predicated region
      $region41: #{language_model_forward.9} parent=39 // pred_check
        %p1304 = pneg %p130
      $region42: #{language_model_forward.9} parent=39 // pred_check_branch
        %1306 = sbr.rel (%p1304) target = $region44
      $region43: #{language_model_forward.9} parent=39 // pred_region
        %s1307 = smul.u32 32, %s20
        %s1308 = smul.u32 3, %s21
        %p1309 = scmp.lt.s32.totalorder %s1307, 63
        %s1310 = scalar_select %p1309, %s1307, 63
        %p1311 = scmp.lt.s32.totalorder %s1308, 2
        %s1312 = scalar_select %p1311, %s1308, 2
        %s1313 = smul.addr %s1310, 3
        %s1314 = sadd.s32 %s1312, %s1313
        %s1315 = smul.addr %s1314, 4
        %s1316 = scalar_lea.vmem %s3, %s1315
      $region44: #{language_model_forward.9} parent=39 // pred_fallthru
        _
    $region40: #{language_model_forward.9} parent=5 // pred_fallthru
      _
  $region6: #{language_model_forward.9} parent=0 // loop_footer
    %s13 = sadd.s32 1, %s9
  $region7: #{language_model_forward.9} parent=0 // loop_footer_branch
    %8 = sbr.rel target = $region3
  $region8: #{language_model_forward.9} parent=0 // loop_exit
    _

// kernel: language_model_forward.11
$region0: #{language_model_forward.11}
  #allocation0 [shape = 'u32[]', space=smem, size = 0x4, offset = 0x4, fixed_abs, tag = 'smem constant byte address 0x4 - core index']
  #allocation1 [shape = 'u32[144,128]{1,0:T(1,128)}', space=vmem, size = 0x12000, scoped, tag = 'internal scratch']
  #allocation2 [shape = 'bf16[128,512]{1,0:T(8,128)(2,1)}', space=vmem, size = 0x20000, scoped, tag = 'scratch operand']
  %s0 = inlined_call_operand.vmem [shape: bf16[512,128], index: 0, kind: input, shape index: {}]
  %s1 = inlined_call_operand.vmem [shape: bf16[128,512], index: 1, kind: input, shape index: {}]
  %s2 = inlined_call_operand.vmem [shape: f32[1,512], index: 2, kind: input, shape index: {}]
  %s3 = inlined_call_operand.vmem [shape: bf16[512,128], index: 3, kind: input, shape index: {}]
  %s4 = inlined_call_operand.vmem [shape: f32[1,128], index: 4, kind: input, shape index: {}]
  %s5 = inlined_call_operand.vmem [shape: f32[1,128], index: 5, kind: input, shape index: {}]
  %s6 = inlined_call_operand.vmem [shape: f32[1,128], index: 6, kind: input, shape index: {}]
  %s7 = inlined_call_operand.vmem [shape: bf16[512,128], index: 7, kind: output, shape index: {}]
  %s8 = sld [smem:[#allocation0]]
  $region61: #{language_model_forward.11} parent=0
    _
  %s10 = ssub.s32 1, %s8
  %s11 = scalar_select 0, %s10, %s8
  loop: start=0, step=1, limit=6
  $region2: #{language_model_forward.11} parent=0 // loop_pre_header
    _
  $region3: #{language_model_forward.11} parent=0 // loop_header
    %s13 = sphi 0, %s17
    %p14 = scmp.ge.s32.totalorder %s13, 6
    %s23 = sphi 0, %s25
    %s26 = sphi 0, %s23
    %s27 = sphi 0, %s26
    %s43 = sphi 0, %s27
    %s47 = sphi 0, %s47
    %s49 = sphi 0, %s47
    %s50 = sphi 0, %s49
    %s64 = sphi 0, %s50
    %s68 = sphi 0, %s68
    %s70 = sphi 0, %s68
    %s71 = sphi 0, %s70
    %s85 = sphi 0, %s71
    %s89 = sphi 0, %s89
    %s91 = sphi 0, %s89
    %s92 = sphi 0, %s91
    %s106 = sphi 0, %s92
    %s110 = sphi 0, %s110
    %s112 = sphi 0, %s110
    %s113 = sphi 0, %s112
    %s127 = sphi 0, %s113
    %s131 = sphi 0, %s131
    %s133 = sphi 0, %s131
    %s134 = sphi 0, %s133
    %s148 = sphi 0, %s134
    %s152 = sphi 0, %s152
    %s154 = sphi 0, %s152
    %s155 = sphi 0, %s154
    %s169 = sphi 0, %s155
    %s175 = sphi 0, %s177
    %s178 = sphi 0, %s175
    %s179 = sphi 0, %s178
    %s195 = sphi 0, %s179
  $region4: #{language_model_forward.11} parent=0 // loop_header_branch
    %16 = sbr.rel (%p14) target = $region8
  $region5: #{language_model_forward.11} parent=0 // loop_body
    %s18 = ssub.s32 %s13, 1
    %s19 = ssub.s32 %s13, 2
    %s20 = sadd.s32 %s13, 1
    %s21 = ssub.s32 %s13, %s20
    %p22 = scmp.eq.s32.totalorder %s21, 0
    %s24 = sadd.s32 %s23, 1
    %s25 = scalar_select %p22, %s23, %s24
    %p28 = pneg %p22
    %p29 = scmp.eq.s32.totalorder %s13, 3
    %p30 = por %p28, %p29
    %p31 = scmp.ne.s32.totalorder %s23, %s26
    %p32 = scmp.eq.s32.totalorder %s13, 0
    %p33 = por %p31, %p32
    %p34 = scmp.ne.s32.totalorder %s23, %s26
    %p35 = scmp.eq.s32.totalorder %s18, 3
    %p36 = por %p34, %p35
    %p37 = scmp.ne.s32.totalorder %s26, %s27
    %p38 = scmp.eq.s32.totalorder %s18, 0
    %p39 = por %p37, %p38
    %p40 = scmp.ne.s32.totalorder %s26, %s27
    %p41 = scmp.eq.s32.totalorder %s19, 3
    %p42 = por %p40, %p41
    %p44 = scmp.ne.s32.totalorder %s27, %s43
    %p45 = scmp.eq.s32.totalorder %s19, 0
    %p46 = por %p44, %p45
    %s48 = sadd.s32 %s47, 1
    %p51 = scmp.eq.s32.totalorder %s13, 3
    %p52 = scmp.ne.s32.totalorder %s47, %s49
    %p53 = scmp.eq.s32.totalorder %s13, 0
    %p54 = por %p52, %p53
    %p55 = scmp.ne.s32.totalorder %s47, %s49
    %p56 = scmp.eq.s32.totalorder %s18, 3
    %p57 = por %p55, %p56
    %p58 = scmp.ne.s32.totalorder %s49, %s50
    %p59 = scmp.eq.s32.totalorder %s18, 0
    %p60 = por %p58, %p59
    %p61 = scmp.ne.s32.totalorder %s49, %s50
    %p62 = scmp.eq.s32.totalorder %s19, 3
    %p63 = por %p61, %p62
    %p65 = scmp.ne.s32.totalorder %s50, %s64
    %p66 = scmp.eq.s32.totalorder %s19, 0
    %p67 = por %p65, %p66
    %s69 = sadd.s32 %s68, 1
    %p72 = scmp.eq.s32.totalorder %s13, 3
    %p73 = scmp.ne.s32.totalorder %s68, %s70
    %p74 = scmp.eq.s32.totalorder %s13, 0
    %p75 = por %p73, %p74
    %p76 = scmp.ne.s32.totalorder %s68, %s70
    %p77 = scmp.eq.s32.totalorder %s18, 3
    %p78 = por %p76, %p77
    %p79 = scmp.ne.s32.totalorder %s70, %s71
    %p80 = scmp.eq.s32.totalorder %s18, 0
    %p81 = por %p79, %p80
    %p82 = scmp.ne.s32.totalorder %s70, %s71
    %p83 = scmp.eq.s32.totalorder %s19, 3
    %p84 = por %p82, %p83
    %p86 = scmp.ne.s32.totalorder %s71, %s85
    %p87 = scmp.eq.s32.totalorder %s19, 0
    %p88 = por %p86, %p87
    %s90 = sadd.s32 %s89, 1
    %p93 = scmp.eq.s32.totalorder %s13, 3
    %p94 = scmp.ne.s32.totalorder %s89, %s91
    %p95 = scmp.eq.s32.totalorder %s13, 0
    %p96 = por %p94, %p95
    %p97 = scmp.ne.s32.totalorder %s89, %s91
    %p98 = scmp.eq.s32.totalorder %s18, 3
    %p99 = por %p97, %p98
    %p100 = scmp.ne.s32.totalorder %s91, %s92
    %p101 = scmp.eq.s32.totalorder %s18, 0
    %p102 = por %p100, %p101
    %p103 = scmp.ne.s32.totalorder %s91, %s92
    %p104 = scmp.eq.s32.totalorder %s19, 3
    %p105 = por %p103, %p104
    %p107 = scmp.ne.s32.totalorder %s92, %s106
    %p108 = scmp.eq.s32.totalorder %s19, 0
    %p109 = por %p107, %p108
    %s111 = sadd.s32 %s110, 1
    %p114 = scmp.eq.s32.totalorder %s13, 3
    %p115 = scmp.ne.s32.totalorder %s110, %s112
    %p116 = scmp.eq.s32.totalorder %s13, 0
    %p117 = por %p115, %p116
    %p118 = scmp.ne.s32.totalorder %s110, %s112
    %p119 = scmp.eq.s32.totalorder %s18, 3
    %p120 = por %p118, %p119
    %p121 = scmp.ne.s32.totalorder %s112, %s113
    %p122 = scmp.eq.s32.totalorder %s18, 0
    %p123 = por %p121, %p122
    %p124 = scmp.ne.s32.totalorder %s112, %s113
    %p125 = scmp.eq.s32.totalorder %s19, 3
    %p126 = por %p124, %p125
    %p128 = scmp.ne.s32.totalorder %s113, %s127
    %p129 = scmp.eq.s32.totalorder %s19, 0
    %p130 = por %p128, %p129
    %s132 = sadd.s32 %s131, 1
    %p135 = scmp.eq.s32.totalorder %s13, 3
    %p136 = scmp.ne.s32.totalorder %s131, %s133
    %p137 = scmp.eq.s32.totalorder %s13, 0
    %p138 = por %p136, %p137
    %p139 = scmp.ne.s32.totalorder %s131, %s133
    %p140 = scmp.eq.s32.totalorder %s18, 3
    %p141 = por %p139, %p140
    %p142 = scmp.ne.s32.totalorder %s133, %s134
    %p143 = scmp.eq.s32.totalorder %s18, 0
    %p144 = por %p142, %p143
    %p145 = scmp.ne.s32.totalorder %s133, %s134
    %p146 = scmp.eq.s32.totalorder %s19, 3
    %p147 = por %p145, %p146
    %p149 = scmp.ne.s32.totalorder %s134, %s148
    %p150 = scmp.eq.s32.totalorder %s19, 0
    %p151 = por %p149, %p150
    %s153 = sadd.s32 %s152, 1
    %p156 = scmp.eq.s32.totalorder %s13, 3
    %p157 = scmp.ne.s32.totalorder %s152, %s154
    %p158 = scmp.eq.s32.totalorder %s13, 0
    %p159 = por %p157, %p158
    %p160 = scmp.ne.s32.totalorder %s152, %s154
    %p161 = scmp.eq.s32.totalorder %s18, 3
    %p162 = por %p160, %p161
    %p163 = scmp.ne.s32.totalorder %s154, %s155
    %p164 = scmp.eq.s32.totalorder %s18, 0
    %p165 = por %p163, %p164
    %p166 = scmp.ne.s32.totalorder %s154, %s155
    %p167 = scmp.eq.s32.totalorder %s19, 3
    %p168 = por %p166, %p167
    %p170 = scmp.ne.s32.totalorder %s155, %s169
    %p171 = scmp.eq.s32.totalorder %s19, 0
    %p172 = por %p170, %p171
    %s173 = ssub.s32 %s13, %s20
    %p174 = scmp.eq.s32.totalorder %s173, 0
    %s176 = sadd.s32 %s175, 1
    %s177 = scalar_select %p174, %s175, %s176
    %p180 = pneg %p174
    %p181 = scmp.eq.s32.totalorder %s13, 3
    %p182 = por %p180, %p181
    %p183 = scmp.ne.s32.totalorder %s175, %s178
    %p184 = scmp.eq.s32.totalorder %s13, 0
    %p185 = por %p183, %p184
    %p186 = scmp.ne.s32.totalorder %s175, %s178
    %p187 = scmp.eq.s32.totalorder %s18, 3
    %p188 = por %p186, %p187
    %p189 = scmp.ne.s32.totalorder %s178, %s179
    %p190 = scmp.eq.s32.totalorder %s18, 0
    %p191 = por %p189, %p190
    %p192 = scmp.ne.s32.totalorder %s178, %s179
    %p193 = scmp.eq.s32.totalorder %s19, 3
    %p194 = por %p192, %p193
    %p196 = scmp.ne.s32.totalorder %s179, %s195
    %p197 = scmp.eq.s32.totalorder %s19, 0
    %p198 = por %p196, %p197
    %p199 = scmp.le.s32.totalorder 1, %s13
    %p200 = scmp.lt.s32.totalorder %s13, 5
    %p201 = pnand %p199, %p200
    %p202 = pneg %p201
    // Predicated region
    $region9: #{language_model_forward.11} parent=5 // pred_check
      _
    $region10: #{language_model_forward.11} parent=5 // pred_check_branch
      %204 = sbr.rel (%p201) target = $region12
    $region11: #{language_model_forward.11} parent=5 // pred_region
      %s205 = ssub.s32 %s13, 1
      // Predicated region
      $region13: #{language_model_forward.11} parent=11 // pred_check
        %p206 = pneg %p60
      $region14: #{language_model_forward.11} parent=11 // pred_check_branch
        %208 = sbr.rel (%p206) target = $region16
      $region15: #{language_model_forward.11} parent=11 // pred_region
        _
      $region16: #{language_model_forward.11} parent=11 // pred_fallthru
        _
      // Predicated region
      $region17: #{language_model_forward.11} parent=11 // pred_check
        %p209 = pneg %p81
      $region18: #{language_model_forward.11} parent=11 // pred_check_branch
        %211 = sbr.rel (%p209) target = $region20
      $region19: #{language_model_forward.11} parent=11 // pred_region
        _
      $region20: #{language_model_forward.11} parent=11 // pred_fallthru
        _
      // Predicated region
      $region21: #{language_model_forward.11} parent=11 // pred_check
        %p212 = pneg %p102
      $region22: #{language_model_forward.11} parent=11 // pred_check_branch
        %214 = sbr.rel (%p212) target = $region24
      $region23: #{language_model_forward.11} parent=11 // pred_region
        _
      $region24: #{language_model_forward.11} parent=11 // pred_fallthru
        _
      // Predicated region
      $region25: #{language_model_forward.11} parent=11 // pred_check
        %p215 = pneg %p123
      $region26: #{language_model_forward.11} parent=11 // pred_check_branch
        %217 = sbr.rel (%p215) target = $region28
      $region27: #{language_model_forward.11} parent=11 // pred_region
        _
      $region28: #{language_model_forward.11} parent=11 // pred_fallthru
        _
      // Predicated region
      $region29: #{language_model_forward.11} parent=11 // pred_check
        %p218 = pneg %p144
      $region30: #{language_model_forward.11} parent=11 // pred_check_branch
        %220 = sbr.rel (%p218) target = $region32
      $region31: #{language_model_forward.11} parent=11 // pred_region
        _
      $region32: #{language_model_forward.11} parent=11 // pred_fallthru
        _
      // Predicated region
      $region33: #{language_model_forward.11} parent=11 // pred_check
        %p221 = pneg %p165
      $region34: #{language_model_forward.11} parent=11 // pred_check_branch
        %223 = sbr.rel (%p221) target = $region36
      $region35: #{language_model_forward.11} parent=11 // pred_region
        _
      $region36: #{language_model_forward.11} parent=11 // pred_fallthru
        _
    $region12: #{language_model_forward.11} parent=5 // pred_fallthru
      _
    %p224 = scmp.lt.s32.totalorder %s13, 4
    // Predicated region
    $region37: #{language_model_forward.11} parent=5 // pred_check
      %p225 = pneg %p224
    $region38: #{language_model_forward.11} parent=5 // pred_check_branch
      %227 = sbr.rel (%p225) target = $region40
    $region39: #{language_model_forward.11} parent=5 // pred_region
      // Predicated region
      $region41: #{language_model_forward.11} parent=39 // pred_check
        %p228 = pneg %p33
      $region42: #{language_model_forward.11} parent=39 // pred_check_branch
        %230 = sbr.rel (%p228) target = $region44
      $region43: #{language_model_forward.11} parent=39 // pred_region
        %s231 = smul.u32 16, %s13
        %p232 = scmp.lt.s32.totalorder %s231, 63
        %s233 = scalar_select %p232, %s231, 63
        %s234 = smul.addr %s233, 4
        %s235 = scalar_lea.vmem %s0, %s234
        %s236 = smul.u32 16, %s13
      $region44: #{language_model_forward.11} parent=39 // pred_fallthru
        _
    $region40: #{language_model_forward.11} parent=5 // pred_fallthru
      _
    %p237 = scmp.le.s32.totalorder 1, %s13
    %p238 = scmp.lt.s32.totalorder %s13, 5
    %p239 = pnand %p237, %p238
    %p240 = pneg %p239
    // Predicated region
    $region45: #{language_model_forward.11} parent=5 // pred_check
      _
    $region46: #{language_model_forward.11} parent=5 // pred_check_branch
      %242 = sbr.rel (%p239) target = $region48
    $region47: #{language_model_forward.11} parent=5 // pred_region
      %s243 = ssub.s32 %s13, 1
      %s244 = smul.u32 16, %s18
      %p245 = scmp.lt.s32.totalorder %s244, 63
      %s246 = scalar_select %p245, %s244, 63
      %s247 = smul.addr %s246, 4
      %s248 = scalar_lea.vmem %s0, %s247
      %p249 = pneg %p39
      %p250 = pneg %p36
      %p251 = pneg %p60
      %p252 = pneg %p57
      %p253 = pneg %p81
      %p254 = pneg %p78
      %p255 = pneg %p102
      %p256 = pneg %p99
      %p257 = pneg %p123
      %p258 = pneg %p120
      %p259 = pneg %p144
      %p260 = pneg %p141
      %p261 = pneg %p165
      %p262 = pneg %p162
      %p263 = pneg %p191
      %p264 = pneg %p188
      %s265 = smul.u32 16, %s18
      %p266 = scmp.lt.s32.totalorder %s265, 63
      %s267 = scalar_select %p266, %s265, 63
      %s268 = smul.addr %s267, 4
      %s269 = scalar_lea.vmem %s7, %s268
      %s270 = smul.u32 16, %s18
      %p271 = scmp.lt.s32.totalorder %s270, 63
      %s272 = scalar_select %p271, %s270, 63
      %s273 = smul.addr %s272, 4
      %s274 = scalar_lea.vmem %s0, %s273
      %s275 = smul.u32 16, %s18
      %s276 = smul.u32 16, %s18
      %p277 = scmp.lt.s32.totalorder %s276, 63
      %s278 = scalar_select %p277, %s276, 63
      %s279 = smul.addr %s278, 4
      %s280 = scalar_lea.vmem %s7, %s279
      %s281 = smul.u32 16, %s18
      %v283 = vld [vmem:[%s274] sm:$0xf]
      %v284 = vld [vmem:[%s274 + $0x4] sm:$0xf]
      %v285 = vld [vmem:[%s274 + $0x8] sm:$0xf]
      %v286 = vld [vmem:[%s274 + $0xc] sm:$0xf]
      %v287 = vld [vmem:[%s274 + $0x10] sm:$0xf]
      %v288 = vld [vmem:[%s274 + $0x14] sm:$0xf]
      %v289 = vld [vmem:[%s274 + $0x18] sm:$0xf]
      %v290 = vld [vmem:[%s274 + $0x1c] sm:$0xf]
      %v291 = vld [vmem:[%s274 + $0x20] sm:$0xf]
      %v292 = vld [vmem:[%s274 + $0x24] sm:$0xf]
      %v293 = vld [vmem:[%s274 + $0x28] sm:$0xf]
      %v294 = vld [vmem:[%s274 + $0x2c] sm:$0xf]
      %v295 = vld [vmem:[%s274 + $0x30] sm:$0xf]
      %v296 = vld [vmem:[%s274 + $0x34] sm:$0xf]
      %v297 = vld [vmem:[%s274 + $0x38] sm:$0xf]
      %v298 = vld [vmem:[%s274 + $0x3c] sm:$0xf]
      %v299 = vld [vmem:[%s1] sm:$0xff]
      %v300 = vld [vmem:[%s1 + $0x8] sm:$0xff]
      %v301 = vld [vmem:[%s1 + $0x10] sm:$0xff]
      %v302 = vld [vmem:[%s1 + $0x18] sm:$0xff]
      %v303 = vld [vmem:[%s1 + $0x20] sm:$0xff]
      %v304 = vld [vmem:[%s1 + $0x28] sm:$0xff]
      %v305 = vld [vmem:[%s1 + $0x30] sm:$0xff]
      %v306 = vld [vmem:[%s1 + $0x38] sm:$0xff]
      %v307 = vld [vmem:[%s1 + $0x40] sm:$0xff]
      %v308 = vld [vmem:[%s1 + $0x48] sm:$0xff]
      %v309 = vld [vmem:[%s1 + $0x50] sm:$0xff]
      %v310 = vld [vmem:[%s1 + $0x58] sm:$0xff]
      %v311 = vld [vmem:[%s1 + $0x60] sm:$0xff]
      %v312 = vld [vmem:[%s1 + $0x68] sm:$0xff]
      %v313 = vld [vmem:[%s1 + $0x70] sm:$0xff]
      %v314 = vld [vmem:[%s1 + $0x78] sm:$0xff]
      %v315 = vld [vmem:[%s1 + $0x80] sm:$0xff]
      %v316 = vld [vmem:[%s1 + $0x88] sm:$0xff]
      %v317 = vld [vmem:[%s1 + $0x90] sm:$0xff]
      %v318 = vld [vmem:[%s1 + $0x98] sm:$0xff]
      %v319 = vld [vmem:[%s1 + $0xa0] sm:$0xff]
      %v320 = vld [vmem:[%s1 + $0xa8] sm:$0xff]
      %v321 = vld [vmem:[%s1 + $0xb0] sm:$0xff]
      %v322 = vld [vmem:[%s1 + $0xb8] sm:$0xff]
      %v323 = vld [vmem:[%s1 + $0xc0] sm:$0xff]
      %v324 = vld [vmem:[%s1 + $0xc8] sm:$0xff]
      %v325 = vld [vmem:[%s1 + $0xd0] sm:$0xff]
      %v326 = vld [vmem:[%s1 + $0xd8] sm:$0xff]
      %v327 = vld [vmem:[%s1 + $0xe0] sm:$0xff]
      %v328 = vld [vmem:[%s1 + $0xe8] sm:$0xff]
      %v329 = vld [vmem:[%s1 + $0xf0] sm:$0xff]
      %v330 = vld [vmem:[%s1 + $0xf8] sm:$0xff]
      %v331 = vld [vmem:[%s2] sm:$0xf]
      %v333 = vlaneseq
      %v334 = vshrl.u32 %v333, 7
      %v335 = vsub.s32 0, %v334
      %v336 = vrot.slane %v331, %v335
      %v337 = vlaneseq
      %v338 = vshrl.u32 %v337, 7
      %v339 = vsub.s32 1, %v338
      %v340 = vrot.slane %v331, %v339
      %v341 = vlaneseq
      %v342 = vshrl.u32 %v341, 7
      %v343 = vsub.s32 2, %v342
      %v344 = vrot.slane %v331, %v343
      %v345 = vlaneseq
      %v346 = vshrl.u32 %v345, 7
      %v347 = vsub.s32 3, %v346
      %v348 = vrot.slane %v331, %v347
      %v369 = vunpack.c.l.b16 %v283
      %v370 = vunpack.c.l.b16 %v284
      %v371 = vunpack.c.l.b16 %v285
      %v372 = vunpack.c.l.b16 %v286
      %v373 = vunpack.c.l.b16 %v287
      %v374 = vunpack.c.l.b16 %v288
      %v375 = vunpack.c.l.b16 %v289
      %v376 = vunpack.c.l.b16 %v290
      %v377 = vunpack.c.l.b16 %v291
      %v378 = vunpack.c.l.b16 %v292
      %v379 = vunpack.c.l.b16 %v293
      %v380 = vunpack.c.l.b16 %v294
      %v381 = vunpack.c.l.b16 %v295
      %v382 = vunpack.c.l.b16 %v296
      %v383 = vunpack.c.l.b16 %v297
      %v384 = vunpack.c.l.b16 %v298
      %v385 = vpack.c.b16 %v370, %v369
      %v386 = vpack.c.b16 %v372, %v371
      %v387 = vpack.c.b16 %v374, %v373
      %v388 = vpack.c.b16 %v376, %v375
      %v389 = vpack.c.b16 %v378, %v377
      %v390 = vpack.c.b16 %v380, %v379
      %v391 = vpack.c.b16 %v382, %v381
      %v392 = vpack.c.b16 %v384, %v383
      %v433 = vunpack.c.l.b16 %v299
      %v434 = vunpack.c.h.b16 %v299
      %v435 = vunpack.c.l.b16 %v300
      %v436 = vunpack.c.h.b16 %v300
      %v437 = vunpack.c.l.b16 %v301
      %v438 = vunpack.c.h.b16 %v301
      %v439 = vunpack.c.l.b16 %v302
      %v440 = vunpack.c.h.b16 %v302
      %v441 = vunpack.c.l.b16 %v303
      %v442 = vunpack.c.h.b16 %v303
      %v443 = vunpack.c.l.b16 %v304
      %v444 = vunpack.c.h.b16 %v304
      %v445 = vunpack.c.l.b16 %v305
      %v446 = vunpack.c.h.b16 %v305
      %v447 = vunpack.c.l.b16 %v306
      %v448 = vunpack.c.h.b16 %v306
      %v449 = vunpack.c.l.b16 %v307
      %v450 = vunpack.c.h.b16 %v307
      %v451 = vunpack.c.l.b16 %v308
      %v452 = vunpack.c.h.b16 %v308
      %v453 = vunpack.c.l.b16 %v309
      %v454 = vunpack.c.h.b16 %v309
      %v455 = vunpack.c.l.b16 %v310
      %v456 = vunpack.c.h.b16 %v310
      %v457 = vunpack.c.l.b16 %v311
      %v458 = vunpack.c.h.b16 %v311
      %v459 = vunpack.c.l.b16 %v312
      %v460 = vunpack.c.h.b16 %v312
      %v461 = vunpack.c.l.b16 %v313
      %v462 = vunpack.c.h.b16 %v313
      %v463 = vunpack.c.l.b16 %v314
      %v464 = vunpack.c.h.b16 %v314
      %v465 = vunpack.c.l.b16 %v315
      %v466 = vunpack.c.h.b16 %v315
      %v467 = vunpack.c.l.b16 %v316
      %v468 = vunpack.c.h.b16 %v316
      %v469 = vunpack.c.l.b16 %v317
      %v470 = vunpack.c.h.b16 %v317
      %v471 = vunpack.c.l.b16 %v318
      %v472 = vunpack.c.h.b16 %v318
      %v473 = vunpack.c.l.b16 %v319
      %v474 = vunpack.c.h.b16 %v319
      %v475 = vunpack.c.l.b16 %v320
      %v476 = vunpack.c.h.b16 %v320
      %v477 = vunpack.c.l.b16 %v321
      %v478 = vunpack.c.h.b16 %v321
      %v479 = vunpack.c.l.b16 %v322
      %v480 = vunpack.c.h.b16 %v322
      %v481 = vunpack.c.l.b16 %v323
      %v482 = vunpack.c.h.b16 %v323
      %v483 = vunpack.c.l.b16 %v324
      %v484 = vunpack.c.h.b16 %v324
      %v485 = vunpack.c.l.b16 %v325
      %v486 = vunpack.c.h.b16 %v325
      %v487 = vunpack.c.l.b16 %v326
      %v488 = vunpack.c.h.b16 %v326
      %v489 = vunpack.c.l.b16 %v327
      %v490 = vunpack.c.h.b16 %v327
      %v491 = vunpack.c.l.b16 %v328
      %v492 = vunpack.c.h.b16 %v328
      %v493 = vunpack.c.l.b16 %v329
      %v494 = vunpack.c.h.b16 %v329
      %v495 = vunpack.c.l.b16 %v330
      %v496 = vunpack.c.h.b16 %v330
      %v497 = vpack.c.b16 %v437, %v433
      %v498 = vpack.c.b16 %v438, %v434
      %v499 = vpack.c.b16 %v439, %v435
      %v500 = vpack.c.b16 %v440, %v436
      %v501 = vpack.c.b16 %v445, %v441
      %v502 = vpack.c.b16 %v446, %v442
      %v503 = vpack.c.b16 %v447, %v443
      %v504 = vpack.c.b16 %v448, %v444
      %v505 = vpack.c.b16 %v453, %v449
      %v506 = vpack.c.b16 %v454, %v450
      %v507 = vpack.c.b16 %v455, %v451
      %v508 = vpack.c.b16 %v456, %v452
      %v509 = vpack.c.b16 %v461, %v457
      %v510 = vpack.c.b16 %v462, %v458
      %v511 = vpack.c.b16 %v463, %v459
      %v512 = vpack.c.b16 %v464, %v460
      %v513 = vpack.c.b16 %v469, %v465
      %v514 = vpack.c.b16 %v470, %v466
      %v515 = vpack.c.b16 %v471, %v467
      %v516 = vpack.c.b16 %v472, %v468
      %v517 = vpack.c.b16 %v477, %v473
      %v518 = vpack.c.b16 %v478, %v474
      %v519 = vpack.c.b16 %v479, %v475
      %v520 = vpack.c.b16 %v480, %v476
      %v521 = vpack.c.b16 %v485, %v481
      %v522 = vpack.c.b16 %v486, %v482
      %v523 = vpack.c.b16 %v487, %v483
      %v524 = vpack.c.b16 %v488, %v484
      %v525 = vpack.c.b16 %v493, %v489
      %v526 = vpack.c.b16 %v494, %v490
      %v527 = vpack.c.b16 %v495, %v491
      %v528 = vpack.c.b16 %v496, %v492
      %561 = vmatprep.subr.bf16.mxu0 %v526
      %562 = vmatpush1.bf16.msra.mxu0 %v525
      %563 = vmatprep.subr.bf16.mxu0 %v522
      %564 = vmatpush1.bf16.msra.mxu0 %v521
      %565 = vmatprep.subr.bf16.mxu0 %v518
      %566 = vmatpush1.bf16.msra.mxu0 %v517
      %567 = vmatprep.subr.bf16.mxu0 %v514
      %568 = vmatpush1.bf16.msra.mxu0 %v513
      %569 = vmatprep.subr.bf16.mxu0 %v510
      %570 = vmatpush1.bf16.msra.mxu0 %v509
      %571 = vmatprep.subr.bf16.mxu0 %v506
      %572 = vmatpush1.bf16.msra.mxu0 %v505
      %573 = vmatprep.subr.bf16.mxu0 %v502
      %574 = vmatpush1.bf16.msra.mxu0 %v501
      %575 = vmatprep.subr.bf16.mxu0 %v498
      %576 = vmatpush1.bf16.msra.mxu0 %v497
      %577 = vmatprep.subr.bf16.mxu0 0
      %578 = vmatpush2.bf16.msra.mxu0 0
      %579 = vmatprep.subr.bf16.mxu0 0
      %580 = vmatpush2.bf16.msra.mxu0 0
      %581 = vmatprep.subr.bf16.mxu0 0
      %582 = vmatpush2.bf16.msra.mxu0 0
      %583 = vmatprep.subr.bf16.mxu0 0
      %584 = vmatpush2.bf16.msra.mxu0 0
      %585 = vmatprep.subr.bf16.mxu0 0
      %586 = vmatpush2.bf16.msra.mxu0 0
      %587 = vmatprep.subr.bf16.mxu0 0
      %588 = vmatpush2.bf16.msra.mxu0 0
      %589 = vmatprep.subr.bf16.mxu0 0
      %590 = vmatpush2.bf16.msra.mxu0 0
      %591 = vmatprep.subr.bf16.mxu0 0
      %592 = vmatpush2.bf16.msra.mxu0 0
      %593 = vmatprep.mubr.bf16.mxu0 0
      %594 = vmatmul.mubr.bf16.gmra.mxu0 %v385
      %v595 = vpop.f32.mrf.mxu0
      %v596 = vadd.f32 %v336, %v595
      %v597 = vpop.f32.mrf.mxu0
      %v598 = vadd.f32 %v340, %v597
      %v599 = vpop.f32.mrf.mxu0
      %v600 = vadd.f32 %v336, %v599
      %v601 = vpop.f32.mrf.mxu0
      %v602 = vadd.f32 %v340, %v601
      %603 = vmatprep.mubr.bf16.mxu0 0
      %604 = vmatmul.mubr.bf16.gmra.mxu0 %v386
      %v605 = vpop.f32.mrf.mxu0
      %v606 = vadd.f32 %v336, %v605
      %v607 = vpop.f32.mrf.mxu0
      %v608 = vadd.f32 %v340, %v607
      %v609 = vpop.f32.mrf.mxu0
      %v610 = vadd.f32 %v336, %v609
      %v611 = vpop.f32.mrf.mxu0
      %v612 = vadd.f32 %v340, %v611
      %613 = vmatprep.mubr.bf16.mxu0 0
      %614 = vmatmul.mubr.bf16.gmra.mxu0 %v387
      %v615 = vpop.f32.mrf.mxu0
      %v616 = vadd.f32 %v336, %v615
      %v617 = vpop.f32.mrf.mxu0
      %v618 = vadd.f32 %v340, %v617
      %v619 = vpop.f32.mrf.mxu0
      %v620 = vadd.f32 %v336, %v619
      %v621 = vpop.f32.mrf.mxu0
      %v622 = vadd.f32 %v340, %v621
      %623 = vmatprep.mubr.bf16.mxu0 0
      %624 = vmatmul.mubr.bf16.gmra.mxu0 %v388
      %v625 = vpop.f32.mrf.mxu0
      %v626 = vadd.f32 %v336, %v625
      %v627 = vpop.f32.mrf.mxu0
      %v628 = vadd.f32 %v340, %v627
      %v629 = vpop.f32.mrf.mxu0
      %v630 = vadd.f32 %v336, %v629
      %v631 = vpop.f32.mrf.mxu0
      %v632 = vadd.f32 %v340, %v631
      %633 = vmatprep.mubr.bf16.mxu0 0
      %634 = vmatmul.mubr.bf16.gmra.mxu0 %v389
      %v635 = vpop.f32.mrf.mxu0
      %v636 = vadd.f32 %v336, %v635
      %v637 = vpop.f32.mrf.mxu0
      %v638 = vadd.f32 %v340, %v637
      %v639 = vpop.f32.mrf.mxu0
      %v640 = vadd.f32 %v336, %v639
      %v641 = vpop.f32.mrf.mxu0
      %v642 = vadd.f32 %v340, %v641
      %643 = vmatprep.mubr.bf16.mxu0 0
      %644 = vmatmul.mubr.bf16.gmra.mxu0 %v390
      %v645 = vpop.f32.mrf.mxu0
      %v646 = vadd.f32 %v336, %v645
      %v647 = vpop.f32.mrf.mxu0
      %v648 = vadd.f32 %v340, %v647
      %v649 = vpop.f32.mrf.mxu0
      %v650 = vadd.f32 %v336, %v649
      %v651 = vpop.f32.mrf.mxu0
      %v652 = vadd.f32 %v340, %v651
      %653 = vmatprep.mubr.bf16.mxu0 0
      %654 = vmatmul.mubr.bf16.gmra.mxu0 %v391
      %v655 = vpop.f32.mrf.mxu0
      %v656 = vadd.f32 %v336, %v655
      %v657 = vpop.f32.mrf.mxu0
      %v658 = vadd.f32 %v340, %v657
      %v659 = vpop.f32.mrf.mxu0
      %v660 = vadd.f32 %v336, %v659
      %v661 = vpop.f32.mrf.mxu0
      %v662 = vadd.f32 %v340, %v661
      %663 = vmatprep.mubr.bf16.mxu0 0
      %664 = vmatmul.mubr.bf16.gmra.mxu0 %v392
      %v665 = vpop.f32.mrf.mxu0
      %v666 = vadd.f32 %v336, %v665
      %v667 = vpop.f32.mrf.mxu0
      %v668 = vadd.f32 %v340, %v667
      %v669 = vpop.f32.mrf.mxu0
      %v670 = vadd.f32 %v336, %v669
      %v671 = vpop.f32.mrf.mxu0
      %v672 = vadd.f32 %v340, %v671
      %673 = vdwg.mxu0
      %674 = vmatprep.subr.bf16.mxu0 %v528
      %675 = vmatpush1.bf16.msra.mxu0 %v527
      %676 = vmatprep.subr.bf16.mxu0 %v524
      %677 = vmatpush1.bf16.msra.mxu0 %v523
      %678 = vmatprep.subr.bf16.mxu0 %v520
      %679 = vmatpush1.bf16.msra.mxu0 %v519
      %680 = vmatprep.subr.bf16.mxu0 %v516
      %681 = vmatpush1.bf16.msra.mxu0 %v515
      %682 = vmatprep.subr.bf16.mxu0 %v512
      %683 = vmatpush1.bf16.msra.mxu0 %v511
      %684 = vmatprep.subr.bf16.mxu0 %v508
      %685 = vmatpush1.bf16.msra.mxu0 %v507
      %686 = vmatprep.subr.bf16.mxu0 %v504
      %687 = vmatpush1.bf16.msra.mxu0 %v503
      %688 = vmatprep.subr.bf16.mxu0 %v500
      %689 = vmatpush1.bf16.msra.mxu0 %v499
      %690 = vmatprep.subr.bf16.mxu0 0
      %691 = vmatpush2.bf16.msra.mxu0 0
      %692 = vmatprep.subr.bf16.mxu0 0
      %693 = vmatpush2.bf16.msra.mxu0 0
      %694 = vmatprep.subr.bf16.mxu0 0
      %695 = vmatpush2.bf16.msra.mxu0 0
      %696 = vmatprep.subr.bf16.mxu0 0
      %697 = vmatpush2.bf16.msra.mxu0 0
      %698 = vmatprep.subr.bf16.mxu0 0
      %699 = vmatpush2.bf16.msra.mxu0 0
      %700 = vmatprep.subr.bf16.mxu0 0
      %701 = vmatpush2.bf16.msra.mxu0 0
      %702 = vmatprep.subr.bf16.mxu0 0
      %703 = vmatpush2.bf16.msra.mxu0 0
      %704 = vmatprep.subr.bf16.mxu0 0
      %705 = vmatpush2.bf16.msra.mxu0 0
      %706 = vmatprep.mubr.bf16.mxu0 0
      %707 = vmatmul.mubr.bf16.gmra.mxu0 %v385
      %v708 = vpop.f32.mrf.mxu0
      %v709 = vadd.f32 %v344, %v708
      %v710 = vpop.f32.mrf.mxu0
      %v711 = vadd.f32 %v348, %v710
      %v712 = vpop.f32.mrf.mxu0
      %v713 = vadd.f32 %v344, %v712
      %v714 = vpop.f32.mrf.mxu0
      %v715 = vadd.f32 %v348, %v714
      %716 = vmatprep.mubr.bf16.mxu0 0
      %717 = vmatmul.mubr.bf16.gmra.mxu0 %v386
      %v718 = vpop.f32.mrf.mxu0
      %v719 = vadd.f32 %v344, %v718
      %v720 = vpop.f32.mrf.mxu0
      %v721 = vadd.f32 %v348, %v720
      %v722 = vpop.f32.mrf.mxu0
      %v723 = vadd.f32 %v344, %v722
      %v724 = vpop.f32.mrf.mxu0
      %v725 = vadd.f32 %v348, %v724
      %726 = vmatprep.mubr.bf16.mxu0 0
      %727 = vmatmul.mubr.bf16.gmra.mxu0 %v387
      %v728 = vpop.f32.mrf.mxu0
      %v729 = vadd.f32 %v344, %v728
      %v730 = vpop.f32.mrf.mxu0
      %v731 = vadd.f32 %v348, %v730
      %v732 = vpop.f32.mrf.mxu0
      %v733 = vadd.f32 %v344, %v732
      %v734 = vpop.f32.mrf.mxu0
      %v735 = vadd.f32 %v348, %v734
      %736 = vmatprep.mubr.bf16.mxu0 0
      %737 = vmatmul.mubr.bf16.gmra.mxu0 %v388
      %v738 = vpop.f32.mrf.mxu0
      %v739 = vadd.f32 %v344, %v738
      %v740 = vpop.f32.mrf.mxu0
      %v741 = vadd.f32 %v348, %v740
      %v742 = vpop.f32.mrf.mxu0
      %v743 = vadd.f32 %v344, %v742
      %v744 = vpop.f32.mrf.mxu0
      %v745 = vadd.f32 %v348, %v744
      %746 = vmatprep.mubr.bf16.mxu0 0
      %747 = vmatmul.mubr.bf16.gmra.mxu0 %v389
      %v748 = vpop.f32.mrf.mxu0
      %v749 = vadd.f32 %v344, %v748
      %v750 = vpop.f32.mrf.mxu0
      %v751 = vadd.f32 %v348, %v750
      %v752 = vpop.f32.mrf.mxu0
      %v753 = vadd.f32 %v344, %v752
      %v754 = vpop.f32.mrf.mxu0
      %v755 = vadd.f32 %v348, %v754
      %756 = vmatprep.mubr.bf16.mxu0 0
      %757 = vmatmul.mubr.bf16.gmra.mxu0 %v390
      %v758 = vpop.f32.mrf.mxu0
      %v759 = vadd.f32 %v344, %v758
      %v760 = vpop.f32.mrf.mxu0
      %v761 = vadd.f32 %v348, %v760
      %v762 = vpop.f32.mrf.mxu0
      %v763 = vadd.f32 %v344, %v762
      %v764 = vpop.f32.mrf.mxu0
      %v765 = vadd.f32 %v348, %v764
      %766 = vmatprep.mubr.bf16.mxu0 0
      %767 = vmatmul.mubr.bf16.gmra.mxu0 %v391
      %v768 = vpop.f32.mrf.mxu0
      %v769 = vadd.f32 %v344, %v768
      %v770 = vpop.f32.mrf.mxu0
      %v771 = vadd.f32 %v348, %v770
      %v772 = vpop.f32.mrf.mxu0
      %v773 = vadd.f32 %v344, %v772
      %v774 = vpop.f32.mrf.mxu0
      %v775 = vadd.f32 %v348, %v774
      %776 = vmatprep.mubr.bf16.mxu0 0
      %777 = vmatmul.mubr.bf16.gmra.mxu0 %v392
      %v778 = vpop.f32.mrf.mxu0
      %v779 = vadd.f32 %v344, %v778
      %v780 = vpop.f32.mrf.mxu0
      %v781 = vadd.f32 %v348, %v780
      %v782 = vpop.f32.mrf.mxu0
      %v783 = vadd.f32 %v344, %v782
      %v784 = vpop.f32.mrf.mxu0
      %v785 = vadd.f32 %v348, %v784
      %786 = vdwg.mxu0
      %v787 = vmax.f32 %v596, 0.0
      %v788 = vmax.f32 %v598, 0.0
      %v789 = vmax.f32 %v709, 0.0
      %v790 = vmax.f32 %v711, 0.0
      %v791 = vmax.f32 %v600, 0.0
      %v792 = vmax.f32 %v602, 0.0
      %v793 = vmax.f32 %v713, 0.0
      %v794 = vmax.f32 %v715, 0.0
      %v795 = vmax.f32 %v606, 0.0
      %v796 = vmax.f32 %v608, 0.0
      %v797 = vmax.f32 %v719, 0.0
      %v798 = vmax.f32 %v721, 0.0
      %v799 = vmax.f32 %v610, 0.0
      %v800 = vmax.f32 %v612, 0.0
      %v801 = vmax.f32 %v723, 0.0
      %v802 = vmax.f32 %v725, 0.0
      %v803 = vmax.f32 %v616, 0.0
      %v804 = vmax.f32 %v618, 0.0
      %v805 = vmax.f32 %v729, 0.0
      %v806 = vmax.f32 %v731, 0.0
      %v807 = vmax.f32 %v620, 0.0
      %v808 = vmax.f32 %v622, 0.0
      %v809 = vmax.f32 %v733, 0.0
      %v810 = vmax.f32 %v735, 0.0
      %v811 = vmax.f32 %v626, 0.0
      %v812 = vmax.f32 %v628, 0.0
      %v813 = vmax.f32 %v739, 0.0
      %v814 = vmax.f32 %v741, 0.0
      %v815 = vmax.f32 %v630, 0.0
      %v816 = vmax.f32 %v632, 0.0
      %v817 = vmax.f32 %v743, 0.0
      %v818 = vmax.f32 %v745, 0.0
      %v819 = vmax.f32 %v636, 0.0
      %v820 = vmax.f32 %v638, 0.0
      %v821 = vmax.f32 %v749, 0.0
      %v822 = vmax.f32 %v751, 0.0
      %v823 = vmax.f32 %v640, 0.0
      %v824 = vmax.f32 %v642, 0.0
      %v825 = vmax.f32 %v753, 0.0
      %v826 = vmax.f32 %v755, 0.0
      %v827 = vmax.f32 %v646, 0.0
      %v828 = vmax.f32 %v648, 0.0
      %v829 = vmax.f32 %v759, 0.0
      %v830 = vmax.f32 %v761, 0.0
      %v831 = vmax.f32 %v650, 0.0
      %v832 = vmax.f32 %v652, 0.0
      %v833 = vmax.f32 %v763, 0.0
      %v834 = vmax.f32 %v765, 0.0
      %v835 = vmax.f32 %v656, 0.0
      %v836 = vmax.f32 %v658, 0.0
      %v837 = vmax.f32 %v769, 0.0
      %v838 = vmax.f32 %v771, 0.0
      %v839 = vmax.f32 %v660, 0.0
      %v840 = vmax.f32 %v662, 0.0
      %v841 = vmax.f32 %v773, 0.0
      %v842 = vmax.f32 %v775, 0.0
      %v843 = vmax.f32 %v666, 0.0
      %v844 = vmax.f32 %v668, 0.0
      %v845 = vmax.f32 %v779, 0.0
      %v846 = vmax.f32 %v781, 0.0
      %v847 = vmax.f32 %v670, 0.0
      %v848 = vmax.f32 %v672, 0.0
      %v849 = vmax.f32 %v783, 0.0
      %v850 = vmax.f32 %v785, 0.0
      %v851 = vpack.c.bf16 %v791, %v787
      %v852 = vpack.c.bf16 %v792, %v788
      %v853 = vpack.c.bf16 %v793, %v789
      %v854 = vpack.c.bf16 %v794, %v790
      %v855 = vpack.c.bf16 %v799, %v795
      %v856 = vpack.c.bf16 %v800, %v796
      %v857 = vpack.c.bf16 %v801, %v797
      %v858 = vpack.c.bf16 %v802, %v798
      %v859 = vpack.c.bf16 %v807, %v803
      %v860 = vpack.c.bf16 %v808, %v804
      %v861 = vpack.c.bf16 %v809, %v805
      %v862 = vpack.c.bf16 %v810, %v806
      %v863 = vpack.c.bf16 %v815, %v811
      %v864 = vpack.c.bf16 %v816, %v812
      %v865 = vpack.c.bf16 %v817, %v813
      %v866 = vpack.c.bf16 %v818, %v814
      %v867 = vpack.c.bf16 %v823, %v819
      %v868 = vpack.c.bf16 %v824, %v820
      %v869 = vpack.c.bf16 %v825, %v821
      %v870 = vpack.c.bf16 %v826, %v822
      %v871 = vpack.c.bf16 %v831, %v827
      %v872 = vpack.c.bf16 %v832, %v828
      %v873 = vpack.c.bf16 %v833, %v829
      %v874 = vpack.c.bf16 %v834, %v830
      %v875 = vpack.c.bf16 %v839, %v835
      %v876 = vpack.c.bf16 %v840, %v836
      %v877 = vpack.c.bf16 %v841, %v837
      %v878 = vpack.c.bf16 %v842, %v838
      %v879 = vpack.c.bf16 %v847, %v843
      %v880 = vpack.c.bf16 %v848, %v844
      %v881 = vpack.c.bf16 %v849, %v845
      %v882 = vpack.c.bf16 %v850, %v846
      %v915 = vunpack.c.l.b16 %v851
      %v916 = vunpack.c.l.b16 %v852
      %v917 = vunpack.c.l.b16 %v853
      %v918 = vunpack.c.l.b16 %v854
      %v919 = vunpack.c.h.b16 %v851
      %v920 = vunpack.c.h.b16 %v852
      %v921 = vunpack.c.h.b16 %v853
      %v922 = vunpack.c.h.b16 %v854
      %v923 = vunpack.c.l.b16 %v855
      %v924 = vunpack.c.l.b16 %v856
      %v925 = vunpack.c.l.b16 %v857
      %v926 = vunpack.c.l.b16 %v858
      %v927 = vunpack.c.h.b16 %v855
      %v928 = vunpack.c.h.b16 %v856
      %v929 = vunpack.c.h.b16 %v857
      %v930 = vunpack.c.h.b16 %v858
      %v931 = vunpack.c.l.b16 %v859
      %v932 = vunpack.c.l.b16 %v860
      %v933 = vunpack.c.l.b16 %v861
      %v934 = vunpack.c.l.b16 %v862
      %v935 = vunpack.c.h.b16 %v859
      %v936 = vunpack.c.h.b16 %v860
      %v937 = vunpack.c.h.b16 %v861
      %v938 = vunpack.c.h.b16 %v862
      %v939 = vunpack.c.l.b16 %v863
      %v940 = vunpack.c.l.b16 %v864
      %v941 = vunpack.c.l.b16 %v865
      %v942 = vunpack.c.l.b16 %v866
      %v943 = vunpack.c.h.b16 %v863
      %v944 = vunpack.c.h.b16 %v864
      %v945 = vunpack.c.h.b16 %v865
      %v946 = vunpack.c.h.b16 %v866
      %v947 = vunpack.c.l.b16 %v867
      %v948 = vunpack.c.l.b16 %v868
      %v949 = vunpack.c.l.b16 %v869
      %v950 = vunpack.c.l.b16 %v870
      %v951 = vunpack.c.h.b16 %v867
      %v952 = vunpack.c.h.b16 %v868
      %v953 = vunpack.c.h.b16 %v869
      %v954 = vunpack.c.h.b16 %v870
      %v955 = vunpack.c.l.b16 %v871
      %v956 = vunpack.c.l.b16 %v872
      %v957 = vunpack.c.l.b16 %v873
      %v958 = vunpack.c.l.b16 %v874
      %v959 = vunpack.c.h.b16 %v871
      %v960 = vunpack.c.h.b16 %v872
      %v961 = vunpack.c.h.b16 %v873
      %v962 = vunpack.c.h.b16 %v874
      %v963 = vunpack.c.l.b16 %v875
      %v964 = vunpack.c.l.b16 %v876
      %v965 = vunpack.c.l.b16 %v877
      %v966 = vunpack.c.l.b16 %v878
      %v967 = vunpack.c.h.b16 %v875
      %v968 = vunpack.c.h.b16 %v876
      %v969 = vunpack.c.h.b16 %v877
      %v970 = vunpack.c.h.b16 %v878
      %v971 = vunpack.c.l.b16 %v879
      %v972 = vunpack.c.l.b16 %v880
      %v973 = vunpack.c.l.b16 %v881
      %v974 = vunpack.c.l.b16 %v882
      %v975 = vunpack.c.h.b16 %v879
      %v976 = vunpack.c.h.b16 %v880
      %v977 = vunpack.c.h.b16 %v881
      %v978 = vunpack.c.h.b16 %v882
      %v979 = vpack.c.b16 %v916, %v915
      %v980 = vpack.c.b16 %v918, %v917
      %v981 = vpack.c.b16 %v920, %v919
      %v982 = vpack.c.b16 %v922, %v921
      %v983 = vpack.c.b16 %v924, %v923
      %v984 = vpack.c.b16 %v926, %v925
      %v985 = vpack.c.b16 %v928, %v927
      %v986 = vpack.c.b16 %v930, %v929
      %v987 = vpack.c.b16 %v932, %v931
      %v988 = vpack.c.b16 %v934, %v933
      %v989 = vpack.c.b16 %v936, %v935
      %v990 = vpack.c.b16 %v938, %v937
      %v991 = vpack.c.b16 %v940, %v939
      %v992 = vpack.c.b16 %v942, %v941
      %v993 = vpack.c.b16 %v944, %v943
      %v994 = vpack.c.b16 %v946, %v945
      %v995 = vpack.c.b16 %v948, %v947
      %v996 = vpack.c.b16 %v950, %v949
      %v997 = vpack.c.b16 %v952, %v951
      %v998 = vpack.c.b16 %v954, %v953
      %v999 = vpack.c.b16 %v956, %v955
      %v1000 = vpack.c.b16 %v958, %v957
      %v1001 = vpack.c.b16 %v960, %v959
      %v1002 = vpack.c.b16 %v962, %v961
      %v1003 = vpack.c.b16 %v964, %v963
      %v1004 = vpack.c.b16 %v966, %v965
      %v1005 = vpack.c.b16 %v968, %v967
      %v1006 = vpack.c.b16 %v970, %v969
      %v1007 = vpack.c.b16 %v972, %v971
      %v1008 = vpack.c.b16 %v974, %v973
      %v1009 = vpack.c.b16 %v976, %v975
      %v1010 = vpack.c.b16 %v978, %v977
      %1043 = vst [vmem:[#allocation2] sm:$0xff] %v979
      %1044 = vst [vmem:[#allocation2 + $0x8] sm:$0xff] %v980
      %1045 = vst [vmem:[#allocation2 + $0x10] sm:$0xff] %v981
      %1046 = vst [vmem:[#allocation2 + $0x18] sm:$0xff] %v982
      %1047 = vst [vmem:[#allocation2 + $0x20] sm:$0xff] %v983
      %1048 = vst [vmem:[#allocation2 + $0x28] sm:$0xff] %v984
      %1049 = vst [vmem:[#allocation2 + $0x30] sm:$0xff] %v985
      %1050 = vst [vmem:[#allocation2 + $0x38] sm:$0xff] %v986
      %1051 = vst [vmem:[#allocation2 + $0x40] sm:$0xff] %v987
      %1052 = vst [vmem:[#allocation2 + $0x48] sm:$0xff] %v988
      %1053 = vst [vmem:[#allocation2 + $0x50] sm:$0xff] %v989
      %1054 = vst [vmem:[#allocation2 + $0x58] sm:$0xff] %v990
      %1055 = vst [vmem:[#allocation2 + $0x60] sm:$0xff] %v991
      %1056 = vst [vmem:[#allocation2 + $0x68] sm:$0xff] %v992
      %1057 = vst [vmem:[#allocation2 + $0x70] sm:$0xff] %v993
      %1058 = vst [vmem:[#allocation2 + $0x78] sm:$0xff] %v994
      %1059 = vst [vmem:[#allocation2 + $0x80] sm:$0xff] %v995
      %1060 = vst [vmem:[#allocation2 + $0x88] sm:$0xff] %v996
      %1061 = vst [vmem:[#allocation2 + $0x90] sm:$0xff] %v997
      %1062 = vst [vmem:[#allocation2 + $0x98] sm:$0xff] %v998
      %1063 = vst [vmem:[#allocation2 + $0xa0] sm:$0xff] %v999
      %1064 = vst [vmem:[#allocation2 + $0xa8] sm:$0xff] %v1000
      %1065 = vst [vmem:[#allocation2 + $0xb0] sm:$0xff] %v1001
      %1066 = vst [vmem:[#allocation2 + $0xb8] sm:$0xff] %v1002
      %1067 = vst [vmem:[#allocation2 + $0xc0] sm:$0xff] %v1003
      %1068 = vst [vmem:[#allocation2 + $0xc8] sm:$0xff] %v1004
      %1069 = vst [vmem:[#allocation2 + $0xd0] sm:$0xff] %v1005
      %1070 = vst [vmem:[#allocation2 + $0xd8] sm:$0xff] %v1006
      %1071 = vst [vmem:[#allocation2 + $0xe0] sm:$0xff] %v1007
      %1072 = vst [vmem:[#allocation2 + $0xe8] sm:$0xff] %v1008
      %1073 = vst [vmem:[#allocation2 + $0xf0] sm:$0xff] %v1009
      %1074 = vst [vmem:[#allocation2 + $0xf8] sm:$0xff] %v1010
      %v1075 = vld [vmem:[#allocation2] sm:$0xff]
      %v1076 = vld [vmem:[#allocation2 + $0x8] sm:$0xff]
      %v1077 = vld [vmem:[#allocation2 + $0x10] sm:$0xff]
      %v1078 = vld [vmem:[#allocation2 + $0x18] sm:$0xff]
      %v1079 = vld [vmem:[#allocation2 + $0x20] sm:$0xff]
      %v1080 = vld [vmem:[#allocation2 + $0x28] sm:$0xff]
      %v1081 = vld [vmem:[#allocation2 + $0x30] sm:$0xff]
      %v1082 = vld [vmem:[#allocation2 + $0x38] sm:$0xff]
      %v1083 = vld [vmem:[#allocation2 + $0x40] sm:$0xff]
      %v1084 = vld [vmem:[#allocation2 + $0x48] sm:$0xff]
      %v1085 = vld [vmem:[#allocation2 + $0x50] sm:$0xff]
      %v1086 = vld [vmem:[#allocation2 + $0x58] sm:$0xff]
      %v1087 = vld [vmem:[#allocation2 + $0x60] sm:$0xff]
      %v1088 = vld [vmem:[#allocation2 + $0x68] sm:$0xff]
      %v1089 = vld [vmem:[#allocation2 + $0x70] sm:$0xff]
      %v1090 = vld [vmem:[#allocation2 + $0x78] sm:$0xff]
      %v1091 = vld [vmem:[#allocation2 + $0x80] sm:$0xff]
      %v1092 = vld [vmem:[#allocation2 + $0x88] sm:$0xff]
      %v1093 = vld [vmem:[#allocation2 + $0x90] sm:$0xff]
      %v1094 = vld [vmem:[#allocation2 + $0x98] sm:$0xff]
      %v1095 = vld [vmem:[#allocation2 + $0xa0] sm:$0xff]
      %v1096 = vld [vmem:[#allocation2 + $0xa8] sm:$0xff]
      %v1097 = vld [vmem:[#allocation2 + $0xb0] sm:$0xff]
      %v1098 = vld [vmem:[#allocation2 + $0xb8] sm:$0xff]
      %v1099 = vld [vmem:[#allocation2 + $0xc0] sm:$0xff]
      %v1100 = vld [vmem:[#allocation2 + $0xc8] sm:$0xff]
      %v1101 = vld [vmem:[#allocation2 + $0xd0] sm:$0xff]
      %v1102 = vld [vmem:[#allocation2 + $0xd8] sm:$0xff]
      %v1103 = vld [vmem:[#allocation2 + $0xe0] sm:$0xff]
      %v1104 = vld [vmem:[#allocation2 + $0xe8] sm:$0xff]
      %v1105 = vld [vmem:[#allocation2 + $0xf0] sm:$0xff]
      %v1106 = vld [vmem:[#allocation2 + $0xf8] sm:$0xff]
      %v1107 = vld [vmem:[%s3] sm:$0xf]
      %v1108 = vld [vmem:[%s3 + $0x4] sm:$0xf]
      %v1109 = vld [vmem:[%s3 + $0x8] sm:$0xf]
      %v1110 = vld [vmem:[%s3 + $0xc] sm:$0xf]
      %v1111 = vld [vmem:[%s3 + $0x10] sm:$0xf]
      %v1112 = vld [vmem:[%s3 + $0x14] sm:$0xf]
      %v1113 = vld [vmem:[%s3 + $0x18] sm:$0xf]
      %v1114 = vld [vmem:[%s3 + $0x1c] sm:$0xf]
      %v1115 = vld [vmem:[%s3 + $0x20] sm:$0xf]
      %v1116 = vld [vmem:[%s3 + $0x24] sm:$0xf]
      %v1117 = vld [vmem:[%s3 + $0x28] sm:$0xf]
      %v1118 = vld [vmem:[%s3 + $0x2c] sm:$0xf]
      %v1119 = vld [vmem:[%s3 + $0x30] sm:$0xf]
      %v1120 = vld [vmem:[%s3 + $0x34] sm:$0xf]
      %v1121 = vld [vmem:[%s3 + $0x38] sm:$0xf]
      %v1122 = vld [vmem:[%s3 + $0x3c] sm:$0xf]
      %v1123 = vld [vmem:[%s3 + $0x40] sm:$0xf]
      %v1124 = vld [vmem:[%s3 + $0x44] sm:$0xf]
      %v1125 = vld [vmem:[%s3 + $0x48] sm:$0xf]
      %v1126 = vld [vmem:[%s3 + $0x4c] sm:$0xf]
      %v1127 = vld [vmem:[%s3 + $0x50] sm:$0xf]
      %v1128 = vld [vmem:[%s3 + $0x54] sm:$0xf]
      %v1129 = vld [vmem:[%s3 + $0x58] sm:$0xf]
      %v1130 = vld [vmem:[%s3 + $0x5c] sm:$0xf]
      %v1131 = vld [vmem:[%s3 + $0x60] sm:$0xf]
      %v1132 = vld [vmem:[%s3 + $0x64] sm:$0xf]
      %v1133 = vld [vmem:[%s3 + $0x68] sm:$0xf]
      %v1134 = vld [vmem:[%s3 + $0x6c] sm:$0xf]
      %v1135 = vld [vmem:[%s3 + $0x70] sm:$0xf]
      %v1136 = vld [vmem:[%s3 + $0x74] sm:$0xf]
      %v1137 = vld [vmem:[%s3 + $0x78] sm:$0xf]
      %v1138 = vld [vmem:[%s3 + $0x7c] sm:$0xf]
      %v1139 = vld [vmem:[%s3 + $0x80] sm:$0xf]
      %v1140 = vld [vmem:[%s3 + $0x84] sm:$0xf]
      %v1141 = vld [vmem:[%s3 + $0x88] sm:$0xf]
      %v1142 = vld [vmem:[%s3 + $0x8c] sm:$0xf]
      %v1143 = vld [vmem:[%s3 + $0x90] sm:$0xf]
      %v1144 = vld [vmem:[%s3 + $0x94] sm:$0xf]
      %v1145 = vld [vmem:[%s3 + $0x98] sm:$0xf]
      %v1146 = vld [vmem:[%s3 + $0x9c] sm:$0xf]
      %v1147 = vld [vmem:[%s3 + $0xa0] sm:$0xf]
      %v1148 = vld [vmem:[%s3 + $0xa4] sm:$0xf]
      %v1149 = vld [vmem:[%s3 + $0xa8] sm:$0xf]
      %v1150 = vld [vmem:[%s3 + $0xac] sm:$0xf]
      %v1151 = vld [vmem:[%s3 + $0xb0] sm:$0xf]
      %v1152 = vld [vmem:[%s3 + $0xb4] sm:$0xf]
      %v1153 = vld [vmem:[%s3 + $0xb8] sm:$0xf]
      %v1154 = vld [vmem:[%s3 + $0xbc] sm:$0xf]
      %v1155 = vld [vmem:[%s3 + $0xc0] sm:$0xf]
      %v1156 = vld [vmem:[%s3 + $0xc4] sm:$0xf]
      %v1157 = vld [vmem:[%s3 + $0xc8] sm:$0xf]
      %v1158 = vld [vmem:[%s3 + $0xcc] sm:$0xf]
      %v1159 = vld [vmem:[%s3 + $0xd0] sm:$0xf]
      %v1160 = vld [vmem:[%s3 + $0xd4] sm:$0xf]
      %v1161 = vld [vmem:[%s3 + $0xd8] sm:$0xf]
      %v1162 = vld [vmem:[%s3 + $0xdc] sm:$0xf]
      %v1163 = vld [vmem:[%s3 + $0xe0] sm:$0xf]
      %v1164 = vld [vmem:[%s3 + $0xe4] sm:$0xf]
      %v1165 = vld [vmem:[%s3 + $0xe8] sm:$0xf]
      %v1166 = vld [vmem:[%s3 + $0xec] sm:$0xf]
      %v1167 = vld [vmem:[%s3 + $0xf0] sm:$0xf]
      %v1168 = vld [vmem:[%s3 + $0xf4] sm:$0xf]
      %v1169 = vld [vmem:[%s3 + $0xf8] sm:$0xf]
      %v1170 = vld [vmem:[%s3 + $0xfc] sm:$0xf]
      %v1171 = vld [vmem:[%s4] sm:$0x1]
      %v1173 = vlaneseq
      %v1174 = vshrl.u32 %v1173, 7
      %v1175 = vsub.s32 0, %v1174
      %v1176 = vrot.slane %v1171, %v1175
      %v1210 = vunpack.c.l.b16 %v1075
      %v1211 = vunpack.c.h.b16 %v1075
      %v1212 = vunpack.c.l.b16 %v1076
      %v1213 = vunpack.c.h.b16 %v1076
      %v1214 = vunpack.c.l.b16 %v1077
      %v1215 = vunpack.c.h.b16 %v1077
      %v1216 = vunpack.c.l.b16 %v1078
      %v1217 = vunpack.c.h.b16 %v1078
      %v1218 = vunpack.c.l.b16 %v1079
      %v1219 = vunpack.c.h.b16 %v1079
      %v1220 = vunpack.c.l.b16 %v1080
      %v1221 = vunpack.c.h.b16 %v1080
      %v1222 = vunpack.c.l.b16 %v1081
      %v1223 = vunpack.c.h.b16 %v1081
      %v1224 = vunpack.c.l.b16 %v1082
      %v1225 = vunpack.c.h.b16 %v1082
      %v1226 = vunpack.c.l.b16 %v1083
      %v1227 = vunpack.c.h.b16 %v1083
      %v1228 = vunpack.c.l.b16 %v1084
      %v1229 = vunpack.c.h.b16 %v1084
      %v1230 = vunpack.c.l.b16 %v1085
      %v1231 = vunpack.c.h.b16 %v1085
      %v1232 = vunpack.c.l.b16 %v1086
      %v1233 = vunpack.c.h.b16 %v1086
      %v1234 = vunpack.c.l.b16 %v1087
      %v1235 = vunpack.c.h.b16 %v1087
      %v1236 = vunpack.c.l.b16 %v1088
      %v1237 = vunpack.c.h.b16 %v1088
      %v1238 = vunpack.c.l.b16 %v1089
      %v1239 = vunpack.c.h.b16 %v1089
      %v1240 = vunpack.c.l.b16 %v1090
      %v1241 = vunpack.c.h.b16 %v1090
      %v1242 = vunpack.c.l.b16 %v1091
      %v1243 = vunpack.c.h.b16 %v1091
      %v1244 = vunpack.c.l.b16 %v1092
      %v1245 = vunpack.c.h.b16 %v1092
      %v1246 = vunpack.c.l.b16 %v1093
      %v1247 = vunpack.c.h.b16 %v1093
      %v1248 = vunpack.c.l.b16 %v1094
      %v1249 = vunpack.c.h.b16 %v1094
      %v1250 = vunpack.c.l.b16 %v1095
      %v1251 = vunpack.c.h.b16 %v1095
      %v1252 = vunpack.c.l.b16 %v1096
      %v1253 = vunpack.c.h.b16 %v1096
      %v1254 = vunpack.c.l.b16 %v1097
      %v1255 = vunpack.c.h.b16 %v1097
      %v1256 = vunpack.c.l.b16 %v1098
      %v1257 = vunpack.c.h.b16 %v1098
      %v1258 = vunpack.c.l.b16 %v1099
      %v1259 = vunpack.c.h.b16 %v1099
      %v1260 = vunpack.c.l.b16 %v1100
      %v1261 = vunpack.c.h.b16 %v1100
      %v1262 = vunpack.c.l.b16 %v1101
      %v1263 = vunpack.c.h.b16 %v1101
      %v1264 = vunpack.c.l.b16 %v1102
      %v1265 = vunpack.c.h.b16 %v1102
      %v1266 = vunpack.c.l.b16 %v1103
      %v1267 = vunpack.c.h.b16 %v1103
      %v1268 = vunpack.c.l.b16 %v1104
      %v1269 = vunpack.c.h.b16 %v1104
      %v1270 = vunpack.c.l.b16 %v1105
      %v1271 = vunpack.c.h.b16 %v1105
      %v1272 = vunpack.c.l.b16 %v1106
      %v1273 = vunpack.c.h.b16 %v1106
      %v1274 = vpack.c.b16 %v1214, %v1210
      %v1275 = vpack.c.b16 %v1215, %v1211
      %v1276 = vpack.c.b16 %v1216, %v1212
      %v1277 = vpack.c.b16 %v1217, %v1213
      %v1278 = vpack.c.b16 %v1222, %v1218
      %v1279 = vpack.c.b16 %v1223, %v1219
      %v1280 = vpack.c.b16 %v1224, %v1220
      %v1281 = vpack.c.b16 %v1225, %v1221
      %v1282 = vpack.c.b16 %v1230, %v1226
      %v1283 = vpack.c.b16 %v1231, %v1227
      %v1284 = vpack.c.b16 %v1232, %v1228
      %v1285 = vpack.c.b16 %v1233, %v1229
      %v1286 = vpack.c.b16 %v1238, %v1234
      %v1287 = vpack.c.b16 %v1239, %v1235
      %v1288 = vpack.c.b16 %v1240, %v1236
      %v1289 = vpack.c.b16 %v1241, %v1237
      %v1290 = vpack.c.b16 %v1246, %v1242
      %v1291 = vpack.c.b16 %v1247, %v1243
      %v1292 = vpack.c.b16 %v1248, %v1244
      %v1293 = vpack.c.b16 %v1249, %v1245
      %v1294 = vpack.c.b16 %v1254, %v1250
      %v1295 = vpack.c.b16 %v1255, %v1251
      %v1296 = vpack.c.b16 %v1256, %v1252
      %v1297 = vpack.c.b16 %v1257, %v1253
      %v1298 = vpack.c.b16 %v1262, %v1258
      %v1299 = vpack.c.b16 %v1263, %v1259
      %v1300 = vpack.c.b16 %v1264, %v1260
      %v1301 = vpack.c.b16 %v1265, %v1261
      %v1302 = vpack.c.b16 %v1270, %v1266
      %v1303 = vpack.c.b16 %v1271, %v1267
      %v1304 = vpack.c.b16 %v1272, %v1268
      %v1305 = vpack.c.b16 %v1273, %v1269
      %v1402 = vunpack.c.l.b16 %v1107
      %v1403 = vunpack.c.l.b16 %v1108
      %v1404 = vunpack.c.l.b16 %v1109
      %v1405 = vunpack.c.l.b16 %v1110
      %v1406 = vunpack.c.l.b16 %v1111
      %v1407 = vunpack.c.l.b16 %v1112
      %v1408 = vunpack.c.l.b16 %v1113
      %v1409 = vunpack.c.l.b16 %v1114
      %v1410 = vunpack.c.l.b16 %v1115
      %v1411 = vunpack.c.l.b16 %v1116
      %v1412 = vunpack.c.l.b16 %v1117
      %v1413 = vunpack.c.l.b16 %v1118
      %v1414 = vunpack.c.l.b16 %v1119
      %v1415 = vunpack.c.l.b16 %v1120
      %v1416 = vunpack.c.l.b16 %v1121
      %v1417 = vunpack.c.l.b16 %v1122
      %v1418 = vunpack.c.l.b16 %v1123
      %v1419 = vunpack.c.l.b16 %v1124
      %v1420 = vunpack.c.l.b16 %v1125
      %v1421 = vunpack.c.l.b16 %v1126
      %v1422 = vunpack.c.l.b16 %v1127
      %v1423 = vunpack.c.l.b16 %v1128
      %v1424 = vunpack.c.l.b16 %v1129
      %v1425 = vunpack.c.l.b16 %v1130
      %v1426 = vunpack.c.l.b16 %v1131
      %v1427 = vunpack.c.l.b16 %v1132
      %v1428 = vunpack.c.l.b16 %v1133
      %v1429 = vunpack.c.l.b16 %v1134
      %v1430 = vunpack.c.l.b16 %v1135
      %v1431 = vunpack.c.l.b16 %v1136
      %v1432 = vunpack.c.l.b16 %v1137
      %v1433 = vunpack.c.l.b16 %v1138
      %v1434 = vunpack.c.l.b16 %v1139
      %v1435 = vunpack.c.l.b16 %v1140
      %v1436 = vunpack.c.l.b16 %v1141
      %v1437 = vunpack.c.l.b16 %v1142
      %v1438 = vunpack.c.l.b16 %v1143
      %v1439 = vunpack.c.l.b16 %v1144
      %v1440 = vunpack.c.l.b16 %v1145
      %v1441 = vunpack.c.l.b16 %v1146
      %v1442 = vunpack.c.l.b16 %v1147
      %v1443 = vunpack.c.l.b16 %v1148
      %v1444 = vunpack.c.l.b16 %v1149
      %v1445 = vunpack.c.l.b16 %v1150
      %v1446 = vunpack.c.l.b16 %v1151
      %v1447 = vunpack.c.l.b16 %v1152
      %v1448 = vunpack.c.l.b16 %v1153
      %v1449 = vunpack.c.l.b16 %v1154
      %v1450 = vunpack.c.l.b16 %v1155
      %v1451 = vunpack.c.l.b16 %v1156
      %v1452 = vunpack.c.l.b16 %v1157
      %v1453 = vunpack.c.l.b16 %v1158
      %v1454 = vunpack.c.l.b16 %v1159
      %v1455 = vunpack.c.l.b16 %v1160
      %v1456 = vunpack.c.l.b16 %v1161
      %v1457 = vunpack.c.l.b16 %v1162
      %v1458 = vunpack.c.l.b16 %v1163
      %v1459 = vunpack.c.l.b16 %v1164
      %v1460 = vunpack.c.l.b16 %v1165
      %v1461 = vunpack.c.l.b16 %v1166
      %v1462 = vunpack.c.l.b16 %v1167
      %v1463 = vunpack.c.l.b16 %v1168
      %v1464 = vunpack.c.l.b16 %v1169
      %v1465 = vunpack.c.l.b16 %v1170
      %v1466 = vpack.c.b16 %v1403, %v1402
      %v1467 = vpack.c.b16 %v1405, %v1404
      %v1468 = vpack.c.b16 %v1407, %v1406
      %v1469 = vpack.c.b16 %v1409, %v1408
      %v1470 = vpack.c.b16 %v1411, %v1410
      %v1471 = vpack.c.b16 %v1413, %v1412
      %v1472 = vpack.c.b16 %v1415, %v1414
      %v1473 = vpack.c.b16 %v1417, %v1416
      %v1474 = vpack.c.b16 %v1419, %v1418
      %v1475 = vpack.c.b16 %v1421, %v1420
      %v1476 = vpack.c.b16 %v1423, %v1422
      %v1477 = vpack.c.b16 %v1425, %v1424
      %v1478 = vpack.c.b16 %v1427, %v1426
      %v1479 = vpack.c.b16 %v1429, %v1428
      %v1480 = vpack.c.b16 %v1431, %v1430
      %v1481 = vpack.c.b16 %v1433, %v1432
      %v1482 = vpack.c.b16 %v1435, %v1434
      %v1483 = vpack.c.b16 %v1437, %v1436
      %v1484 = vpack.c.b16 %v1439, %v1438
      %v1485 = vpack.c.b16 %v1441, %v1440
      %v1486 = vpack.c.b16 %v1443, %v1442
      %v1487 = vpack.c.b16 %v1445, %v1444
      %v1488 = vpack.c.b16 %v1447, %v1446
      %v1489 = vpack.c.b16 %v1449, %v1448
      %v1490 = vpack.c.b16 %v1451, %v1450
      %v1491 = vpack.c.b16 %v1453, %v1452
      %v1492 = vpack.c.b16 %v1455, %v1454
      %v1493 = vpack.c.b16 %v1457, %v1456
      %v1494 = vpack.c.b16 %v1459, %v1458
      %v1495 = vpack.c.b16 %v1461, %v1460
      %v1496 = vpack.c.b16 %v1463, %v1462
      %v1497 = vpack.c.b16 %v1465, %v1464
      %1530 = vmatprep.subr.bf16.mxu0 0
      %1531 = vmatpush1.bf16.msra.mxu0 %v1473
      %1532 = vmatprep.subr.bf16.mxu0 0
      %1533 = vmatpush1.bf16.msra.mxu0 %v1472
      %1534 = vmatprep.subr.bf16.mxu0 0
      %1535 = vmatpush1.bf16.msra.mxu0 %v1471
      %1536 = vmatprep.subr.bf16.mxu0 0
      %1537 = vmatpush1.bf16.msra.mxu0 %v1470
      %1538 = vmatprep.subr.bf16.mxu0 0
      %1539 = vmatpush1.bf16.msra.mxu0 %v1469
      %1540 = vmatprep.subr.bf16.mxu0 0
      %1541 = vmatpush1.bf16.msra.mxu0 %v1468
      %1542 = vmatprep.subr.bf16.mxu0 0
      %1543 = vmatpush1.bf16.msra.mxu0 %v1467
      %1544 = vmatprep.subr.bf16.mxu0 0
      %1545 = vmatpush1.bf16.msra.mxu0 %v1466
      %1546 = vmatprep.subr.bf16.mxu0 0
      %1547 = vmatpush2.bf16.msra.mxu0 %v1481
      %1548 = vmatprep.subr.bf16.mxu0 0
      %1549 = vmatpush2.bf16.msra.mxu0 %v1480
      %1550 = vmatprep.subr.bf16.mxu0 0
      %1551 = vmatpush2.bf16.msra.mxu0 %v1479
      %1552 = vmatprep.subr.bf16.mxu0 0
      %1553 = vmatpush2.bf16.msra.mxu0 %v1478
      %1554 = vmatprep.subr.bf16.mxu0 0
      %1555 = vmatpush2.bf16.msra.mxu0 %v1477
      %1556 = vmatprep.subr.bf16.mxu0 0
      %1557 = vmatpush2.bf16.msra.mxu0 %v1476
      %1558 = vmatprep.subr.bf16.mxu0 0
      %1559 = vmatpush2.bf16.msra.mxu0 %v1475
      %1560 = vmatprep.subr.bf16.mxu0 0
      %1561 = vmatpush2.bf16.msra.mxu0 %v1474
      %1562 = vmatprep.mubr.bf16.mxu0 %v1275
      %1563 = vmatmul.mubr.bf16.gmra.mxu0 %v1274
      %v1564 = vpop.f32.mrf.mxu0
      %v1565 = vadd.f32 %v1176, %v1564
      %v1566 = vpop.f32.mrf.mxu0
      %v1567 = vpop.f32.mrf.mxu0
      %v1568 = vadd.f32 %v1176, %v1567
      %v1569 = vpop.f32.mrf.mxu0
      %1570 = vmatprep.mubr.bf16.mxu0 %v1279
      %1571 = vmatmul.mubr.bf16.gmra.mxu0 %v1278
      %v1572 = vpop.f32.mrf.mxu0
      %v1573 = vadd.f32 %v1176, %v1572
      %v1574 = vpop.f32.mrf.mxu0
      %v1575 = vpop.f32.mrf.mxu0
      %v1576 = vadd.f32 %v1176, %v1575
      %v1577 = vpop.f32.mrf.mxu0
      %1578 = vmatprep.mubr.bf16.mxu0 %v1283
      %1579 = vmatmul.mubr.bf16.gmra.mxu0 %v1282
      %v1580 = vpop.f32.mrf.mxu0
      %v1581 = vadd.f32 %v1176, %v1580
      %v1582 = vpop.f32.mrf.mxu0
      %v1583 = vpop.f32.mrf.mxu0
      %v1584 = vadd.f32 %v1176, %v1583
      %v1585 = vpop.f32.mrf.mxu0
      %1586 = vmatprep.mubr.bf16.mxu0 %v1287
      %1587 = vmatmul.mubr.bf16.gmra.mxu0 %v1286
      %v1588 = vpop.f32.mrf.mxu0
      %v1589 = vadd.f32 %v1176, %v1588
      %v1590 = vpop.f32.mrf.mxu0
      %v1591 = vpop.f32.mrf.mxu0
      %v1592 = vadd.f32 %v1176, %v1591
      %v1593 = vpop.f32.mrf.mxu0
      %1594 = vmatprep.mubr.bf16.mxu0 %v1291
      %1595 = vmatmul.mubr.bf16.gmra.mxu0 %v1290
      %v1596 = vpop.f32.mrf.mxu0
      %v1597 = vadd.f32 %v1176, %v1596
      %v1598 = vpop.f32.mrf.mxu0
      %v1599 = vpop.f32.mrf.mxu0
      %v1600 = vadd.f32 %v1176, %v1599
      %v1601 = vpop.f32.mrf.mxu0
      %1602 = vmatprep.mubr.bf16.mxu0 %v1295
      %1603 = vmatmul.mubr.bf16.gmra.mxu0 %v1294
      %v1604 = vpop.f32.mrf.mxu0
      %v1605 = vadd.f32 %v1176, %v1604
      %v1606 = vpop.f32.mrf.mxu0
      %v1607 = vpop.f32.mrf.mxu0
      %v1608 = vadd.f32 %v1176, %v1607
      %v1609 = vpop.f32.mrf.mxu0
      %1610 = vmatprep.mubr.bf16.mxu0 %v1299
      %1611 = vmatmul.mubr.bf16.gmra.mxu0 %v1298
      %v1612 = vpop.f32.mrf.mxu0
      %v1613 = vadd.f32 %v1176, %v1612
      %v1614 = vpop.f32.mrf.mxu0
      %v1615 = vpop.f32.mrf.mxu0
      %v1616 = vadd.f32 %v1176, %v1615
      %v1617 = vpop.f32.mrf.mxu0
      %1618 = vmatprep.mubr.bf16.mxu0 %v1303
      %1619 = vmatmul.mubr.bf16.gmra.mxu0 %v1302
      %v1620 = vpop.f32.mrf.mxu0
      %v1621 = vadd.f32 %v1176, %v1620
      %v1622 = vpop.f32.mrf.mxu0
      %v1623 = vpop.f32.mrf.mxu0
      %v1624 = vadd.f32 %v1176, %v1623
      %v1625 = vpop.f32.mrf.mxu0
      %1626 = vdwg.mxu0
      %1627 = vmatprep.subr.bf16.mxu0 0
      %1628 = vmatpush1.bf16.msra.mxu0 %v1489
      %1629 = vmatprep.subr.bf16.mxu0 0
      %1630 = vmatpush1.bf16.msra.mxu0 %v1488
      %1631 = vmatprep.subr.bf16.mxu0 0
      %1632 = vmatpush1.bf16.msra.mxu0 %v1487
      %1633 = vmatprep.subr.bf16.mxu0 0
      %1634 = vmatpush1.bf16.msra.mxu0 %v1486
      %1635 = vmatprep.subr.bf16.mxu0 0
      %1636 = vmatpush1.bf16.msra.mxu0 %v1485
      %1637 = vmatprep.subr.bf16.mxu0 0
      %1638 = vmatpush1.bf16.msra.mxu0 %v1484
      %1639 = vmatprep.subr.bf16.mxu0 0
      %1640 = vmatpush1.bf16.msra.mxu0 %v1483
      %1641 = vmatprep.subr.bf16.mxu0 0
      %1642 = vmatpush1.bf16.msra.mxu0 %v1482
      %1643 = vmatprep.subr.bf16.mxu0 0
      %1644 = vmatpush2.bf16.msra.mxu0 %v1497
      %1645 = vmatprep.subr.bf16.mxu0 0
      %1646 = vmatpush2.bf16.msra.mxu0 %v1496
      %1647 = vmatprep.subr.bf16.mxu0 0
      %1648 = vmatpush2.bf16.msra.mxu0 %v1495
      %1649 = vmatprep.subr.bf16.mxu0 0
      %1650 = vmatpush2.bf16.msra.mxu0 %v1494
      %1651 = vmatprep.subr.bf16.mxu0 0
      %1652 = vmatpush2.bf16.msra.mxu0 %v1493
      %1653 = vmatprep.subr.bf16.mxu0 0
      %1654 = vmatpush2.bf16.msra.mxu0 %v1492
      %1655 = vmatprep.subr.bf16.mxu0 0
      %1656 = vmatpush2.bf16.msra.mxu0 %v1491
      %1657 = vmatprep.subr.bf16.mxu0 0
      %1658 = vmatpush2.bf16.msra.mxu0 %v1490
      %1659 = vmatprep.mubr.bf16.mxu0 %v1277
      %1660 = vmatmul.mubr.bf16.gmra.mxu0 %v1276
      %v1661 = vpop.f32.mrf.mxu0
      %v1662 = vadd.f32 %v1565, %v1661
      %v1663 = vpop.f32.mrf.mxu0
      %v1664 = vpop.f32.mrf.mxu0
      %v1665 = vadd.f32 %v1568, %v1664
      %v1666 = vpop.f32.mrf.mxu0
      %1667 = vmatprep.mubr.bf16.mxu0 %v1281
      %1668 = vmatmul.mubr.bf16.gmra.mxu0 %v1280
      %v1669 = vpop.f32.mrf.mxu0
      %v1670 = vadd.f32 %v1573, %v1669
      %v1671 = vpop.f32.mrf.mxu0
      %v1672 = vpop.f32.mrf.mxu0
      %v1673 = vadd.f32 %v1576, %v1672
      %v1674 = vpop.f32.mrf.mxu0
      %1675 = vmatprep.mubr.bf16.mxu0 %v1285
      %1676 = vmatmul.mubr.bf16.gmra.mxu0 %v1284
      %v1677 = vpop.f32.mrf.mxu0
      %v1678 = vadd.f32 %v1581, %v1677
      %v1679 = vpop.f32.mrf.mxu0
      %v1680 = vpop.f32.mrf.mxu0
      %v1681 = vadd.f32 %v1584, %v1680
      %v1682 = vpop.f32.mrf.mxu0
      %1683 = vmatprep.mubr.bf16.mxu0 %v1289
      %1684 = vmatmul.mubr.bf16.gmra.mxu0 %v1288
      %v1685 = vpop.f32.mrf.mxu0
      %v1686 = vadd.f32 %v1589, %v1685
      %v1687 = vpop.f32.mrf.mxu0
      %v1688 = vpop.f32.mrf.mxu0
      %v1689 = vadd.f32 %v1592, %v1688
      %v1690 = vpop.f32.mrf.mxu0
      %1691 = vmatprep.mubr.bf16.mxu0 %v1293
      %1692 = vmatmul.mubr.bf16.gmra.mxu0 %v1292
      %v1693 = vpop.f32.mrf.mxu0
      %v1694 = vadd.f32 %v1597, %v1693
      %v1695 = vpop.f32.mrf.mxu0
      %v1696 = vpop.f32.mrf.mxu0
      %v1697 = vadd.f32 %v1600, %v1696
      %v1698 = vpop.f32.mrf.mxu0
      %1699 = vmatprep.mubr.bf16.mxu0 %v1297
      %1700 = vmatmul.mubr.bf16.gmra.mxu0 %v1296
      %v1701 = vpop.f32.mrf.mxu0
      %v1702 = vadd.f32 %v1605, %v1701
      %v1703 = vpop.f32.mrf.mxu0
      %v1704 = vpop.f32.mrf.mxu0
      %v1705 = vadd.f32 %v1608, %v1704
      %v1706 = vpop.f32.mrf.mxu0
      %1707 = vmatprep.mubr.bf16.mxu0 %v1301
      %1708 = vmatmul.mubr.bf16.gmra.mxu0 %v1300
      %v1709 = vpop.f32.mrf.mxu0
      %v1710 = vadd.f32 %v1613, %v1709
      %v1711 = vpop.f32.mrf.mxu0
      %v1712 = vpop.f32.mrf.mxu0
      %v1713 = vadd.f32 %v1616, %v1712
      %v1714 = vpop.f32.mrf.mxu0
      %1715 = vmatprep.mubr.bf16.mxu0 %v1305
      %1716 = vmatmul.mubr.bf16.gmra.mxu0 %v1304
      %v1717 = vpop.f32.mrf.mxu0
      %v1718 = vadd.f32 %v1621, %v1717
      %v1719 = vpop.f32.mrf.mxu0
      %v1720 = vpop.f32.mrf.mxu0
      %v1721 = vadd.f32 %v1624, %v1720
      %v1722 = vpop.f32.mrf.mxu0
      %1723 = vdwg.mxu0
      %v1724 = vld [vmem:[%s274] sm:$0xf]
      %v1725 = vld [vmem:[%s274 + $0x4] sm:$0xf]
      %v1726 = vld [vmem:[%s274 + $0x8] sm:$0xf]
      %v1727 = vld [vmem:[%s274 + $0xc] sm:$0xf]
      %v1728 = vld [vmem:[%s274 + $0x10] sm:$0xf]
      %v1729 = vld [vmem:[%s274 + $0x14] sm:$0xf]
      %v1730 = vld [vmem:[%s274 + $0x18] sm:$0xf]
      %v1731 = vld [vmem:[%s274 + $0x1c] sm:$0xf]
      %v1732 = vld [vmem:[%s274 + $0x20] sm:$0xf]
      %v1733 = vld [vmem:[%s274 + $0x24] sm:$0xf]
      %v1734 = vld [vmem:[%s274 + $0x28] sm:$0xf]
      %v1735 = vld [vmem:[%s274 + $0x2c] sm:$0xf]
      %v1736 = vld [vmem:[%s274 + $0x30] sm:$0xf]
      %v1737 = vld [vmem:[%s274 + $0x34] sm:$0xf]
      %v1738 = vld [vmem:[%s274 + $0x38] sm:$0xf]
      %v1739 = vld [vmem:[%s274 + $0x3c] sm:$0xf]
      %v1740 = vunpack.c.l.bf16 %v1724
      %v1741 = vunpack.c.l.bf16 %v1725
      %v1742 = vunpack.c.l.bf16 %v1726
      %v1743 = vunpack.c.l.bf16 %v1727
      %v1744 = vunpack.c.l.bf16 %v1728
      %v1745 = vunpack.c.l.bf16 %v1729
      %v1746 = vunpack.c.l.bf16 %v1730
      %v1747 = vunpack.c.l.bf16 %v1731
      %v1748 = vunpack.c.l.bf16 %v1732
      %v1749 = vunpack.c.l.bf16 %v1733
      %v1750 = vunpack.c.l.bf16 %v1734
      %v1751 = vunpack.c.l.bf16 %v1735
      %v1752 = vunpack.c.l.bf16 %v1736
      %v1753 = vunpack.c.l.bf16 %v1737
      %v1754 = vunpack.c.l.bf16 %v1738
      %v1755 = vunpack.c.l.bf16 %v1739
      %v1756 = vadd.f32 %v1662, %v1740
      %v1757 = vadd.f32 %v1665, %v1741
      %v1758 = vadd.f32 %v1670, %v1742
      %v1759 = vadd.f32 %v1673, %v1743
      %v1760 = vadd.f32 %v1678, %v1744
      %v1761 = vadd.f32 %v1681, %v1745
      %v1762 = vadd.f32 %v1686, %v1746
      %v1763 = vadd.f32 %v1689, %v1747
      %v1764 = vadd.f32 %v1694, %v1748
      %v1765 = vadd.f32 %v1697, %v1749
      %v1766 = vadd.f32 %v1702, %v1750
      %v1767 = vadd.f32 %v1705, %v1751
      %v1768 = vadd.f32 %v1710, %v1752
      %v1769 = vadd.f32 %v1713, %v1753
      %v1770 = vadd.f32 %v1718, %v1754
      %v1771 = vadd.f32 %v1721, %v1755
      %1772 = vadd.xlane.f32.xlu0 %v1756
      %v1773 = vpop.xlane.xlu0 %1772
      %1774 = vadd.xlane.f32.xlu0 %v1757
      %v1775 = vpop.xlane.xlu0 %1774
      %1776 = vadd.xlane.f32.xlu0 %v1758
      %v1777 = vpop.xlane.xlu0 %1776
      %1778 = vadd.xlane.f32.xlu0 %v1759
      %v1779 = vpop.xlane.xlu0 %1778
      %1780 = vadd.xlane.f32.xlu0 %v1760
      %v1781 = vpop.xlane.xlu0 %1780
      %1782 = vadd.xlane.f32.xlu0 %v1761
      %v1783 = vpop.xlane.xlu0 %1782
      %1784 = vadd.xlane.f32.xlu0 %v1762
      %v1785 = vpop.xlane.xlu0 %1784
      %1786 = vadd.xlane.f32.xlu0 %v1763
      %v1787 = vpop.xlane.xlu0 %1786
      %1788 = vadd.xlane.f32.xlu0 %v1764
      %v1789 = vpop.xlane.xlu0 %1788
      %1790 = vadd.xlane.f32.xlu0 %v1765
      %v1791 = vpop.xlane.xlu0 %1790
      %1792 = vadd.xlane.f32.xlu0 %v1766
      %v1793 = vpop.xlane.xlu0 %1792
      %1794 = vadd.xlane.f32.xlu0 %v1767
      %v1795 = vpop.xlane.xlu0 %1794
      %1796 = vadd.xlane.f32.xlu0 %v1768
      %v1797 = vpop.xlane.xlu0 %1796
      %1798 = vadd.xlane.f32.xlu0 %v1769
      %v1799 = vpop.xlane.xlu0 %1798
      %1800 = vadd.xlane.f32.xlu0 %v1770
      %v1801 = vpop.xlane.xlu0 %1800
      %1802 = vadd.xlane.f32.xlu0 %v1771
      %v1803 = vpop.xlane.xlu0 %1802
      %v1804 = vrcp.pop 128.0
      %v1805 = vmul.f32 %v1773, %v1804
      %v1806 = vmul.f32 %v1775, %v1804
      %v1807 = vmul.f32 %v1777, %v1804
      %v1808 = vmul.f32 %v1779, %v1804
      %v1809 = vmul.f32 %v1781, %v1804
      %v1810 = vmul.f32 %v1783, %v1804
      %v1811 = vmul.f32 %v1785, %v1804
      %v1812 = vmul.f32 %v1787, %v1804
      %v1813 = vmul.f32 %v1789, %v1804
      %v1814 = vmul.f32 %v1791, %v1804
      %v1815 = vmul.f32 %v1793, %v1804
      %v1816 = vmul.f32 %v1795, %v1804
      %v1817 = vmul.f32 %v1797, %v1804
      %v1818 = vmul.f32 %v1799, %v1804
      %v1819 = vmul.f32 %v1801, %v1804
      %v1820 = vmul.f32 %v1803, %v1804
      %v1821 = vsub.f32 %v1756, %v1805
      %v1822 = vsub.f32 %v1757, %v1806
      %v1823 = vsub.f32 %v1758, %v1807
      %v1824 = vsub.f32 %v1759, %v1808
      %v1825 = vsub.f32 %v1760, %v1809
      %v1826 = vsub.f32 %v1761, %v1810
      %v1827 = vsub.f32 %v1762, %v1811
      %v1828 = vsub.f32 %v1763, %v1812
      %v1829 = vsub.f32 %v1764, %v1813
      %v1830 = vsub.f32 %v1765, %v1814
      %v1831 = vsub.f32 %v1766, %v1815
      %v1832 = vsub.f32 %v1767, %v1816
      %v1833 = vsub.f32 %v1768, %v1817
      %v1834 = vsub.f32 %v1769, %v1818
      %v1835 = vsub.f32 %v1770, %v1819
      %v1836 = vsub.f32 %v1771, %v1820
      %v1837 = vmul.f32 %v1821, %v1821
      %v1838 = vmul.f32 %v1822, %v1822
      %v1839 = vmul.f32 %v1823, %v1823
      %v1840 = vmul.f32 %v1824, %v1824
      %v1841 = vmul.f32 %v1825, %v1825
      %v1842 = vmul.f32 %v1826, %v1826
      %v1843 = vmul.f32 %v1827, %v1827
      %v1844 = vmul.f32 %v1828, %v1828
      %v1845 = vmul.f32 %v1829, %v1829
      %v1846 = vmul.f32 %v1830, %v1830
      %v1847 = vmul.f32 %v1831, %v1831
      %v1848 = vmul.f32 %v1832, %v1832
      %v1849 = vmul.f32 %v1833, %v1833
      %v1850 = vmul.f32 %v1834, %v1834
      %v1851 = vmul.f32 %v1835, %v1835
      %v1852 = vmul.f32 %v1836, %v1836
      %1853 = vadd.xlane.f32.xlu0 %v1837
      %v1854 = vpop.xlane.xlu0 %1853
      %1855 = vadd.xlane.f32.xlu0 %v1838
      %v1856 = vpop.xlane.xlu0 %1855
      %1857 = vadd.xlane.f32.xlu0 %v1839
      %v1858 = vpop.xlane.xlu0 %1857
      %1859 = vadd.xlane.f32.xlu0 %v1840
      %v1860 = vpop.xlane.xlu0 %1859
      %1861 = vadd.xlane.f32.xlu0 %v1841
      %v1862 = vpop.xlane.xlu0 %1861
      %1863 = vadd.xlane.f32.xlu0 %v1842
      %v1864 = vpop.xlane.xlu0 %1863
      %1865 = vadd.xlane.f32.xlu0 %v1843
      %v1866 = vpop.xlane.xlu0 %1865
      %1867 = vadd.xlane.f32.xlu0 %v1844
      %v1868 = vpop.xlane.xlu0 %1867
      %1869 = vadd.xlane.f32.xlu0 %v1845
      %v1870 = vpop.xlane.xlu0 %1869
      %1871 = vadd.xlane.f32.xlu0 %v1846
      %v1872 = vpop.xlane.xlu0 %1871
      %1873 = vadd.xlane.f32.xlu0 %v1847
      %v1874 = vpop.xlane.xlu0 %1873
      %1875 = vadd.xlane.f32.xlu0 %v1848
      %v1876 = vpop.xlane.xlu0 %1875
      %1877 = vadd.xlane.f32.xlu0 %v1849
      %v1878 = vpop.xlane.xlu0 %1877
      %1879 = vadd.xlane.f32.xlu0 %v1850
      %v1880 = vpop.xlane.xlu0 %1879
      %1881 = vadd.xlane.f32.xlu0 %v1851
      %v1882 = vpop.xlane.xlu0 %1881
      %1883 = vadd.xlane.f32.xlu0 %v1852
      %v1884 = vpop.xlane.xlu0 %1883
      %v1885 = vmul.f32 %v1854, %v1804
      %v1886 = vmul.f32 %v1856, %v1804
      %v1887 = vmul.f32 %v1858, %v1804
      %v1888 = vmul.f32 %v1860, %v1804
      %v1889 = vmul.f32 %v1862, %v1804
      %v1890 = vmul.f32 %v1864, %v1804
      %v1891 = vmul.f32 %v1866, %v1804
      %v1892 = vmul.f32 %v1868, %v1804
      %v1893 = vmul.f32 %v1870, %v1804
      %v1894 = vmul.f32 %v1872, %v1804
      %v1895 = vmul.f32 %v1874, %v1804
      %v1896 = vmul.f32 %v1876, %v1804
      %v1897 = vmul.f32 %v1878, %v1804
      %v1898 = vmul.f32 %v1880, %v1804
      %v1899 = vmul.f32 %v1882, %v1804
      %v1900 = vmul.f32 %v1884, %v1804
      %v1901 = vadd.f32 %v1885, 1e-05
      %v1902 = vadd.f32 %v1886, 1e-05
      %v1903 = vadd.f32 %v1887, 1e-05
      %v1904 = vadd.f32 %v1888, 1e-05
      %v1905 = vadd.f32 %v1889, 1e-05
      %v1906 = vadd.f32 %v1890, 1e-05
      %v1907 = vadd.f32 %v1891, 1e-05
      %v1908 = vadd.f32 %v1892, 1e-05
      %v1909 = vadd.f32 %v1893, 1e-05
      %v1910 = vadd.f32 %v1894, 1e-05
      %v1911 = vadd.f32 %v1895, 1e-05
      %v1912 = vadd.f32 %v1896, 1e-05
      %v1913 = vadd.f32 %v1897, 1e-05
      %v1914 = vadd.f32 %v1898, 1e-05
      %v1915 = vadd.f32 %v1899, 1e-05
      %v1916 = vadd.f32 %v1900, 1e-05
      %v1917 = vrsqrt.pop %v1901
      %v1918 = vrsqrt.pop %v1902
      %v1919 = vrsqrt.pop %v1903
      %v1920 = vrsqrt.pop %v1904
      %v1921 = vrsqrt.pop %v1905
      %v1922 = vrsqrt.pop %v1906
      %v1923 = vrsqrt.pop %v1907
      %v1924 = vrsqrt.pop %v1908
      %v1925 = vrsqrt.pop %v1909
      %v1926 = vrsqrt.pop %v1910
      %v1927 = vrsqrt.pop %v1911
      %v1928 = vrsqrt.pop %v1912
      %v1929 = vrsqrt.pop %v1913
      %v1930 = vrsqrt.pop %v1914
      %v1931 = vrsqrt.pop %v1915
      %v1932 = vrsqrt.pop %v1916
      %v1933 = vmul.f32 %v1821, %v1917
      %v1934 = vmul.f32 %v1822, %v1918
      %v1935 = vmul.f32 %v1823, %v1919
      %v1936 = vmul.f32 %v1824, %v1920
      %v1937 = vmul.f32 %v1825, %v1921
      %v1938 = vmul.f32 %v1826, %v1922
      %v1939 = vmul.f32 %v1827, %v1923
      %v1940 = vmul.f32 %v1828, %v1924
      %v1941 = vmul.f32 %v1829, %v1925
      %v1942 = vmul.f32 %v1830, %v1926
      %v1943 = vmul.f32 %v1831, %v1927
      %v1944 = vmul.f32 %v1832, %v1928
      %v1945 = vmul.f32 %v1833, %v1929
      %v1946 = vmul.f32 %v1834, %v1930
      %v1947 = vmul.f32 %v1835, %v1931
      %v1948 = vmul.f32 %v1836, %v1932
      %v1949 = vld [vmem:[%s5] sm:$0x1]
      %v1951 = vlaneseq
      %v1952 = vshrl.u32 %v1951, 7
      %v1953 = vsub.s32 0, %v1952
      %v1954 = vrot.slane %v1949, %v1953
      %v1956 = vmul.f32 %v1933, %v1954
      %v1957 = vmul.f32 %v1934, %v1954
      %v1958 = vmul.f32 %v1935, %v1954
      %v1959 = vmul.f32 %v1936, %v1954
      %v1960 = vmul.f32 %v1937, %v1954
      %v1961 = vmul.f32 %v1938, %v1954
      %v1962 = vmul.f32 %v1939, %v1954
      %v1963 = vmul.f32 %v1940, %v1954
      %v1964 = vmul.f32 %v1941, %v1954
      %v1965 = vmul.f32 %v1942, %v1954
      %v1966 = vmul.f32 %v1943, %v1954
      %v1967 = vmul.f32 %v1944, %v1954
      %v1968 = vmul.f32 %v1945, %v1954
      %v1969 = vmul.f32 %v1946, %v1954
      %v1970 = vmul.f32 %v1947, %v1954
      %v1971 = vmul.f32 %v1948, %v1954
      %v1972 = vld [vmem:[%s6] sm:$0x1]
      %v1974 = vlaneseq
      %v1975 = vshrl.u32 %v1974, 7
      %v1976 = vsub.s32 0, %v1975
      %v1977 = vrot.slane %v1972, %v1976
      %v1979 = vadd.f32 %v1956, %v1977
      %v1980 = vadd.f32 %v1957, %v1977
      %v1981 = vadd.f32 %v1958, %v1977
      %v1982 = vadd.f32 %v1959, %v1977
      %v1983 = vadd.f32 %v1960, %v1977
      %v1984 = vadd.f32 %v1961, %v1977
      %v1985 = vadd.f32 %v1962, %v1977
      %v1986 = vadd.f32 %v1963, %v1977
      %v1987 = vadd.f32 %v1964, %v1977
      %v1988 = vadd.f32 %v1965, %v1977
      %v1989 = vadd.f32 %v1966, %v1977
      %v1990 = vadd.f32 %v1967, %v1977
      %v1991 = vadd.f32 %v1968, %v1977
      %v1992 = vadd.f32 %v1969, %v1977
      %v1993 = vadd.f32 %v1970, %v1977
      %v1994 = vadd.f32 %v1971, %v1977
      %v1995 = vpack.c.bf16 %v1980, %v1979
      %v1996 = vpack.c.bf16 %v1982, %v1981
      %v1997 = vpack.c.bf16 %v1984, %v1983
      %v1998 = vpack.c.bf16 %v1986, %v1985
      %v1999 = vpack.c.bf16 %v1988, %v1987
      %v2000 = vpack.c.bf16 %v1990, %v1989
      %v2001 = vpack.c.bf16 %v1992, %v1991
      %v2002 = vpack.c.bf16 %v1994, %v1993
      %v2011 = vunpack.c.l.b16 %v1995
      %v2012 = vunpack.c.h.b16 %v1995
      %v2013 = vunpack.c.l.b16 %v1996
      %v2014 = vunpack.c.h.b16 %v1996
      %v2015 = vunpack.c.l.b16 %v1997
      %v2016 = vunpack.c.h.b16 %v1997
      %v2017 = vunpack.c.l.b16 %v1998
      %v2018 = vunpack.c.h.b16 %v1998
      %v2019 = vunpack.c.l.b16 %v1999
      %v2020 = vunpack.c.h.b16 %v1999
      %v2021 = vunpack.c.l.b16 %v2000
      %v2022 = vunpack.c.h.b16 %v2000
      %v2023 = vunpack.c.l.b16 %v2001
      %v2024 = vunpack.c.h.b16 %v2001
      %v2025 = vunpack.c.l.b16 %v2002
      %v2026 = vunpack.c.h.b16 %v2002
      %v2027 = vpack.c.b16 %v2011, %v2011
      %v2028 = vpack.c.b16 %v2012, %v2012
      %v2029 = vpack.c.b16 %v2013, %v2013
      %v2030 = vpack.c.b16 %v2014, %v2014
      %v2031 = vpack.c.b16 %v2015, %v2015
      %v2032 = vpack.c.b16 %v2016, %v2016
      %v2033 = vpack.c.b16 %v2017, %v2017
      %v2034 = vpack.c.b16 %v2018, %v2018
      %v2035 = vpack.c.b16 %v2019, %v2019
      %v2036 = vpack.c.b16 %v2020, %v2020
      %v2037 = vpack.c.b16 %v2021, %v2021
      %v2038 = vpack.c.b16 %v2022, %v2022
      %v2039 = vpack.c.b16 %v2023, %v2023
      %v2040 = vpack.c.b16 %v2024, %v2024
      %v2041 = vpack.c.b16 %v2025, %v2025
      %v2042 = vpack.c.b16 %v2026, %v2026
      %2059 = vst [vmem:[%s280] sm:$0xf] %v2027
      %2060 = vst [vmem:[%s280 + $0x4] sm:$0xf] %v2028
      %2061 = vst [vmem:[%s280 + $0x8] sm:$0xf] %v2029
      %2062 = vst [vmem:[%s280 + $0xc] sm:$0xf] %v2030
      %2063 = vst [vmem:[%s280 + $0x10] sm:$0xf] %v2031
      %2064 = vst [vmem:[%s280 + $0x14] sm:$0xf] %v2032
      %2065 = vst [vmem:[%s280 + $0x18] sm:$0xf] %v2033
      %2066 = vst [vmem:[%s280 + $0x1c] sm:$0xf] %v2034
      %2067 = vst [vmem:[%s280 + $0x20] sm:$0xf] %v2035
      %2068 = vst [vmem:[%s280 + $0x24] sm:$0xf] %v2036
      %2069 = vst [vmem:[%s280 + $0x28] sm:$0xf] %v2037
      %2070 = vst [vmem:[%s280 + $0x2c] sm:$0xf] %v2038
      %2071 = vst [vmem:[%s280 + $0x30] sm:$0xf] %v2039
      %2072 = vst [vmem:[%s280 + $0x34] sm:$0xf] %v2040
      %2073 = vst [vmem:[%s280 + $0x38] sm:$0xf] %v2041
      %2074 = vst [vmem:[%s280 + $0x3c] sm:$0xf] %v2042
      %s2075 = smul.u32 16, %s18
      %p2076 = scmp.lt.s32.totalorder %s2075, 63
      %s2077 = scalar_select %p2076, %s2075, 63
      %s2078 = smul.addr %s2077, 4
      %s2079 = scalar_lea.vmem %s7, %s2078
      // Predicated region
      $region49: #{language_model_forward.11} parent=47 // pred_check
        %p2080 = pneg %p188
      $region50: #{language_model_forward.11} parent=47 // pred_check_branch
        %2082 = sbr.rel (%p2080) target = $region52
      $region51: #{language_model_forward.11} parent=47 // pred_region
        %s2083 = smul.u32 16, %s18
      $region52: #{language_model_forward.11} parent=47 // pred_fallthru
        _
    $region48: #{language_model_forward.11} parent=5 // pred_fallthru
      _
    %p2084 = scmp.le.s32.totalorder 2, %s13
    // Predicated region
    $region53: #{language_model_forward.11} parent=5 // pred_check
      %p2085 = pneg %p2084
    $region54: #{language_model_forward.11} parent=5 // pred_check_branch
      %2087 = sbr.rel (%p2085) target = $region56
    $region55: #{language_model_forward.11} parent=5 // pred_region
      %s2088 = ssub.s32 %s13, 2
      // Predicated region
      $region57: #{language_model_forward.11} parent=55 // pred_check
        %p2089 = pneg %p194
      $region58: #{language_model_forward.11} parent=55 // pred_check_branch
        %2091 = sbr.rel (%p2089) target = $region60
      $region59: #{language_model_forward.11} parent=55 // pred_region
        %s2092 = smul.u32 16, %s19
        %p2093 = scmp.lt.s32.totalorder %s2092, 63
        %s2094 = scalar_select %p2093, %s2092, 63
        %s2095 = smul.addr %s2094, 4
        %s2096 = scalar_lea.vmem %s7, %s2095
      $region60: #{language_model_forward.11} parent=55 // pred_fallthru
        _
    $region56: #{language_model_forward.11} parent=5 // pred_fallthru
      _
  $region6: #{language_model_forward.11} parent=0 // loop_footer
    %s17 = sadd.s32 1, %s13
  $region7: #{language_model_forward.11} parent=0 // loop_footer_branch
    %12 = sbr.rel target = $region3
  $region8: #{language_model_forward.11} parent=0 // loop_exit
    _

// kernel: language_model_forward.15
$region0: #{language_model_forward.15}
  #allocation0 [shape = 'u32[]', space=smem, size = 0x4, offset = 0x4, fixed_abs, tag = 'smem constant byte address 0x4 - core index']
  #allocation1 [shape = 'u32[144,128]{1,0:T(1,128)}', space=vmem, size = 0x12000, scoped, tag = 'internal scratch']
  %s0 = inlined_call_operand.vmem [shape: bf16[512,128], index: 0, kind: input, shape index: {}]
  %s1 = inlined_call_operand.vmem [shape: bf16[128,256], index: 1, kind: input, shape index: {}]
  %s2 = inlined_call_operand.vmem [shape: f32[1,256], index: 2, kind: input, shape index: {}]
  %s3 = inlined_call_operand.hbm [shape: f32[512,256], index: 3, kind: output, shape index: {}]
  %s4 = sld [smem:[#allocation0]]
  $region45: #{language_model_forward.15} parent=0
    _
  %s6 = ssub.s32 1, %s4
  %s7 = scalar_select 0, %s6, %s4
  $region1: #{language_model_forward.15} parent=0
    #allocation2 [shape = 'u8[524288]{0}', space=vmem, size = 0x80000, scoped, tag = 'output window, operand 0']
    #allocation3 [shape = 's32[2]{0}', space=sflag, size = 0x8, scoped, tag = 'scoped memory for language_model_forward.15']
    %8 = vsyncpa [#allocation3], 0
    %s9 = scalar_lea.sflag [#allocation3], 1
    %10 = vsyncpa %s9, 0
    loop: start=0, step=1, limit=4
    $region2: #{language_model_forward.15} parent=1 // loop_pre_header
      _
    $region3: #{language_model_forward.15} parent=1 // loop_header
      %s12 = sphi 0, %s16
      %p13 = scmp.ge.s32.totalorder %s12, 4
      %s19 = sphi 0, %s31
      %s20 = sphi 0, %s27
      %s21 = sphi 0, %s19
      %s22 = sphi 0, %s20
      %s23 = sphi 0, %s21
      %s24 = sphi 0, %s22
      %s34 = sphi 0, %s36
      %s37 = sphi 0, %s34
      %s38 = sphi 0, %s37
      %s54 = sphi 0, %s38
      %s60 = sphi 0, %s62
      %s63 = sphi 0, %s60
      %s64 = sphi 0, %s63
      %s80 = sphi 0, %s64
      %s86 = sphi 0, %s88
      %s89 = sphi 0, %s86
      %s90 = sphi 0, %s89
      %s106 = sphi 0, %s90
      %s114 = sphi 0, %s116
      %s117 = sphi 0, %s114
      %s118 = sphi 0, %s117
      %s134 = sphi 0, %s118
    $region4: #{language_model_forward.15} parent=1 // loop_header_branch
      %15 = sbr.rel (%p13) target = $region8
    $region5: #{language_model_forward.15} parent=1 // loop_body
      %s17 = ssub.s32 %s12, 1
      %s18 = ssub.s32 %s12, 2
      %s25 = sadd.s32 1, %s20
      %p26 = scmp.ge.s32.totalorder %s25, 1
      %s27 = scalar_select %p26, 0, %s25
      %s28 = sadd.s32 1, %s19
      %s29 = scalar_select %p26, %s28, %s19
      %p30 = scmp.ge.s32.totalorder %s29, 2
      %s31 = scalar_select %p30, 0, %s29
      %s32 = ssub.s32 %s19, %s31
      %p33 = scmp.eq.s32.totalorder %s32, 0
      %s35 = sadd.s32 %s34, 1
      %s36 = scalar_select %p33, %s34, %s35
      %p39 = pneg %p33
      %p40 = scmp.eq.s32.totalorder %s12, 1
      %p41 = por %p39, %p40
      %p42 = scmp.ne.s32.totalorder %s34, %s37
      %p43 = scmp.eq.s32.totalorder %s12, 0
      %p44 = por %p42, %p43
      %p45 = scmp.ne.s32.totalorder %s34, %s37
      %p46 = scmp.eq.s32.totalorder %s17, 1
      %p47 = por %p45, %p46
      %p48 = scmp.ne.s32.totalorder %s37, %s38
      %p49 = scmp.eq.s32.totalorder %s17, 0
      %p50 = por %p48, %p49
      %p51 = scmp.ne.s32.totalorder %s37, %s38
      %p52 = scmp.eq.s32.totalorder %s18, 1
      %p53 = por %p51, %p52
      %p55 = scmp.ne.s32.totalorder %s38, %s54
      %p56 = scmp.eq.s32.totalorder %s18, 0
      %p57 = por %p55, %p56
      %s58 = ssub.s32 %s20, %s27
      %p59 = scmp.eq.s32.totalorder %s58, 0
      %s61 = sadd.s32 %s60, 1
      %s62 = scalar_select %p59, %s60, %s61
      %p65 = pneg %p59
      %p66 = scmp.eq.s32.totalorder %s12, 1
      %p67 = por %p65, %p66
      %p68 = scmp.ne.s32.totalorder %s60, %s63
      %p69 = scmp.eq.s32.totalorder %s12, 0
      %p70 = por %p68, %p69
      %p71 = scmp.ne.s32.totalorder %s60, %s63
      %p72 = scmp.eq.s32.totalorder %s17, 1
      %p73 = por %p71, %p72
      %p74 = scmp.ne.s32.totalorder %s63, %s64
      %p75 = scmp.eq.s32.totalorder %s17, 0
      %p76 = por %p74, %p75
      %p77 = scmp.ne.s32.totalorder %s63, %s64
      %p78 = scmp.eq.s32.totalorder %s18, 1
      %p79 = por %p77, %p78
      %p81 = scmp.ne.s32.totalorder %s64, %s80
      %p82 = scmp.eq.s32.totalorder %s18, 0
      %p83 = por %p81, %p82
      %s84 = ssub.s32 %s20, %s27
      %p85 = scmp.eq.s32.totalorder %s84, 0
      %s87 = sadd.s32 %s86, 1
      %s88 = scalar_select %p85, %s86, %s87
      %p91 = pneg %p85
      %p92 = scmp.eq.s32.totalorder %s12, 1
      %p93 = por %p91, %p92
      %p94 = scmp.ne.s32.totalorder %s86, %s89
      %p95 = scmp.eq.s32.totalorder %s12, 0
      %p96 = por %p94, %p95
      %p97 = scmp.ne.s32.totalorder %s86, %s89
      %p98 = scmp.eq.s32.totalorder %s17, 1
      %p99 = por %p97, %p98
      %p100 = scmp.ne.s32.totalorder %s89, %s90
      %p101 = scmp.eq.s32.totalorder %s17, 0
      %p102 = por %p100, %p101
      %p103 = scmp.ne.s32.totalorder %s89, %s90
      %p104 = scmp.eq.s32.totalorder %s18, 1
      %p105 = por %p103, %p104
      %p107 = scmp.ne.s32.totalorder %s90, %s106
      %p108 = scmp.eq.s32.totalorder %s18, 0
      %p109 = por %p107, %p108
      %s110 = ssub.s32 %s19, %s31
      %s111 = ssub.s32 %s20, %s27
      %s112 = sor.u32 %s110, %s111
      %p113 = scmp.eq.s32.totalorder %s112, 0
      %s115 = sadd.s32 %s114, 1
      %s116 = scalar_select %p113, %s114, %s115
      %p119 = pneg %p113
      %p120 = scmp.eq.s32.totalorder %s12, 1
      %p121 = por %p119, %p120
      %p122 = scmp.ne.s32.totalorder %s114, %s117
      %p123 = scmp.eq.s32.totalorder %s12, 0
      %p124 = por %p122, %p123
      %p125 = scmp.ne.s32.totalorder %s114, %s117
      %p126 = scmp.eq.s32.totalorder %s17, 1
      %p127 = por %p125, %p126
      %p128 = scmp.ne.s32.totalorder %s117, %s118
      %p129 = scmp.eq.s32.totalorder %s17, 0
      %p130 = por %p128, %p129
      %p131 = scmp.ne.s32.totalorder %s117, %s118
      %p132 = scmp.eq.s32.totalorder %s18, 1
      %p133 = por %p131, %p132
      %p135 = scmp.ne.s32.totalorder %s118, %s134
      %p136 = scmp.eq.s32.totalorder %s18, 0
      %p137 = por %p135, %p136
      %p138 = scmp.le.s32.totalorder 1, %s12
      %p139 = scmp.lt.s32.totalorder %s12, 3
      %p140 = pnand %p138, %p139
      %p141 = pneg %p140
      // Predicated region
      $region9: #{language_model_forward.15} parent=5 // pred_check
        _
      $region10: #{language_model_forward.15} parent=5 // pred_check_branch
        %143 = sbr.rel (%p140) target = $region12
      $region11: #{language_model_forward.15} parent=5 // pred_region
        %s144 = ssub.s32 %s12, 1
        // Predicated region
        $region13: #{language_model_forward.15} parent=11 // pred_check
          %p145 = pneg %p76
        $region14: #{language_model_forward.15} parent=11 // pred_check_branch
          %147 = sbr.rel (%p145) target = $region16
        $region15: #{language_model_forward.15} parent=11 // pred_region
          %s148 = smul.u32 2, %s22
          %p149 = scmp.lt.s32.totalorder %s148, 1
          %s150 = scalar_select %p149, %s148, 1
          %s151 = smul.addr %s150, 4
          %s152 = scalar_lea.vmem %s1, %s151
          %s153 = smul.u32 2, %s22
        $region16: #{language_model_forward.15} parent=11 // pred_fallthru
          _
        // Predicated region
        $region17: #{language_model_forward.15} parent=11 // pred_check
          %p154 = pneg %p102
        $region18: #{language_model_forward.15} parent=11 // pred_check_branch
          %156 = sbr.rel (%p154) target = $region20
        $region19: #{language_model_forward.15} parent=11 // pred_region
          %s157 = smul.u32 2, %s22
          %p158 = scmp.lt.s32.totalorder %s157, 1
          %s159 = scalar_select %p158, %s157, 1
          %s160 = scalar_lea.vmem %s2, %s159
          %s161 = smul.u32 2, %s22
        $region20: #{language_model_forward.15} parent=11 // pred_fallthru
          _
      $region12: #{language_model_forward.15} parent=5 // pred_fallthru
        _
      %p162 = scmp.lt.s32.totalorder %s12, 2
      // Predicated region
      $region21: #{language_model_forward.15} parent=5 // pred_check
        %p163 = pneg %p162
      $region22: #{language_model_forward.15} parent=5 // pred_check_branch
        %165 = sbr.rel (%p163) target = $region24
      $region23: #{language_model_forward.15} parent=5 // pred_region
        // Predicated region
        $region25: #{language_model_forward.15} parent=23 // pred_check
          %p166 = pneg %p44
        $region26: #{language_model_forward.15} parent=23 // pred_check_branch
          %168 = sbr.rel (%p166) target = $region28
        $region27: #{language_model_forward.15} parent=23 // pred_region
          %s169 = smul.u32 32, %s19
          %p170 = scmp.lt.s32.totalorder %s169, 63
          %s171 = scalar_select %p170, %s169, 63
          %s172 = smul.addr %s171, 4
          %s173 = scalar_lea.vmem %s0, %s172
          %s174 = smul.u32 32, %s19
        $region28: #{language_model_forward.15} parent=23 // pred_fallthru
          _
      $region24: #{language_model_forward.15} parent=5 // pred_fallthru
        _
      %p175 = scmp.le.s32.totalorder 1, %s12
      %p176 = scmp.lt.s32.totalorder %s12, 3
      %p177 = pnand %p175, %p176
      %p178 = pneg %p177
      // Predicated region
      $region29: #{language_model_forward.15} parent=5 // pred_check
        _
      $region30: #{language_model_forward.15} parent=5 // pred_check_branch
        %180 = sbr.rel (%p177) target = $region32
      $region31: #{language_model_forward.15} parent=5 // pred_region
        %s181 = ssub.s32 %s12, 1
        %s182 = smul.u32 32, %s21
        %p183 = scmp.lt.s32.totalorder %s182, 63
        %s184 = scalar_select %p183, %s182, 63
        %s185 = smul.addr %s184, 4
        %s186 = scalar_lea.vmem %s0, %s185
        %p187 = pneg %p50
        %p188 = pneg %p47
        %s189 = smul.u32 2, %s22
        %p190 = scmp.lt.s32.totalorder %s189, 1
        %s191 = scalar_select %p190, %s189, 1
        %s192 = smul.addr %s191, 4
        %s193 = scalar_lea.vmem %s1, %s192
        %p194 = pneg %p76
        %p195 = pneg %p73
        %s196 = smul.u32 2, %s22
        %p197 = scmp.lt.s32.totalorder %s196, 1
        %s198 = scalar_select %p197, %s196, 1
        %s199 = scalar_lea.vmem %s2, %s198
        %p200 = pneg %p102
        %p201 = pneg %p99
        %p202 = pneg %p130
        %p203 = pneg %p127
        %s204 = sand.u32 %s117, 1
        %s205 = scalar_lea.sflag [#allocation3], %s204
        %s206 = sand.u32 %s117, 1
        %s207 = smul.addr %s206, 512
        %s208 = scalar_lea.vmem [#allocation2], %s207
        %s209 = smul.u32 32, %s21
        %p210 = scmp.lt.s32.totalorder %s209, 63
        %s211 = scalar_select %p210, %s209, 63
        %s212 = smul.addr %s211, 4
        %s213 = scalar_lea.vmem %s0, %s212
        %s214 = smul.u32 32, %s21
        %s215 = smul.u32 2, %s22
        %p216 = scmp.lt.s32.totalorder %s215, 1
        %s217 = scalar_select %p216, %s215, 1
        %s218 = smul.addr %s217, 4
        %s219 = scalar_lea.vmem %s1, %s218
        %s220 = smul.u32 2, %s22
        %s221 = smul.u32 2, %s22
        %p222 = scmp.lt.s32.totalorder %s221, 1
        %s223 = scalar_select %p222, %s221, 1
        %s224 = scalar_lea.vmem %s2, %s223
        %s225 = smul.u32 2, %s22
        %s226 = smul.u32 32, %s21
        %s227 = smul.u32 2, %s22
        %v229 = vld [vmem:[%s213] sm:$0xf]
        %v230 = vld [vmem:[%s213 + $0x4] sm:$0xf]
        %v231 = vld [vmem:[%s213 + $0x8] sm:$0xf]
        %v232 = vld [vmem:[%s213 + $0xc] sm:$0xf]
        %v233 = vld [vmem:[%s213 + $0x10] sm:$0xf]
        %v234 = vld [vmem:[%s213 + $0x14] sm:$0xf]
        %v235 = vld [vmem:[%s213 + $0x18] sm:$0xf]
        %v236 = vld [vmem:[%s213 + $0x1c] sm:$0xf]
        %v237 = vld [vmem:[%s213 + $0x20] sm:$0xf]
        %v238 = vld [vmem:[%s213 + $0x24] sm:$0xf]
        %v239 = vld [vmem:[%s213 + $0x28] sm:$0xf]
        %v240 = vld [vmem:[%s213 + $0x2c] sm:$0xf]
        %v241 = vld [vmem:[%s213 + $0x30] sm:$0xf]
        %v242 = vld [vmem:[%s213 + $0x34] sm:$0xf]
        %v243 = vld [vmem:[%s213 + $0x38] sm:$0xf]
        %v244 = vld [vmem:[%s213 + $0x3c] sm:$0xf]
        %v245 = vld [vmem:[%s213 + $0x40] sm:$0xf]
        %v246 = vld [vmem:[%s213 + $0x44] sm:$0xf]
        %v247 = vld [vmem:[%s213 + $0x48] sm:$0xf]
        %v248 = vld [vmem:[%s213 + $0x4c] sm:$0xf]
        %v249 = vld [vmem:[%s213 + $0x50] sm:$0xf]
        %v250 = vld [vmem:[%s213 + $0x54] sm:$0xf]
        %v251 = vld [vmem:[%s213 + $0x58] sm:$0xf]
        %v252 = vld [vmem:[%s213 + $0x5c] sm:$0xf]
        %v253 = vld [vmem:[%s213 + $0x60] sm:$0xf]
        %v254 = vld [vmem:[%s213 + $0x64] sm:$0xf]
        %v255 = vld [vmem:[%s213 + $0x68] sm:$0xf]
        %v256 = vld [vmem:[%s213 + $0x6c] sm:$0xf]
        %v257 = vld [vmem:[%s213 + $0x70] sm:$0xf]
        %v258 = vld [vmem:[%s213 + $0x74] sm:$0xf]
        %v259 = vld [vmem:[%s213 + $0x78] sm:$0xf]
        %v260 = vld [vmem:[%s213 + $0x7c] sm:$0xf]
        %v261 = vld [vmem:[%s219] sm:$0xff]
        %v262 = vld [vmem:[%s219 + $0x8] sm:$0xff]
        %v263 = vld [vmem:[%s219 + $0x10] sm:$0xff]
        %v264 = vld [vmem:[%s219 + $0x18] sm:$0xff]
        %v265 = vld [vmem:[%s219 + $0x20] sm:$0xff]
        %v266 = vld [vmem:[%s219 + $0x28] sm:$0xff]
        %v267 = vld [vmem:[%s219 + $0x30] sm:$0xff]
        %v268 = vld [vmem:[%s219 + $0x38] sm:$0xff]
        %v269 = vld [vmem:[%s219 + $0x40] sm:$0xff]
        %v270 = vld [vmem:[%s219 + $0x48] sm:$0xff]
        %v271 = vld [vmem:[%s219 + $0x50] sm:$0xff]
        %v272 = vld [vmem:[%s219 + $0x58] sm:$0xff]
        %v273 = vld [vmem:[%s219 + $0x60] sm:$0xff]
        %v274 = vld [vmem:[%s219 + $0x68] sm:$0xff]
        %v275 = vld [vmem:[%s219 + $0x70] sm:$0xff]
        %v276 = vld [vmem:[%s219 + $0x78] sm:$0xff]
        %v277 = vld [vmem:[%s224] sm:$0x3]
        %v279 = vlaneseq
        %v280 = vshrl.u32 %v279, 7
        %v281 = vsub.s32 0, %v280
        %v282 = vrot.slane %v277, %v281
        %v283 = vlaneseq
        %v284 = vshrl.u32 %v283, 7
        %v285 = vsub.s32 1, %v284
        %v286 = vrot.slane %v277, %v285
        %v321 = vunpack.c.l.b16 %v229
        %v322 = vunpack.c.l.b16 %v230
        %v323 = vunpack.c.l.b16 %v231
        %v324 = vunpack.c.l.b16 %v232
        %v325 = vunpack.c.l.b16 %v233
        %v326 = vunpack.c.l.b16 %v234
        %v327 = vunpack.c.l.b16 %v235
        %v328 = vunpack.c.l.b16 %v236
        %v329 = vunpack.c.l.b16 %v237
        %v330 = vunpack.c.l.b16 %v238
        %v331 = vunpack.c.l.b16 %v239
        %v332 = vunpack.c.l.b16 %v240
        %v333 = vunpack.c.l.b16 %v241
        %v334 = vunpack.c.l.b16 %v242
        %v335 = vunpack.c.l.b16 %v243
        %v336 = vunpack.c.l.b16 %v244
        %v337 = vunpack.c.l.b16 %v245
        %v338 = vunpack.c.l.b16 %v246
        %v339 = vunpack.c.l.b16 %v247
        %v340 = vunpack.c.l.b16 %v248
        %v341 = vunpack.c.l.b16 %v249
        %v342 = vunpack.c.l.b16 %v250
        %v343 = vunpack.c.l.b16 %v251
        %v344 = vunpack.c.l.b16 %v252
        %v345 = vunpack.c.l.b16 %v253
        %v346 = vunpack.c.l.b16 %v254
        %v347 = vunpack.c.l.b16 %v255
        %v348 = vunpack.c.l.b16 %v256
        %v349 = vunpack.c.l.b16 %v257
        %v350 = vunpack.c.l.b16 %v258
        %v351 = vunpack.c.l.b16 %v259
        %v352 = vunpack.c.l.b16 %v260
        %v353 = vpack.c.b16 %v322, %v321
        %v354 = vpack.c.b16 %v324, %v323
        %v355 = vpack.c.b16 %v326, %v325
        %v356 = vpack.c.b16 %v328, %v327
        %v357 = vpack.c.b16 %v330, %v329
        %v358 = vpack.c.b16 %v332, %v331
        %v359 = vpack.c.b16 %v334, %v333
        %v360 = vpack.c.b16 %v336, %v335
        %v361 = vpack.c.b16 %v338, %v337
        %v362 = vpack.c.b16 %v340, %v339
        %v363 = vpack.c.b16 %v342, %v341
        %v364 = vpack.c.b16 %v344, %v343
        %v365 = vpack.c.b16 %v346, %v345
        %v366 = vpack.c.b16 %v348, %v347
        %v367 = vpack.c.b16 %v350, %v349
        %v368 = vpack.c.b16 %v352, %v351
        %v401 = vunpack.c.l.b16 %v261
        %v402 = vunpack.c.h.b16 %v261
        %v403 = vunpack.c.l.b16 %v262
        %v404 = vunpack.c.h.b16 %v262
        %v405 = vunpack.c.l.b16 %v263
        %v406 = vunpack.c.h.b16 %v263
        %v407 = vunpack.c.l.b16 %v264
        %v408 = vunpack.c.h.b16 %v264
        %v409 = vunpack.c.l.b16 %v265
        %v410 = vunpack.c.h.b16 %v265
        %v411 = vunpack.c.l.b16 %v266
        %v412 = vunpack.c.h.b16 %v266
        %v413 = vunpack.c.l.b16 %v267
        %v414 = vunpack.c.h.b16 %v267
        %v415 = vunpack.c.l.b16 %v268
        %v416 = vunpack.c.h.b16 %v268
        %v417 = vunpack.c.l.b16 %v269
        %v418 = vunpack.c.h.b16 %v269
        %v419 = vunpack.c.l.b16 %v270
        %v420 = vunpack.c.h.b16 %v270
        %v421 = vunpack.c.l.b16 %v271
        %v422 = vunpack.c.h.b16 %v271
        %v423 = vunpack.c.l.b16 %v272
        %v424 = vunpack.c.h.b16 %v272
        %v425 = vunpack.c.l.b16 %v273
        %v426 = vunpack.c.h.b16 %v273
        %v427 = vunpack.c.l.b16 %v274
        %v428 = vunpack.c.h.b16 %v274
        %v429 = vunpack.c.l.b16 %v275
        %v430 = vunpack.c.h.b16 %v275
        %v431 = vunpack.c.l.b16 %v276
        %v432 = vunpack.c.h.b16 %v276
        %v433 = vpack.c.b16 %v403, %v401
        %v434 = vpack.c.b16 %v404, %v402
        %v435 = vpack.c.b16 %v407, %v405
        %v436 = vpack.c.b16 %v408, %v406
        %v437 = vpack.c.b16 %v411, %v409
        %v438 = vpack.c.b16 %v412, %v410
        %v439 = vpack.c.b16 %v415, %v413
        %v440 = vpack.c.b16 %v416, %v414
        %v441 = vpack.c.b16 %v419, %v417
        %v442 = vpack.c.b16 %v420, %v418
        %v443 = vpack.c.b16 %v423, %v421
        %v444 = vpack.c.b16 %v424, %v422
        %v445 = vpack.c.b16 %v427, %v425
        %v446 = vpack.c.b16 %v428, %v426
        %v447 = vpack.c.b16 %v431, %v429
        %v448 = vpack.c.b16 %v432, %v430
        %465 = vmatprep.subr.bf16.mxu0 %v448
        %466 = vmatpush1.bf16.msra.mxu0 %v447
        %467 = vmatprep.subr.bf16.mxu0 %v446
        %468 = vmatpush1.bf16.msra.mxu0 %v445
        %469 = vmatprep.subr.bf16.mxu0 %v444
        %470 = vmatpush1.bf16.msra.mxu0 %v443
        %471 = vmatprep.subr.bf16.mxu0 %v442
        %472 = vmatpush1.bf16.msra.mxu0 %v441
        %473 = vmatprep.subr.bf16.mxu0 %v440
        %474 = vmatpush1.bf16.msra.mxu0 %v439
        %475 = vmatprep.subr.bf16.mxu0 %v438
        %476 = vmatpush1.bf16.msra.mxu0 %v437
        %477 = vmatprep.subr.bf16.mxu0 %v436
        %478 = vmatpush1.bf16.msra.mxu0 %v435
        %479 = vmatprep.subr.bf16.mxu0 %v434
        %480 = vmatpush1.bf16.msra.mxu0 %v433
        %481 = vmatprep.subr.bf16.mxu0 0
        %482 = vmatpush2.bf16.msra.mxu0 0
        %483 = vmatprep.subr.bf16.mxu0 0
        %484 = vmatpush2.bf16.msra.mxu0 0
        %485 = vmatprep.subr.bf16.mxu0 0
        %486 = vmatpush2.bf16.msra.mxu0 0
        %487 = vmatprep.subr.bf16.mxu0 0
        %488 = vmatpush2.bf16.msra.mxu0 0
        %489 = vmatprep.subr.bf16.mxu0 0
        %490 = vmatpush2.bf16.msra.mxu0 0
        %491 = vmatprep.subr.bf16.mxu0 0
        %492 = vmatpush2.bf16.msra.mxu0 0
        %493 = vmatprep.subr.bf16.mxu0 0
        %494 = vmatpush2.bf16.msra.mxu0 0
        %495 = vmatprep.subr.bf16.mxu0 0
        %496 = vmatpush2.bf16.msra.mxu0 0
        %497 = vmatprep.mubr.bf16.mxu0 0
        %498 = vmatmul.mubr.bf16.gmra.mxu0 %v353
        %v499 = vpop.f32.mrf.mxu0
        %v500 = vadd.f32 %v282, %v499
        %v501 = vpop.f32.mrf.mxu0
        %v502 = vadd.f32 %v286, %v501
        %v503 = vpop.f32.mrf.mxu0
        %v504 = vadd.f32 %v282, %v503
        %v505 = vpop.f32.mrf.mxu0
        %v506 = vadd.f32 %v286, %v505
        %507 = vmatprep.mubr.bf16.mxu0 0
        %508 = vmatmul.mubr.bf16.gmra.mxu0 %v354
        %v509 = vpop.f32.mrf.mxu0
        %v510 = vadd.f32 %v282, %v509
        %v511 = vpop.f32.mrf.mxu0
        %v512 = vadd.f32 %v286, %v511
        %v513 = vpop.f32.mrf.mxu0
        %v514 = vadd.f32 %v282, %v513
        %v515 = vpop.f32.mrf.mxu0
        %v516 = vadd.f32 %v286, %v515
        %517 = vmatprep.mubr.bf16.mxu0 0
        %518 = vmatmul.mubr.bf16.gmra.mxu0 %v355
        %v519 = vpop.f32.mrf.mxu0
        %v520 = vadd.f32 %v282, %v519
        %v521 = vpop.f32.mrf.mxu0
        %v522 = vadd.f32 %v286, %v521
        %v523 = vpop.f32.mrf.mxu0
        %v524 = vadd.f32 %v282, %v523
        %v525 = vpop.f32.mrf.mxu0
        %v526 = vadd.f32 %v286, %v525
        %527 = vmatprep.mubr.bf16.mxu0 0
        %528 = vmatmul.mubr.bf16.gmra.mxu0 %v356
        %v529 = vpop.f32.mrf.mxu0
        %v530 = vadd.f32 %v282, %v529
        %v531 = vpop.f32.mrf.mxu0
        %v532 = vadd.f32 %v286, %v531
        %v533 = vpop.f32.mrf.mxu0
        %v534 = vadd.f32 %v282, %v533
        %v535 = vpop.f32.mrf.mxu0
        %v536 = vadd.f32 %v286, %v535
        %537 = vmatprep.mubr.bf16.mxu0 0
        %538 = vmatmul.mubr.bf16.gmra.mxu0 %v357
        %v539 = vpop.f32.mrf.mxu0
        %v540 = vadd.f32 %v282, %v539
        %v541 = vpop.f32.mrf.mxu0
        %v542 = vadd.f32 %v286, %v541
        %v543 = vpop.f32.mrf.mxu0
        %v544 = vadd.f32 %v282, %v543
        %v545 = vpop.f32.mrf.mxu0
        %v546 = vadd.f32 %v286, %v545
        %547 = vmatprep.mubr.bf16.mxu0 0
        %548 = vmatmul.mubr.bf16.gmra.mxu0 %v358
        %v549 = vpop.f32.mrf.mxu0
        %v550 = vadd.f32 %v282, %v549
        %v551 = vpop.f32.mrf.mxu0
        %v552 = vadd.f32 %v286, %v551
        %v553 = vpop.f32.mrf.mxu0
        %v554 = vadd.f32 %v282, %v553
        %v555 = vpop.f32.mrf.mxu0
        %v556 = vadd.f32 %v286, %v555
        %557 = vmatprep.mubr.bf16.mxu0 0
        %558 = vmatmul.mubr.bf16.gmra.mxu0 %v359
        %v559 = vpop.f32.mrf.mxu0
        %v560 = vadd.f32 %v282, %v559
        %v561 = vpop.f32.mrf.mxu0
        %v562 = vadd.f32 %v286, %v561
        %v563 = vpop.f32.mrf.mxu0
        %v564 = vadd.f32 %v282, %v563
        %v565 = vpop.f32.mrf.mxu0
        %v566 = vadd.f32 %v286, %v565
        %567 = vmatprep.mubr.bf16.mxu0 0
        %568 = vmatmul.mubr.bf16.gmra.mxu0 %v360
        %v569 = vpop.f32.mrf.mxu0
        %v570 = vadd.f32 %v282, %v569
        %v571 = vpop.f32.mrf.mxu0
        %v572 = vadd.f32 %v286, %v571
        %v573 = vpop.f32.mrf.mxu0
        %v574 = vadd.f32 %v282, %v573
        %v575 = vpop.f32.mrf.mxu0
        %v576 = vadd.f32 %v286, %v575
        %577 = vmatprep.mubr.bf16.mxu0 0
        %578 = vmatmul.mubr.bf16.gmra.mxu0 %v361
        %v579 = vpop.f32.mrf.mxu0
        %v580 = vadd.f32 %v282, %v579
        %v581 = vpop.f32.mrf.mxu0
        %v582 = vadd.f32 %v286, %v581
        %v583 = vpop.f32.mrf.mxu0
        %v584 = vadd.f32 %v282, %v583
        %v585 = vpop.f32.mrf.mxu0
        %v586 = vadd.f32 %v286, %v585
        %587 = vmatprep.mubr.bf16.mxu0 0
        %588 = vmatmul.mubr.bf16.gmra.mxu0 %v362
        %v589 = vpop.f32.mrf.mxu0
        %v590 = vadd.f32 %v282, %v589
        %v591 = vpop.f32.mrf.mxu0
        %v592 = vadd.f32 %v286, %v591
        %v593 = vpop.f32.mrf.mxu0
        %v594 = vadd.f32 %v282, %v593
        %v595 = vpop.f32.mrf.mxu0
        %v596 = vadd.f32 %v286, %v595
        %597 = vmatprep.mubr.bf16.mxu0 0
        %598 = vmatmul.mubr.bf16.gmra.mxu0 %v363
        %v599 = vpop.f32.mrf.mxu0
        %v600 = vadd.f32 %v282, %v599
        %v601 = vpop.f32.mrf.mxu0
        %v602 = vadd.f32 %v286, %v601
        %v603 = vpop.f32.mrf.mxu0
        %v604 = vadd.f32 %v282, %v603
        %v605 = vpop.f32.mrf.mxu0
        %v606 = vadd.f32 %v286, %v605
        %607 = vmatprep.mubr.bf16.mxu0 0
        %608 = vmatmul.mubr.bf16.gmra.mxu0 %v364
        %v609 = vpop.f32.mrf.mxu0
        %v610 = vadd.f32 %v282, %v609
        %v611 = vpop.f32.mrf.mxu0
        %v612 = vadd.f32 %v286, %v611
        %v613 = vpop.f32.mrf.mxu0
        %v614 = vadd.f32 %v282, %v613
        %v615 = vpop.f32.mrf.mxu0
        %v616 = vadd.f32 %v286, %v615
        %617 = vmatprep.mubr.bf16.mxu0 0
        %618 = vmatmul.mubr.bf16.gmra.mxu0 %v365
        %v619 = vpop.f32.mrf.mxu0
        %v620 = vadd.f32 %v282, %v619
        %v621 = vpop.f32.mrf.mxu0
        %v622 = vadd.f32 %v286, %v621
        %v623 = vpop.f32.mrf.mxu0
        %v624 = vadd.f32 %v282, %v623
        %v625 = vpop.f32.mrf.mxu0
        %v626 = vadd.f32 %v286, %v625
        %627 = vmatprep.mubr.bf16.mxu0 0
        %628 = vmatmul.mubr.bf16.gmra.mxu0 %v366
        %v629 = vpop.f32.mrf.mxu0
        %v630 = vadd.f32 %v282, %v629
        %v631 = vpop.f32.mrf.mxu0
        %v632 = vadd.f32 %v286, %v631
        %v633 = vpop.f32.mrf.mxu0
        %v634 = vadd.f32 %v282, %v633
        %v635 = vpop.f32.mrf.mxu0
        %v636 = vadd.f32 %v286, %v635
        %637 = vmatprep.mubr.bf16.mxu0 0
        %638 = vmatmul.mubr.bf16.gmra.mxu0 %v367
        %v639 = vpop.f32.mrf.mxu0
        %v640 = vadd.f32 %v282, %v639
        %v641 = vpop.f32.mrf.mxu0
        %v642 = vadd.f32 %v286, %v641
        %v643 = vpop.f32.mrf.mxu0
        %v644 = vadd.f32 %v282, %v643
        %v645 = vpop.f32.mrf.mxu0
        %v646 = vadd.f32 %v286, %v645
        %647 = vmatprep.mubr.bf16.mxu0 0
        %648 = vmatmul.mubr.bf16.gmra.mxu0 %v368
        %v649 = vpop.f32.mrf.mxu0
        %v650 = vadd.f32 %v282, %v649
        %v651 = vpop.f32.mrf.mxu0
        %v652 = vadd.f32 %v286, %v651
        %v653 = vpop.f32.mrf.mxu0
        %v654 = vadd.f32 %v282, %v653
        %v655 = vpop.f32.mrf.mxu0
        %v656 = vadd.f32 %v286, %v655
        %657 = vdwg.mxu0
        %658 = vst [vmem:[%s208] sm:$0xff] %v500
        %659 = vst [vmem:[%s208 + $0x8] sm:$0xff] %v502
        %660 = vst [vmem:[%s208 + $0x10] sm:$0xff] %v504
        %661 = vst [vmem:[%s208 + $0x18] sm:$0xff] %v506
        %662 = vst [vmem:[%s208 + $0x20] sm:$0xff] %v510
        %663 = vst [vmem:[%s208 + $0x28] sm:$0xff] %v512
        %664 = vst [vmem:[%s208 + $0x30] sm:$0xff] %v514
        %665 = vst [vmem:[%s208 + $0x38] sm:$0xff] %v516
        %666 = vst [vmem:[%s208 + $0x40] sm:$0xff] %v520
        %667 = vst [vmem:[%s208 + $0x48] sm:$0xff] %v522
        %668 = vst [vmem:[%s208 + $0x50] sm:$0xff] %v524
        %669 = vst [vmem:[%s208 + $0x58] sm:$0xff] %v526
        %670 = vst [vmem:[%s208 + $0x60] sm:$0xff] %v530
        %671 = vst [vmem:[%s208 + $0x68] sm:$0xff] %v532
        %672 = vst [vmem:[%s208 + $0x70] sm:$0xff] %v534
        %673 = vst [vmem:[%s208 + $0x78] sm:$0xff] %v536
        %674 = vst [vmem:[%s208 + $0x80] sm:$0xff] %v540
        %675 = vst [vmem:[%s208 + $0x88] sm:$0xff] %v542
        %676 = vst [vmem:[%s208 + $0x90] sm:$0xff] %v544
        %677 = vst [vmem:[%s208 + $0x98] sm:$0xff] %v546
        %678 = vst [vmem:[%s208 + $0xa0] sm:$0xff] %v550
        %679 = vst [vmem:[%s208 + $0xa8] sm:$0xff] %v552
        %680 = vst [vmem:[%s208 + $0xb0] sm:$0xff] %v554
        %681 = vst [vmem:[%s208 + $0xb8] sm:$0xff] %v556
        %682 = vst [vmem:[%s208 + $0xc0] sm:$0xff] %v560
        %683 = vst [vmem:[%s208 + $0xc8] sm:$0xff] %v562
        %684 = vst [vmem:[%s208 + $0xd0] sm:$0xff] %v564
        %685 = vst [vmem:[%s208 + $0xd8] sm:$0xff] %v566
        %686 = vst [vmem:[%s208 + $0xe0] sm:$0xff] %v570
        %687 = vst [vmem:[%s208 + $0xe8] sm:$0xff] %v572
        %688 = vst [vmem:[%s208 + $0xf0] sm:$0xff] %v574
        %689 = vst [vmem:[%s208 + $0xf8] sm:$0xff] %v576
        %690 = vst [vmem:[%s208 + $0x100] sm:$0xff] %v580
        %691 = vst [vmem:[%s208 + $0x108] sm:$0xff] %v582
        %692 = vst [vmem:[%s208 + $0x110] sm:$0xff] %v584
        %693 = vst [vmem:[%s208 + $0x118] sm:$0xff] %v586
        %694 = vst [vmem:[%s208 + $0x120] sm:$0xff] %v590
        %695 = vst [vmem:[%s208 + $0x128] sm:$0xff] %v592
        %696 = vst [vmem:[%s208 + $0x130] sm:$0xff] %v594
        %697 = vst [vmem:[%s208 + $0x138] sm:$0xff] %v596
        %698 = vst [vmem:[%s208 + $0x140] sm:$0xff] %v600
        %699 = vst [vmem:[%s208 + $0x148] sm:$0xff] %v602
        %700 = vst [vmem:[%s208 + $0x150] sm:$0xff] %v604
        %701 = vst [vmem:[%s208 + $0x158] sm:$0xff] %v606
        %702 = vst [vmem:[%s208 + $0x160] sm:$0xff] %v610
        %703 = vst [vmem:[%s208 + $0x168] sm:$0xff] %v612
        %704 = vst [vmem:[%s208 + $0x170] sm:$0xff] %v614
        %705 = vst [vmem:[%s208 + $0x178] sm:$0xff] %v616
        %706 = vst [vmem:[%s208 + $0x180] sm:$0xff] %v620
        %707 = vst [vmem:[%s208 + $0x188] sm:$0xff] %v622
        %708 = vst [vmem:[%s208 + $0x190] sm:$0xff] %v624
        %709 = vst [vmem:[%s208 + $0x198] sm:$0xff] %v626
        %710 = vst [vmem:[%s208 + $0x1a0] sm:$0xff] %v630
        %711 = vst [vmem:[%s208 + $0x1a8] sm:$0xff] %v632
        %712 = vst [vmem:[%s208 + $0x1b0] sm:$0xff] %v634
        %713 = vst [vmem:[%s208 + $0x1b8] sm:$0xff] %v636
        %714 = vst [vmem:[%s208 + $0x1c0] sm:$0xff] %v640
        %715 = vst [vmem:[%s208 + $0x1c8] sm:$0xff] %v642
        %716 = vst [vmem:[%s208 + $0x1d0] sm:$0xff] %v644
        %717 = vst [vmem:[%s208 + $0x1d8] sm:$0xff] %v646
        %718 = vst [vmem:[%s208 + $0x1e0] sm:$0xff] %v650
        %719 = vst [vmem:[%s208 + $0x1e8] sm:$0xff] %v652
        %720 = vst [vmem:[%s208 + $0x1f0] sm:$0xff] %v654
        %721 = vst [vmem:[%s208 + $0x1f8] sm:$0xff] %v656
        %s722 = sand.u32 %s117, 1
        %s723 = scalar_lea.sflag [#allocation3], %s722
        %s724 = sand.u32 %s117, 1
        %s725 = smul.addr %s724, 512
        %s726 = scalar_lea.vmem [#allocation2], %s725
        // Predicated region
        $region33: #{language_model_forward.15} parent=31 // pred_check
          %p727 = pneg %p127
        $region34: #{language_model_forward.15} parent=31 // pred_check_branch
          %729 = sbr.rel (%p727) target = $region36
        $region35: #{language_model_forward.15} parent=31 // pred_region
          %s730 = smul.u32 32, %s21
          %s731 = smul.u32 2, %s22
          %s733 = ssub.s32 8192, 8192
          %734 = vsyncadd %s723, %s733
          %s735 = smul.addr %s730, 2
          %s736 = sadd.s32 %s731, %s735
          %s737 = smul.addr %s736, 128
          %s738 = scalar_lea.hbm %s3, %s737
          %s739 = sshll.u32 %s726, 4
          %s740 = int_to_ptr.vmem [resolvable:$true] %s739
          %745 = dma.vmem_to_hbm [thread:$0]  %s740, 8192, %s738, %s723, 256, 256, 16
        $region36: #{language_model_forward.15} parent=31 // pred_fallthru
          _
      $region32: #{language_model_forward.15} parent=5 // pred_fallthru
        _
      %p746 = scmp.le.s32.totalorder 2, %s12
      // Predicated region
      $region37: #{language_model_forward.15} parent=5 // pred_check
        %p747 = pneg %p746
      $region38: #{language_model_forward.15} parent=5 // pred_check_branch
        %749 = sbr.rel (%p747) target = $region40
      $region39: #{language_model_forward.15} parent=5 // pred_region
        %s750 = ssub.s32 %s12, 2
        // Predicated region
        $region41: #{language_model_forward.15} parent=39 // pred_check
          %p751 = pneg %p133
        $region42: #{language_model_forward.15} parent=39 // pred_check_branch
          %753 = sbr.rel (%p751) target = $region44
        $region43: #{language_model_forward.15} parent=39 // pred_region
          %s754 = sand.u32 %s118, 1
          %s755 = scalar_lea.sflag [#allocation3], %s754
          %s756 = sand.u32 %s118, 1
          %s757 = smul.addr %s756, 512
          %s758 = scalar_lea.vmem [#allocation2], %s757
          %759 = dma.done %s755, 8192
        $region44: #{language_model_forward.15} parent=39 // pred_fallthru
          _
      $region40: #{language_model_forward.15} parent=5 // pred_fallthru
        _
    $region6: #{language_model_forward.15} parent=1 // loop_footer
      %s16 = sadd.s32 1, %s12
    $region7: #{language_model_forward.15} parent=1 // loop_footer_branch
      %11 = sbr.rel target = $region3
    $region8: #{language_model_forward.15} parent=1 // loop_exit
      _
    %760 = vsyncpa [#allocation3], 1
    %s761 = scalar_lea.sflag [#allocation3], 1
    %762 = vsyncpa %s761, 1

// kernel: language_model_forward.10
$region0: #{language_model_forward.10}
  #allocation0 [shape = 'u32[]', space=smem, size = 0x4, offset = 0x4, fixed_abs, tag = 'smem constant byte address 0x4 - core index']
  #allocation1 [shape = 'u32[144,128]{1,0:T(1,128)}', space=vmem, size = 0x12000, scoped, tag = 'internal scratch']
  %s0 = inlined_call_operand.vmem [shape: bf16[2,256,384], index: 0, kind: input, shape index: {}, may-alias: {0,1,2}]
  %s1 = inlined_call_operand.vmem [shape: bf16[2,256,384], index: 1, kind: input, shape index: {}, may-alias: {0,1,2}]
  %s2 = inlined_call_operand.vmem [shape: bf16[2,256,384], index: 2, kind: input, shape index: {}, may-alias: {0,1,2}]
  %s3 = inlined_call_operand.vmem [shape: f32[2,1,256], index: 3, kind: input, shape index: {}]
  %s4 = inlined_call_operand.vmem [shape: bf16[2,256,128], index: 4, kind: input, shape index: {}]
  %s5 = inlined_call_operand.vmem [shape: bf16[4,32,128], index: 5, kind: input, shape index: {}]
  %s6 = inlined_call_operand.vmem [shape: f32[1,128], index: 6, kind: input, shape index: {}]
  %s7 = inlined_call_operand.vmem [shape: f32[1,128], index: 7, kind: input, shape index: {}]
  %s8 = inlined_call_operand.vmem [shape: f32[1,128], index: 8, kind: input, shape index: {}]
  %s9 = inlined_call_operand.vmem [shape: bf16[2,256,128], index: 9, kind: output, shape index: {}]
  %s10 = sld [smem:[#allocation0]]
  $region192: #{language_model_forward.10} parent=0
    _
  %s12 = ssub.s32 1, %s10
  %s13 = scalar_select 0, %s12, %s10
  $region1: #{language_model_forward.10} parent=0
    #allocation2 [shape = 'u8[65536]{0}', space=vmem, size = 0x10000, scoped, tag = 'input window, operand 0']
    #allocation3 [shape = 'u8[131072]{0}', space=vmem, size = 0x20000, scoped, tag = 'input window, operand 1']
    #allocation4 [shape = 'u8[131072]{0}', space=vmem, size = 0x20000, scoped, tag = 'input window, operand 2']
    loop: start=0, step=1, limit=6
    $region2: #{language_model_forward.10} parent=1 // loop_pre_header
      _
    $region3: #{language_model_forward.10} parent=1 // loop_header
      %s15 = sphi 0, %s19
      %p16 = scmp.ge.s32.totalorder %s15, 6
      %s22 = sphi 0, %s34
      %s23 = sphi 0, %s30
      %s24 = sphi 0, %s22
      %s25 = sphi 0, %s23
      %s26 = sphi 0, %s24
      %s27 = sphi 0, %s25
      %s39 = sphi 0, %s41
      %s42 = sphi 0, %s39
      %s43 = sphi 0, %s42
      %s59 = sphi 0, %s43
      %s65 = sphi 0, %s67
      %s68 = sphi 0, %s65
      %s69 = sphi 0, %s68
      %s85 = sphi 0, %s69
      %s91 = sphi 0, %s93
      %s94 = sphi 0, %s91
      %s95 = sphi 0, %s94
      %s111 = sphi 0, %s95
      %s117 = sphi 0, %s119
      %s120 = sphi 0, %s117
      %s121 = sphi 0, %s120
      %s137 = sphi 0, %s121
      %s145 = sphi 0, %s147
      %s148 = sphi 0, %s145
      %s149 = sphi 0, %s148
      %s165 = sphi 0, %s149
      %s169 = sphi 0, %s169
      %s171 = sphi 0, %s169
      %s172 = sphi 0, %s171
      %s186 = sphi 0, %s172
      %s190 = sphi 0, %s190
      %s192 = sphi 0, %s190
      %s193 = sphi 0, %s192
      %s207 = sphi 0, %s193
      %s211 = sphi 0, %s211
      %s213 = sphi 0, %s211
      %s214 = sphi 0, %s213
      %s228 = sphi 0, %s214
      %s232 = sphi 0, %s232
      %s234 = sphi 0, %s232
      %s235 = sphi 0, %s234
      %s249 = sphi 0, %s235
      %s257 = sphi 0, %s259
      %s260 = sphi 0, %s257
      %s261 = sphi 0, %s260
      %s277 = sphi 0, %s261
    $region4: #{language_model_forward.10} parent=1 // loop_header_branch
      %18 = sbr.rel (%p16) target = $region8
    $region5: #{language_model_forward.10} parent=1 // loop_body
      %s20 = ssub.s32 %s15, 1
      %s21 = ssub.s32 %s15, 2
      %s28 = sadd.s32 1, %s23
      %p29 = scmp.ge.s32.totalorder %s28, 2
      %s30 = scalar_select %p29, 0, %s28
      %s31 = sadd.s32 1, %s22
      %s32 = scalar_select %p29, %s31, %s22
      %p33 = scmp.ge.s32.totalorder %s32, 2
      %s34 = scalar_select %p33, 0, %s32
      %s35 = ssub.s32 %s22, %s34
      %s36 = ssub.s32 %s23, %s30
      %s37 = sor.u32 %s35, %s36
      %p38 = scmp.eq.s32.totalorder %s37, 0
      %s40 = sadd.s32 %s39, 1
      %s41 = scalar_select %p38, %s39, %s40
      %p44 = pneg %p38
      %p45 = scmp.eq.s32.totalorder %s15, 3
      %p46 = por %p44, %p45
      %p47 = scmp.ne.s32.totalorder %s39, %s42
      %p48 = scmp.eq.s32.totalorder %s15, 0
      %p49 = por %p47, %p48
      %p50 = scmp.ne.s32.totalorder %s39, %s42
      %p51 = scmp.eq.s32.totalorder %s20, 3
      %p52 = por %p50, %p51
      %p53 = scmp.ne.s32.totalorder %s42, %s43
      %p54 = scmp.eq.s32.totalorder %s20, 0
      %p55 = por %p53, %p54
      %p56 = scmp.ne.s32.totalorder %s42, %s43
      %p57 = scmp.eq.s32.totalorder %s21, 3
      %p58 = por %p56, %p57
      %p60 = scmp.ne.s32.totalorder %s43, %s59
      %p61 = scmp.eq.s32.totalorder %s21, 0
      %p62 = por %p60, %p61
      %s63 = ssub.s32 %s22, %s34
      %p64 = scmp.eq.s32.totalorder %s63, 0
      %s66 = sadd.s32 %s65, 1
      %s67 = scalar_select %p64, %s65, %s66
      %p70 = pneg %p64
      %p71 = scmp.eq.s32.totalorder %s15, 3
      %p72 = por %p70, %p71
      %p73 = scmp.ne.s32.totalorder %s65, %s68
      %p74 = scmp.eq.s32.totalorder %s15, 0
      %p75 = por %p73, %p74
      %p76 = scmp.ne.s32.totalorder %s65, %s68
      %p77 = scmp.eq.s32.totalorder %s20, 3
      %p78 = por %p76, %p77
      %p79 = scmp.ne.s32.totalorder %s68, %s69
      %p80 = scmp.eq.s32.totalorder %s20, 0
      %p81 = por %p79, %p80
      %p82 = scmp.ne.s32.totalorder %s68, %s69
      %p83 = scmp.eq.s32.totalorder %s21, 3
      %p84 = por %p82, %p83
      %p86 = scmp.ne.s32.totalorder %s69, %s85
      %p87 = scmp.eq.s32.totalorder %s21, 0
      %p88 = por %p86, %p87
      %s89 = ssub.s32 %s22, %s34
      %p90 = scmp.eq.s32.totalorder %s89, 0
      %s92 = sadd.s32 %s91, 1
      %s93 = scalar_select %p90, %s91, %s92
      %p96 = pneg %p90
      %p97 = scmp.eq.s32.totalorder %s15, 3
      %p98 = por %p96, %p97
      %p99 = scmp.ne.s32.totalorder %s91, %s94
      %p100 = scmp.eq.s32.totalorder %s15, 0
      %p101 = por %p99, %p100
      %p102 = scmp.ne.s32.totalorder %s91, %s94
      %p103 = scmp.eq.s32.totalorder %s20, 3
      %p104 = por %p102, %p103
      %p105 = scmp.ne.s32.totalorder %s94, %s95
      %p106 = scmp.eq.s32.totalorder %s20, 0
      %p107 = por %p105, %p106
      %p108 = scmp.ne.s32.totalorder %s94, %s95
      %p109 = scmp.eq.s32.totalorder %s21, 3
      %p110 = por %p108, %p109
      %p112 = scmp.ne.s32.totalorder %s95, %s111
      %p113 = scmp.eq.s32.totalorder %s21, 0
      %p114 = por %p112, %p113
      %s115 = ssub.s32 %s22, %s34
      %p116 = scmp.eq.s32.totalorder %s115, 0
      %s118 = sadd.s32 %s117, 1
      %s119 = scalar_select %p116, %s117, %s118
      %p122 = pneg %p116
      %p123 = scmp.eq.s32.totalorder %s15, 3
      %p124 = por %p122, %p123
      %p125 = scmp.ne.s32.totalorder %s117, %s120
      %p126 = scmp.eq.s32.totalorder %s15, 0
      %p127 = por %p125, %p126
      %p128 = scmp.ne.s32.totalorder %s117, %s120
      %p129 = scmp.eq.s32.totalorder %s20, 3
      %p130 = por %p128, %p129
      %p131 = scmp.ne.s32.totalorder %s120, %s121
      %p132 = scmp.eq.s32.totalorder %s20, 0
      %p133 = por %p131, %p132
      %p134 = scmp.ne.s32.totalorder %s120, %s121
      %p135 = scmp.eq.s32.totalorder %s21, 3
      %p136 = por %p134, %p135
      %p138 = scmp.ne.s32.totalorder %s121, %s137
      %p139 = scmp.eq.s32.totalorder %s21, 0
      %p140 = por %p138, %p139
      %s141 = ssub.s32 %s22, %s34
      %s142 = ssub.s32 %s23, %s30
      %s143 = sor.u32 %s141, %s142
      %p144 = scmp.eq.s32.totalorder %s143, 0
      %s146 = sadd.s32 %s145, 1
      %s147 = scalar_select %p144, %s145, %s146
      %p150 = pneg %p144
      %p151 = scmp.eq.s32.totalorder %s15, 3
      %p152 = por %p150, %p151
      %p153 = scmp.ne.s32.totalorder %s145, %s148
      %p154 = scmp.eq.s32.totalorder %s15, 0
      %p155 = por %p153, %p154
      %p156 = scmp.ne.s32.totalorder %s145, %s148
      %p157 = scmp.eq.s32.totalorder %s20, 3
      %p158 = por %p156, %p157
      %p159 = scmp.ne.s32.totalorder %s148, %s149
      %p160 = scmp.eq.s32.totalorder %s20, 0
      %p161 = por %p159, %p160
      %p162 = scmp.ne.s32.totalorder %s148, %s149
      %p163 = scmp.eq.s32.totalorder %s21, 3
      %p164 = por %p162, %p163
      %p166 = scmp.ne.s32.totalorder %s149, %s165
      %p167 = scmp.eq.s32.totalorder %s21, 0
      %p168 = por %p166, %p167
      %s170 = sadd.s32 %s169, 1
      %p173 = scmp.eq.s32.totalorder %s15, 3
      %p174 = scmp.ne.s32.totalorder %s169, %s171
      %p175 = scmp.eq.s32.totalorder %s15, 0
      %p176 = por %p174, %p175
      %p177 = scmp.ne.s32.totalorder %s169, %s171
      %p178 = scmp.eq.s32.totalorder %s20, 3
      %p179 = por %p177, %p178
      %p180 = scmp.ne.s32.totalorder %s171, %s172
      %p181 = scmp.eq.s32.totalorder %s20, 0
      %p182 = por %p180, %p181
      %p183 = scmp.ne.s32.totalorder %s171, %s172
      %p184 = scmp.eq.s32.totalorder %s21, 3
      %p185 = por %p183, %p184
      %p187 = scmp.ne.s32.totalorder %s172, %s186
      %p188 = scmp.eq.s32.totalorder %s21, 0
      %p189 = por %p187, %p188
      %s191 = sadd.s32 %s190, 1
      %p194 = scmp.eq.s32.totalorder %s15, 3
      %p195 = scmp.ne.s32.totalorder %s190, %s192
      %p196 = scmp.eq.s32.totalorder %s15, 0
      %p197 = por %p195, %p196
      %p198 = scmp.ne.s32.totalorder %s190, %s192
      %p199 = scmp.eq.s32.totalorder %s20, 3
      %p200 = por %p198, %p199
      %p201 = scmp.ne.s32.totalorder %s192, %s193
      %p202 = scmp.eq.s32.totalorder %s20, 0
      %p203 = por %p201, %p202
      %p204 = scmp.ne.s32.totalorder %s192, %s193
      %p205 = scmp.eq.s32.totalorder %s21, 3
      %p206 = por %p204, %p205
      %p208 = scmp.ne.s32.totalorder %s193, %s207
      %p209 = scmp.eq.s32.totalorder %s21, 0
      %p210 = por %p208, %p209
      %s212 = sadd.s32 %s211, 1
      %p215 = scmp.eq.s32.totalorder %s15, 3
      %p216 = scmp.ne.s32.totalorder %s211, %s213
      %p217 = scmp.eq.s32.totalorder %s15, 0
      %p218 = por %p216, %p217
      %p219 = scmp.ne.s32.totalorder %s211, %s213
      %p220 = scmp.eq.s32.totalorder %s20, 3
      %p221 = por %p219, %p220
      %p222 = scmp.ne.s32.totalorder %s213, %s214
      %p223 = scmp.eq.s32.totalorder %s20, 0
      %p224 = por %p222, %p223
      %p225 = scmp.ne.s32.totalorder %s213, %s214
      %p226 = scmp.eq.s32.totalorder %s21, 3
      %p227 = por %p225, %p226
      %p229 = scmp.ne.s32.totalorder %s214, %s228
      %p230 = scmp.eq.s32.totalorder %s21, 0
      %p231 = por %p229, %p230
      %s233 = sadd.s32 %s232, 1
      %p236 = scmp.eq.s32.totalorder %s15, 3
      %p237 = scmp.ne.s32.totalorder %s232, %s234
      %p238 = scmp.eq.s32.totalorder %s15, 0
      %p239 = por %p237, %p238
      %p240 = scmp.ne.s32.totalorder %s232, %s234
      %p241 = scmp.eq.s32.totalorder %s20, 3
      %p242 = por %p240, %p241
      %p243 = scmp.ne.s32.totalorder %s234, %s235
      %p244 = scmp.eq.s32.totalorder %s20, 0
      %p245 = por %p243, %p244
      %p246 = scmp.ne.s32.totalorder %s234, %s235
      %p247 = scmp.eq.s32.totalorder %s21, 3
      %p248 = por %p246, %p247
      %p250 = scmp.ne.s32.totalorder %s235, %s249
      %p251 = scmp.eq.s32.totalorder %s21, 0
      %p252 = por %p250, %p251
      %s253 = ssub.s32 %s22, %s34
      %s254 = ssub.s32 %s23, %s30
      %s255 = sor.u32 %s253, %s254
      %p256 = scmp.eq.s32.totalorder %s255, 0
      %s258 = sadd.s32 %s257, 1
      %s259 = scalar_select %p256, %s257, %s258
      %p262 = pneg %p256
      %p263 = scmp.eq.s32.totalorder %s15, 3
      %p264 = por %p262, %p263
      %p265 = scmp.ne.s32.totalorder %s257, %s260
      %p266 = scmp.eq.s32.totalorder %s15, 0
      %p267 = por %p265, %p266
      %p268 = scmp.ne.s32.totalorder %s257, %s260
      %p269 = scmp.eq.s32.totalorder %s20, 3
      %p270 = por %p268, %p269
      %p271 = scmp.ne.s32.totalorder %s260, %s261
      %p272 = scmp.eq.s32.totalorder %s20, 0
      %p273 = por %p271, %p272
      %p274 = scmp.ne.s32.totalorder %s260, %s261
      %p275 = scmp.eq.s32.totalorder %s21, 3
      %p276 = por %p274, %p275
      %p278 = scmp.ne.s32.totalorder %s261, %s277
      %p279 = scmp.eq.s32.totalorder %s21, 0
      %p280 = por %p278, %p279
      %p281 = scmp.le.s32.totalorder 1, %s15
      %p282 = scmp.lt.s32.totalorder %s15, 5
      %p283 = pnand %p281, %p282
      %p284 = pneg %p283
      // Predicated region
      $region9: #{language_model_forward.10} parent=5 // pred_check
        _
      $region10: #{language_model_forward.10} parent=5 // pred_check_branch
        %286 = sbr.rel (%p283) target = $region12
      $region11: #{language_model_forward.10} parent=5 // pred_region
        %s287 = ssub.s32 %s15, 1
        // Predicated region
        $region13: #{language_model_forward.10} parent=11 // pred_check
          %p288 = pneg %p182
        $region14: #{language_model_forward.10} parent=11 // pred_check_branch
          %290 = sbr.rel (%p288) target = $region16
        $region15: #{language_model_forward.10} parent=11 // pred_region
          _
        $region16: #{language_model_forward.10} parent=11 // pred_fallthru
          _
        // Predicated region
        $region17: #{language_model_forward.10} parent=11 // pred_check
          %p291 = pneg %p203
        $region18: #{language_model_forward.10} parent=11 // pred_check_branch
          %293 = sbr.rel (%p291) target = $region20
        $region19: #{language_model_forward.10} parent=11 // pred_region
          _
        $region20: #{language_model_forward.10} parent=11 // pred_fallthru
          _
        // Predicated region
        $region21: #{language_model_forward.10} parent=11 // pred_check
          %p294 = pneg %p224
        $region22: #{language_model_forward.10} parent=11 // pred_check_branch
          %296 = sbr.rel (%p294) target = $region24
        $region23: #{language_model_forward.10} parent=11 // pred_region
          _
        $region24: #{language_model_forward.10} parent=11 // pred_fallthru
          _
        // Predicated region
        $region25: #{language_model_forward.10} parent=11 // pred_check
          %p297 = pneg %p245
        $region26: #{language_model_forward.10} parent=11 // pred_check_branch
          %299 = sbr.rel (%p297) target = $region28
        $region27: #{language_model_forward.10} parent=11 // pred_region
          _
        $region28: #{language_model_forward.10} parent=11 // pred_fallthru
          _
      $region12: #{language_model_forward.10} parent=5 // pred_fallthru
        _
      %p300 = scmp.lt.s32.totalorder %s15, 4
      // Predicated region
      $region29: #{language_model_forward.10} parent=5 // pred_check
        %p301 = pneg %p300
      $region30: #{language_model_forward.10} parent=5 // pred_check_branch
        %303 = sbr.rel (%p301) target = $region32
      $region31: #{language_model_forward.10} parent=5 // pred_region
        // Predicated region
        $region33: #{language_model_forward.10} parent=31 // pred_check
          %p304 = pneg %p49
        $region34: #{language_model_forward.10} parent=31 // pred_check_branch
          %306 = sbr.rel (%p304) target = $region36
        $region35: #{language_model_forward.10} parent=31 // pred_region
          %s307 = sand.u32 %s39, 1
          %s308 = sand.u32 %s39, 1
          %s309 = smul.addr %s308, 64
          %s310 = scalar_lea.vmem [#allocation2], %s309
          %s311 = smul.u32 16, %s23
          %s312 = smul.addr %s311, 3
          %s313 = smul.addr %s22, 96
          %s314 = sadd.s32 %s312, %s313
          %s315 = smul.addr %s314, 4
          %s316 = scalar_lea.vmem %s0, %s315
          // Predicated region
          $region37: #{language_model_forward.10} parent=35 // pred_check
            _
          $region38: #{language_model_forward.10} parent=35 // pred_check_branch
            %318 = sbr.rel (0) target = $region40
          $region39: #{language_model_forward.10} parent=35 // pred_region
            // Predicated region
            $region41: #{language_model_forward.10} parent=39 // pred_check
              _
            $region42: #{language_model_forward.10} parent=39 // pred_check_branch
              %320 = sbr.rel target = $region44
            $region43: #{language_model_forward.10} parent=39 // pred_region
              // Predicated region
              $region56: #{language_model_forward.10} parent=43 // pred_check
                _
              $region57: #{language_model_forward.10} parent=43 // pred_check_branch
                %366 = sbr.rel (0) target = $region59
              $region58: #{language_model_forward.10} parent=43 // pred_region
                loop: start=0, step=1, limit=1
                $region60: #{language_model_forward.10} parent=58 // loop_pre_header
                  _
                $region61: #{language_model_forward.10} parent=58 // loop_header
                  %s368 = sphi 0, %s372
                  %p369 = scmp.ge.s32.totalorder %s368, 1
                  %s373 = sphi %s316, %s316
                  %s374 = sphi %s310, %s310
                $region62: #{language_model_forward.10} parent=58 // loop_header_branch
                  %371 = sbr.rel (%p369) target = $region66
                $region63: #{language_model_forward.10} parent=58 // loop_body
                  _
                $region64: #{language_model_forward.10} parent=58 // loop_footer
                  %s372 = sadd.s32 1, %s368
                $region65: #{language_model_forward.10} parent=58 // loop_footer_branch
                  %367 = sbr.rel target = $region61
                $region66: #{language_model_forward.10} parent=58 // loop_exit
                  _
                %s376 = ssub.s32 16, 1
                loop: start=0, step=1, limit=1
                $region67: #{language_model_forward.10} parent=58 // loop_pre_header
                  _
                $region68: #{language_model_forward.10} parent=58 // loop_header
                  %s378 = sphi 0, %s382
                  %p379 = scmp.ge.s32.totalorder %s378, 1
                  %s383 = sphi %s316, %s316
                  %s384 = sphi %s310, %s310
                $region69: #{language_model_forward.10} parent=58 // loop_header_branch
                  %381 = sbr.rel (%p379) target = $region73
                $region70: #{language_model_forward.10} parent=58 // loop_body
                  %v385 = vld [vmem:[%s383] sm:%s376]
                  %386 = vst [vmem:[%s384] sm:%s376] %v385
                  %v387 = vld [vmem:[%s383 + $0xc] sm:%s376]
                  %388 = vst [vmem:[%s384 + $0x4] sm:%s376] %v387
                  %v389 = vld [vmem:[%s383 + $0x18] sm:%s376]
                  %390 = vst [vmem:[%s384 + $0x8] sm:%s376] %v389
                  %v391 = vld [vmem:[%s383 + $0x24] sm:%s376]
                  %392 = vst [vmem:[%s384 + $0xc] sm:%s376] %v391
                  %v393 = vld [vmem:[%s383 + $0x30] sm:%s376]
                  %394 = vst [vmem:[%s384 + $0x10] sm:%s376] %v393
                  %v395 = vld [vmem:[%s383 + $0x3c] sm:%s376]
                  %396 = vst [vmem:[%s384 + $0x14] sm:%s376] %v395
                  %v397 = vld [vmem:[%s383 + $0x48] sm:%s376]
                  %398 = vst [vmem:[%s384 + $0x18] sm:%s376] %v397
                  %v399 = vld [vmem:[%s383 + $0x54] sm:%s376]
                  %400 = vst [vmem:[%s384 + $0x1c] sm:%s376] %v399
                  %v401 = vld [vmem:[%s383 + $0x60] sm:%s376]
                  %402 = vst [vmem:[%s384 + $0x20] sm:%s376] %v401
                  %v403 = vld [vmem:[%s383 + $0x6c] sm:%s376]
                  %404 = vst [vmem:[%s384 + $0x24] sm:%s376] %v403
                  %v405 = vld [vmem:[%s383 + $0x78] sm:%s376]
                  %406 = vst [vmem:[%s384 + $0x28] sm:%s376] %v405
                  %v407 = vld [vmem:[%s383 + $0x84] sm:%s376]
                  %408 = vst [vmem:[%s384 + $0x2c] sm:%s376] %v407
                  %v409 = vld [vmem:[%s383 + $0x90] sm:%s376]
                  %410 = vst [vmem:[%s384 + $0x30] sm:%s376] %v409
                  %v411 = vld [vmem:[%s383 + $0x9c] sm:%s376]
                  %412 = vst [vmem:[%s384 + $0x34] sm:%s376] %v411
                  %v413 = vld [vmem:[%s383 + $0xa8] sm:%s376]
                  %414 = vst [vmem:[%s384 + $0x38] sm:%s376] %v413
                  %v415 = vld [vmem:[%s383 + $0xb4] sm:%s376]
                  %416 = vst [vmem:[%s384 + $0x3c] sm:%s376] %v415
                $region71: #{language_model_forward.10} parent=58 // loop_footer
                  %s382 = sadd.s32 1, %s378
                $region72: #{language_model_forward.10} parent=58 // loop_footer_branch
                  %377 = sbr.rel target = $region68
                $region73: #{language_model_forward.10} parent=58 // loop_exit
                  _
              $region59: #{language_model_forward.10} parent=43 // pred_fallthru
                _
            $region44: #{language_model_forward.10} parent=39 // pred_fallthru
              _
            // Predicated region
            $region45: #{language_model_forward.10} parent=39 // pred_check
              _
            $region46: #{language_model_forward.10} parent=39 // pred_check_branch
              %322 = sbr.rel (0) target = $region48
            $region47: #{language_model_forward.10} parent=39 // pred_region
              %s324 = ssub.s32 16, 1
              loop: start=0, step=1, limit=1
              $region49: #{language_model_forward.10} parent=47 // loop_pre_header
                _
              $region50: #{language_model_forward.10} parent=47 // loop_header
                %s326 = sphi 0, %s330
                %p327 = scmp.ge.s32.totalorder %s326, 1
                %s331 = sphi %s316, %s316
                %s332 = sphi %s310, %s310
              $region51: #{language_model_forward.10} parent=47 // loop_header_branch
                %329 = sbr.rel (%p327) target = $region55
              $region52: #{language_model_forward.10} parent=47 // loop_body
                %v333 = vld [vmem:[%s331] sm:%s324]
                %334 = vst [vmem:[%s332] sm:%s324] %v333
                %v335 = vld [vmem:[%s331 + $0xc] sm:%s324]
                %336 = vst [vmem:[%s332 + $0x4] sm:%s324] %v335
                %v337 = vld [vmem:[%s331 + $0x18] sm:%s324]
                %338 = vst [vmem:[%s332 + $0x8] sm:%s324] %v337
                %v339 = vld [vmem:[%s331 + $0x24] sm:%s324]
                %340 = vst [vmem:[%s332 + $0xc] sm:%s324] %v339
                %v341 = vld [vmem:[%s331 + $0x30] sm:%s324]
                %342 = vst [vmem:[%s332 + $0x10] sm:%s324] %v341
                %v343 = vld [vmem:[%s331 + $0x3c] sm:%s324]
                %344 = vst [vmem:[%s332 + $0x14] sm:%s324] %v343
                %v345 = vld [vmem:[%s331 + $0x48] sm:%s324]
                %346 = vst [vmem:[%s332 + $0x18] sm:%s324] %v345
                %v347 = vld [vmem:[%s331 + $0x54] sm:%s324]
                %348 = vst [vmem:[%s332 + $0x1c] sm:%s324] %v347
                %v349 = vld [vmem:[%s331 + $0x60] sm:%s324]
                %350 = vst [vmem:[%s332 + $0x20] sm:%s324] %v349
                %v351 = vld [vmem:[%s331 + $0x6c] sm:%s324]
                %352 = vst [vmem:[%s332 + $0x24] sm:%s324] %v351
                %v353 = vld [vmem:[%s331 + $0x78] sm:%s324]
                %354 = vst [vmem:[%s332 + $0x28] sm:%s324] %v353
                %v355 = vld [vmem:[%s331 + $0x84] sm:%s324]
                %356 = vst [vmem:[%s332 + $0x2c] sm:%s324] %v355
                %v357 = vld [vmem:[%s331 + $0x90] sm:%s324]
                %358 = vst [vmem:[%s332 + $0x30] sm:%s324] %v357
                %v359 = vld [vmem:[%s331 + $0x9c] sm:%s324]
                %360 = vst [vmem:[%s332 + $0x34] sm:%s324] %v359
                %v361 = vld [vmem:[%s331 + $0xa8] sm:%s324]
                %362 = vst [vmem:[%s332 + $0x38] sm:%s324] %v361
                %v363 = vld [vmem:[%s331 + $0xb4] sm:%s324]
                %364 = vst [vmem:[%s332 + $0x3c] sm:%s324] %v363
              $region53: #{language_model_forward.10} parent=47 // loop_footer
                %s330 = sadd.s32 1, %s326
              $region54: #{language_model_forward.10} parent=47 // loop_footer_branch
                %325 = sbr.rel target = $region50
              $region55: #{language_model_forward.10} parent=47 // loop_exit
                _
            $region48: #{language_model_forward.10} parent=39 // pred_fallthru
              _
          $region40: #{language_model_forward.10} parent=35 // pred_fallthru
            _
          %417 = vnop
        $region36: #{language_model_forward.10} parent=31 // pred_fallthru
          _
        // Predicated region
        $region74: #{language_model_forward.10} parent=31 // pred_check
          %p418 = pneg %p75
        $region75: #{language_model_forward.10} parent=31 // pred_check_branch
          %420 = sbr.rel (%p418) target = $region77
        $region76: #{language_model_forward.10} parent=31 // pred_region
          %s421 = sand.u32 %s65, 1
          %s422 = sand.u32 %s65, 1
          %s423 = smul.addr %s422, 128
          %s424 = scalar_lea.vmem [#allocation3], %s423
          %s425 = smul.addr %s22, 96
          %s426 = sadd.s32 1, %s425
          %s427 = smul.addr %s426, 4
          %s428 = scalar_lea.vmem %s1, %s427
          // Predicated region
          $region78: #{language_model_forward.10} parent=76 // pred_check
            _
          $region79: #{language_model_forward.10} parent=76 // pred_check_branch
            %430 = sbr.rel (0) target = $region81
          $region80: #{language_model_forward.10} parent=76 // pred_region
            // Predicated region
            $region82: #{language_model_forward.10} parent=80 // pred_check
              _
            $region83: #{language_model_forward.10} parent=80 // pred_check_branch
              %432 = sbr.rel target = $region85
            $region84: #{language_model_forward.10} parent=80 // pred_region
              // Predicated region
              $region97: #{language_model_forward.10} parent=84 // pred_check
                _
              $region98: #{language_model_forward.10} parent=84 // pred_check_branch
                %510 = sbr.rel (0) target = $region100
              $region99: #{language_model_forward.10} parent=84 // pred_region
                loop: start=0, step=1, limit=1
                $region101: #{language_model_forward.10} parent=99 // loop_pre_header
                  _
                $region102: #{language_model_forward.10} parent=99 // loop_header
                  %s512 = sphi 0, %s516
                  %p513 = scmp.ge.s32.totalorder %s512, 1
                  %s517 = sphi %s428, %s428
                  %s518 = sphi %s424, %s424
                $region103: #{language_model_forward.10} parent=99 // loop_header_branch
                  %515 = sbr.rel (%p513) target = $region107
                $region104: #{language_model_forward.10} parent=99 // loop_body
                  _
                $region105: #{language_model_forward.10} parent=99 // loop_footer
                  %s516 = sadd.s32 1, %s512
                $region106: #{language_model_forward.10} parent=99 // loop_footer_branch
                  %511 = sbr.rel target = $region102
                $region107: #{language_model_forward.10} parent=99 // loop_exit
                  _
                %s520 = ssub.s32 16, 1
                loop: start=0, step=1, limit=1
                $region108: #{language_model_forward.10} parent=99 // loop_pre_header
                  _
                $region109: #{language_model_forward.10} parent=99 // loop_header
                  %s522 = sphi 0, %s526
                  %p523 = scmp.ge.s32.totalorder %s522, 1
                  %s527 = sphi %s428, %s428
                  %s528 = sphi %s424, %s424
                $region110: #{language_model_forward.10} parent=99 // loop_header_branch
                  %525 = sbr.rel (%p523) target = $region114
                $region111: #{language_model_forward.10} parent=99 // loop_body
                  %v529 = vld [vmem:[%s527] sm:%s520]
                  %530 = vst [vmem:[%s528] sm:%s520] %v529
                  %v531 = vld [vmem:[%s527 + $0xc] sm:%s520]
                  %532 = vst [vmem:[%s528 + $0x4] sm:%s520] %v531
                  %v533 = vld [vmem:[%s527 + $0x18] sm:%s520]
                  %534 = vst [vmem:[%s528 + $0x8] sm:%s520] %v533
                  %v535 = vld [vmem:[%s527 + $0x24] sm:%s520]
                  %536 = vst [vmem:[%s528 + $0xc] sm:%s520] %v535
                  %v537 = vld [vmem:[%s527 + $0x30] sm:%s520]
                  %538 = vst [vmem:[%s528 + $0x10] sm:%s520] %v537
                  %v539 = vld [vmem:[%s527 + $0x3c] sm:%s520]
                  %540 = vst [vmem:[%s528 + $0x14] sm:%s520] %v539
                  %v541 = vld [vmem:[%s527 + $0x48] sm:%s520]
                  %542 = vst [vmem:[%s528 + $0x18] sm:%s520] %v541
                  %v543 = vld [vmem:[%s527 + $0x54] sm:%s520]
                  %544 = vst [vmem:[%s528 + $0x1c] sm:%s520] %v543
                  %v545 = vld [vmem:[%s527 + $0x60] sm:%s520]
                  %546 = vst [vmem:[%s528 + $0x20] sm:%s520] %v545
                  %v547 = vld [vmem:[%s527 + $0x6c] sm:%s520]
                  %548 = vst [vmem:[%s528 + $0x24] sm:%s520] %v547
                  %v549 = vld [vmem:[%s527 + $0x78] sm:%s520]
                  %550 = vst [vmem:[%s528 + $0x28] sm:%s520] %v549
                  %v551 = vld [vmem:[%s527 + $0x84] sm:%s520]
                  %552 = vst [vmem:[%s528 + $0x2c] sm:%s520] %v551
                  %v553 = vld [vmem:[%s527 + $0x90] sm:%s520]
                  %554 = vst [vmem:[%s528 + $0x30] sm:%s520] %v553
                  %v555 = vld [vmem:[%s527 + $0x9c] sm:%s520]
                  %556 = vst [vmem:[%s528 + $0x34] sm:%s520] %v555
                  %v557 = vld [vmem:[%s527 + $0xa8] sm:%s520]
                  %558 = vst [vmem:[%s528 + $0x38] sm:%s520] %v557
                  %v559 = vld [vmem:[%s527 + $0xb4] sm:%s520]
                  %560 = vst [vmem:[%s528 + $0x3c] sm:%s520] %v559
                  %v561 = vld [vmem:[%s527 + $0xc0] sm:%s520]
                  %562 = vst [vmem:[%s528 + $0x40] sm:%s520] %v561
                  %v563 = vld [vmem:[%s527 + $0xcc] sm:%s520]
                  %564 = vst [vmem:[%s528 + $0x44] sm:%s520] %v563
                  %v565 = vld [vmem:[%s527 + $0xd8] sm:%s520]
                  %566 = vst [vmem:[%s528 + $0x48] sm:%s520] %v565
                  %v567 = vld [vmem:[%s527 + $0xe4] sm:%s520]
                  %568 = vst [vmem:[%s528 + $0x4c] sm:%s520] %v567
                  %v569 = vld [vmem:[%s527 + $0xf0] sm:%s520]
                  %570 = vst [vmem:[%s528 + $0x50] sm:%s520] %v569
                  %v571 = vld [vmem:[%s527 + $0xfc] sm:%s520]
                  %572 = vst [vmem:[%s528 + $0x54] sm:%s520] %v571
                  %v573 = vld [vmem:[%s527 + $0x108] sm:%s520]
                  %574 = vst [vmem:[%s528 + $0x58] sm:%s520] %v573
                  %v575 = vld [vmem:[%s527 + $0x114] sm:%s520]
                  %576 = vst [vmem:[%s528 + $0x5c] sm:%s520] %v575
                  %v577 = vld [vmem:[%s527 + $0x120] sm:%s520]
                  %578 = vst [vmem:[%s528 + $0x60] sm:%s520] %v577
                  %v579 = vld [vmem:[%s527 + $0x12c] sm:%s520]
                  %580 = vst [vmem:[%s528 + $0x64] sm:%s520] %v579
                  %v581 = vld [vmem:[%s527 + $0x138] sm:%s520]
                  %582 = vst [vmem:[%s528 + $0x68] sm:%s520] %v581
                  %v583 = vld [vmem:[%s527 + $0x144] sm:%s520]
                  %584 = vst [vmem:[%s528 + $0x6c] sm:%s520] %v583
                  %v585 = vld [vmem:[%s527 + $0x150] sm:%s520]
                  %586 = vst [vmem:[%s528 + $0x70] sm:%s520] %v585
                  %v587 = vld [vmem:[%s527 + $0x15c] sm:%s520]
                  %588 = vst [vmem:[%s528 + $0x74] sm:%s520] %v587
                  %v589 = vld [vmem:[%s527 + $0x168] sm:%s520]
                  %590 = vst [vmem:[%s528 + $0x78] sm:%s520] %v589
                  %v591 = vld [vmem:[%s527 + $0x174] sm:%s520]
                  %592 = vst [vmem:[%s528 + $0x7c] sm:%s520] %v591
                $region112: #{language_model_forward.10} parent=99 // loop_footer
                  %s526 = sadd.s32 1, %s522
                $region113: #{language_model_forward.10} parent=99 // loop_footer_branch
                  %521 = sbr.rel target = $region109
                $region114: #{language_model_forward.10} parent=99 // loop_exit
                  _
              $region100: #{language_model_forward.10} parent=84 // pred_fallthru
                _
            $region85: #{language_model_forward.10} parent=80 // pred_fallthru
              _
            // Predicated region
            $region86: #{language_model_forward.10} parent=80 // pred_check
              _
            $region87: #{language_model_forward.10} parent=80 // pred_check_branch
              %434 = sbr.rel (0) target = $region89
            $region88: #{language_model_forward.10} parent=80 // pred_region
              %s436 = ssub.s32 16, 1
              loop: start=0, step=1, limit=1
              $region90: #{language_model_forward.10} parent=88 // loop_pre_header
                _
              $region91: #{language_model_forward.10} parent=88 // loop_header
                %s438 = sphi 0, %s442
                %p439 = scmp.ge.s32.totalorder %s438, 1
                %s443 = sphi %s428, %s428
                %s444 = sphi %s424, %s424
              $region92: #{language_model_forward.10} parent=88 // loop_header_branch
                %441 = sbr.rel (%p439) target = $region96
              $region93: #{language_model_forward.10} parent=88 // loop_body
                %v445 = vld [vmem:[%s443] sm:%s436]
                %446 = vst [vmem:[%s444] sm:%s436] %v445
                %v447 = vld [vmem:[%s443 + $0xc] sm:%s436]
                %448 = vst [vmem:[%s444 + $0x4] sm:%s436] %v447
                %v449 = vld [vmem:[%s443 + $0x18] sm:%s436]
                %450 = vst [vmem:[%s444 + $0x8] sm:%s436] %v449
                %v451 = vld [vmem:[%s443 + $0x24] sm:%s436]
                %452 = vst [vmem:[%s444 + $0xc] sm:%s436] %v451
                %v453 = vld [vmem:[%s443 + $0x30] sm:%s436]
                %454 = vst [vmem:[%s444 + $0x10] sm:%s436] %v453
                %v455 = vld [vmem:[%s443 + $0x3c] sm:%s436]
                %456 = vst [vmem:[%s444 + $0x14] sm:%s436] %v455
                %v457 = vld [vmem:[%s443 + $0x48] sm:%s436]
                %458 = vst [vmem:[%s444 + $0x18] sm:%s436] %v457
                %v459 = vld [vmem:[%s443 + $0x54] sm:%s436]
                %460 = vst [vmem:[%s444 + $0x1c] sm:%s436] %v459
                %v461 = vld [vmem:[%s443 + $0x60] sm:%s436]
                %462 = vst [vmem:[%s444 + $0x20] sm:%s436] %v461
                %v463 = vld [vmem:[%s443 + $0x6c] sm:%s436]
                %464 = vst [vmem:[%s444 + $0x24] sm:%s436] %v463
                %v465 = vld [vmem:[%s443 + $0x78] sm:%s436]
                %466 = vst [vmem:[%s444 + $0x28] sm:%s436] %v465
                %v467 = vld [vmem:[%s443 + $0x84] sm:%s436]
                %468 = vst [vmem:[%s444 + $0x2c] sm:%s436] %v467
                %v469 = vld [vmem:[%s443 + $0x90] sm:%s436]
                %470 = vst [vmem:[%s444 + $0x30] sm:%s436] %v469
                %v471 = vld [vmem:[%s443 + $0x9c] sm:%s436]
                %472 = vst [vmem:[%s444 + $0x34] sm:%s436] %v471
                %v473 = vld [vmem:[%s443 + $0xa8] sm:%s436]
                %474 = vst [vmem:[%s444 + $0x38] sm:%s436] %v473
                %v475 = vld [vmem:[%s443 + $0xb4] sm:%s436]
                %476 = vst [vmem:[%s444 + $0x3c] sm:%s436] %v475
                %v477 = vld [vmem:[%s443 + $0xc0] sm:%s436]
                %478 = vst [vmem:[%s444 + $0x40] sm:%s436] %v477
                %v479 = vld [vmem:[%s443 + $0xcc] sm:%s436]
                %480 = vst [vmem:[%s444 + $0x44] sm:%s436] %v479
                %v481 = vld [vmem:[%s443 + $0xd8] sm:%s436]
                %482 = vst [vmem:[%s444 + $0x48] sm:%s436] %v481
                %v483 = vld [vmem:[%s443 + $0xe4] sm:%s436]
                %484 = vst [vmem:[%s444 + $0x4c] sm:%s436] %v483
                %v485 = vld [vmem:[%s443 + $0xf0] sm:%s436]
                %486 = vst [vmem:[%s444 + $0x50] sm:%s436] %v485
                %v487 = vld [vmem:[%s443 + $0xfc] sm:%s436]
                %488 = vst [vmem:[%s444 + $0x54] sm:%s436] %v487
                %v489 = vld [vmem:[%s443 + $0x108] sm:%s436]
                %490 = vst [vmem:[%s444 + $0x58] sm:%s436] %v489
                %v491 = vld [vmem:[%s443 + $0x114] sm:%s436]
                %492 = vst [vmem:[%s444 + $0x5c] sm:%s436] %v491
                %v493 = vld [vmem:[%s443 + $0x120] sm:%s436]
                %494 = vst [vmem:[%s444 + $0x60] sm:%s436] %v493
                %v495 = vld [vmem:[%s443 + $0x12c] sm:%s436]
                %496 = vst [vmem:[%s444 + $0x64] sm:%s436] %v495
                %v497 = vld [vmem:[%s443 + $0x138] sm:%s436]
                %498 = vst [vmem:[%s444 + $0x68] sm:%s436] %v497
                %v499 = vld [vmem:[%s443 + $0x144] sm:%s436]
                %500 = vst [vmem:[%s444 + $0x6c] sm:%s436] %v499
                %v501 = vld [vmem:[%s443 + $0x150] sm:%s436]
                %502 = vst [vmem:[%s444 + $0x70] sm:%s436] %v501
                %v503 = vld [vmem:[%s443 + $0x15c] sm:%s436]
                %504 = vst [vmem:[%s444 + $0x74] sm:%s436] %v503
                %v505 = vld [vmem:[%s443 + $0x168] sm:%s436]
                %506 = vst [vmem:[%s444 + $0x78] sm:%s436] %v505
                %v507 = vld [vmem:[%s443 + $0x174] sm:%s436]
                %508 = vst [vmem:[%s444 + $0x7c] sm:%s436] %v507
              $region94: #{language_model_forward.10} parent=88 // loop_footer
                %s442 = sadd.s32 1, %s438
              $region95: #{language_model_forward.10} parent=88 // loop_footer_branch
                %437 = sbr.rel target = $region91
              $region96: #{language_model_forward.10} parent=88 // loop_exit
                _
            $region89: #{language_model_forward.10} parent=80 // pred_fallthru
              _
          $region81: #{language_model_forward.10} parent=76 // pred_fallthru
            _
          %593 = vnop
        $region77: #{language_model_forward.10} parent=31 // pred_fallthru
          _
        // Predicated region
        $region115: #{language_model_forward.10} parent=31 // pred_check
          %p594 = pneg %p101
        $region116: #{language_model_forward.10} parent=31 // pred_check_branch
          %596 = sbr.rel (%p594) target = $region118
        $region117: #{language_model_forward.10} parent=31 // pred_region
          %s597 = sand.u32 %s91, 1
          %s598 = sand.u32 %s91, 1
          %s599 = smul.addr %s598, 128
          %s600 = scalar_lea.vmem [#allocation4], %s599
          %s601 = smul.addr %s22, 96
          %s602 = sadd.s32 2, %s601
          %s603 = smul.addr %s602, 4
          %s604 = scalar_lea.vmem %s2, %s603
          // Predicated region
          $region119: #{language_model_forward.10} parent=117 // pred_check
            _
          $region120: #{language_model_forward.10} parent=117 // pred_check_branch
            %606 = sbr.rel (0) target = $region122
          $region121: #{language_model_forward.10} parent=117 // pred_region
            // Predicated region
            $region123: #{language_model_forward.10} parent=121 // pred_check
              _
            $region124: #{language_model_forward.10} parent=121 // pred_check_branch
              %608 = sbr.rel target = $region126
            $region125: #{language_model_forward.10} parent=121 // pred_region
              // Predicated region
              $region138: #{language_model_forward.10} parent=125 // pred_check
                _
              $region139: #{language_model_forward.10} parent=125 // pred_check_branch
                %686 = sbr.rel (0) target = $region141
              $region140: #{language_model_forward.10} parent=125 // pred_region
                loop: start=0, step=1, limit=1
                $region142: #{language_model_forward.10} parent=140 // loop_pre_header
                  _
                $region143: #{language_model_forward.10} parent=140 // loop_header
                  %s688 = sphi 0, %s692
                  %p689 = scmp.ge.s32.totalorder %s688, 1
                  %s693 = sphi %s604, %s604
                  %s694 = sphi %s600, %s600
                $region144: #{language_model_forward.10} parent=140 // loop_header_branch
                  %691 = sbr.rel (%p689) target = $region148
                $region145: #{language_model_forward.10} parent=140 // loop_body
                  _
                $region146: #{language_model_forward.10} parent=140 // loop_footer
                  %s692 = sadd.s32 1, %s688
                $region147: #{language_model_forward.10} parent=140 // loop_footer_branch
                  %687 = sbr.rel target = $region143
                $region148: #{language_model_forward.10} parent=140 // loop_exit
                  _
                %s696 = ssub.s32 16, 1
                loop: start=0, step=1, limit=1
                $region149: #{language_model_forward.10} parent=140 // loop_pre_header
                  _
                $region150: #{language_model_forward.10} parent=140 // loop_header
                  %s698 = sphi 0, %s702
                  %p699 = scmp.ge.s32.totalorder %s698, 1
                  %s703 = sphi %s604, %s604
                  %s704 = sphi %s600, %s600
                $region151: #{language_model_forward.10} parent=140 // loop_header_branch
                  %701 = sbr.rel (%p699) target = $region155
                $region152: #{language_model_forward.10} parent=140 // loop_body
                  %v705 = vld [vmem:[%s703] sm:%s696]
                  %706 = vst [vmem:[%s704] sm:%s696] %v705
                  %v707 = vld [vmem:[%s703 + $0xc] sm:%s696]
                  %708 = vst [vmem:[%s704 + $0x4] sm:%s696] %v707
                  %v709 = vld [vmem:[%s703 + $0x18] sm:%s696]
                  %710 = vst [vmem:[%s704 + $0x8] sm:%s696] %v709
                  %v711 = vld [vmem:[%s703 + $0x24] sm:%s696]
                  %712 = vst [vmem:[%s704 + $0xc] sm:%s696] %v711
                  %v713 = vld [vmem:[%s703 + $0x30] sm:%s696]
                  %714 = vst [vmem:[%s704 + $0x10] sm:%s696] %v713
                  %v715 = vld [vmem:[%s703 + $0x3c] sm:%s696]
                  %716 = vst [vmem:[%s704 + $0x14] sm:%s696] %v715
                  %v717 = vld [vmem:[%s703 + $0x48] sm:%s696]
                  %718 = vst [vmem:[%s704 + $0x18] sm:%s696] %v717
                  %v719 = vld [vmem:[%s703 + $0x54] sm:%s696]
                  %720 = vst [vmem:[%s704 + $0x1c] sm:%s696] %v719
                  %v721 = vld [vmem:[%s703 + $0x60] sm:%s696]
                  %722 = vst [vmem:[%s704 + $0x20] sm:%s696] %v721
                  %v723 = vld [vmem:[%s703 + $0x6c] sm:%s696]
                  %724 = vst [vmem:[%s704 + $0x24] sm:%s696] %v723
                  %v725 = vld [vmem:[%s703 + $0x78] sm:%s696]
                  %726 = vst [vmem:[%s704 + $0x28] sm:%s696] %v725
                  %v727 = vld [vmem:[%s703 + $0x84] sm:%s696]
                  %728 = vst [vmem:[%s704 + $0x2c] sm:%s696] %v727
                  %v729 = vld [vmem:[%s703 + $0x90] sm:%s696]
                  %730 = vst [vmem:[%s704 + $0x30] sm:%s696] %v729
                  %v731 = vld [vmem:[%s703 + $0x9c] sm:%s696]
                  %732 = vst [vmem:[%s704 + $0x34] sm:%s696] %v731
                  %v733 = vld [vmem:[%s703 + $0xa8] sm:%s696]
                  %734 = vst [vmem:[%s704 + $0x38] sm:%s696] %v733
                  %v735 = vld [vmem:[%s703 + $0xb4] sm:%s696]
                  %736 = vst [vmem:[%s704 + $0x3c] sm:%s696] %v735
                  %v737 = vld [vmem:[%s703 + $0xc0] sm:%s696]
                  %738 = vst [vmem:[%s704 + $0x40] sm:%s696] %v737
                  %v739 = vld [vmem:[%s703 + $0xcc] sm:%s696]
                  %740 = vst [vmem:[%s704 + $0x44] sm:%s696] %v739
                  %v741 = vld [vmem:[%s703 + $0xd8] sm:%s696]
                  %742 = vst [vmem:[%s704 + $0x48] sm:%s696] %v741
                  %v743 = vld [vmem:[%s703 + $0xe4] sm:%s696]
                  %744 = vst [vmem:[%s704 + $0x4c] sm:%s696] %v743
                  %v745 = vld [vmem:[%s703 + $0xf0] sm:%s696]
                  %746 = vst [vmem:[%s704 + $0x50] sm:%s696] %v745
                  %v747 = vld [vmem:[%s703 + $0xfc] sm:%s696]
                  %748 = vst [vmem:[%s704 + $0x54] sm:%s696] %v747
                  %v749 = vld [vmem:[%s703 + $0x108] sm:%s696]
                  %750 = vst [vmem:[%s704 + $0x58] sm:%s696] %v749
                  %v751 = vld [vmem:[%s703 + $0x114] sm:%s696]
                  %752 = vst [vmem:[%s704 + $0x5c] sm:%s696] %v751
                  %v753 = vld [vmem:[%s703 + $0x120] sm:%s696]
                  %754 = vst [vmem:[%s704 + $0x60] sm:%s696] %v753
                  %v755 = vld [vmem:[%s703 + $0x12c] sm:%s696]
                  %756 = vst [vmem:[%s704 + $0x64] sm:%s696] %v755
                  %v757 = vld [vmem:[%s703 + $0x138] sm:%s696]
                  %758 = vst [vmem:[%s704 + $0x68] sm:%s696] %v757
                  %v759 = vld [vmem:[%s703 + $0x144] sm:%s696]
                  %760 = vst [vmem:[%s704 + $0x6c] sm:%s696] %v759
                  %v761 = vld [vmem:[%s703 + $0x150] sm:%s696]
                  %762 = vst [vmem:[%s704 + $0x70] sm:%s696] %v761
                  %v763 = vld [vmem:[%s703 + $0x15c] sm:%s696]
                  %764 = vst [vmem:[%s704 + $0x74] sm:%s696] %v763
                  %v765 = vld [vmem:[%s703 + $0x168] sm:%s696]
                  %766 = vst [vmem:[%s704 + $0x78] sm:%s696] %v765
                  %v767 = vld [vmem:[%s703 + $0x174] sm:%s696]
                  %768 = vst [vmem:[%s704 + $0x7c] sm:%s696] %v767
                $region153: #{language_model_forward.10} parent=140 // loop_footer
                  %s702 = sadd.s32 1, %s698
                $region154: #{language_model_forward.10} parent=140 // loop_footer_branch
                  %697 = sbr.rel target = $region150
                $region155: #{language_model_forward.10} parent=140 // loop_exit
                  _
              $region141: #{language_model_forward.10} parent=125 // pred_fallthru
                _
            $region126: #{language_model_forward.10} parent=121 // pred_fallthru
              _
            // Predicated region
            $region127: #{language_model_forward.10} parent=121 // pred_check
              _
            $region128: #{language_model_forward.10} parent=121 // pred_check_branch
              %610 = sbr.rel (0) target = $region130
            $region129: #{language_model_forward.10} parent=121 // pred_region
              %s612 = ssub.s32 16, 1
              loop: start=0, step=1, limit=1
              $region131: #{language_model_forward.10} parent=129 // loop_pre_header
                _
              $region132: #{language_model_forward.10} parent=129 // loop_header
                %s614 = sphi 0, %s618
                %p615 = scmp.ge.s32.totalorder %s614, 1
                %s619 = sphi %s604, %s604
                %s620 = sphi %s600, %s600
              $region133: #{language_model_forward.10} parent=129 // loop_header_branch
                %617 = sbr.rel (%p615) target = $region137
              $region134: #{language_model_forward.10} parent=129 // loop_body
                %v621 = vld [vmem:[%s619] sm:%s612]
                %622 = vst [vmem:[%s620] sm:%s612] %v621
                %v623 = vld [vmem:[%s619 + $0xc] sm:%s612]
                %624 = vst [vmem:[%s620 + $0x4] sm:%s612] %v623
                %v625 = vld [vmem:[%s619 + $0x18] sm:%s612]
                %626 = vst [vmem:[%s620 + $0x8] sm:%s612] %v625
                %v627 = vld [vmem:[%s619 + $0x24] sm:%s612]
                %628 = vst [vmem:[%s620 + $0xc] sm:%s612] %v627
                %v629 = vld [vmem:[%s619 + $0x30] sm:%s612]
                %630 = vst [vmem:[%s620 + $0x10] sm:%s612] %v629
                %v631 = vld [vmem:[%s619 + $0x3c] sm:%s612]
                %632 = vst [vmem:[%s620 + $0x14] sm:%s612] %v631
                %v633 = vld [vmem:[%s619 + $0x48] sm:%s612]
                %634 = vst [vmem:[%s620 + $0x18] sm:%s612] %v633
                %v635 = vld [vmem:[%s619 + $0x54] sm:%s612]
                %636 = vst [vmem:[%s620 + $0x1c] sm:%s612] %v635
                %v637 = vld [vmem:[%s619 + $0x60] sm:%s612]
                %638 = vst [vmem:[%s620 + $0x20] sm:%s612] %v637
                %v639 = vld [vmem:[%s619 + $0x6c] sm:%s612]
                %640 = vst [vmem:[%s620 + $0x24] sm:%s612] %v639
                %v641 = vld [vmem:[%s619 + $0x78] sm:%s612]
                %642 = vst [vmem:[%s620 + $0x28] sm:%s612] %v641
                %v643 = vld [vmem:[%s619 + $0x84] sm:%s612]
                %644 = vst [vmem:[%s620 + $0x2c] sm:%s612] %v643
                %v645 = vld [vmem:[%s619 + $0x90] sm:%s612]
                %646 = vst [vmem:[%s620 + $0x30] sm:%s612] %v645
                %v647 = vld [vmem:[%s619 + $0x9c] sm:%s612]
                %648 = vst [vmem:[%s620 + $0x34] sm:%s612] %v647
                %v649 = vld [vmem:[%s619 + $0xa8] sm:%s612]
                %650 = vst [vmem:[%s620 + $0x38] sm:%s612] %v649
                %v651 = vld [vmem:[%s619 + $0xb4] sm:%s612]
                %652 = vst [vmem:[%s620 + $0x3c] sm:%s612] %v651
                %v653 = vld [vmem:[%s619 + $0xc0] sm:%s612]
                %654 = vst [vmem:[%s620 + $0x40] sm:%s612] %v653
                %v655 = vld [vmem:[%s619 + $0xcc] sm:%s612]
                %656 = vst [vmem:[%s620 + $0x44] sm:%s612] %v655
                %v657 = vld [vmem:[%s619 + $0xd8] sm:%s612]
                %658 = vst [vmem:[%s620 + $0x48] sm:%s612] %v657
                %v659 = vld [vmem:[%s619 + $0xe4] sm:%s612]
                %660 = vst [vmem:[%s620 + $0x4c] sm:%s612] %v659
                %v661 = vld [vmem:[%s619 + $0xf0] sm:%s612]
                %662 = vst [vmem:[%s620 + $0x50] sm:%s612] %v661
                %v663 = vld [vmem:[%s619 + $0xfc] sm:%s612]
                %664 = vst [vmem:[%s620 + $0x54] sm:%s612] %v663
                %v665 = vld [vmem:[%s619 + $0x108] sm:%s612]
                %666 = vst [vmem:[%s620 + $0x58] sm:%s612] %v665
                %v667 = vld [vmem:[%s619 + $0x114] sm:%s612]
                %668 = vst [vmem:[%s620 + $0x5c] sm:%s612] %v667
                %v669 = vld [vmem:[%s619 + $0x120] sm:%s612]
                %670 = vst [vmem:[%s620 + $0x60] sm:%s612] %v669
                %v671 = vld [vmem:[%s619 + $0x12c] sm:%s612]
                %672 = vst [vmem:[%s620 + $0x64] sm:%s612] %v671
                %v673 = vld [vmem:[%s619 + $0x138] sm:%s612]
                %674 = vst [vmem:[%s620 + $0x68] sm:%s612] %v673
                %v675 = vld [vmem:[%s619 + $0x144] sm:%s612]
                %676 = vst [vmem:[%s620 + $0x6c] sm:%s612] %v675
                %v677 = vld [vmem:[%s619 + $0x150] sm:%s612]
                %678 = vst [vmem:[%s620 + $0x70] sm:%s612] %v677
                %v679 = vld [vmem:[%s619 + $0x15c] sm:%s612]
                %680 = vst [vmem:[%s620 + $0x74] sm:%s612] %v679
                %v681 = vld [vmem:[%s619 + $0x168] sm:%s612]
                %682 = vst [vmem:[%s620 + $0x78] sm:%s612] %v681
                %v683 = vld [vmem:[%s619 + $0x174] sm:%s612]
                %684 = vst [vmem:[%s620 + $0x7c] sm:%s612] %v683
              $region135: #{language_model_forward.10} parent=129 // loop_footer
                %s618 = sadd.s32 1, %s614
              $region136: #{language_model_forward.10} parent=129 // loop_footer_branch
                %613 = sbr.rel target = $region132
              $region137: #{language_model_forward.10} parent=129 // loop_exit
                _
            $region130: #{language_model_forward.10} parent=121 // pred_fallthru
              _
          $region122: #{language_model_forward.10} parent=117 // pred_fallthru
            _
          %769 = vnop
        $region118: #{language_model_forward.10} parent=31 // pred_fallthru
          _
        // Predicated region
        $region156: #{language_model_forward.10} parent=31 // pred_check
          %p770 = pneg %p127
        $region157: #{language_model_forward.10} parent=31 // pred_check_branch
          %772 = sbr.rel (%p770) target = $region159
        $region158: #{language_model_forward.10} parent=31 // pred_region
          %p773 = scmp.lt.s32.totalorder %s22, 1
          %s774 = scalar_select %p773, %s22, 1
          %s775 = smul.addr %s774, 2
          %s776 = scalar_lea.vmem %s3, %s775
        $region159: #{language_model_forward.10} parent=31 // pred_fallthru
          _
        // Predicated region
        $region160: #{language_model_forward.10} parent=31 // pred_check
          %p777 = pneg %p155
        $region161: #{language_model_forward.10} parent=31 // pred_check_branch
          %779 = sbr.rel (%p777) target = $region163
        $region162: #{language_model_forward.10} parent=31 // pred_region
          %s780 = smul.u32 16, %s23
          %p781 = scmp.lt.s32.totalorder %s22, 1
          %s782 = scalar_select %p781, %s22, 1
          %p783 = scmp.lt.s32.totalorder %s780, 31
          %s784 = scalar_select %p783, %s780, 31
          %s785 = smul.addr %s782, 32
          %s786 = sadd.s32 %s784, %s785
          %s787 = smul.addr %s786, 4
          %s788 = scalar_lea.vmem %s4, %s787
          %s789 = smul.u32 16, %s23
        $region163: #{language_model_forward.10} parent=31 // pred_fallthru
          _
      $region32: #{language_model_forward.10} parent=5 // pred_fallthru
        _
      %p790 = scmp.le.s32.totalorder 1, %s15
      %p791 = scmp.lt.s32.totalorder %s15, 5
      %p792 = pnand %p790, %p791
      %p793 = pneg %p792
      // Predicated region
      $region164: #{language_model_forward.10} parent=5 // pred_check
        _
      $region165: #{language_model_forward.10} parent=5 // pred_check_branch
        %795 = sbr.rel (%p792) target = $region167
      $region166: #{language_model_forward.10} parent=5 // pred_region
        %s796 = ssub.s32 %s15, 1
        %s797 = sand.u32 %s42, 1
        %s798 = sand.u32 %s42, 1
        %s799 = smul.addr %s798, 64
        %s800 = scalar_lea.vmem [#allocation2], %s799
        // Predicated region
        $region168: #{language_model_forward.10} parent=166 // pred_check
          %p801 = pneg %p55
        $region169: #{language_model_forward.10} parent=166 // pred_check_branch
          %803 = sbr.rel (%p801) target = $region171
        $region170: #{language_model_forward.10} parent=166 // pred_region
          _
        $region171: #{language_model_forward.10} parent=166 // pred_fallthru
          _
        %s804 = sand.u32 %s68, 1
        %s805 = sand.u32 %s68, 1
        %s806 = smul.addr %s805, 128
        %s807 = scalar_lea.vmem [#allocation3], %s806
        // Predicated region
        $region172: #{language_model_forward.10} parent=166 // pred_check
          %p808 = pneg %p81
        $region173: #{language_model_forward.10} parent=166 // pred_check_branch
          %810 = sbr.rel (%p808) target = $region175
        $region174: #{language_model_forward.10} parent=166 // pred_region
          _
        $region175: #{language_model_forward.10} parent=166 // pred_fallthru
          _
        %s811 = sand.u32 %s94, 1
        %s812 = sand.u32 %s94, 1
        %s813 = smul.addr %s812, 128
        %s814 = scalar_lea.vmem [#allocation4], %s813
        // Predicated region
        $region176: #{language_model_forward.10} parent=166 // pred_check
          %p815 = pneg %p107
        $region177: #{language_model_forward.10} parent=166 // pred_check_branch
          %817 = sbr.rel (%p815) target = $region179
        $region178: #{language_model_forward.10} parent=166 // pred_region
          _
        $region179: #{language_model_forward.10} parent=166 // pred_fallthru
          _
        %s818 = sand.u32 %s42, 1
        %s819 = sand.u32 %s42, 1
        %s820 = smul.addr %s819, 64
        %s821 = scalar_lea.vmem [#allocation2], %s820
        %p822 = pneg %p55
        %p823 = pneg %p52
        %s824 = sand.u32 %s68, 1
        %s825 = sand.u32 %s68, 1
        %s826 = smul.addr %s825, 128
        %s827 = scalar_lea.vmem [#allocation3], %s826
        %p828 = pneg %p81
        %p829 = pneg %p78
        %s830 = sand.u32 %s94, 1
        %s831 = sand.u32 %s94, 1
        %s832 = smul.addr %s831, 128
        %s833 = scalar_lea.vmem [#allocation4], %s832
        %p834 = pneg %p107
        %p835 = pneg %p104
        %p836 = scmp.lt.s32.totalorder %s24, 1
        %s837 = scalar_select %p836, %s24, 1
        %s838 = smul.addr %s837, 2
        %s839 = scalar_lea.vmem %s3, %s838
        %p840 = pneg %p133
        %p841 = pneg %p130
        %s842 = smul.u32 16, %s25
        %p843 = scmp.lt.s32.totalorder %s24, 1
        %s844 = scalar_select %p843, %s24, 1
        %p845 = scmp.lt.s32.totalorder %s842, 31
        %s846 = scalar_select %p845, %s842, 31
        %s847 = smul.addr %s844, 32
        %s848 = sadd.s32 %s846, %s847
        %s849 = smul.addr %s848, 4
        %s850 = scalar_lea.vmem %s4, %s849
        %p851 = pneg %p161
        %p852 = pneg %p158
        %p853 = pneg %p182
        %p854 = pneg %p179
        %p855 = pneg %p203
        %p856 = pneg %p200
        %p857 = pneg %p224
        %p858 = pneg %p221
        %p859 = pneg %p245
        %p860 = pneg %p242
        %p861 = pneg %p273
        %p862 = pneg %p270
        %s863 = smul.u32 16, %s25
        %p864 = scmp.lt.s32.totalorder %s24, 1
        %s865 = scalar_select %p864, %s24, 1
        %p866 = scmp.lt.s32.totalorder %s863, 31
        %s867 = scalar_select %p866, %s863, 31
        %s868 = smul.addr %s865, 32
        %s869 = sadd.s32 %s867, %s868
        %s870 = smul.addr %s869, 4
        %s871 = scalar_lea.vmem %s9, %s870
        %s872 = smul.u32 16, %s25
        %p873 = scmp.lt.s32.totalorder %s24, 1
        %s874 = scalar_select %p873, %s24, 1
        %s875 = smul.addr %s874, 2
        %s876 = scalar_lea.vmem %s3, %s875
        %s877 = smul.u32 16, %s25
        %p878 = scmp.lt.s32.totalorder %s24, 1
        %s879 = scalar_select %p878, %s24, 1
        %p880 = scmp.lt.s32.totalorder %s877, 31
        %s881 = scalar_select %p880, %s877, 31
        %s882 = smul.addr %s879, 32
        %s883 = sadd.s32 %s881, %s882
        %s884 = smul.addr %s883, 4
        %s885 = scalar_lea.vmem %s4, %s884
        %s886 = smul.u32 16, %s25
        %s887 = smul.u32 16, %s25
        %p888 = scmp.lt.s32.totalorder %s24, 1
        %s889 = scalar_select %p888, %s24, 1
        %p890 = scmp.lt.s32.totalorder %s887, 31
        %s891 = scalar_select %p890, %s887, 31
        %s892 = smul.addr %s889, 32
        %s893 = sadd.s32 %s891, %s892
        %s894 = smul.addr %s893, 4
        %s895 = scalar_lea.vmem %s9, %s894
        %s896 = smul.u32 16, %s25
        %v898 = vld [vmem:[%s800] sm:$0xf]
        %v899 = vld [vmem:[%s800 + $0x4] sm:$0xf]
        %v900 = vld [vmem:[%s800 + $0x8] sm:$0xf]
        %v901 = vld [vmem:[%s800 + $0xc] sm:$0xf]
        %v902 = vld [vmem:[%s800 + $0x10] sm:$0xf]
        %v903 = vld [vmem:[%s800 + $0x14] sm:$0xf]
        %v904 = vld [vmem:[%s800 + $0x18] sm:$0xf]
        %v905 = vld [vmem:[%s800 + $0x1c] sm:$0xf]
        %v906 = vld [vmem:[%s800 + $0x20] sm:$0xf]
        %v907 = vld [vmem:[%s800 + $0x24] sm:$0xf]
        %v908 = vld [vmem:[%s800 + $0x28] sm:$0xf]
        %v909 = vld [vmem:[%s800 + $0x2c] sm:$0xf]
        %v910 = vld [vmem:[%s800 + $0x30] sm:$0xf]
        %v911 = vld [vmem:[%s800 + $0x34] sm:$0xf]
        %v912 = vld [vmem:[%s800 + $0x38] sm:$0xf]
        %v913 = vld [vmem:[%s800 + $0x3c] sm:$0xf]
        %v914 = vld [vmem:[%s807] sm:$0xf]
        %v915 = vld [vmem:[%s807 + $0x4] sm:$0xf]
        %v916 = vld [vmem:[%s807 + $0x8] sm:$0xf]
        %v917 = vld [vmem:[%s807 + $0xc] sm:$0xf]
        %v918 = vld [vmem:[%s807 + $0x10] sm:$0xf]
        %v919 = vld [vmem:[%s807 + $0x14] sm:$0xf]
        %v920 = vld [vmem:[%s807 + $0x18] sm:$0xf]
        %v921 = vld [vmem:[%s807 + $0x1c] sm:$0xf]
        %v922 = vld [vmem:[%s807 + $0x20] sm:$0xf]
        %v923 = vld [vmem:[%s807 + $0x24] sm:$0xf]
        %v924 = vld [vmem:[%s807 + $0x28] sm:$0xf]
        %v925 = vld [vmem:[%s807 + $0x2c] sm:$0xf]
        %v926 = vld [vmem:[%s807 + $0x30] sm:$0xf]
        %v927 = vld [vmem:[%s807 + $0x34] sm:$0xf]
        %v928 = vld [vmem:[%s807 + $0x38] sm:$0xf]
        %v929 = vld [vmem:[%s807 + $0x3c] sm:$0xf]
        %v930 = vld [vmem:[%s807 + $0x40] sm:$0xf]
        %v931 = vld [vmem:[%s807 + $0x44] sm:$0xf]
        %v932 = vld [vmem:[%s807 + $0x48] sm:$0xf]
        %v933 = vld [vmem:[%s807 + $0x4c] sm:$0xf]
        %v934 = vld [vmem:[%s807 + $0x50] sm:$0xf]
        %v935 = vld [vmem:[%s807 + $0x54] sm:$0xf]
        %v936 = vld [vmem:[%s807 + $0x58] sm:$0xf]
        %v937 = vld [vmem:[%s807 + $0x5c] sm:$0xf]
        %v938 = vld [vmem:[%s807 + $0x60] sm:$0xf]
        %v939 = vld [vmem:[%s807 + $0x64] sm:$0xf]
        %v940 = vld [vmem:[%s807 + $0x68] sm:$0xf]
        %v941 = vld [vmem:[%s807 + $0x6c] sm:$0xf]
        %v942 = vld [vmem:[%s807 + $0x70] sm:$0xf]
        %v943 = vld [vmem:[%s807 + $0x74] sm:$0xf]
        %v944 = vld [vmem:[%s807 + $0x78] sm:$0xf]
        %v945 = vld [vmem:[%s807 + $0x7c] sm:$0xf]
        %v946 = vld [vmem:[%s814] sm:$0xf]
        %v947 = vld [vmem:[%s814 + $0x4] sm:$0xf]
        %v948 = vld [vmem:[%s814 + $0x8] sm:$0xf]
        %v949 = vld [vmem:[%s814 + $0xc] sm:$0xf]
        %v950 = vld [vmem:[%s814 + $0x10] sm:$0xf]
        %v951 = vld [vmem:[%s814 + $0x14] sm:$0xf]
        %v952 = vld [vmem:[%s814 + $0x18] sm:$0xf]
        %v953 = vld [vmem:[%s814 + $0x1c] sm:$0xf]
        %v954 = vld [vmem:[%s814 + $0x20] sm:$0xf]
        %v955 = vld [vmem:[%s814 + $0x24] sm:$0xf]
        %v956 = vld [vmem:[%s814 + $0x28] sm:$0xf]
        %v957 = vld [vmem:[%s814 + $0x2c] sm:$0xf]
        %v958 = vld [vmem:[%s814 + $0x30] sm:$0xf]
        %v959 = vld [vmem:[%s814 + $0x34] sm:$0xf]
        %v960 = vld [vmem:[%s814 + $0x38] sm:$0xf]
        %v961 = vld [vmem:[%s814 + $0x3c] sm:$0xf]
        %v962 = vld [vmem:[%s814 + $0x40] sm:$0xf]
        %v963 = vld [vmem:[%s814 + $0x44] sm:$0xf]
        %v964 = vld [vmem:[%s814 + $0x48] sm:$0xf]
        %v965 = vld [vmem:[%s814 + $0x4c] sm:$0xf]
        %v966 = vld [vmem:[%s814 + $0x50] sm:$0xf]
        %v967 = vld [vmem:[%s814 + $0x54] sm:$0xf]
        %v968 = vld [vmem:[%s814 + $0x58] sm:$0xf]
        %v969 = vld [vmem:[%s814 + $0x5c] sm:$0xf]
        %v970 = vld [vmem:[%s814 + $0x60] sm:$0xf]
        %v971 = vld [vmem:[%s814 + $0x64] sm:$0xf]
        %v972 = vld [vmem:[%s814 + $0x68] sm:$0xf]
        %v973 = vld [vmem:[%s814 + $0x6c] sm:$0xf]
        %v974 = vld [vmem:[%s814 + $0x70] sm:$0xf]
        %v975 = vld [vmem:[%s814 + $0x74] sm:$0xf]
        %v976 = vld [vmem:[%s814 + $0x78] sm:$0xf]
        %v977 = vld [vmem:[%s814 + $0x7c] sm:$0xf]
        %v978 = vld [vmem:[%s876] sm:$0x3]
        %v980 = vlaneseq
        %v981 = vshrl.u32 %v980, 7
        %v982 = vsub.s32 0, %v981
        %v983 = vrot.slane %v978, %v982
        %v984 = vlaneseq
        %v985 = vshrl.u32 %v984, 7
        %v986 = vsub.s32 1, %v985
        %v987 = vrot.slane %v978, %v986
        %v1006 = vunpack.c.l.b16 %v898
        %v1007 = vunpack.c.l.b16 %v899
        %v1008 = vunpack.c.l.b16 %v900
        %v1009 = vunpack.c.l.b16 %v901
        %v1010 = vunpack.c.l.b16 %v902
        %v1011 = vunpack.c.l.b16 %v903
        %v1012 = vunpack.c.l.b16 %v904
        %v1013 = vunpack.c.l.b16 %v905
        %v1014 = vunpack.c.l.b16 %v906
        %v1015 = vunpack.c.l.b16 %v907
        %v1016 = vunpack.c.l.b16 %v908
        %v1017 = vunpack.c.l.b16 %v909
        %v1018 = vunpack.c.l.b16 %v910
        %v1019 = vunpack.c.l.b16 %v911
        %v1020 = vunpack.c.l.b16 %v912
        %v1021 = vunpack.c.l.b16 %v913
        %v1022 = vpack.c.b16 %v1007, %v1006
        %v1023 = vpack.c.b16 %v1009, %v1008
        %v1024 = vpack.c.b16 %v1011, %v1010
        %v1025 = vpack.c.b16 %v1013, %v1012
        %v1026 = vpack.c.b16 %v1015, %v1014
        %v1027 = vpack.c.b16 %v1017, %v1016
        %v1028 = vpack.c.b16 %v1019, %v1018
        %v1029 = vpack.c.b16 %v1021, %v1020
        %v1062 = vunpack.c.l.b16 %v914
        %v1063 = vunpack.c.l.b16 %v915
        %v1064 = vunpack.c.l.b16 %v916
        %v1065 = vunpack.c.l.b16 %v917
        %v1066 = vunpack.c.l.b16 %v918
        %v1067 = vunpack.c.l.b16 %v919
        %v1068 = vunpack.c.l.b16 %v920
        %v1069 = vunpack.c.l.b16 %v921
        %v1070 = vunpack.c.l.b16 %v922
        %v1071 = vunpack.c.l.b16 %v923
        %v1072 = vunpack.c.l.b16 %v924
        %v1073 = vunpack.c.l.b16 %v925
        %v1074 = vunpack.c.l.b16 %v926
        %v1075 = vunpack.c.l.b16 %v927
        %v1076 = vunpack.c.l.b16 %v928
        %v1077 = vunpack.c.l.b16 %v929
        %v1078 = vunpack.c.l.b16 %v930
        %v1079 = vunpack.c.l.b16 %v931
        %v1080 = vunpack.c.l.b16 %v932
        %v1081 = vunpack.c.l.b16 %v933
        %v1082 = vunpack.c.l.b16 %v934
        %v1083 = vunpack.c.l.b16 %v935
        %v1084 = vunpack.c.l.b16 %v936
        %v1085 = vunpack.c.l.b16 %v937
        %v1086 = vunpack.c.l.b16 %v938
        %v1087 = vunpack.c.l.b16 %v939
        %v1088 = vunpack.c.l.b16 %v940
        %v1089 = vunpack.c.l.b16 %v941
        %v1090 = vunpack.c.l.b16 %v942
        %v1091 = vunpack.c.l.b16 %v943
        %v1092 = vunpack.c.l.b16 %v944
        %v1093 = vunpack.c.l.b16 %v945
        %v1094 = vpack.c.b16 %v1063, %v1062
        %v1095 = vpack.c.b16 %v1065, %v1064
        %v1096 = vpack.c.b16 %v1067, %v1066
        %v1097 = vpack.c.b16 %v1069, %v1068
        %v1098 = vpack.c.b16 %v1071, %v1070
        %v1099 = vpack.c.b16 %v1073, %v1072
        %v1100 = vpack.c.b16 %v1075, %v1074
        %v1101 = vpack.c.b16 %v1077, %v1076
        %v1102 = vpack.c.b16 %v1079, %v1078
        %v1103 = vpack.c.b16 %v1081, %v1080
        %v1104 = vpack.c.b16 %v1083, %v1082
        %v1105 = vpack.c.b16 %v1085, %v1084
        %v1106 = vpack.c.b16 %v1087, %v1086
        %v1107 = vpack.c.b16 %v1089, %v1088
        %v1108 = vpack.c.b16 %v1091, %v1090
        %v1109 = vpack.c.b16 %v1093, %v1092
        %vm1110 = vcmask 261120
        %v1112 = vsel %vm1110, %v1022, 0
        %v1115 = vsel %vm1110, %v1023, 0
        %v1118 = vsel %vm1110, %v1024, 0
        %v1121 = vsel %vm1110, %v1025, 0
        %v1124 = vsel %vm1110, %v1026, 0
        %v1127 = vsel %vm1110, %v1027, 0
        %v1130 = vsel %vm1110, %v1028, 0
        %v1133 = vsel %vm1110, %v1029, 0
        %v1136 = vsel %vm1110, %v1094, 0
        %v1139 = vsel %vm1110, %v1095, 0
        %v1142 = vsel %vm1110, %v1096, 0
        %v1145 = vsel %vm1110, %v1097, 0
        %v1148 = vsel %vm1110, %v1098, 0
        %v1151 = vsel %vm1110, %v1099, 0
        %v1154 = vsel %vm1110, %v1100, 0
        %v1157 = vsel %vm1110, %v1101, 0
        %v1160 = vsel %vm1110, %v1102, 0
        %v1163 = vsel %vm1110, %v1103, 0
        %v1166 = vsel %vm1110, %v1104, 0
        %v1169 = vsel %vm1110, %v1105, 0
        %v1172 = vsel %vm1110, %v1106, 0
        %v1175 = vsel %vm1110, %v1107, 0
        %v1178 = vsel %vm1110, %v1108, 0
        %v1181 = vsel %vm1110, %v1109, 0
        %1183 = vmatprep.subr.bf16.mxu0 0
        %1184 = vmatpush1.bf16.xpose.msra.mxu0 %v1157
        %1185 = vmatprep.subr.bf16.mxu0 0
        %1186 = vmatpush1.bf16.xpose.msra.mxu0 %v1154
        %1187 = vmatprep.subr.bf16.mxu0 0
        %1188 = vmatpush1.bf16.xpose.msra.mxu0 %v1151
        %1189 = vmatprep.subr.bf16.mxu0 0
        %1190 = vmatpush1.bf16.xpose.msra.mxu0 %v1148
        %1191 = vmatprep.subr.bf16.mxu0 0
        %1192 = vmatpush1.bf16.xpose.msra.mxu0 %v1145
        %1193 = vmatprep.subr.bf16.mxu0 0
        %1194 = vmatpush1.bf16.xpose.msra.mxu0 %v1142
        %1195 = vmatprep.subr.bf16.mxu0 0
        %1196 = vmatpush1.bf16.xpose.msra.mxu0 %v1139
        %1197 = vmatprep.subr.bf16.mxu0 0
        %1198 = vmatpush1.bf16.xpose.msra.mxu0 %v1136
        %1199 = vmatprep.subr.bf16.mxu0 0
        %1200 = vmatpush2.bf16.xpose.msra.mxu0 %v1181
        %1201 = vmatprep.subr.bf16.mxu0 0
        %1202 = vmatpush2.bf16.xpose.msra.mxu0 %v1178
        %1203 = vmatprep.subr.bf16.mxu0 0
        %1204 = vmatpush2.bf16.xpose.msra.mxu0 %v1175
        %1205 = vmatprep.subr.bf16.mxu0 0
        %1206 = vmatpush2.bf16.xpose.msra.mxu0 %v1172
        %1207 = vmatprep.subr.bf16.mxu0 0
        %1208 = vmatpush2.bf16.xpose.msra.mxu0 %v1169
        %1209 = vmatprep.subr.bf16.mxu0 0
        %1210 = vmatpush2.bf16.xpose.msra.mxu0 %v1166
        %1211 = vmatprep.subr.bf16.mxu0 0
        %1212 = vmatpush2.bf16.xpose.msra.mxu0 %v1163
        %1213 = vmatprep.subr.bf16.mxu0 0
        %1214 = vmatpush2.bf16.xpose.msra.mxu0 %v1160
        %1215 = vmatprep.mubr.bf16.mxu0 0
        %1216 = vmatmul.mubr.bf16.gmra.mxu0 %v1112
        %v1217 = vpop.f32.mrf.mxu0
        %v1218 = vadd.f32 %v983, %v1217
        %v1219 = vpop.f32.mrf.mxu0
        %v1220 = vadd.f32 %v987, %v1219
        %v1221 = vpop.f32.mrf.mxu0
        %v1222 = vadd.f32 %v983, %v1221
        %v1223 = vpop.f32.mrf.mxu0
        %v1224 = vadd.f32 %v987, %v1223
        %1225 = vmatprep.mubr.bf16.mxu0 0
        %1226 = vmatmul.mubr.bf16.gmra.mxu0 %v1115
        %v1227 = vpop.f32.mrf.mxu0
        %v1228 = vadd.f32 %v983, %v1227
        %v1229 = vpop.f32.mrf.mxu0
        %v1230 = vadd.f32 %v987, %v1229
        %v1231 = vpop.f32.mrf.mxu0
        %v1232 = vadd.f32 %v983, %v1231
        %v1233 = vpop.f32.mrf.mxu0
        %v1234 = vadd.f32 %v987, %v1233
        %1235 = vmatprep.mubr.bf16.mxu0 0
        %1236 = vmatmul.mubr.bf16.gmra.mxu0 %v1118
        %v1237 = vpop.f32.mrf.mxu0
        %v1238 = vadd.f32 %v983, %v1237
        %v1239 = vpop.f32.mrf.mxu0
        %v1240 = vadd.f32 %v987, %v1239
        %v1241 = vpop.f32.mrf.mxu0
        %v1242 = vadd.f32 %v983, %v1241
        %v1243 = vpop.f32.mrf.mxu0
        %v1244 = vadd.f32 %v987, %v1243
        %1245 = vmatprep.mubr.bf16.mxu0 0
        %1246 = vmatmul.mubr.bf16.gmra.mxu0 %v1121
        %v1247 = vpop.f32.mrf.mxu0
        %v1248 = vadd.f32 %v983, %v1247
        %v1249 = vpop.f32.mrf.mxu0
        %v1250 = vadd.f32 %v987, %v1249
        %v1251 = vpop.f32.mrf.mxu0
        %v1252 = vadd.f32 %v983, %v1251
        %v1253 = vpop.f32.mrf.mxu0
        %v1254 = vadd.f32 %v987, %v1253
        %1255 = vmatprep.mubr.bf16.mxu0 0
        %1256 = vmatmul.mubr.bf16.gmra.mxu0 %v1124
        %v1257 = vpop.f32.mrf.mxu0
        %v1258 = vadd.f32 %v983, %v1257
        %v1259 = vpop.f32.mrf.mxu0
        %v1260 = vadd.f32 %v987, %v1259
        %v1261 = vpop.f32.mrf.mxu0
        %v1262 = vadd.f32 %v983, %v1261
        %v1263 = vpop.f32.mrf.mxu0
        %v1264 = vadd.f32 %v987, %v1263
        %1265 = vmatprep.mubr.bf16.mxu0 0
        %1266 = vmatmul.mubr.bf16.gmra.mxu0 %v1127
        %v1267 = vpop.f32.mrf.mxu0
        %v1268 = vadd.f32 %v983, %v1267
        %v1269 = vpop.f32.mrf.mxu0
        %v1270 = vadd.f32 %v987, %v1269
        %v1271 = vpop.f32.mrf.mxu0
        %v1272 = vadd.f32 %v983, %v1271
        %v1273 = vpop.f32.mrf.mxu0
        %v1274 = vadd.f32 %v987, %v1273
        %1275 = vmatprep.mubr.bf16.mxu0 0
        %1276 = vmatmul.mubr.bf16.gmra.mxu0 %v1130
        %v1277 = vpop.f32.mrf.mxu0
        %v1278 = vadd.f32 %v983, %v1277
        %v1279 = vpop.f32.mrf.mxu0
        %v1280 = vadd.f32 %v987, %v1279
        %v1281 = vpop.f32.mrf.mxu0
        %v1282 = vadd.f32 %v983, %v1281
        %v1283 = vpop.f32.mrf.mxu0
        %v1284 = vadd.f32 %v987, %v1283
        %1285 = vmatprep.mubr.bf16.mxu0 0
        %1286 = vmatmul.mubr.bf16.gmra.mxu0 %v1133
        %v1287 = vpop.f32.mrf.mxu0
        %v1288 = vadd.f32 %v983, %v1287
        %v1289 = vpop.f32.mrf.mxu0
        %v1290 = vadd.f32 %v987, %v1289
        %v1291 = vpop.f32.mrf.mxu0
        %v1292 = vadd.f32 %v983, %v1291
        %v1293 = vpop.f32.mrf.mxu0
        %v1294 = vadd.f32 %v987, %v1293
        %1295 = vdwg.mxu0
        %v1296 = vmax.f32 %v1218, %v1220
        %1297 = vmax.xlane.f32.xlu0 %v1296
        %v1298 = vpop.xlane.xlu0 %1297
        %v1299 = vmax.f32 %v1222, %v1224
        %1300 = vmax.xlane.f32.xlu0 %v1299
        %v1301 = vpop.xlane.xlu0 %1300
        %v1302 = vmax.f32 %v1228, %v1230
        %1303 = vmax.xlane.f32.xlu0 %v1302
        %v1304 = vpop.xlane.xlu0 %1303
        %v1305 = vmax.f32 %v1232, %v1234
        %1306 = vmax.xlane.f32.xlu0 %v1305
        %v1307 = vpop.xlane.xlu0 %1306
        %v1308 = vmax.f32 %v1238, %v1240
        %1309 = vmax.xlane.f32.xlu0 %v1308
        %v1310 = vpop.xlane.xlu0 %1309
        %v1311 = vmax.f32 %v1242, %v1244
        %1312 = vmax.xlane.f32.xlu0 %v1311
        %v1313 = vpop.xlane.xlu0 %1312
        %v1314 = vmax.f32 %v1248, %v1250
        %1315 = vmax.xlane.f32.xlu0 %v1314
        %v1316 = vpop.xlane.xlu0 %1315
        %v1317 = vmax.f32 %v1252, %v1254
        %1318 = vmax.xlane.f32.xlu0 %v1317
        %v1319 = vpop.xlane.xlu0 %1318
        %v1320 = vmax.f32 %v1258, %v1260
        %1321 = vmax.xlane.f32.xlu0 %v1320
        %v1322 = vpop.xlane.xlu0 %1321
        %v1323 = vmax.f32 %v1262, %v1264
        %1324 = vmax.xlane.f32.xlu0 %v1323
        %v1325 = vpop.xlane.xlu0 %1324
        %v1326 = vmax.f32 %v1268, %v1270
        %1327 = vmax.xlane.f32.xlu0 %v1326
        %v1328 = vpop.xlane.xlu0 %1327
        %v1329 = vmax.f32 %v1272, %v1274
        %1330 = vmax.xlane.f32.xlu0 %v1329
        %v1331 = vpop.xlane.xlu0 %1330
        %v1332 = vmax.f32 %v1278, %v1280
        %1333 = vmax.xlane.f32.xlu0 %v1332
        %v1334 = vpop.xlane.xlu0 %1333
        %v1335 = vmax.f32 %v1282, %v1284
        %1336 = vmax.xlane.f32.xlu0 %v1335
        %v1337 = vpop.xlane.xlu0 %1336
        %v1338 = vmax.f32 %v1288, %v1290
        %1339 = vmax.xlane.f32.xlu0 %v1338
        %v1340 = vpop.xlane.xlu0 %1339
        %v1341 = vmax.f32 %v1292, %v1294
        %1342 = vmax.xlane.f32.xlu0 %v1341
        %v1343 = vpop.xlane.xlu0 %1342
        %v1344 = vsub.f32 %v1218, %v1298
        %v1345 = vsub.f32 %v1220, %v1298
        %v1346 = vsub.f32 %v1222, %v1301
        %v1347 = vsub.f32 %v1224, %v1301
        %v1348 = vsub.f32 %v1228, %v1304
        %v1349 = vsub.f32 %v1230, %v1304
        %v1350 = vsub.f32 %v1232, %v1307
        %v1351 = vsub.f32 %v1234, %v1307
        %v1352 = vsub.f32 %v1238, %v1310
        %v1353 = vsub.f32 %v1240, %v1310
        %v1354 = vsub.f32 %v1242, %v1313
        %v1355 = vsub.f32 %v1244, %v1313
        %v1356 = vsub.f32 %v1248, %v1316
        %v1357 = vsub.f32 %v1250, %v1316
        %v1358 = vsub.f32 %v1252, %v1319
        %v1359 = vsub.f32 %v1254, %v1319
        %v1360 = vsub.f32 %v1258, %v1322
        %v1361 = vsub.f32 %v1260, %v1322
        %v1362 = vsub.f32 %v1262, %v1325
        %v1363 = vsub.f32 %v1264, %v1325
        %v1364 = vsub.f32 %v1268, %v1328
        %v1365 = vsub.f32 %v1270, %v1328
        %v1366 = vsub.f32 %v1272, %v1331
        %v1367 = vsub.f32 %v1274, %v1331
        %v1368 = vsub.f32 %v1278, %v1334
        %v1369 = vsub.f32 %v1280, %v1334
        %v1370 = vsub.f32 %v1282, %v1337
        %v1371 = vsub.f32 %v1284, %v1337
        %v1372 = vsub.f32 %v1288, %v1340
        %v1373 = vsub.f32 %v1290, %v1340
        %v1374 = vsub.f32 %v1292, %v1343
        %v1375 = vsub.f32 %v1294, %v1343
        %v1376 = vmul.f32 %v1344, 1.442695
        %v1377 = vpow.pop %v1376
        %v1378 = vmul.f32 %v1345, 1.442695
        %v1379 = vpow.pop %v1378
        %v1380 = vmul.f32 %v1346, 1.442695
        %v1381 = vpow.pop %v1380
        %v1382 = vmul.f32 %v1347, 1.442695
        %v1383 = vpow.pop %v1382
        %v1384 = vmul.f32 %v1348, 1.442695
        %v1385 = vpow.pop %v1384
        %v1386 = vmul.f32 %v1349, 1.442695
        %v1387 = vpow.pop %v1386
        %v1388 = vmul.f32 %v1350, 1.442695
        %v1389 = vpow.pop %v1388
        %v1390 = vmul.f32 %v1351, 1.442695
        %v1391 = vpow.pop %v1390
        %v1392 = vmul.f32 %v1352, 1.442695
        %v1393 = vpow.pop %v1392
        %v1394 = vmul.f32 %v1353, 1.442695
        %v1395 = vpow.pop %v1394
        %v1396 = vmul.f32 %v1354, 1.442695
        %v1397 = vpow.pop %v1396
        %v1398 = vmul.f32 %v1355, 1.442695
        %v1399 = vpow.pop %v1398
        %v1400 = vmul.f32 %v1356, 1.442695
        %v1401 = vpow.pop %v1400
        %v1402 = vmul.f32 %v1357, 1.442695
        %v1403 = vpow.pop %v1402
        %v1404 = vmul.f32 %v1358, 1.442695
        %v1405 = vpow.pop %v1404
        %v1406 = vmul.f32 %v1359, 1.442695
        %v1407 = vpow.pop %v1406
        %v1408 = vmul.f32 %v1360, 1.442695
        %v1409 = vpow.pop %v1408
        %v1410 = vmul.f32 %v1361, 1.442695
        %v1411 = vpow.pop %v1410
        %v1412 = vmul.f32 %v1362, 1.442695
        %v1413 = vpow.pop %v1412
        %v1414 = vmul.f32 %v1363, 1.442695
        %v1415 = vpow.pop %v1414
        %v1416 = vmul.f32 %v1364, 1.442695
        %v1417 = vpow.pop %v1416
        %v1418 = vmul.f32 %v1365, 1.442695
        %v1419 = vpow.pop %v1418
        %v1420 = vmul.f32 %v1366, 1.442695
        %v1421 = vpow.pop %v1420
        %v1422 = vmul.f32 %v1367, 1.442695
        %v1423 = vpow.pop %v1422
        %v1424 = vmul.f32 %v1368, 1.442695
        %v1425 = vpow.pop %v1424
        %v1426 = vmul.f32 %v1369, 1.442695
        %v1427 = vpow.pop %v1426
        %v1428 = vmul.f32 %v1370, 1.442695
        %v1429 = vpow.pop %v1428
        %v1430 = vmul.f32 %v1371, 1.442695
        %v1431 = vpow.pop %v1430
        %v1432 = vmul.f32 %v1372, 1.442695
        %v1433 = vpow.pop %v1432
        %v1434 = vmul.f32 %v1373, 1.442695
        %v1435 = vpow.pop %v1434
        %v1436 = vmul.f32 %v1374, 1.442695
        %v1437 = vpow.pop %v1436
        %v1438 = vmul.f32 %v1375, 1.442695
        %v1439 = vpow.pop %v1438
        %v1440 = vadd.f32 %v1377, %v1379
        %1441 = vadd.xlane.f32.xlu0 %v1440
        %v1442 = vpop.xlane.xlu0 %1441
        %v1443 = vadd.f32 %v1381, %v1383
        %1444 = vadd.xlane.f32.xlu0 %v1443
        %v1445 = vpop.xlane.xlu0 %1444
        %v1446 = vadd.f32 %v1385, %v1387
        %1447 = vadd.xlane.f32.xlu0 %v1446
        %v1448 = vpop.xlane.xlu0 %1447
        %v1449 = vadd.f32 %v1389, %v1391
        %1450 = vadd.xlane.f32.xlu0 %v1449
        %v1451 = vpop.xlane.xlu0 %1450
        %v1452 = vadd.f32 %v1393, %v1395
        %1453 = vadd.xlane.f32.xlu0 %v1452
        %v1454 = vpop.xlane.xlu0 %1453
        %v1455 = vadd.f32 %v1397, %v1399
        %1456 = vadd.xlane.f32.xlu0 %v1455
        %v1457 = vpop.xlane.xlu0 %1456
        %v1458 = vadd.f32 %v1401, %v1403
        %1459 = vadd.xlane.f32.xlu0 %v1458
        %v1460 = vpop.xlane.xlu0 %1459
        %v1461 = vadd.f32 %v1405, %v1407
        %1462 = vadd.xlane.f32.xlu0 %v1461
        %v1463 = vpop.xlane.xlu0 %1462
        %v1464 = vadd.f32 %v1409, %v1411
        %1465 = vadd.xlane.f32.xlu0 %v1464
        %v1466 = vpop.xlane.xlu0 %1465
        %v1467 = vadd.f32 %v1413, %v1415
        %1468 = vadd.xlane.f32.xlu0 %v1467
        %v1469 = vpop.xlane.xlu0 %1468
        %v1470 = vadd.f32 %v1417, %v1419
        %1471 = vadd.xlane.f32.xlu0 %v1470
        %v1472 = vpop.xlane.xlu0 %1471
        %v1473 = vadd.f32 %v1421, %v1423
        %1474 = vadd.xlane.f32.xlu0 %v1473
        %v1475 = vpop.xlane.xlu0 %1474
        %v1476 = vadd.f32 %v1425, %v1427
        %1477 = vadd.xlane.f32.xlu0 %v1476
        %v1478 = vpop.xlane.xlu0 %1477
        %v1479 = vadd.f32 %v1429, %v1431
        %1480 = vadd.xlane.f32.xlu0 %v1479
        %v1481 = vpop.xlane.xlu0 %1480
        %v1482 = vadd.f32 %v1433, %v1435
        %1483 = vadd.xlane.f32.xlu0 %v1482
        %v1484 = vpop.xlane.xlu0 %1483
        %v1485 = vadd.f32 %v1437, %v1439
        %1486 = vadd.xlane.f32.xlu0 %v1485
        %v1487 = vpop.xlane.xlu0 %1486
        %v1488 = vrcp.pop %v1442
        %v1489 = vmul.f32 %v1377, %v1488
        %v1490 = vmul.f32 %v1379, %v1488
        %v1491 = vrcp.pop %v1445
        %v1492 = vmul.f32 %v1381, %v1491
        %v1493 = vmul.f32 %v1383, %v1491
        %v1494 = vrcp.pop %v1448
        %v1495 = vmul.f32 %v1385, %v1494
        %v1496 = vmul.f32 %v1387, %v1494
        %v1497 = vrcp.pop %v1451
        %v1498 = vmul.f32 %v1389, %v1497
        %v1499 = vmul.f32 %v1391, %v1497
        %v1500 = vrcp.pop %v1454
        %v1501 = vmul.f32 %v1393, %v1500
        %v1502 = vmul.f32 %v1395, %v1500
        %v1503 = vrcp.pop %v1457
        %v1504 = vmul.f32 %v1397, %v1503
        %v1505 = vmul.f32 %v1399, %v1503
        %v1506 = vrcp.pop %v1460
        %v1507 = vmul.f32 %v1401, %v1506
        %v1508 = vmul.f32 %v1403, %v1506
        %v1509 = vrcp.pop %v1463
        %v1510 = vmul.f32 %v1405, %v1509
        %v1511 = vmul.f32 %v1407, %v1509
        %v1512 = vrcp.pop %v1466
        %v1513 = vmul.f32 %v1409, %v1512
        %v1514 = vmul.f32 %v1411, %v1512
        %v1515 = vrcp.pop %v1469
        %v1516 = vmul.f32 %v1413, %v1515
        %v1517 = vmul.f32 %v1415, %v1515
        %v1518 = vrcp.pop %v1472
        %v1519 = vmul.f32 %v1417, %v1518
        %v1520 = vmul.f32 %v1419, %v1518
        %v1521 = vrcp.pop %v1475
        %v1522 = vmul.f32 %v1421, %v1521
        %v1523 = vmul.f32 %v1423, %v1521
        %v1524 = vrcp.pop %v1478
        %v1525 = vmul.f32 %v1425, %v1524
        %v1526 = vmul.f32 %v1427, %v1524
        %v1527 = vrcp.pop %v1481
        %v1528 = vmul.f32 %v1429, %v1527
        %v1529 = vmul.f32 %v1431, %v1527
        %v1530 = vrcp.pop %v1484
        %v1531 = vmul.f32 %v1433, %v1530
        %v1532 = vmul.f32 %v1435, %v1530
        %v1533 = vrcp.pop %v1487
        %v1534 = vmul.f32 %v1437, %v1533
        %v1535 = vmul.f32 %v1439, %v1533
        %v1536 = vpack.c.bf16 %v1492, %v1489
        %v1537 = vpack.c.bf16 %v1493, %v1490
        %v1538 = vpack.c.bf16 %v1498, %v1495
        %v1539 = vpack.c.bf16 %v1499, %v1496
        %v1540 = vpack.c.bf16 %v1504, %v1501
        %v1541 = vpack.c.bf16 %v1505, %v1502
        %v1542 = vpack.c.bf16 %v1510, %v1507
        %v1543 = vpack.c.bf16 %v1511, %v1508
        %v1544 = vpack.c.bf16 %v1516, %v1513
        %v1545 = vpack.c.bf16 %v1517, %v1514
        %v1546 = vpack.c.bf16 %v1522, %v1519
        %v1547 = vpack.c.bf16 %v1523, %v1520
        %v1548 = vpack.c.bf16 %v1528, %v1525
        %v1549 = vpack.c.bf16 %v1529, %v1526
        %v1550 = vpack.c.bf16 %v1534, %v1531
        %v1551 = vpack.c.bf16 %v1535, %v1532
        %v1584 = vunpack.c.l.b16 %v946
        %v1585 = vunpack.c.l.b16 %v947
        %v1586 = vunpack.c.l.b16 %v948
        %v1587 = vunpack.c.l.b16 %v949
        %v1588 = vunpack.c.l.b16 %v950
        %v1589 = vunpack.c.l.b16 %v951
        %v1590 = vunpack.c.l.b16 %v952
        %v1591 = vunpack.c.l.b16 %v953
        %v1592 = vunpack.c.l.b16 %v954
        %v1593 = vunpack.c.l.b16 %v955
        %v1594 = vunpack.c.l.b16 %v956
        %v1595 = vunpack.c.l.b16 %v957
        %v1596 = vunpack.c.l.b16 %v958
        %v1597 = vunpack.c.l.b16 %v959
        %v1598 = vunpack.c.l.b16 %v960
        %v1599 = vunpack.c.l.b16 %v961
        %v1600 = vunpack.c.l.b16 %v962
        %v1601 = vunpack.c.l.b16 %v963
        %v1602 = vunpack.c.l.b16 %v964
        %v1603 = vunpack.c.l.b16 %v965
        %v1604 = vunpack.c.l.b16 %v966
        %v1605 = vunpack.c.l.b16 %v967
        %v1606 = vunpack.c.l.b16 %v968
        %v1607 = vunpack.c.l.b16 %v969
        %v1608 = vunpack.c.l.b16 %v970
        %v1609 = vunpack.c.l.b16 %v971
        %v1610 = vunpack.c.l.b16 %v972
        %v1611 = vunpack.c.l.b16 %v973
        %v1612 = vunpack.c.l.b16 %v974
        %v1613 = vunpack.c.l.b16 %v975
        %v1614 = vunpack.c.l.b16 %v976
        %v1615 = vunpack.c.l.b16 %v977
        %v1616 = vpack.c.b16 %v1585, %v1584
        %v1617 = vpack.c.b16 %v1587, %v1586
        %v1618 = vpack.c.b16 %v1589, %v1588
        %v1619 = vpack.c.b16 %v1591, %v1590
        %v1620 = vpack.c.b16 %v1593, %v1592
        %v1621 = vpack.c.b16 %v1595, %v1594
        %v1622 = vpack.c.b16 %v1597, %v1596
        %v1623 = vpack.c.b16 %v1599, %v1598
        %v1624 = vpack.c.b16 %v1601, %v1600
        %v1625 = vpack.c.b16 %v1603, %v1602
        %v1626 = vpack.c.b16 %v1605, %v1604
        %v1627 = vpack.c.b16 %v1607, %v1606
        %v1628 = vpack.c.b16 %v1609, %v1608
        %v1629 = vpack.c.b16 %v1611, %v1610
        %v1630 = vpack.c.b16 %v1613, %v1612
        %v1631 = vpack.c.b16 %v1615, %v1614
        %1648 = vmatprep.subr.bf16.mxu0 0
        %1649 = vmatpush1.bf16.msra.mxu0 %v1623
        %1650 = vmatprep.subr.bf16.mxu0 0
        %1651 = vmatpush1.bf16.msra.mxu0 %v1622
        %1652 = vmatprep.subr.bf16.mxu0 0
        %1653 = vmatpush1.bf16.msra.mxu0 %v1621
        %1654 = vmatprep.subr.bf16.mxu0 0
        %1655 = vmatpush1.bf16.msra.mxu0 %v1620
        %1656 = vmatprep.subr.bf16.mxu0 0
        %1657 = vmatpush1.bf16.msra.mxu0 %v1619
        %1658 = vmatprep.subr.bf16.mxu0 0
        %1659 = vmatpush1.bf16.msra.mxu0 %v1618
        %1660 = vmatprep.subr.bf16.mxu0 0
        %1661 = vmatpush1.bf16.msra.mxu0 %v1617
        %1662 = vmatprep.subr.bf16.mxu0 0
        %1663 = vmatpush1.bf16.msra.mxu0 %v1616
        %1664 = vmatprep.subr.bf16.mxu0 0
        %1665 = vmatpush2.bf16.msra.mxu0 %v1631
        %1666 = vmatprep.subr.bf16.mxu0 0
        %1667 = vmatpush2.bf16.msra.mxu0 %v1630
        %1668 = vmatprep.subr.bf16.mxu0 0
        %1669 = vmatpush2.bf16.msra.mxu0 %v1629
        %1670 = vmatprep.subr.bf16.mxu0 0
        %1671 = vmatpush2.bf16.msra.mxu0 %v1628
        %1672 = vmatprep.subr.bf16.mxu0 0
        %1673 = vmatpush2.bf16.msra.mxu0 %v1627
        %1674 = vmatprep.subr.bf16.mxu0 0
        %1675 = vmatpush2.bf16.msra.mxu0 %v1626
        %1676 = vmatprep.subr.bf16.mxu0 0
        %1677 = vmatpush2.bf16.msra.mxu0 %v1625
        %1678 = vmatprep.subr.bf16.mxu0 0
        %1679 = vmatpush2.bf16.msra.mxu0 %v1624
        %1680 = vmatprep.mubr.bf16.mxu0 %v1537
        %1681 = vmatmul.mubr.bf16.gmra.mxu0 %v1536
        %v1682 = vpop.f32.mrf.mxu0
        %v1683 = vadd.f32 0.0, %v1682
        %v1684 = vpop.f32.mrf.mxu0
        %v1685 = vpop.f32.mrf.mxu0
        %v1686 = vadd.f32 0.0, %v1685
        %v1687 = vpop.f32.mrf.mxu0
        %1688 = vmatprep.mubr.bf16.mxu0 %v1539
        %1689 = vmatmul.mubr.bf16.gmra.mxu0 %v1538
        %v1690 = vpop.f32.mrf.mxu0
        %v1691 = vadd.f32 0.0, %v1690
        %v1692 = vpop.f32.mrf.mxu0
        %v1693 = vpop.f32.mrf.mxu0
        %v1694 = vadd.f32 0.0, %v1693
        %v1695 = vpop.f32.mrf.mxu0
        %1696 = vmatprep.mubr.bf16.mxu0 %v1541
        %1697 = vmatmul.mubr.bf16.gmra.mxu0 %v1540
        %v1698 = vpop.f32.mrf.mxu0
        %v1699 = vadd.f32 0.0, %v1698
        %v1700 = vpop.f32.mrf.mxu0
        %v1701 = vpop.f32.mrf.mxu0
        %v1702 = vadd.f32 0.0, %v1701
        %v1703 = vpop.f32.mrf.mxu0
        %1704 = vmatprep.mubr.bf16.mxu0 %v1543
        %1705 = vmatmul.mubr.bf16.gmra.mxu0 %v1542
        %v1706 = vpop.f32.mrf.mxu0
        %v1707 = vadd.f32 0.0, %v1706
        %v1708 = vpop.f32.mrf.mxu0
        %v1709 = vpop.f32.mrf.mxu0
        %v1710 = vadd.f32 0.0, %v1709
        %v1711 = vpop.f32.mrf.mxu0
        %1712 = vmatprep.mubr.bf16.mxu0 %v1545
        %1713 = vmatmul.mubr.bf16.gmra.mxu0 %v1544
        %v1714 = vpop.f32.mrf.mxu0
        %v1715 = vadd.f32 0.0, %v1714
        %v1716 = vpop.f32.mrf.mxu0
        %v1717 = vpop.f32.mrf.mxu0
        %v1718 = vadd.f32 0.0, %v1717
        %v1719 = vpop.f32.mrf.mxu0
        %1720 = vmatprep.mubr.bf16.mxu0 %v1547
        %1721 = vmatmul.mubr.bf16.gmra.mxu0 %v1546
        %v1722 = vpop.f32.mrf.mxu0
        %v1723 = vadd.f32 0.0, %v1722
        %v1724 = vpop.f32.mrf.mxu0
        %v1725 = vpop.f32.mrf.mxu0
        %v1726 = vadd.f32 0.0, %v1725
        %v1727 = vpop.f32.mrf.mxu0
        %1728 = vmatprep.mubr.bf16.mxu0 %v1549
        %1729 = vmatmul.mubr.bf16.gmra.mxu0 %v1548
        %v1730 = vpop.f32.mrf.mxu0
        %v1731 = vadd.f32 0.0, %v1730
        %v1732 = vpop.f32.mrf.mxu0
        %v1733 = vpop.f32.mrf.mxu0
        %v1734 = vadd.f32 0.0, %v1733
        %v1735 = vpop.f32.mrf.mxu0
        %1736 = vmatprep.mubr.bf16.mxu0 %v1551
        %1737 = vmatmul.mubr.bf16.gmra.mxu0 %v1550
        %v1738 = vpop.f32.mrf.mxu0
        %v1739 = vadd.f32 0.0, %v1738
        %v1740 = vpop.f32.mrf.mxu0
        %v1741 = vpop.f32.mrf.mxu0
        %v1742 = vadd.f32 0.0, %v1741
        %v1743 = vpop.f32.mrf.mxu0
        %1744 = vdwg.mxu0
        %v1745 = vpack.c.bf16 %v1686, %v1683
        %v1746 = vpack.c.bf16 %v1694, %v1691
        %v1747 = vpack.c.bf16 %v1702, %v1699
        %v1748 = vpack.c.bf16 %v1710, %v1707
        %v1749 = vpack.c.bf16 %v1718, %v1715
        %v1750 = vpack.c.bf16 %v1726, %v1723
        %v1751 = vpack.c.bf16 %v1734, %v1731
        %v1752 = vpack.c.bf16 %v1742, %v1739
        %v1753 = vld [vmem:[%s5] sm:$0xf]
        %v1754 = vld [vmem:[%s5 + $0x4] sm:$0xf]
        %v1755 = vld [vmem:[%s5 + $0x8] sm:$0xf]
        %v1756 = vld [vmem:[%s5 + $0xc] sm:$0xf]
        %1757 = vrot.lane.b32.xlu0 %v1022, 96
        %v1758 = vpop.permute.xlu0 %1757
        %1759 = vrot.lane.b32.xlu0 %v1023, 96
        %v1760 = vpop.permute.xlu0 %1759
        %1761 = vrot.lane.b32.xlu0 %v1024, 96
        %v1762 = vpop.permute.xlu0 %1761
        %1763 = vrot.lane.b32.xlu0 %v1025, 96
        %v1764 = vpop.permute.xlu0 %1763
        %1765 = vrot.lane.b32.xlu0 %v1026, 96
        %v1766 = vpop.permute.xlu0 %1765
        %1767 = vrot.lane.b32.xlu0 %v1027, 96
        %v1768 = vpop.permute.xlu0 %1767
        %1769 = vrot.lane.b32.xlu0 %v1028, 96
        %v1770 = vpop.permute.xlu0 %1769
        %1771 = vrot.lane.b32.xlu0 %v1029, 96
        %v1772 = vpop.permute.xlu0 %1771
        %1773 = vrot.lane.b32.xlu0 %v1094, 96
        %v1774 = vpop.permute.xlu0 %1773
        %1775 = vrot.lane.b32.xlu0 %v1095, 96
        %v1776 = vpop.permute.xlu0 %1775
        %1777 = vrot.lane.b32.xlu0 %v1096, 96
        %v1778 = vpop.permute.xlu0 %1777
        %1779 = vrot.lane.b32.xlu0 %v1097, 96
        %v1780 = vpop.permute.xlu0 %1779
        %1781 = vrot.lane.b32.xlu0 %v1098, 96
        %v1782 = vpop.permute.xlu0 %1781
        %1783 = vrot.lane.b32.xlu0 %v1099, 96
        %v1784 = vpop.permute.xlu0 %1783
        %1785 = vrot.lane.b32.xlu0 %v1100, 96
        %v1786 = vpop.permute.xlu0 %1785
        %1787 = vrot.lane.b32.xlu0 %v1101, 96
        %v1788 = vpop.permute.xlu0 %1787
        %1789 = vrot.lane.b32.xlu0 %v1102, 96
        %v1790 = vpop.permute.xlu0 %1789
        %1791 = vrot.lane.b32.xlu0 %v1103, 96
        %v1792 = vpop.permute.xlu0 %1791
        %1793 = vrot.lane.b32.xlu0 %v1104, 96
        %v1794 = vpop.permute.xlu0 %1793
        %1795 = vrot.lane.b32.xlu0 %v1105, 96
        %v1796 = vpop.permute.xlu0 %1795
        %1797 = vrot.lane.b32.xlu0 %v1106, 96
        %v1798 = vpop.permute.xlu0 %1797
        %1799 = vrot.lane.b32.xlu0 %v1107, 96
        %v1800 = vpop.permute.xlu0 %1799
        %1801 = vrot.lane.b32.xlu0 %v1108, 96
        %v1802 = vpop.permute.xlu0 %1801
        %1803 = vrot.lane.b32.xlu0 %v1109, 96
        %v1804 = vpop.permute.xlu0 %1803
        %v1806 = vsel %vm1110, %v1758, 0
        %v1809 = vsel %vm1110, %v1760, 0
        %v1812 = vsel %vm1110, %v1762, 0
        %v1815 = vsel %vm1110, %v1764, 0
        %v1818 = vsel %vm1110, %v1766, 0
        %v1821 = vsel %vm1110, %v1768, 0
        %v1824 = vsel %vm1110, %v1770, 0
        %v1827 = vsel %vm1110, %v1772, 0
        %v1830 = vsel %vm1110, %v1774, 0
        %v1833 = vsel %vm1110, %v1776, 0
        %v1836 = vsel %vm1110, %v1778, 0
        %v1839 = vsel %vm1110, %v1780, 0
        %v1842 = vsel %vm1110, %v1782, 0
        %v1845 = vsel %vm1110, %v1784, 0
        %v1848 = vsel %vm1110, %v1786, 0
        %v1851 = vsel %vm1110, %v1788, 0
        %v1854 = vsel %vm1110, %v1790, 0
        %v1857 = vsel %vm1110, %v1792, 0
        %v1860 = vsel %vm1110, %v1794, 0
        %v1863 = vsel %vm1110, %v1796, 0
        %v1866 = vsel %vm1110, %v1798, 0
        %v1869 = vsel %vm1110, %v1800, 0
        %v1872 = vsel %vm1110, %v1802, 0
        %v1875 = vsel %vm1110, %v1804, 0
        %1877 = vmatprep.subr.bf16.mxu0 0
        %1878 = vmatpush1.bf16.xpose.msra.mxu0 %v1851
        %1879 = vmatprep.subr.bf16.mxu0 0
        %1880 = vmatpush1.bf16.xpose.msra.mxu0 %v1848
        %1881 = vmatprep.subr.bf16.mxu0 0
        %1882 = vmatpush1.bf16.xpose.msra.mxu0 %v1845
        %1883 = vmatprep.subr.bf16.mxu0 0
        %1884 = vmatpush1.bf16.xpose.msra.mxu0 %v1842
        %1885 = vmatprep.subr.bf16.mxu0 0
        %1886 = vmatpush1.bf16.xpose.msra.mxu0 %v1839
        %1887 = vmatprep.subr.bf16.mxu0 0
        %1888 = vmatpush1.bf16.xpose.msra.mxu0 %v1836
        %1889 = vmatprep.subr.bf16.mxu0 0
        %1890 = vmatpush1.bf16.xpose.msra.mxu0 %v1833
        %1891 = vmatprep.subr.bf16.mxu0 0
        %1892 = vmatpush1.bf16.xpose.msra.mxu0 %v1830
        %1893 = vmatprep.subr.bf16.mxu0 0
        %1894 = vmatpush2.bf16.xpose.msra.mxu0 %v1875
        %1895 = vmatprep.subr.bf16.mxu0 0
        %1896 = vmatpush2.bf16.xpose.msra.mxu0 %v1872
        %1897 = vmatprep.subr.bf16.mxu0 0
        %1898 = vmatpush2.bf16.xpose.msra.mxu0 %v1869
        %1899 = vmatprep.subr.bf16.mxu0 0
        %1900 = vmatpush2.bf16.xpose.msra.mxu0 %v1866
        %1901 = vmatprep.subr.bf16.mxu0 0
        %1902 = vmatpush2.bf16.xpose.msra.mxu0 %v1863
        %1903 = vmatprep.subr.bf16.mxu0 0
        %1904 = vmatpush2.bf16.xpose.msra.mxu0 %v1860
        %1905 = vmatprep.subr.bf16.mxu0 0
        %1906 = vmatpush2.bf16.xpose.msra.mxu0 %v1857
        %1907 = vmatprep.subr.bf16.mxu0 0
        %1908 = vmatpush2.bf16.xpose.msra.mxu0 %v1854
        %1909 = vmatprep.mubr.bf16.mxu0 0
        %1910 = vmatmul.mubr.bf16.gmra.mxu0 %v1806
        %v1911 = vpop.f32.mrf.mxu0
        %v1912 = vadd.f32 %v983, %v1911
        %v1913 = vpop.f32.mrf.mxu0
        %v1914 = vadd.f32 %v987, %v1913
        %v1915 = vpop.f32.mrf.mxu0
        %v1916 = vadd.f32 %v983, %v1915
        %v1917 = vpop.f32.mrf.mxu0
        %v1918 = vadd.f32 %v987, %v1917
        %1919 = vmatprep.mubr.bf16.mxu0 0
        %1920 = vmatmul.mubr.bf16.gmra.mxu0 %v1809
        %v1921 = vpop.f32.mrf.mxu0
        %v1922 = vadd.f32 %v983, %v1921
        %v1923 = vpop.f32.mrf.mxu0
        %v1924 = vadd.f32 %v987, %v1923
        %v1925 = vpop.f32.mrf.mxu0
        %v1926 = vadd.f32 %v983, %v1925
        %v1927 = vpop.f32.mrf.mxu0
        %v1928 = vadd.f32 %v987, %v1927
        %1929 = vmatprep.mubr.bf16.mxu0 0
        %1930 = vmatmul.mubr.bf16.gmra.mxu0 %v1812
        %v1931 = vpop.f32.mrf.mxu0
        %v1932 = vadd.f32 %v983, %v1931
        %v1933 = vpop.f32.mrf.mxu0
        %v1934 = vadd.f32 %v987, %v1933
        %v1935 = vpop.f32.mrf.mxu0
        %v1936 = vadd.f32 %v983, %v1935
        %v1937 = vpop.f32.mrf.mxu0
        %v1938 = vadd.f32 %v987, %v1937
        %1939 = vmatprep.mubr.bf16.mxu0 0
        %1940 = vmatmul.mubr.bf16.gmra.mxu0 %v1815
        %v1941 = vpop.f32.mrf.mxu0
        %v1942 = vadd.f32 %v983, %v1941
        %v1943 = vpop.f32.mrf.mxu0
        %v1944 = vadd.f32 %v987, %v1943
        %v1945 = vpop.f32.mrf.mxu0
        %v1946 = vadd.f32 %v983, %v1945
        %v1947 = vpop.f32.mrf.mxu0
        %v1948 = vadd.f32 %v987, %v1947
        %1949 = vmatprep.mubr.bf16.mxu0 0
        %1950 = vmatmul.mubr.bf16.gmra.mxu0 %v1818
        %v1951 = vpop.f32.mrf.mxu0
        %v1952 = vadd.f32 %v983, %v1951
        %v1953 = vpop.f32.mrf.mxu0
        %v1954 = vadd.f32 %v987, %v1953
        %v1955 = vpop.f32.mrf.mxu0
        %v1956 = vadd.f32 %v983, %v1955
        %v1957 = vpop.f32.mrf.mxu0
        %v1958 = vadd.f32 %v987, %v1957
        %1959 = vmatprep.mubr.bf16.mxu0 0
        %1960 = vmatmul.mubr.bf16.gmra.mxu0 %v1821
        %v1961 = vpop.f32.mrf.mxu0
        %v1962 = vadd.f32 %v983, %v1961
        %v1963 = vpop.f32.mrf.mxu0
        %v1964 = vadd.f32 %v987, %v1963
        %v1965 = vpop.f32.mrf.mxu0
        %v1966 = vadd.f32 %v983, %v1965
        %v1967 = vpop.f32.mrf.mxu0
        %v1968 = vadd.f32 %v987, %v1967
        %1969 = vmatprep.mubr.bf16.mxu0 0
        %1970 = vmatmul.mubr.bf16.gmra.mxu0 %v1824
        %v1971 = vpop.f32.mrf.mxu0
        %v1972 = vadd.f32 %v983, %v1971
        %v1973 = vpop.f32.mrf.mxu0
        %v1974 = vadd.f32 %v987, %v1973
        %v1975 = vpop.f32.mrf.mxu0
        %v1976 = vadd.f32 %v983, %v1975
        %v1977 = vpop.f32.mrf.mxu0
        %v1978 = vadd.f32 %v987, %v1977
        %1979 = vmatprep.mubr.bf16.mxu0 0
        %1980 = vmatmul.mubr.bf16.gmra.mxu0 %v1827
        %v1981 = vpop.f32.mrf.mxu0
        %v1982 = vadd.f32 %v983, %v1981
        %v1983 = vpop.f32.mrf.mxu0
        %v1984 = vadd.f32 %v987, %v1983
        %v1985 = vpop.f32.mrf.mxu0
        %v1986 = vadd.f32 %v983, %v1985
        %v1987 = vpop.f32.mrf.mxu0
        %v1988 = vadd.f32 %v987, %v1987
        %1989 = vdwg.mxu0
        %v1990 = vmax.f32 %v1912, %v1914
        %1991 = vmax.xlane.f32.xlu0 %v1990
        %v1992 = vpop.xlane.xlu0 %1991
        %v1993 = vmax.f32 %v1916, %v1918
        %1994 = vmax.xlane.f32.xlu0 %v1993
        %v1995 = vpop.xlane.xlu0 %1994
        %v1996 = vmax.f32 %v1922, %v1924
        %1997 = vmax.xlane.f32.xlu0 %v1996
        %v1998 = vpop.xlane.xlu0 %1997
        %v1999 = vmax.f32 %v1926, %v1928
        %2000 = vmax.xlane.f32.xlu0 %v1999
        %v2001 = vpop.xlane.xlu0 %2000
        %v2002 = vmax.f32 %v1932, %v1934
        %2003 = vmax.xlane.f32.xlu0 %v2002
        %v2004 = vpop.xlane.xlu0 %2003
        %v2005 = vmax.f32 %v1936, %v1938
        %2006 = vmax.xlane.f32.xlu0 %v2005
        %v2007 = vpop.xlane.xlu0 %2006
        %v2008 = vmax.f32 %v1942, %v1944
        %2009 = vmax.xlane.f32.xlu0 %v2008
        %v2010 = vpop.xlane.xlu0 %2009
        %v2011 = vmax.f32 %v1946, %v1948
        %2012 = vmax.xlane.f32.xlu0 %v2011
        %v2013 = vpop.xlane.xlu0 %2012
        %v2014 = vmax.f32 %v1952, %v1954
        %2015 = vmax.xlane.f32.xlu0 %v2014
        %v2016 = vpop.xlane.xlu0 %2015
        %v2017 = vmax.f32 %v1956, %v1958
        %2018 = vmax.xlane.f32.xlu0 %v2017
        %v2019 = vpop.xlane.xlu0 %2018
        %v2020 = vmax.f32 %v1962, %v1964
        %2021 = vmax.xlane.f32.xlu0 %v2020
        %v2022 = vpop.xlane.xlu0 %2021
        %v2023 = vmax.f32 %v1966, %v1968
        %2024 = vmax.xlane.f32.xlu0 %v2023
        %v2025 = vpop.xlane.xlu0 %2024
        %v2026 = vmax.f32 %v1972, %v1974
        %2027 = vmax.xlane.f32.xlu0 %v2026
        %v2028 = vpop.xlane.xlu0 %2027
        %v2029 = vmax.f32 %v1976, %v1978
        %2030 = vmax.xlane.f32.xlu0 %v2029
        %v2031 = vpop.xlane.xlu0 %2030
        %v2032 = vmax.f32 %v1982, %v1984
        %2033 = vmax.xlane.f32.xlu0 %v2032
        %v2034 = vpop.xlane.xlu0 %2033
        %v2035 = vmax.f32 %v1986, %v1988
        %2036 = vmax.xlane.f32.xlu0 %v2035
        %v2037 = vpop.xlane.xlu0 %2036
        %v2038 = vsub.f32 %v1912, %v1992
        %v2039 = vsub.f32 %v1914, %v1992
        %v2040 = vsub.f32 %v1916, %v1995
        %v2041 = vsub.f32 %v1918, %v1995
        %v2042 = vsub.f32 %v1922, %v1998
        %v2043 = vsub.f32 %v1924, %v1998
        %v2044 = vsub.f32 %v1926, %v2001
        %v2045 = vsub.f32 %v1928, %v2001
        %v2046 = vsub.f32 %v1932, %v2004
        %v2047 = vsub.f32 %v1934, %v2004
        %v2048 = vsub.f32 %v1936, %v2007
        %v2049 = vsub.f32 %v1938, %v2007
        %v2050 = vsub.f32 %v1942, %v2010
        %v2051 = vsub.f32 %v1944, %v2010
        %v2052 = vsub.f32 %v1946, %v2013
        %v2053 = vsub.f32 %v1948, %v2013
        %v2054 = vsub.f32 %v1952, %v2016
        %v2055 = vsub.f32 %v1954, %v2016
        %v2056 = vsub.f32 %v1956, %v2019
        %v2057 = vsub.f32 %v1958, %v2019
        %v2058 = vsub.f32 %v1962, %v2022
        %v2059 = vsub.f32 %v1964, %v2022
        %v2060 = vsub.f32 %v1966, %v2025
        %v2061 = vsub.f32 %v1968, %v2025
        %v2062 = vsub.f32 %v1972, %v2028
        %v2063 = vsub.f32 %v1974, %v2028
        %v2064 = vsub.f32 %v1976, %v2031
        %v2065 = vsub.f32 %v1978, %v2031
        %v2066 = vsub.f32 %v1982, %v2034
        %v2067 = vsub.f32 %v1984, %v2034
        %v2068 = vsub.f32 %v1986, %v2037
        %v2069 = vsub.f32 %v1988, %v2037
        %v2070 = vmul.f32 %v2038, 1.442695
        %v2071 = vpow.pop %v2070
        %v2072 = vmul.f32 %v2039, 1.442695
        %v2073 = vpow.pop %v2072
        %v2074 = vmul.f32 %v2040, 1.442695
        %v2075 = vpow.pop %v2074
        %v2076 = vmul.f32 %v2041, 1.442695
        %v2077 = vpow.pop %v2076
        %v2078 = vmul.f32 %v2042, 1.442695
        %v2079 = vpow.pop %v2078
        %v2080 = vmul.f32 %v2043, 1.442695
        %v2081 = vpow.pop %v2080
        %v2082 = vmul.f32 %v2044, 1.442695
        %v2083 = vpow.pop %v2082
        %v2084 = vmul.f32 %v2045, 1.442695
        %v2085 = vpow.pop %v2084
        %v2086 = vmul.f32 %v2046, 1.442695
        %v2087 = vpow.pop %v2086
        %v2088 = vmul.f32 %v2047, 1.442695
        %v2089 = vpow.pop %v2088
        %v2090 = vmul.f32 %v2048, 1.442695
        %v2091 = vpow.pop %v2090
        %v2092 = vmul.f32 %v2049, 1.442695
        %v2093 = vpow.pop %v2092
        %v2094 = vmul.f32 %v2050, 1.442695
        %v2095 = vpow.pop %v2094
        %v2096 = vmul.f32 %v2051, 1.442695
        %v2097 = vpow.pop %v2096
        %v2098 = vmul.f32 %v2052, 1.442695
        %v2099 = vpow.pop %v2098
        %v2100 = vmul.f32 %v2053, 1.442695
        %v2101 = vpow.pop %v2100
        %v2102 = vmul.f32 %v2054, 1.442695
        %v2103 = vpow.pop %v2102
        %v2104 = vmul.f32 %v2055, 1.442695
        %v2105 = vpow.pop %v2104
        %v2106 = vmul.f32 %v2056, 1.442695
        %v2107 = vpow.pop %v2106
        %v2108 = vmul.f32 %v2057, 1.442695
        %v2109 = vpow.pop %v2108
        %v2110 = vmul.f32 %v2058, 1.442695
        %v2111 = vpow.pop %v2110
        %v2112 = vmul.f32 %v2059, 1.442695
        %v2113 = vpow.pop %v2112
        %v2114 = vmul.f32 %v2060, 1.442695
        %v2115 = vpow.pop %v2114
        %v2116 = vmul.f32 %v2061, 1.442695
        %v2117 = vpow.pop %v2116
        %v2118 = vmul.f32 %v2062, 1.442695
        %v2119 = vpow.pop %v2118
        %v2120 = vmul.f32 %v2063, 1.442695
        %v2121 = vpow.pop %v2120
        %v2122 = vmul.f32 %v2064, 1.442695
        %v2123 = vpow.pop %v2122
        %v2124 = vmul.f32 %v2065, 1.442695
        %v2125 = vpow.pop %v2124
        %v2126 = vmul.f32 %v2066, 1.442695
        %v2127 = vpow.pop %v2126
        %v2128 = vmul.f32 %v2067, 1.442695
        %v2129 = vpow.pop %v2128
        %v2130 = vmul.f32 %v2068, 1.442695
        %v2131 = vpow.pop %v2130
        %v2132 = vmul.f32 %v2069, 1.442695
        %v2133 = vpow.pop %v2132
        %v2134 = vadd.f32 %v2071, %v2073
        %2135 = vadd.xlane.f32.xlu0 %v2134
        %v2136 = vpop.xlane.xlu0 %2135
        %v2137 = vadd.f32 %v2075, %v2077
        %2138 = vadd.xlane.f32.xlu0 %v2137
        %v2139 = vpop.xlane.xlu0 %2138
        %v2140 = vadd.f32 %v2079, %v2081
        %2141 = vadd.xlane.f32.xlu0 %v2140
        %v2142 = vpop.xlane.xlu0 %2141
        %v2143 = vadd.f32 %v2083, %v2085
        %2144 = vadd.xlane.f32.xlu0 %v2143
        %v2145 = vpop.xlane.xlu0 %2144
        %v2146 = vadd.f32 %v2087, %v2089
        %2147 = vadd.xlane.f32.xlu0 %v2146
        %v2148 = vpop.xlane.xlu0 %2147
        %v2149 = vadd.f32 %v2091, %v2093
        %2150 = vadd.xlane.f32.xlu0 %v2149
        %v2151 = vpop.xlane.xlu0 %2150
        %v2152 = vadd.f32 %v2095, %v2097
        %2153 = vadd.xlane.f32.xlu0 %v2152
        %v2154 = vpop.xlane.xlu0 %2153
        %v2155 = vadd.f32 %v2099, %v2101
        %2156 = vadd.xlane.f32.xlu0 %v2155
        %v2157 = vpop.xlane.xlu0 %2156
        %v2158 = vadd.f32 %v2103, %v2105
        %2159 = vadd.xlane.f32.xlu0 %v2158
        %v2160 = vpop.xlane.xlu0 %2159
        %v2161 = vadd.f32 %v2107, %v2109
        %2162 = vadd.xlane.f32.xlu0 %v2161
        %v2163 = vpop.xlane.xlu0 %2162
        %v2164 = vadd.f32 %v2111, %v2113
        %2165 = vadd.xlane.f32.xlu0 %v2164
        %v2166 = vpop.xlane.xlu0 %2165
        %v2167 = vadd.f32 %v2115, %v2117
        %2168 = vadd.xlane.f32.xlu0 %v2167
        %v2169 = vpop.xlane.xlu0 %2168
        %v2170 = vadd.f32 %v2119, %v2121
        %2171 = vadd.xlane.f32.xlu0 %v2170
        %v2172 = vpop.xlane.xlu0 %2171
        %v2173 = vadd.f32 %v2123, %v2125
        %2174 = vadd.xlane.f32.xlu0 %v2173
        %v2175 = vpop.xlane.xlu0 %2174
        %v2176 = vadd.f32 %v2127, %v2129
        %2177 = vadd.xlane.f32.xlu0 %v2176
        %v2178 = vpop.xlane.xlu0 %2177
        %v2179 = vadd.f32 %v2131, %v2133
        %2180 = vadd.xlane.f32.xlu0 %v2179
        %v2181 = vpop.xlane.xlu0 %2180
        %v2182 = vrcp.pop %v2136
        %v2183 = vmul.f32 %v2071, %v2182
        %v2184 = vmul.f32 %v2073, %v2182
        %v2185 = vrcp.pop %v2139
        %v2186 = vmul.f32 %v2075, %v2185
        %v2187 = vmul.f32 %v2077, %v2185
        %v2188 = vrcp.pop %v2142
        %v2189 = vmul.f32 %v2079, %v2188
        %v2190 = vmul.f32 %v2081, %v2188
        %v2191 = vrcp.pop %v2145
        %v2192 = vmul.f32 %v2083, %v2191
        %v2193 = vmul.f32 %v2085, %v2191
        %v2194 = vrcp.pop %v2148
        %v2195 = vmul.f32 %v2087, %v2194
        %v2196 = vmul.f32 %v2089, %v2194
        %v2197 = vrcp.pop %v2151
        %v2198 = vmul.f32 %v2091, %v2197
        %v2199 = vmul.f32 %v2093, %v2197
        %v2200 = vrcp.pop %v2154
        %v2201 = vmul.f32 %v2095, %v2200
        %v2202 = vmul.f32 %v2097, %v2200
        %v2203 = vrcp.pop %v2157
        %v2204 = vmul.f32 %v2099, %v2203
        %v2205 = vmul.f32 %v2101, %v2203
        %v2206 = vrcp.pop %v2160
        %v2207 = vmul.f32 %v2103, %v2206
        %v2208 = vmul.f32 %v2105, %v2206
        %v2209 = vrcp.pop %v2163
        %v2210 = vmul.f32 %v2107, %v2209
        %v2211 = vmul.f32 %v2109, %v2209
        %v2212 = vrcp.pop %v2166
        %v2213 = vmul.f32 %v2111, %v2212
        %v2214 = vmul.f32 %v2113, %v2212
        %v2215 = vrcp.pop %v2169
        %v2216 = vmul.f32 %v2115, %v2215
        %v2217 = vmul.f32 %v2117, %v2215
        %v2218 = vrcp.pop %v2172
        %v2219 = vmul.f32 %v2119, %v2218
        %v2220 = vmul.f32 %v2121, %v2218
        %v2221 = vrcp.pop %v2175
        %v2222 = vmul.f32 %v2123, %v2221
        %v2223 = vmul.f32 %v2125, %v2221
        %v2224 = vrcp.pop %v2178
        %v2225 = vmul.f32 %v2127, %v2224
        %v2226 = vmul.f32 %v2129, %v2224
        %v2227 = vrcp.pop %v2181
        %v2228 = vmul.f32 %v2131, %v2227
        %v2229 = vmul.f32 %v2133, %v2227
        %v2230 = vpack.c.bf16 %v2186, %v2183
        %v2231 = vpack.c.bf16 %v2187, %v2184
        %v2232 = vpack.c.bf16 %v2192, %v2189
        %v2233 = vpack.c.bf16 %v2193, %v2190
        %v2234 = vpack.c.bf16 %v2198, %v2195
        %v2235 = vpack.c.bf16 %v2199, %v2196
        %v2236 = vpack.c.bf16 %v2204, %v2201
        %v2237 = vpack.c.bf16 %v2205, %v2202
        %v2238 = vpack.c.bf16 %v2210, %v2207
        %v2239 = vpack.c.bf16 %v2211, %v2208
        %v2240 = vpack.c.bf16 %v2216, %v2213
        %v2241 = vpack.c.bf16 %v2217, %v2214
        %v2242 = vpack.c.bf16 %v2222, %v2219
        %v2243 = vpack.c.bf16 %v2223, %v2220
        %v2244 = vpack.c.bf16 %v2228, %v2225
        %v2245 = vpack.c.bf16 %v2229, %v2226
        %2246 = vrot.lane.b32.xlu0 %v1616, 96
        %v2247 = vpop.permute.xlu0 %2246
        %2248 = vrot.lane.b32.xlu0 %v1617, 96
        %v2249 = vpop.permute.xlu0 %2248
        %2250 = vrot.lane.b32.xlu0 %v1618, 96
        %v2251 = vpop.permute.xlu0 %2250
        %2252 = vrot.lane.b32.xlu0 %v1619, 96
        %v2253 = vpop.permute.xlu0 %2252
        %2254 = vrot.lane.b32.xlu0 %v1620, 96
        %v2255 = vpop.permute.xlu0 %2254
        %2256 = vrot.lane.b32.xlu0 %v1621, 96
        %v2257 = vpop.permute.xlu0 %2256
        %2258 = vrot.lane.b32.xlu0 %v1622, 96
        %v2259 = vpop.permute.xlu0 %2258
        %2260 = vrot.lane.b32.xlu0 %v1623, 96
        %v2261 = vpop.permute.xlu0 %2260
        %2262 = vrot.lane.b32.xlu0 %v1624, 96
        %v2263 = vpop.permute.xlu0 %2262
        %2264 = vrot.lane.b32.xlu0 %v1625, 96
        %v2265 = vpop.permute.xlu0 %2264
        %2266 = vrot.lane.b32.xlu0 %v1626, 96
        %v2267 = vpop.permute.xlu0 %2266
        %2268 = vrot.lane.b32.xlu0 %v1627, 96
        %v2269 = vpop.permute.xlu0 %2268
        %2270 = vrot.lane.b32.xlu0 %v1628, 96
        %v2271 = vpop.permute.xlu0 %2270
        %2272 = vrot.lane.b32.xlu0 %v1629, 96
        %v2273 = vpop.permute.xlu0 %2272
        %2274 = vrot.lane.b32.xlu0 %v1630, 96
        %v2275 = vpop.permute.xlu0 %2274
        %2276 = vrot.lane.b32.xlu0 %v1631, 96
        %v2277 = vpop.permute.xlu0 %2276
        %2294 = vmatprep.subr.bf16.mxu0 0
        %2295 = vmatpush1.bf16.msra.mxu0 %v2261
        %2296 = vmatprep.subr.bf16.mxu0 0
        %2297 = vmatpush1.bf16.msra.mxu0 %v2259
        %2298 = vmatprep.subr.bf16.mxu0 0
        %2299 = vmatpush1.bf16.msra.mxu0 %v2257
        %2300 = vmatprep.subr.bf16.mxu0 0
        %2301 = vmatpush1.bf16.msra.mxu0 %v2255
        %2302 = vmatprep.subr.bf16.mxu0 0
        %2303 = vmatpush1.bf16.msra.mxu0 %v2253
        %2304 = vmatprep.subr.bf16.mxu0 0
        %2305 = vmatpush1.bf16.msra.mxu0 %v2251
        %2306 = vmatprep.subr.bf16.mxu0 0
        %2307 = vmatpush1.bf16.msra.mxu0 %v2249
        %2308 = vmatprep.subr.bf16.mxu0 0
        %2309 = vmatpush1.bf16.msra.mxu0 %v2247
        %2310 = vmatprep.subr.bf16.mxu0 0
        %2311 = vmatpush2.bf16.msra.mxu0 %v2277
        %2312 = vmatprep.subr.bf16.mxu0 0
        %2313 = vmatpush2.bf16.msra.mxu0 %v2275
        %2314 = vmatprep.subr.bf16.mxu0 0
        %2315 = vmatpush2.bf16.msra.mxu0 %v2273
        %2316 = vmatprep.subr.bf16.mxu0 0
        %2317 = vmatpush2.bf16.msra.mxu0 %v2271
        %2318 = vmatprep.subr.bf16.mxu0 0
        %2319 = vmatpush2.bf16.msra.mxu0 %v2269
        %2320 = vmatprep.subr.bf16.mxu0 0
        %2321 = vmatpush2.bf16.msra.mxu0 %v2267
        %2322 = vmatprep.subr.bf16.mxu0 0
        %2323 = vmatpush2.bf16.msra.mxu0 %v2265
        %2324 = vmatprep.subr.bf16.mxu0 0
        %2325 = vmatpush2.bf16.msra.mxu0 %v2263
        %2326 = vmatprep.mubr.bf16.mxu0 %v2231
        %2327 = vmatmul.mubr.bf16.gmra.mxu0 %v2230
        %v2328 = vpop.f32.mrf.mxu0
        %v2329 = vadd.f32 0.0, %v2328
        %v2330 = vpop.f32.mrf.mxu0
        %v2331 = vpop.f32.mrf.mxu0
        %v2332 = vadd.f32 0.0, %v2331
        %v2333 = vpop.f32.mrf.mxu0
        %2334 = vmatprep.mubr.bf16.mxu0 %v2233
        %2335 = vmatmul.mubr.bf16.gmra.mxu0 %v2232
        %v2336 = vpop.f32.mrf.mxu0
        %v2337 = vadd.f32 0.0, %v2336
        %v2338 = vpop.f32.mrf.mxu0
        %v2339 = vpop.f32.mrf.mxu0
        %v2340 = vadd.f32 0.0, %v2339
        %v2341 = vpop.f32.mrf.mxu0
        %2342 = vmatprep.mubr.bf16.mxu0 %v2235
        %2343 = vmatmul.mubr.bf16.gmra.mxu0 %v2234
        %v2344 = vpop.f32.mrf.mxu0
        %v2345 = vadd.f32 0.0, %v2344
        %v2346 = vpop.f32.mrf.mxu0
        %v2347 = vpop.f32.mrf.mxu0
        %v2348 = vadd.f32 0.0, %v2347
        %v2349 = vpop.f32.mrf.mxu0
        %2350 = vmatprep.mubr.bf16.mxu0 %v2237
        %2351 = vmatmul.mubr.bf16.gmra.mxu0 %v2236
        %v2352 = vpop.f32.mrf.mxu0
        %v2353 = vadd.f32 0.0, %v2352
        %v2354 = vpop.f32.mrf.mxu0
        %v2355 = vpop.f32.mrf.mxu0
        %v2356 = vadd.f32 0.0, %v2355
        %v2357 = vpop.f32.mrf.mxu0
        %2358 = vmatprep.mubr.bf16.mxu0 %v2239
        %2359 = vmatmul.mubr.bf16.gmra.mxu0 %v2238
        %v2360 = vpop.f32.mrf.mxu0
        %v2361 = vadd.f32 0.0, %v2360
        %v2362 = vpop.f32.mrf.mxu0
        %v2363 = vpop.f32.mrf.mxu0
        %v2364 = vadd.f32 0.0, %v2363
        %v2365 = vpop.f32.mrf.mxu0
        %2366 = vmatprep.mubr.bf16.mxu0 %v2241
        %2367 = vmatmul.mubr.bf16.gmra.mxu0 %v2240
        %v2368 = vpop.f32.mrf.mxu0
        %v2369 = vadd.f32 0.0, %v2368
        %v2370 = vpop.f32.mrf.mxu0
        %v2371 = vpop.f32.mrf.mxu0
        %v2372 = vadd.f32 0.0, %v2371
        %v2373 = vpop.f32.mrf.mxu0
        %2374 = vmatprep.mubr.bf16.mxu0 %v2243
        %2375 = vmatmul.mubr.bf16.gmra.mxu0 %v2242
        %v2376 = vpop.f32.mrf.mxu0
        %v2377 = vadd.f32 0.0, %v2376
        %v2378 = vpop.f32.mrf.mxu0
        %v2379 = vpop.f32.mrf.mxu0
        %v2380 = vadd.f32 0.0, %v2379
        %v2381 = vpop.f32.mrf.mxu0
        %2382 = vmatprep.mubr.bf16.mxu0 %v2245
        %2383 = vmatmul.mubr.bf16.gmra.mxu0 %v2244
        %v2384 = vpop.f32.mrf.mxu0
        %v2385 = vadd.f32 0.0, %v2384
        %v2386 = vpop.f32.mrf.mxu0
        %v2387 = vpop.f32.mrf.mxu0
        %v2388 = vadd.f32 0.0, %v2387
        %v2389 = vpop.f32.mrf.mxu0
        %2390 = vdwg.mxu0
        %v2391 = vpack.c.bf16 %v2332, %v2329
        %v2392 = vpack.c.bf16 %v2340, %v2337
        %v2393 = vpack.c.bf16 %v2348, %v2345
        %v2394 = vpack.c.bf16 %v2356, %v2353
        %v2395 = vpack.c.bf16 %v2364, %v2361
        %v2396 = vpack.c.bf16 %v2372, %v2369
        %v2397 = vpack.c.bf16 %v2380, %v2377
        %v2398 = vpack.c.bf16 %v2388, %v2385
        %s2399 = scalar_lea.vmem %s5, 16
        %v2400 = vld [vmem:[%s2399] sm:$0xf]
        %v2401 = vld [vmem:[%s2399 + $0x4] sm:$0xf]
        %v2402 = vld [vmem:[%s2399 + $0x8] sm:$0xf]
        %v2403 = vld [vmem:[%s2399 + $0xc] sm:$0xf]
        %v2408 = vunpack.c.l.b16 %v2400
        %v2409 = vunpack.c.l.b16 %v2401
        %v2410 = vunpack.c.l.b16 %v2402
        %v2411 = vunpack.c.l.b16 %v2403
        %v2412 = vpack.c.b16 %v2409, %v2408
        %v2413 = vpack.c.b16 %v2411, %v2410
        %v2417 = vsel %vm1110, %v2391, 0
        %v2420 = vsel %vm1110, %v2392, 0
        %v2423 = vsel %vm1110, %v2393, 0
        %v2426 = vsel %vm1110, %v2394, 0
        %v2429 = vsel %vm1110, %v2395, 0
        %v2432 = vsel %vm1110, %v2396, 0
        %v2435 = vsel %vm1110, %v2397, 0
        %v2438 = vsel %vm1110, %v2398, 0
        %2440 = vmatprep.subr.bf16.mxu0 0
        %2441 = vmatpush1.bf16.msra.mxu0 0
        %2442 = vmatprep.subr.bf16.mxu0 0
        %2443 = vmatpush1.bf16.msra.mxu0 0
        %2444 = vmatprep.subr.bf16.mxu0 0
        %2445 = vmatpush1.bf16.msra.mxu0 0
        %2446 = vmatprep.subr.bf16.mxu0 0
        %2447 = vmatpush1.bf16.msra.mxu0 0
        %2448 = vmatprep.subr.bf16.mxu0 0
        %2449 = vmatpush1.bf16.msra.mxu0 0
        %2450 = vmatprep.subr.bf16.mxu0 0
        %2451 = vmatpush1.bf16.msra.mxu0 0
        %2452 = vmatprep.subr.bf16.mxu0 0
        %2453 = vmatpush1.bf16.msra.mxu0 %v2413
        %2454 = vmatprep.subr.bf16.mxu0 0
        %2455 = vmatpush1.bf16.msra.mxu0 %v2412
        %2456 = vmatprep.subr.bf16.mxu0 0
        %2457 = vmatpush2.bf16.msra.mxu0 0
        %2458 = vmatprep.subr.bf16.mxu0 0
        %2459 = vmatpush2.bf16.msra.mxu0 0
        %2460 = vmatprep.subr.bf16.mxu0 0
        %2461 = vmatpush2.bf16.msra.mxu0 0
        %2462 = vmatprep.subr.bf16.mxu0 0
        %2463 = vmatpush2.bf16.msra.mxu0 0
        %2464 = vmatprep.subr.bf16.mxu0 0
        %2465 = vmatpush2.bf16.msra.mxu0 0
        %2466 = vmatprep.subr.bf16.mxu0 0
        %2467 = vmatpush2.bf16.msra.mxu0 0
        %2468 = vmatprep.subr.bf16.mxu0 0
        %2469 = vmatpush2.bf16.msra.mxu0 0
        %2470 = vmatprep.subr.bf16.mxu0 0
        %2471 = vmatpush2.bf16.msra.mxu0 0
        %2472 = vmatprep.mubr.bf16.mxu0 0
        %2473 = vmatmul.mubr.bf16.gmra.mxu0 %v2417
        %v2474 = vpop.f32.mrf.mxu0
        %v2475 = vadd.f32 0.0, %v2474
        %v2476 = vpop.f32.mrf.mxu0
        %v2477 = vpop.f32.mrf.mxu0
        %v2478 = vadd.f32 0.0, %v2477
        %v2479 = vpop.f32.mrf.mxu0
        %2480 = vmatprep.mubr.bf16.mxu0 0
        %2481 = vmatmul.mubr.bf16.gmra.mxu0 %v2420
        %v2482 = vpop.f32.mrf.mxu0
        %v2483 = vadd.f32 0.0, %v2482
        %v2484 = vpop.f32.mrf.mxu0
        %v2485 = vpop.f32.mrf.mxu0
        %v2486 = vadd.f32 0.0, %v2485
        %v2487 = vpop.f32.mrf.mxu0
        %2488 = vmatprep.mubr.bf16.mxu0 0
        %2489 = vmatmul.mubr.bf16.gmra.mxu0 %v2423
        %v2490 = vpop.f32.mrf.mxu0
        %v2491 = vadd.f32 0.0, %v2490
        %v2492 = vpop.f32.mrf.mxu0
        %v2493 = vpop.f32.mrf.mxu0
        %v2494 = vadd.f32 0.0, %v2493
        %v2495 = vpop.f32.mrf.mxu0
        %2496 = vmatprep.mubr.bf16.mxu0 0
        %2497 = vmatmul.mubr.bf16.gmra.mxu0 %v2426
        %v2498 = vpop.f32.mrf.mxu0
        %v2499 = vadd.f32 0.0, %v2498
        %v2500 = vpop.f32.mrf.mxu0
        %v2501 = vpop.f32.mrf.mxu0
        %v2502 = vadd.f32 0.0, %v2501
        %v2503 = vpop.f32.mrf.mxu0
        %2504 = vmatprep.mubr.bf16.mxu0 0
        %2505 = vmatmul.mubr.bf16.gmra.mxu0 %v2429
        %v2506 = vpop.f32.mrf.mxu0
        %v2507 = vadd.f32 0.0, %v2506
        %v2508 = vpop.f32.mrf.mxu0
        %v2509 = vpop.f32.mrf.mxu0
        %v2510 = vadd.f32 0.0, %v2509
        %v2511 = vpop.f32.mrf.mxu0
        %2512 = vmatprep.mubr.bf16.mxu0 0
        %2513 = vmatmul.mubr.bf16.gmra.mxu0 %v2432
        %v2514 = vpop.f32.mrf.mxu0
        %v2515 = vadd.f32 0.0, %v2514
        %v2516 = vpop.f32.mrf.mxu0
        %v2517 = vpop.f32.mrf.mxu0
        %v2518 = vadd.f32 0.0, %v2517
        %v2519 = vpop.f32.mrf.mxu0
        %2520 = vmatprep.mubr.bf16.mxu0 0
        %2521 = vmatmul.mubr.bf16.gmra.mxu0 %v2435
        %v2522 = vpop.f32.mrf.mxu0
        %v2523 = vadd.f32 0.0, %v2522
        %v2524 = vpop.f32.mrf.mxu0
        %v2525 = vpop.f32.mrf.mxu0
        %v2526 = vadd.f32 0.0, %v2525
        %v2527 = vpop.f32.mrf.mxu0
        %2528 = vmatprep.mubr.bf16.mxu0 0
        %2529 = vmatmul.mubr.bf16.gmra.mxu0 %v2438
        %v2530 = vpop.f32.mrf.mxu0
        %v2531 = vadd.f32 0.0, %v2530
        %v2532 = vpop.f32.mrf.mxu0
        %v2533 = vpop.f32.mrf.mxu0
        %v2534 = vadd.f32 0.0, %v2533
        %v2535 = vpop.f32.mrf.mxu0
        %2536 = vdwg.mxu0
        %v2541 = vunpack.c.l.b16 %v1753
        %v2542 = vunpack.c.l.b16 %v1754
        %v2543 = vunpack.c.l.b16 %v1755
        %v2544 = vunpack.c.l.b16 %v1756
        %v2545 = vpack.c.b16 %v2542, %v2541
        %v2546 = vpack.c.b16 %v2544, %v2543
        %v2550 = vsel %vm1110, %v1745, 0
        %v2553 = vsel %vm1110, %v1746, 0
        %v2556 = vsel %vm1110, %v1747, 0
        %v2559 = vsel %vm1110, %v1748, 0
        %v2562 = vsel %vm1110, %v1749, 0
        %v2565 = vsel %vm1110, %v1750, 0
        %v2568 = vsel %vm1110, %v1751, 0
        %v2571 = vsel %vm1110, %v1752, 0
        %2573 = vmatprep.subr.bf16.mxu0 0
        %2574 = vmatpush1.bf16.msra.mxu0 0
        %2575 = vmatprep.subr.bf16.mxu0 0
        %2576 = vmatpush1.bf16.msra.mxu0 0
        %2577 = vmatprep.subr.bf16.mxu0 0
        %2578 = vmatpush1.bf16.msra.mxu0 0
        %2579 = vmatprep.subr.bf16.mxu0 0
        %2580 = vmatpush1.bf16.msra.mxu0 0
        %2581 = vmatprep.subr.bf16.mxu0 0
        %2582 = vmatpush1.bf16.msra.mxu0 0
        %2583 = vmatprep.subr.bf16.mxu0 0
        %2584 = vmatpush1.bf16.msra.mxu0 0
        %2585 = vmatprep.subr.bf16.mxu0 0
        %2586 = vmatpush1.bf16.msra.mxu0 %v2546
        %2587 = vmatprep.subr.bf16.mxu0 0
        %2588 = vmatpush1.bf16.msra.mxu0 %v2545
        %2589 = vmatprep.subr.bf16.mxu0 0
        %2590 = vmatpush2.bf16.msra.mxu0 0
        %2591 = vmatprep.subr.bf16.mxu0 0
        %2592 = vmatpush2.bf16.msra.mxu0 0
        %2593 = vmatprep.subr.bf16.mxu0 0
        %2594 = vmatpush2.bf16.msra.mxu0 0
        %2595 = vmatprep.subr.bf16.mxu0 0
        %2596 = vmatpush2.bf16.msra.mxu0 0
        %2597 = vmatprep.subr.bf16.mxu0 0
        %2598 = vmatpush2.bf16.msra.mxu0 0
        %2599 = vmatprep.subr.bf16.mxu0 0
        %2600 = vmatpush2.bf16.msra.mxu0 0
        %2601 = vmatprep.subr.bf16.mxu0 0
        %2602 = vmatpush2.bf16.msra.mxu0 0
        %2603 = vmatprep.subr.bf16.mxu0 0
        %2604 = vmatpush2.bf16.msra.mxu0 0
        %2605 = vmatprep.mubr.bf16.mxu0 0
        %2606 = vmatmul.mubr.bf16.gmra.mxu0 %v2550
        %v2607 = vpop.f32.mrf.mxu0
        %v2608 = vadd.f32 %v2475, %v2607
        %v2609 = vpop.f32.mrf.mxu0
        %v2610 = vpop.f32.mrf.mxu0
        %v2611 = vadd.f32 %v2478, %v2610
        %v2612 = vpop.f32.mrf.mxu0
        %2613 = vmatprep.mubr.bf16.mxu0 0
        %2614 = vmatmul.mubr.bf16.gmra.mxu0 %v2553
        %v2615 = vpop.f32.mrf.mxu0
        %v2616 = vadd.f32 %v2483, %v2615
        %v2617 = vpop.f32.mrf.mxu0
        %v2618 = vpop.f32.mrf.mxu0
        %v2619 = vadd.f32 %v2486, %v2618
        %v2620 = vpop.f32.mrf.mxu0
        %2621 = vmatprep.mubr.bf16.mxu0 0
        %2622 = vmatmul.mubr.bf16.gmra.mxu0 %v2556
        %v2623 = vpop.f32.mrf.mxu0
        %v2624 = vadd.f32 %v2491, %v2623
        %v2625 = vpop.f32.mrf.mxu0
        %v2626 = vpop.f32.mrf.mxu0
        %v2627 = vadd.f32 %v2494, %v2626
        %v2628 = vpop.f32.mrf.mxu0
        %2629 = vmatprep.mubr.bf16.mxu0 0
        %2630 = vmatmul.mubr.bf16.gmra.mxu0 %v2559
        %v2631 = vpop.f32.mrf.mxu0
        %v2632 = vadd.f32 %v2499, %v2631
        %v2633 = vpop.f32.mrf.mxu0
        %v2634 = vpop.f32.mrf.mxu0
        %v2635 = vadd.f32 %v2502, %v2634
        %v2636 = vpop.f32.mrf.mxu0
        %2637 = vmatprep.mubr.bf16.mxu0 0
        %2638 = vmatmul.mubr.bf16.gmra.mxu0 %v2562
        %v2639 = vpop.f32.mrf.mxu0
        %v2640 = vadd.f32 %v2507, %v2639
        %v2641 = vpop.f32.mrf.mxu0
        %v2642 = vpop.f32.mrf.mxu0
        %v2643 = vadd.f32 %v2510, %v2642
        %v2644 = vpop.f32.mrf.mxu0
        %2645 = vmatprep.mubr.bf16.mxu0 0
        %2646 = vmatmul.mubr.bf16.gmra.mxu0 %v2565
        %v2647 = vpop.f32.mrf.mxu0
        %v2648 = vadd.f32 %v2515, %v2647
        %v2649 = vpop.f32.mrf.mxu0
        %v2650 = vpop.f32.mrf.mxu0
        %v2651 = vadd.f32 %v2518, %v2650
        %v2652 = vpop.f32.mrf.mxu0
        %2653 = vmatprep.mubr.bf16.mxu0 0
        %2654 = vmatmul.mubr.bf16.gmra.mxu0 %v2568
        %v2655 = vpop.f32.mrf.mxu0
        %v2656 = vadd.f32 %v2523, %v2655
        %v2657 = vpop.f32.mrf.mxu0
        %v2658 = vpop.f32.mrf.mxu0
        %v2659 = vadd.f32 %v2526, %v2658
        %v2660 = vpop.f32.mrf.mxu0
        %2661 = vmatprep.mubr.bf16.mxu0 0
        %2662 = vmatmul.mubr.bf16.gmra.mxu0 %v2571
        %v2663 = vpop.f32.mrf.mxu0
        %v2664 = vadd.f32 %v2531, %v2663
        %v2665 = vpop.f32.mrf.mxu0
        %v2666 = vpop.f32.mrf.mxu0
        %v2667 = vadd.f32 %v2534, %v2666
        %v2668 = vpop.f32.mrf.mxu0
        %2669 = vdwg.mxu0
        %2670 = vrot.lane.b32.xlu0 %v1022, 64
        %v2671 = vpop.permute.xlu0 %2670
        %2672 = vrot.lane.b32.xlu0 %v1023, 64
        %v2673 = vpop.permute.xlu0 %2672
        %2674 = vrot.lane.b32.xlu0 %v1024, 64
        %v2675 = vpop.permute.xlu0 %2674
        %2676 = vrot.lane.b32.xlu0 %v1025, 64
        %v2677 = vpop.permute.xlu0 %2676
        %2678 = vrot.lane.b32.xlu0 %v1026, 64
        %v2679 = vpop.permute.xlu0 %2678
        %2680 = vrot.lane.b32.xlu0 %v1027, 64
        %v2681 = vpop.permute.xlu0 %2680
        %2682 = vrot.lane.b32.xlu0 %v1028, 64
        %v2683 = vpop.permute.xlu0 %2682
        %2684 = vrot.lane.b32.xlu0 %v1029, 64
        %v2685 = vpop.permute.xlu0 %2684
        %2686 = vrot.lane.b32.xlu0 %v1094, 64
        %v2687 = vpop.permute.xlu0 %2686
        %2688 = vrot.lane.b32.xlu0 %v1095, 64
        %v2689 = vpop.permute.xlu0 %2688
        %2690 = vrot.lane.b32.xlu0 %v1096, 64
        %v2691 = vpop.permute.xlu0 %2690
        %2692 = vrot.lane.b32.xlu0 %v1097, 64
        %v2693 = vpop.permute.xlu0 %2692
        %2694 = vrot.lane.b32.xlu0 %v1098, 64
        %v2695 = vpop.permute.xlu0 %2694
        %2696 = vrot.lane.b32.xlu0 %v1099, 64
        %v2697 = vpop.permute.xlu0 %2696
        %2698 = vrot.lane.b32.xlu0 %v1100, 64
        %v2699 = vpop.permute.xlu0 %2698
        %2700 = vrot.lane.b32.xlu0 %v1101, 64
        %v2701 = vpop.permute.xlu0 %2700
        %2702 = vrot.lane.b32.xlu0 %v1102, 64
        %v2703 = vpop.permute.xlu0 %2702
        %2704 = vrot.lane.b32.xlu0 %v1103, 64
        %v2705 = vpop.permute.xlu0 %2704
        %2706 = vrot.lane.b32.xlu0 %v1104, 64
        %v2707 = vpop.permute.xlu0 %2706
        %2708 = vrot.lane.b32.xlu0 %v1105, 64
        %v2709 = vpop.permute.xlu0 %2708
        %2710 = vrot.lane.b32.xlu0 %v1106, 64
        %v2711 = vpop.permute.xlu0 %2710
        %2712 = vrot.lane.b32.xlu0 %v1107, 64
        %v2713 = vpop.permute.xlu0 %2712
        %2714 = vrot.lane.b32.xlu0 %v1108, 64
        %v2715 = vpop.permute.xlu0 %2714
        %2716 = vrot.lane.b32.xlu0 %v1109, 64
        %v2717 = vpop.permute.xlu0 %2716
        %v2719 = vsel %vm1110, %v2671, 0
        %v2722 = vsel %vm1110, %v2673, 0
        %v2725 = vsel %vm1110, %v2675, 0
        %v2728 = vsel %vm1110, %v2677, 0
        %v2731 = vsel %vm1110, %v2679, 0
        %v2734 = vsel %vm1110, %v2681, 0
        %v2737 = vsel %vm1110, %v2683, 0
        %v2740 = vsel %vm1110, %v2685, 0
        %v2743 = vsel %vm1110, %v2687, 0
        %v2746 = vsel %vm1110, %v2689, 0
        %v2749 = vsel %vm1110, %v2691, 0
        %v2752 = vsel %vm1110, %v2693, 0
        %v2755 = vsel %vm1110, %v2695, 0
        %v2758 = vsel %vm1110, %v2697, 0
        %v2761 = vsel %vm1110, %v2699, 0
        %v2764 = vsel %vm1110, %v2701, 0
        %v2767 = vsel %vm1110, %v2703, 0
        %v2770 = vsel %vm1110, %v2705, 0
        %v2773 = vsel %vm1110, %v2707, 0
        %v2776 = vsel %vm1110, %v2709, 0
        %v2779 = vsel %vm1110, %v2711, 0
        %v2782 = vsel %vm1110, %v2713, 0
        %v2785 = vsel %vm1110, %v2715, 0
        %v2788 = vsel %vm1110, %v2717, 0
        %2790 = vmatprep.subr.bf16.mxu0 0
        %2791 = vmatpush1.bf16.xpose.msra.mxu0 %v2764
        %2792 = vmatprep.subr.bf16.mxu0 0
        %2793 = vmatpush1.bf16.xpose.msra.mxu0 %v2761
        %2794 = vmatprep.subr.bf16.mxu0 0
        %2795 = vmatpush1.bf16.xpose.msra.mxu0 %v2758
        %2796 = vmatprep.subr.bf16.mxu0 0
        %2797 = vmatpush1.bf16.xpose.msra.mxu0 %v2755
        %2798 = vmatprep.subr.bf16.mxu0 0
        %2799 = vmatpush1.bf16.xpose.msra.mxu0 %v2752
        %2800 = vmatprep.subr.bf16.mxu0 0
        %2801 = vmatpush1.bf16.xpose.msra.mxu0 %v2749
        %2802 = vmatprep.subr.bf16.mxu0 0
        %2803 = vmatpush1.bf16.xpose.msra.mxu0 %v2746
        %2804 = vmatprep.subr.bf16.mxu0 0
        %2805 = vmatpush1.bf16.xpose.msra.mxu0 %v2743
        %2806 = vmatprep.subr.bf16.mxu0 0
        %2807 = vmatpush2.bf16.xpose.msra.mxu0 %v2788
        %2808 = vmatprep.subr.bf16.mxu0 0
        %2809 = vmatpush2.bf16.xpose.msra.mxu0 %v2785
        %2810 = vmatprep.subr.bf16.mxu0 0
        %2811 = vmatpush2.bf16.xpose.msra.mxu0 %v2782
        %2812 = vmatprep.subr.bf16.mxu0 0
        %2813 = vmatpush2.bf16.xpose.msra.mxu0 %v2779
        %2814 = vmatprep.subr.bf16.mxu0 0
        %2815 = vmatpush2.bf16.xpose.msra.mxu0 %v2776
        %2816 = vmatprep.subr.bf16.mxu0 0
        %2817 = vmatpush2.bf16.xpose.msra.mxu0 %v2773
        %2818 = vmatprep.subr.bf16.mxu0 0
        %2819 = vmatpush2.bf16.xpose.msra.mxu0 %v2770
        %2820 = vmatprep.subr.bf16.mxu0 0
        %2821 = vmatpush2.bf16.xpose.msra.mxu0 %v2767
        %2822 = vmatprep.mubr.bf16.mxu0 0
        %2823 = vmatmul.mubr.bf16.gmra.mxu0 %v2719
        %v2824 = vpop.f32.mrf.mxu0
        %v2825 = vadd.f32 %v983, %v2824
        %v2826 = vpop.f32.mrf.mxu0
        %v2827 = vadd.f32 %v987, %v2826
        %v2828 = vpop.f32.mrf.mxu0
        %v2829 = vadd.f32 %v983, %v2828
        %v2830 = vpop.f32.mrf.mxu0
        %v2831 = vadd.f32 %v987, %v2830
        %2832 = vmatprep.mubr.bf16.mxu0 0
        %2833 = vmatmul.mubr.bf16.gmra.mxu0 %v2722
        %v2834 = vpop.f32.mrf.mxu0
        %v2835 = vadd.f32 %v983, %v2834
        %v2836 = vpop.f32.mrf.mxu0
        %v2837 = vadd.f32 %v987, %v2836
        %v2838 = vpop.f32.mrf.mxu0
        %v2839 = vadd.f32 %v983, %v2838
        %v2840 = vpop.f32.mrf.mxu0
        %v2841 = vadd.f32 %v987, %v2840
        %2842 = vmatprep.mubr.bf16.mxu0 0
        %2843 = vmatmul.mubr.bf16.gmra.mxu0 %v2725
        %v2844 = vpop.f32.mrf.mxu0
        %v2845 = vadd.f32 %v983, %v2844
        %v2846 = vpop.f32.mrf.mxu0
        %v2847 = vadd.f32 %v987, %v2846
        %v2848 = vpop.f32.mrf.mxu0
        %v2849 = vadd.f32 %v983, %v2848
        %v2850 = vpop.f32.mrf.mxu0
        %v2851 = vadd.f32 %v987, %v2850
        %2852 = vmatprep.mubr.bf16.mxu0 0
        %2853 = vmatmul.mubr.bf16.gmra.mxu0 %v2728
        %v2854 = vpop.f32.mrf.mxu0
        %v2855 = vadd.f32 %v983, %v2854
        %v2856 = vpop.f32.mrf.mxu0
        %v2857 = vadd.f32 %v987, %v2856
        %v2858 = vpop.f32.mrf.mxu0
        %v2859 = vadd.f32 %v983, %v2858
        %v2860 = vpop.f32.mrf.mxu0
        %v2861 = vadd.f32 %v987, %v2860
        %2862 = vmatprep.mubr.bf16.mxu0 0
        %2863 = vmatmul.mubr.bf16.gmra.mxu0 %v2731
        %v2864 = vpop.f32.mrf.mxu0
        %v2865 = vadd.f32 %v983, %v2864
        %v2866 = vpop.f32.mrf.mxu0
        %v2867 = vadd.f32 %v987, %v2866
        %v2868 = vpop.f32.mrf.mxu0
        %v2869 = vadd.f32 %v983, %v2868
        %v2870 = vpop.f32.mrf.mxu0
        %v2871 = vadd.f32 %v987, %v2870
        %2872 = vmatprep.mubr.bf16.mxu0 0
        %2873 = vmatmul.mubr.bf16.gmra.mxu0 %v2734
        %v2874 = vpop.f32.mrf.mxu0
        %v2875 = vadd.f32 %v983, %v2874
        %v2876 = vpop.f32.mrf.mxu0
        %v2877 = vadd.f32 %v987, %v2876
        %v2878 = vpop.f32.mrf.mxu0
        %v2879 = vadd.f32 %v983, %v2878
        %v2880 = vpop.f32.mrf.mxu0
        %v2881 = vadd.f32 %v987, %v2880
        %2882 = vmatprep.mubr.bf16.mxu0 0
        %2883 = vmatmul.mubr.bf16.gmra.mxu0 %v2737
        %v2884 = vpop.f32.mrf.mxu0
        %v2885 = vadd.f32 %v983, %v2884
        %v2886 = vpop.f32.mrf.mxu0
        %v2887 = vadd.f32 %v987, %v2886
        %v2888 = vpop.f32.mrf.mxu0
        %v2889 = vadd.f32 %v983, %v2888
        %v2890 = vpop.f32.mrf.mxu0
        %v2891 = vadd.f32 %v987, %v2890
        %2892 = vmatprep.mubr.bf16.mxu0 0
        %2893 = vmatmul.mubr.bf16.gmra.mxu0 %v2740
        %v2894 = vpop.f32.mrf.mxu0
        %v2895 = vadd.f32 %v983, %v2894
        %v2896 = vpop.f32.mrf.mxu0
        %v2897 = vadd.f32 %v987, %v2896
        %v2898 = vpop.f32.mrf.mxu0
        %v2899 = vadd.f32 %v983, %v2898
        %v2900 = vpop.f32.mrf.mxu0
        %v2901 = vadd.f32 %v987, %v2900
        %2902 = vdwg.mxu0
        %v2903 = vmax.f32 %v2825, %v2827
        %2904 = vmax.xlane.f32.xlu0 %v2903
        %v2905 = vpop.xlane.xlu0 %2904
        %v2906 = vmax.f32 %v2829, %v2831
        %2907 = vmax.xlane.f32.xlu0 %v2906
        %v2908 = vpop.xlane.xlu0 %2907
        %v2909 = vmax.f32 %v2835, %v2837
        %2910 = vmax.xlane.f32.xlu0 %v2909
        %v2911 = vpop.xlane.xlu0 %2910
        %v2912 = vmax.f32 %v2839, %v2841
        %2913 = vmax.xlane.f32.xlu0 %v2912
        %v2914 = vpop.xlane.xlu0 %2913
        %v2915 = vmax.f32 %v2845, %v2847
        %2916 = vmax.xlane.f32.xlu0 %v2915
        %v2917 = vpop.xlane.xlu0 %2916
        %v2918 = vmax.f32 %v2849, %v2851
        %2919 = vmax.xlane.f32.xlu0 %v2918
        %v2920 = vpop.xlane.xlu0 %2919
        %v2921 = vmax.f32 %v2855, %v2857
        %2922 = vmax.xlane.f32.xlu0 %v2921
        %v2923 = vpop.xlane.xlu0 %2922
        %v2924 = vmax.f32 %v2859, %v2861
        %2925 = vmax.xlane.f32.xlu0 %v2924
        %v2926 = vpop.xlane.xlu0 %2925
        %v2927 = vmax.f32 %v2865, %v2867
        %2928 = vmax.xlane.f32.xlu0 %v2927
        %v2929 = vpop.xlane.xlu0 %2928
        %v2930 = vmax.f32 %v2869, %v2871
        %2931 = vmax.xlane.f32.xlu0 %v2930
        %v2932 = vpop.xlane.xlu0 %2931
        %v2933 = vmax.f32 %v2875, %v2877
        %2934 = vmax.xlane.f32.xlu0 %v2933
        %v2935 = vpop.xlane.xlu0 %2934
        %v2936 = vmax.f32 %v2879, %v2881
        %2937 = vmax.xlane.f32.xlu0 %v2936
        %v2938 = vpop.xlane.xlu0 %2937
        %v2939 = vmax.f32 %v2885, %v2887
        %2940 = vmax.xlane.f32.xlu0 %v2939
        %v2941 = vpop.xlane.xlu0 %2940
        %v2942 = vmax.f32 %v2889, %v2891
        %2943 = vmax.xlane.f32.xlu0 %v2942
        %v2944 = vpop.xlane.xlu0 %2943
        %v2945 = vmax.f32 %v2895, %v2897
        %2946 = vmax.xlane.f32.xlu0 %v2945
        %v2947 = vpop.xlane.xlu0 %2946
        %v2948 = vmax.f32 %v2899, %v2901
        %2949 = vmax.xlane.f32.xlu0 %v2948
        %v2950 = vpop.xlane.xlu0 %2949
        %v2951 = vsub.f32 %v2825, %v2905
        %v2952 = vsub.f32 %v2827, %v2905
        %v2953 = vsub.f32 %v2829, %v2908
        %v2954 = vsub.f32 %v2831, %v2908
        %v2955 = vsub.f32 %v2835, %v2911
        %v2956 = vsub.f32 %v2837, %v2911
        %v2957 = vsub.f32 %v2839, %v2914
        %v2958 = vsub.f32 %v2841, %v2914
        %v2959 = vsub.f32 %v2845, %v2917
        %v2960 = vsub.f32 %v2847, %v2917
        %v2961 = vsub.f32 %v2849, %v2920
        %v2962 = vsub.f32 %v2851, %v2920
        %v2963 = vsub.f32 %v2855, %v2923
        %v2964 = vsub.f32 %v2857, %v2923
        %v2965 = vsub.f32 %v2859, %v2926
        %v2966 = vsub.f32 %v2861, %v2926
        %v2967 = vsub.f32 %v2865, %v2929
        %v2968 = vsub.f32 %v2867, %v2929
        %v2969 = vsub.f32 %v2869, %v2932
        %v2970 = vsub.f32 %v2871, %v2932
        %v2971 = vsub.f32 %v2875, %v2935
        %v2972 = vsub.f32 %v2877, %v2935
        %v2973 = vsub.f32 %v2879, %v2938
        %v2974 = vsub.f32 %v2881, %v2938
        %v2975 = vsub.f32 %v2885, %v2941
        %v2976 = vsub.f32 %v2887, %v2941
        %v2977 = vsub.f32 %v2889, %v2944
        %v2978 = vsub.f32 %v2891, %v2944
        %v2979 = vsub.f32 %v2895, %v2947
        %v2980 = vsub.f32 %v2897, %v2947
        %v2981 = vsub.f32 %v2899, %v2950
        %v2982 = vsub.f32 %v2901, %v2950
        %v2983 = vmul.f32 %v2951, 1.442695
        %v2984 = vpow.pop %v2983
        %v2985 = vmul.f32 %v2952, 1.442695
        %v2986 = vpow.pop %v2985
        %v2987 = vmul.f32 %v2953, 1.442695
        %v2988 = vpow.pop %v2987
        %v2989 = vmul.f32 %v2954, 1.442695
        %v2990 = vpow.pop %v2989
        %v2991 = vmul.f32 %v2955, 1.442695
        %v2992 = vpow.pop %v2991
        %v2993 = vmul.f32 %v2956, 1.442695
        %v2994 = vpow.pop %v2993
        %v2995 = vmul.f32 %v2957, 1.442695
        %v2996 = vpow.pop %v2995
        %v2997 = vmul.f32 %v2958, 1.442695
        %v2998 = vpow.pop %v2997
        %v2999 = vmul.f32 %v2959, 1.442695
        %v3000 = vpow.pop %v2999
        %v3001 = vmul.f32 %v2960, 1.442695
        %v3002 = vpow.pop %v3001
        %v3003 = vmul.f32 %v2961, 1.442695
        %v3004 = vpow.pop %v3003
        %v3005 = vmul.f32 %v2962, 1.442695
        %v3006 = vpow.pop %v3005
        %v3007 = vmul.f32 %v2963, 1.442695
        %v3008 = vpow.pop %v3007
        %v3009 = vmul.f32 %v2964, 1.442695
        %v3010 = vpow.pop %v3009
        %v3011 = vmul.f32 %v2965, 1.442695
        %v3012 = vpow.pop %v3011
        %v3013 = vmul.f32 %v2966, 1.442695
        %v3014 = vpow.pop %v3013
        %v3015 = vmul.f32 %v2967, 1.442695
        %v3016 = vpow.pop %v3015
        %v3017 = vmul.f32 %v2968, 1.442695
        %v3018 = vpow.pop %v3017
        %v3019 = vmul.f32 %v2969, 1.442695
        %v3020 = vpow.pop %v3019
        %v3021 = vmul.f32 %v2970, 1.442695
        %v3022 = vpow.pop %v3021
        %v3023 = vmul.f32 %v2971, 1.442695
        %v3024 = vpow.pop %v3023
        %v3025 = vmul.f32 %v2972, 1.442695
        %v3026 = vpow.pop %v3025
        %v3027 = vmul.f32 %v2973, 1.442695
        %v3028 = vpow.pop %v3027
        %v3029 = vmul.f32 %v2974, 1.442695
        %v3030 = vpow.pop %v3029
        %v3031 = vmul.f32 %v2975, 1.442695
        %v3032 = vpow.pop %v3031
        %v3033 = vmul.f32 %v2976, 1.442695
        %v3034 = vpow.pop %v3033
        %v3035 = vmul.f32 %v2977, 1.442695
        %v3036 = vpow.pop %v3035
        %v3037 = vmul.f32 %v2978, 1.442695
        %v3038 = vpow.pop %v3037
        %v3039 = vmul.f32 %v2979, 1.442695
        %v3040 = vpow.pop %v3039
        %v3041 = vmul.f32 %v2980, 1.442695
        %v3042 = vpow.pop %v3041
        %v3043 = vmul.f32 %v2981, 1.442695
        %v3044 = vpow.pop %v3043
        %v3045 = vmul.f32 %v2982, 1.442695
        %v3046 = vpow.pop %v3045
        %v3047 = vadd.f32 %v2984, %v2986
        %3048 = vadd.xlane.f32.xlu0 %v3047
        %v3049 = vpop.xlane.xlu0 %3048
        %v3050 = vadd.f32 %v2988, %v2990
        %3051 = vadd.xlane.f32.xlu0 %v3050
        %v3052 = vpop.xlane.xlu0 %3051
        %v3053 = vadd.f32 %v2992, %v2994
        %3054 = vadd.xlane.f32.xlu0 %v3053
        %v3055 = vpop.xlane.xlu0 %3054
        %v3056 = vadd.f32 %v2996, %v2998
        %3057 = vadd.xlane.f32.xlu0 %v3056
        %v3058 = vpop.xlane.xlu0 %3057
        %v3059 = vadd.f32 %v3000, %v3002
        %3060 = vadd.xlane.f32.xlu0 %v3059
        %v3061 = vpop.xlane.xlu0 %3060
        %v3062 = vadd.f32 %v3004, %v3006
        %3063 = vadd.xlane.f32.xlu0 %v3062
        %v3064 = vpop.xlane.xlu0 %3063
        %v3065 = vadd.f32 %v3008, %v3010
        %3066 = vadd.xlane.f32.xlu0 %v3065
        %v3067 = vpop.xlane.xlu0 %3066
        %v3068 = vadd.f32 %v3012, %v3014
        %3069 = vadd.xlane.f32.xlu0 %v3068
        %v3070 = vpop.xlane.xlu0 %3069
        %v3071 = vadd.f32 %v3016, %v3018
        %3072 = vadd.xlane.f32.xlu0 %v3071
        %v3073 = vpop.xlane.xlu0 %3072
        %v3074 = vadd.f32 %v3020, %v3022
        %3075 = vadd.xlane.f32.xlu0 %v3074
        %v3076 = vpop.xlane.xlu0 %3075
        %v3077 = vadd.f32 %v3024, %v3026
        %3078 = vadd.xlane.f32.xlu0 %v3077
        %v3079 = vpop.xlane.xlu0 %3078
        %v3080 = vadd.f32 %v3028, %v3030
        %3081 = vadd.xlane.f32.xlu0 %v3080
        %v3082 = vpop.xlane.xlu0 %3081
        %v3083 = vadd.f32 %v3032, %v3034
        %3084 = vadd.xlane.f32.xlu0 %v3083
        %v3085 = vpop.xlane.xlu0 %3084
        %v3086 = vadd.f32 %v3036, %v3038
        %3087 = vadd.xlane.f32.xlu0 %v3086
        %v3088 = vpop.xlane.xlu0 %3087
        %v3089 = vadd.f32 %v3040, %v3042
        %3090 = vadd.xlane.f32.xlu0 %v3089
        %v3091 = vpop.xlane.xlu0 %3090
        %v3092 = vadd.f32 %v3044, %v3046
        %3093 = vadd.xlane.f32.xlu0 %v3092
        %v3094 = vpop.xlane.xlu0 %3093
        %v3095 = vrcp.pop %v3049
        %v3096 = vmul.f32 %v2984, %v3095
        %v3097 = vmul.f32 %v2986, %v3095
        %v3098 = vrcp.pop %v3052
        %v3099 = vmul.f32 %v2988, %v3098
        %v3100 = vmul.f32 %v2990, %v3098
        %v3101 = vrcp.pop %v3055
        %v3102 = vmul.f32 %v2992, %v3101
        %v3103 = vmul.f32 %v2994, %v3101
        %v3104 = vrcp.pop %v3058
        %v3105 = vmul.f32 %v2996, %v3104
        %v3106 = vmul.f32 %v2998, %v3104
        %v3107 = vrcp.pop %v3061
        %v3108 = vmul.f32 %v3000, %v3107
        %v3109 = vmul.f32 %v3002, %v3107
        %v3110 = vrcp.pop %v3064
        %v3111 = vmul.f32 %v3004, %v3110
        %v3112 = vmul.f32 %v3006, %v3110
        %v3113 = vrcp.pop %v3067
        %v3114 = vmul.f32 %v3008, %v3113
        %v3115 = vmul.f32 %v3010, %v3113
        %v3116 = vrcp.pop %v3070
        %v3117 = vmul.f32 %v3012, %v3116
        %v3118 = vmul.f32 %v3014, %v3116
        %v3119 = vrcp.pop %v3073
        %v3120 = vmul.f32 %v3016, %v3119
        %v3121 = vmul.f32 %v3018, %v3119
        %v3122 = vrcp.pop %v3076
        %v3123 = vmul.f32 %v3020, %v3122
        %v3124 = vmul.f32 %v3022, %v3122
        %v3125 = vrcp.pop %v3079
        %v3126 = vmul.f32 %v3024, %v3125
        %v3127 = vmul.f32 %v3026, %v3125
        %v3128 = vrcp.pop %v3082
        %v3129 = vmul.f32 %v3028, %v3128
        %v3130 = vmul.f32 %v3030, %v3128
        %v3131 = vrcp.pop %v3085
        %v3132 = vmul.f32 %v3032, %v3131
        %v3133 = vmul.f32 %v3034, %v3131
        %v3134 = vrcp.pop %v3088
        %v3135 = vmul.f32 %v3036, %v3134
        %v3136 = vmul.f32 %v3038, %v3134
        %v3137 = vrcp.pop %v3091
        %v3138 = vmul.f32 %v3040, %v3137
        %v3139 = vmul.f32 %v3042, %v3137
        %v3140 = vrcp.pop %v3094
        %v3141 = vmul.f32 %v3044, %v3140
        %v3142 = vmul.f32 %v3046, %v3140
        %v3143 = vpack.c.bf16 %v3099, %v3096
        %v3144 = vpack.c.bf16 %v3100, %v3097
        %v3145 = vpack.c.bf16 %v3105, %v3102
        %v3146 = vpack.c.bf16 %v3106, %v3103
        %v3147 = vpack.c.bf16 %v3111, %v3108
        %v3148 = vpack.c.bf16 %v3112, %v3109
        %v3149 = vpack.c.bf16 %v3117, %v3114
        %v3150 = vpack.c.bf16 %v3118, %v3115
        %v3151 = vpack.c.bf16 %v3123, %v3120
        %v3152 = vpack.c.bf16 %v3124, %v3121
        %v3153 = vpack.c.bf16 %v3129, %v3126
        %v3154 = vpack.c.bf16 %v3130, %v3127
        %v3155 = vpack.c.bf16 %v3135, %v3132
        %v3156 = vpack.c.bf16 %v3136, %v3133
        %v3157 = vpack.c.bf16 %v3141, %v3138
        %v3158 = vpack.c.bf16 %v3142, %v3139
        %3159 = vrot.lane.b32.xlu0 %v1616, 64
        %v3160 = vpop.permute.xlu0 %3159
        %3161 = vrot.lane.b32.xlu0 %v1617, 64
        %v3162 = vpop.permute.xlu0 %3161
        %3163 = vrot.lane.b32.xlu0 %v1618, 64
        %v3164 = vpop.permute.xlu0 %3163
        %3165 = vrot.lane.b32.xlu0 %v1619, 64
        %v3166 = vpop.permute.xlu0 %3165
        %3167 = vrot.lane.b32.xlu0 %v1620, 64
        %v3168 = vpop.permute.xlu0 %3167
        %3169 = vrot.lane.b32.xlu0 %v1621, 64
        %v3170 = vpop.permute.xlu0 %3169
        %3171 = vrot.lane.b32.xlu0 %v1622, 64
        %v3172 = vpop.permute.xlu0 %3171
        %3173 = vrot.lane.b32.xlu0 %v1623, 64
        %v3174 = vpop.permute.xlu0 %3173
        %3175 = vrot.lane.b32.xlu0 %v1624, 64
        %v3176 = vpop.permute.xlu0 %3175
        %3177 = vrot.lane.b32.xlu0 %v1625, 64
        %v3178 = vpop.permute.xlu0 %3177
        %3179 = vrot.lane.b32.xlu0 %v1626, 64
        %v3180 = vpop.permute.xlu0 %3179
        %3181 = vrot.lane.b32.xlu0 %v1627, 64
        %v3182 = vpop.permute.xlu0 %3181
        %3183 = vrot.lane.b32.xlu0 %v1628, 64
        %v3184 = vpop.permute.xlu0 %3183
        %3185 = vrot.lane.b32.xlu0 %v1629, 64
        %v3186 = vpop.permute.xlu0 %3185
        %3187 = vrot.lane.b32.xlu0 %v1630, 64
        %v3188 = vpop.permute.xlu0 %3187
        %3189 = vrot.lane.b32.xlu0 %v1631, 64
        %v3190 = vpop.permute.xlu0 %3189
        %3207 = vmatprep.subr.bf16.mxu0 0
        %3208 = vmatpush1.bf16.msra.mxu0 %v3174
        %3209 = vmatprep.subr.bf16.mxu0 0
        %3210 = vmatpush1.bf16.msra.mxu0 %v3172
        %3211 = vmatprep.subr.bf16.mxu0 0
        %3212 = vmatpush1.bf16.msra.mxu0 %v3170
        %3213 = vmatprep.subr.bf16.mxu0 0
        %3214 = vmatpush1.bf16.msra.mxu0 %v3168
        %3215 = vmatprep.subr.bf16.mxu0 0
        %3216 = vmatpush1.bf16.msra.mxu0 %v3166
        %3217 = vmatprep.subr.bf16.mxu0 0
        %3218 = vmatpush1.bf16.msra.mxu0 %v3164
        %3219 = vmatprep.subr.bf16.mxu0 0
        %3220 = vmatpush1.bf16.msra.mxu0 %v3162
        %3221 = vmatprep.subr.bf16.mxu0 0
        %3222 = vmatpush1.bf16.msra.mxu0 %v3160
        %3223 = vmatprep.subr.bf16.mxu0 0
        %3224 = vmatpush2.bf16.msra.mxu0 %v3190
        %3225 = vmatprep.subr.bf16.mxu0 0
        %3226 = vmatpush2.bf16.msra.mxu0 %v3188
        %3227 = vmatprep.subr.bf16.mxu0 0
        %3228 = vmatpush2.bf16.msra.mxu0 %v3186
        %3229 = vmatprep.subr.bf16.mxu0 0
        %3230 = vmatpush2.bf16.msra.mxu0 %v3184
        %3231 = vmatprep.subr.bf16.mxu0 0
        %3232 = vmatpush2.bf16.msra.mxu0 %v3182
        %3233 = vmatprep.subr.bf16.mxu0 0
        %3234 = vmatpush2.bf16.msra.mxu0 %v3180
        %3235 = vmatprep.subr.bf16.mxu0 0
        %3236 = vmatpush2.bf16.msra.mxu0 %v3178
        %3237 = vmatprep.subr.bf16.mxu0 0
        %3238 = vmatpush2.bf16.msra.mxu0 %v3176
        %3239 = vmatprep.mubr.bf16.mxu0 %v3144
        %3240 = vmatmul.mubr.bf16.gmra.mxu0 %v3143
        %v3241 = vpop.f32.mrf.mxu0
        %v3242 = vadd.f32 0.0, %v3241
        %v3243 = vpop.f32.mrf.mxu0
        %v3244 = vpop.f32.mrf.mxu0
        %v3245 = vadd.f32 0.0, %v3244
        %v3246 = vpop.f32.mrf.mxu0
        %3247 = vmatprep.mubr.bf16.mxu0 %v3146
        %3248 = vmatmul.mubr.bf16.gmra.mxu0 %v3145
        %v3249 = vpop.f32.mrf.mxu0
        %v3250 = vadd.f32 0.0, %v3249
        %v3251 = vpop.f32.mrf.mxu0
        %v3252 = vpop.f32.mrf.mxu0
        %v3253 = vadd.f32 0.0, %v3252
        %v3254 = vpop.f32.mrf.mxu0
        %3255 = vmatprep.mubr.bf16.mxu0 %v3148
        %3256 = vmatmul.mubr.bf16.gmra.mxu0 %v3147
        %v3257 = vpop.f32.mrf.mxu0
        %v3258 = vadd.f32 0.0, %v3257
        %v3259 = vpop.f32.mrf.mxu0
        %v3260 = vpop.f32.mrf.mxu0
        %v3261 = vadd.f32 0.0, %v3260
        %v3262 = vpop.f32.mrf.mxu0
        %3263 = vmatprep.mubr.bf16.mxu0 %v3150
        %3264 = vmatmul.mubr.bf16.gmra.mxu0 %v3149
        %v3265 = vpop.f32.mrf.mxu0
        %v3266 = vadd.f32 0.0, %v3265
        %v3267 = vpop.f32.mrf.mxu0
        %v3268 = vpop.f32.mrf.mxu0
        %v3269 = vadd.f32 0.0, %v3268
        %v3270 = vpop.f32.mrf.mxu0
        %3271 = vmatprep.mubr.bf16.mxu0 %v3152
        %3272 = vmatmul.mubr.bf16.gmra.mxu0 %v3151
        %v3273 = vpop.f32.mrf.mxu0
        %v3274 = vadd.f32 0.0, %v3273
        %v3275 = vpop.f32.mrf.mxu0
        %v3276 = vpop.f32.mrf.mxu0
        %v3277 = vadd.f32 0.0, %v3276
        %v3278 = vpop.f32.mrf.mxu0
        %3279 = vmatprep.mubr.bf16.mxu0 %v3154
        %3280 = vmatmul.mubr.bf16.gmra.mxu0 %v3153
        %v3281 = vpop.f32.mrf.mxu0
        %v3282 = vadd.f32 0.0, %v3281
        %v3283 = vpop.f32.mrf.mxu0
        %v3284 = vpop.f32.mrf.mxu0
        %v3285 = vadd.f32 0.0, %v3284
        %v3286 = vpop.f32.mrf.mxu0
        %3287 = vmatprep.mubr.bf16.mxu0 %v3156
        %3288 = vmatmul.mubr.bf16.gmra.mxu0 %v3155
        %v3289 = vpop.f32.mrf.mxu0
        %v3290 = vadd.f32 0.0, %v3289
        %v3291 = vpop.f32.mrf.mxu0
        %v3292 = vpop.f32.mrf.mxu0
        %v3293 = vadd.f32 0.0, %v3292
        %v3294 = vpop.f32.mrf.mxu0
        %3295 = vmatprep.mubr.bf16.mxu0 %v3158
        %3296 = vmatmul.mubr.bf16.gmra.mxu0 %v3157
        %v3297 = vpop.f32.mrf.mxu0
        %v3298 = vadd.f32 0.0, %v3297
        %v3299 = vpop.f32.mrf.mxu0
        %v3300 = vpop.f32.mrf.mxu0
        %v3301 = vadd.f32 0.0, %v3300
        %v3302 = vpop.f32.mrf.mxu0
        %3303 = vdwg.mxu0
        %v3304 = vpack.c.bf16 %v3245, %v3242
        %v3305 = vpack.c.bf16 %v3253, %v3250
        %v3306 = vpack.c.bf16 %v3261, %v3258
        %v3307 = vpack.c.bf16 %v3269, %v3266
        %v3308 = vpack.c.bf16 %v3277, %v3274
        %v3309 = vpack.c.bf16 %v3285, %v3282
        %v3310 = vpack.c.bf16 %v3293, %v3290
        %v3311 = vpack.c.bf16 %v3301, %v3298
        %s3312 = scalar_lea.vmem %s5, 32
        %v3313 = vld [vmem:[%s3312] sm:$0xf]
        %v3314 = vld [vmem:[%s3312 + $0x4] sm:$0xf]
        %v3315 = vld [vmem:[%s3312 + $0x8] sm:$0xf]
        %v3316 = vld [vmem:[%s3312 + $0xc] sm:$0xf]
        %v3321 = vunpack.c.l.b16 %v3313
        %v3322 = vunpack.c.l.b16 %v3314
        %v3323 = vunpack.c.l.b16 %v3315
        %v3324 = vunpack.c.l.b16 %v3316
        %v3325 = vpack.c.b16 %v3322, %v3321
        %v3326 = vpack.c.b16 %v3324, %v3323
        %v3330 = vsel %vm1110, %v3304, 0
        %v3333 = vsel %vm1110, %v3305, 0
        %v3336 = vsel %vm1110, %v3306, 0
        %v3339 = vsel %vm1110, %v3307, 0
        %v3342 = vsel %vm1110, %v3308, 0
        %v3345 = vsel %vm1110, %v3309, 0
        %v3348 = vsel %vm1110, %v3310, 0
        %v3351 = vsel %vm1110, %v3311, 0
        %3353 = vmatprep.subr.bf16.mxu0 0
        %3354 = vmatpush1.bf16.msra.mxu0 0
        %3355 = vmatprep.subr.bf16.mxu0 0
        %3356 = vmatpush1.bf16.msra.mxu0 0
        %3357 = vmatprep.subr.bf16.mxu0 0
        %3358 = vmatpush1.bf16.msra.mxu0 0
        %3359 = vmatprep.subr.bf16.mxu0 0
        %3360 = vmatpush1.bf16.msra.mxu0 0
        %3361 = vmatprep.subr.bf16.mxu0 0
        %3362 = vmatpush1.bf16.msra.mxu0 0
        %3363 = vmatprep.subr.bf16.mxu0 0
        %3364 = vmatpush1.bf16.msra.mxu0 0
        %3365 = vmatprep.subr.bf16.mxu0 0
        %3366 = vmatpush1.bf16.msra.mxu0 %v3326
        %3367 = vmatprep.subr.bf16.mxu0 0
        %3368 = vmatpush1.bf16.msra.mxu0 %v3325
        %3369 = vmatprep.subr.bf16.mxu0 0
        %3370 = vmatpush2.bf16.msra.mxu0 0
        %3371 = vmatprep.subr.bf16.mxu0 0
        %3372 = vmatpush2.bf16.msra.mxu0 0
        %3373 = vmatprep.subr.bf16.mxu0 0
        %3374 = vmatpush2.bf16.msra.mxu0 0
        %3375 = vmatprep.subr.bf16.mxu0 0
        %3376 = vmatpush2.bf16.msra.mxu0 0
        %3377 = vmatprep.subr.bf16.mxu0 0
        %3378 = vmatpush2.bf16.msra.mxu0 0
        %3379 = vmatprep.subr.bf16.mxu0 0
        %3380 = vmatpush2.bf16.msra.mxu0 0
        %3381 = vmatprep.subr.bf16.mxu0 0
        %3382 = vmatpush2.bf16.msra.mxu0 0
        %3383 = vmatprep.subr.bf16.mxu0 0
        %3384 = vmatpush2.bf16.msra.mxu0 0
        %3385 = vmatprep.mubr.bf16.mxu0 0
        %3386 = vmatmul.mubr.bf16.gmra.mxu0 %v3330
        %v3387 = vpop.f32.mrf.mxu0
        %v3388 = vadd.f32 0.0, %v3387
        %v3389 = vpop.f32.mrf.mxu0
        %v3390 = vpop.f32.mrf.mxu0
        %v3391 = vadd.f32 0.0, %v3390
        %v3392 = vpop.f32.mrf.mxu0
        %3393 = vmatprep.mubr.bf16.mxu0 0
        %3394 = vmatmul.mubr.bf16.gmra.mxu0 %v3333
        %v3395 = vpop.f32.mrf.mxu0
        %v3396 = vadd.f32 0.0, %v3395
        %v3397 = vpop.f32.mrf.mxu0
        %v3398 = vpop.f32.mrf.mxu0
        %v3399 = vadd.f32 0.0, %v3398
        %v3400 = vpop.f32.mrf.mxu0
        %3401 = vmatprep.mubr.bf16.mxu0 0
        %3402 = vmatmul.mubr.bf16.gmra.mxu0 %v3336
        %v3403 = vpop.f32.mrf.mxu0
        %v3404 = vadd.f32 0.0, %v3403
        %v3405 = vpop.f32.mrf.mxu0
        %v3406 = vpop.f32.mrf.mxu0
        %v3407 = vadd.f32 0.0, %v3406
        %v3408 = vpop.f32.mrf.mxu0
        %3409 = vmatprep.mubr.bf16.mxu0 0
        %3410 = vmatmul.mubr.bf16.gmra.mxu0 %v3339
        %v3411 = vpop.f32.mrf.mxu0
        %v3412 = vadd.f32 0.0, %v3411
        %v3413 = vpop.f32.mrf.mxu0
        %v3414 = vpop.f32.mrf.mxu0
        %v3415 = vadd.f32 0.0, %v3414
        %v3416 = vpop.f32.mrf.mxu0
        %3417 = vmatprep.mubr.bf16.mxu0 0
        %3418 = vmatmul.mubr.bf16.gmra.mxu0 %v3342
        %v3419 = vpop.f32.mrf.mxu0
        %v3420 = vadd.f32 0.0, %v3419
        %v3421 = vpop.f32.mrf.mxu0
        %v3422 = vpop.f32.mrf.mxu0
        %v3423 = vadd.f32 0.0, %v3422
        %v3424 = vpop.f32.mrf.mxu0
        %3425 = vmatprep.mubr.bf16.mxu0 0
        %3426 = vmatmul.mubr.bf16.gmra.mxu0 %v3345
        %v3427 = vpop.f32.mrf.mxu0
        %v3428 = vadd.f32 0.0, %v3427
        %v3429 = vpop.f32.mrf.mxu0
        %v3430 = vpop.f32.mrf.mxu0
        %v3431 = vadd.f32 0.0, %v3430
        %v3432 = vpop.f32.mrf.mxu0
        %3433 = vmatprep.mubr.bf16.mxu0 0
        %3434 = vmatmul.mubr.bf16.gmra.mxu0 %v3348
        %v3435 = vpop.f32.mrf.mxu0
        %v3436 = vadd.f32 0.0, %v3435
        %v3437 = vpop.f32.mrf.mxu0
        %v3438 = vpop.f32.mrf.mxu0
        %v3439 = vadd.f32 0.0, %v3438
        %v3440 = vpop.f32.mrf.mxu0
        %3441 = vmatprep.mubr.bf16.mxu0 0
        %3442 = vmatmul.mubr.bf16.gmra.mxu0 %v3351
        %v3443 = vpop.f32.mrf.mxu0
        %v3444 = vadd.f32 0.0, %v3443
        %v3445 = vpop.f32.mrf.mxu0
        %v3446 = vpop.f32.mrf.mxu0
        %v3447 = vadd.f32 0.0, %v3446
        %v3448 = vpop.f32.mrf.mxu0
        %3449 = vdwg.mxu0
        %v3450 = vadd.f32 %v2608, %v3388
        %v3451 = vadd.f32 %v2611, %v3391
        %v3452 = vadd.f32 %v2616, %v3396
        %v3453 = vadd.f32 %v2619, %v3399
        %v3454 = vadd.f32 %v2624, %v3404
        %v3455 = vadd.f32 %v2627, %v3407
        %v3456 = vadd.f32 %v2632, %v3412
        %v3457 = vadd.f32 %v2635, %v3415
        %v3458 = vadd.f32 %v2640, %v3420
        %v3459 = vadd.f32 %v2643, %v3423
        %v3460 = vadd.f32 %v2648, %v3428
        %v3461 = vadd.f32 %v2651, %v3431
        %v3462 = vadd.f32 %v2656, %v3436
        %v3463 = vadd.f32 %v2659, %v3439
        %v3464 = vadd.f32 %v2664, %v3444
        %v3465 = vadd.f32 %v2667, %v3447
        %3466 = vrot.lane.b32.xlu0 %v1022, 32
        %v3467 = vpop.permute.xlu0 %3466
        %3468 = vrot.lane.b32.xlu0 %v1023, 32
        %v3469 = vpop.permute.xlu0 %3468
        %3470 = vrot.lane.b32.xlu0 %v1024, 32
        %v3471 = vpop.permute.xlu0 %3470
        %3472 = vrot.lane.b32.xlu0 %v1025, 32
        %v3473 = vpop.permute.xlu0 %3472
        %3474 = vrot.lane.b32.xlu0 %v1026, 32
        %v3475 = vpop.permute.xlu0 %3474
        %3476 = vrot.lane.b32.xlu0 %v1027, 32
        %v3477 = vpop.permute.xlu0 %3476
        %3478 = vrot.lane.b32.xlu0 %v1028, 32
        %v3479 = vpop.permute.xlu0 %3478
        %3480 = vrot.lane.b32.xlu0 %v1029, 32
        %v3481 = vpop.permute.xlu0 %3480
        %3482 = vrot.lane.b32.xlu0 %v1094, 32
        %v3483 = vpop.permute.xlu0 %3482
        %3484 = vrot.lane.b32.xlu0 %v1095, 32
        %v3485 = vpop.permute.xlu0 %3484
        %3486 = vrot.lane.b32.xlu0 %v1096, 32
        %v3487 = vpop.permute.xlu0 %3486
        %3488 = vrot.lane.b32.xlu0 %v1097, 32
        %v3489 = vpop.permute.xlu0 %3488
        %3490 = vrot.lane.b32.xlu0 %v1098, 32
        %v3491 = vpop.permute.xlu0 %3490
        %3492 = vrot.lane.b32.xlu0 %v1099, 32
        %v3493 = vpop.permute.xlu0 %3492
        %3494 = vrot.lane.b32.xlu0 %v1100, 32
        %v3495 = vpop.permute.xlu0 %3494
        %3496 = vrot.lane.b32.xlu0 %v1101, 32
        %v3497 = vpop.permute.xlu0 %3496
        %3498 = vrot.lane.b32.xlu0 %v1102, 32
        %v3499 = vpop.permute.xlu0 %3498
        %3500 = vrot.lane.b32.xlu0 %v1103, 32
        %v3501 = vpop.permute.xlu0 %3500
        %3502 = vrot.lane.b32.xlu0 %v1104, 32
        %v3503 = vpop.permute.xlu0 %3502
        %3504 = vrot.lane.b32.xlu0 %v1105, 32
        %v3505 = vpop.permute.xlu0 %3504
        %3506 = vrot.lane.b32.xlu0 %v1106, 32
        %v3507 = vpop.permute.xlu0 %3506
        %3508 = vrot.lane.b32.xlu0 %v1107, 32
        %v3509 = vpop.permute.xlu0 %3508
        %3510 = vrot.lane.b32.xlu0 %v1108, 32
        %v3511 = vpop.permute.xlu0 %3510
        %3512 = vrot.lane.b32.xlu0 %v1109, 32
        %v3513 = vpop.permute.xlu0 %3512
        %v3515 = vsel %vm1110, %v3467, 0
        %v3518 = vsel %vm1110, %v3469, 0
        %v3521 = vsel %vm1110, %v3471, 0
        %v3524 = vsel %vm1110, %v3473, 0
        %v3527 = vsel %vm1110, %v3475, 0
        %v3530 = vsel %vm1110, %v3477, 0
        %v3533 = vsel %vm1110, %v3479, 0
        %v3536 = vsel %vm1110, %v3481, 0
        %v3539 = vsel %vm1110, %v3483, 0
        %v3542 = vsel %vm1110, %v3485, 0
        %v3545 = vsel %vm1110, %v3487, 0
        %v3548 = vsel %vm1110, %v3489, 0
        %v3551 = vsel %vm1110, %v3491, 0
        %v3554 = vsel %vm1110, %v3493, 0
        %v3557 = vsel %vm1110, %v3495, 0
        %v3560 = vsel %vm1110, %v3497, 0
        %v3563 = vsel %vm1110, %v3499, 0
        %v3566 = vsel %vm1110, %v3501, 0
        %v3569 = vsel %vm1110, %v3503, 0
        %v3572 = vsel %vm1110, %v3505, 0
        %v3575 = vsel %vm1110, %v3507, 0
        %v3578 = vsel %vm1110, %v3509, 0
        %v3581 = vsel %vm1110, %v3511, 0
        %v3584 = vsel %vm1110, %v3513, 0
        %3586 = vmatprep.subr.bf16.mxu0 0
        %3587 = vmatpush1.bf16.xpose.msra.mxu0 %v3560
        %3588 = vmatprep.subr.bf16.mxu0 0
        %3589 = vmatpush1.bf16.xpose.msra.mxu0 %v3557
        %3590 = vmatprep.subr.bf16.mxu0 0
        %3591 = vmatpush1.bf16.xpose.msra.mxu0 %v3554
        %3592 = vmatprep.subr.bf16.mxu0 0
        %3593 = vmatpush1.bf16.xpose.msra.mxu0 %v3551
        %3594 = vmatprep.subr.bf16.mxu0 0
        %3595 = vmatpush1.bf16.xpose.msra.mxu0 %v3548
        %3596 = vmatprep.subr.bf16.mxu0 0
        %3597 = vmatpush1.bf16.xpose.msra.mxu0 %v3545
        %3598 = vmatprep.subr.bf16.mxu0 0
        %3599 = vmatpush1.bf16.xpose.msra.mxu0 %v3542
        %3600 = vmatprep.subr.bf16.mxu0 0
        %3601 = vmatpush1.bf16.xpose.msra.mxu0 %v3539
        %3602 = vmatprep.subr.bf16.mxu0 0
        %3603 = vmatpush2.bf16.xpose.msra.mxu0 %v3584
        %3604 = vmatprep.subr.bf16.mxu0 0
        %3605 = vmatpush2.bf16.xpose.msra.mxu0 %v3581
        %3606 = vmatprep.subr.bf16.mxu0 0
        %3607 = vmatpush2.bf16.xpose.msra.mxu0 %v3578
        %3608 = vmatprep.subr.bf16.mxu0 0
        %3609 = vmatpush2.bf16.xpose.msra.mxu0 %v3575
        %3610 = vmatprep.subr.bf16.mxu0 0
        %3611 = vmatpush2.bf16.xpose.msra.mxu0 %v3572
        %3612 = vmatprep.subr.bf16.mxu0 0
        %3613 = vmatpush2.bf16.xpose.msra.mxu0 %v3569
        %3614 = vmatprep.subr.bf16.mxu0 0
        %3615 = vmatpush2.bf16.xpose.msra.mxu0 %v3566
        %3616 = vmatprep.subr.bf16.mxu0 0
        %3617 = vmatpush2.bf16.xpose.msra.mxu0 %v3563
        %3618 = vmatprep.mubr.bf16.mxu0 0
        %3619 = vmatmul.mubr.bf16.gmra.mxu0 %v3515
        %v3620 = vpop.f32.mrf.mxu0
        %v3621 = vadd.f32 %v983, %v3620
        %v3622 = vpop.f32.mrf.mxu0
        %v3623 = vadd.f32 %v987, %v3622
        %v3624 = vpop.f32.mrf.mxu0
        %v3625 = vadd.f32 %v983, %v3624
        %v3626 = vpop.f32.mrf.mxu0
        %v3627 = vadd.f32 %v987, %v3626
        %3628 = vmatprep.mubr.bf16.mxu0 0
        %3629 = vmatmul.mubr.bf16.gmra.mxu0 %v3518
        %v3630 = vpop.f32.mrf.mxu0
        %v3631 = vadd.f32 %v983, %v3630
        %v3632 = vpop.f32.mrf.mxu0
        %v3633 = vadd.f32 %v987, %v3632
        %v3634 = vpop.f32.mrf.mxu0
        %v3635 = vadd.f32 %v983, %v3634
        %v3636 = vpop.f32.mrf.mxu0
        %v3637 = vadd.f32 %v987, %v3636
        %3638 = vmatprep.mubr.bf16.mxu0 0
        %3639 = vmatmul.mubr.bf16.gmra.mxu0 %v3521
        %v3640 = vpop.f32.mrf.mxu0
        %v3641 = vadd.f32 %v983, %v3640
        %v3642 = vpop.f32.mrf.mxu0
        %v3643 = vadd.f32 %v987, %v3642
        %v3644 = vpop.f32.mrf.mxu0
        %v3645 = vadd.f32 %v983, %v3644
        %v3646 = vpop.f32.mrf.mxu0
        %v3647 = vadd.f32 %v987, %v3646
        %3648 = vmatprep.mubr.bf16.mxu0 0
        %3649 = vmatmul.mubr.bf16.gmra.mxu0 %v3524
        %v3650 = vpop.f32.mrf.mxu0
        %v3651 = vadd.f32 %v983, %v3650
        %v3652 = vpop.f32.mrf.mxu0
        %v3653 = vadd.f32 %v987, %v3652
        %v3654 = vpop.f32.mrf.mxu0
        %v3655 = vadd.f32 %v983, %v3654
        %v3656 = vpop.f32.mrf.mxu0
        %v3657 = vadd.f32 %v987, %v3656
        %3658 = vmatprep.mubr.bf16.mxu0 0
        %3659 = vmatmul.mubr.bf16.gmra.mxu0 %v3527
        %v3660 = vpop.f32.mrf.mxu0
        %v3661 = vadd.f32 %v983, %v3660
        %v3662 = vpop.f32.mrf.mxu0
        %v3663 = vadd.f32 %v987, %v3662
        %v3664 = vpop.f32.mrf.mxu0
        %v3665 = vadd.f32 %v983, %v3664
        %v3666 = vpop.f32.mrf.mxu0
        %v3667 = vadd.f32 %v987, %v3666
        %3668 = vmatprep.mubr.bf16.mxu0 0
        %3669 = vmatmul.mubr.bf16.gmra.mxu0 %v3530
        %v3670 = vpop.f32.mrf.mxu0
        %v3671 = vadd.f32 %v983, %v3670
        %v3672 = vpop.f32.mrf.mxu0
        %v3673 = vadd.f32 %v987, %v3672
        %v3674 = vpop.f32.mrf.mxu0
        %v3675 = vadd.f32 %v983, %v3674
        %v3676 = vpop.f32.mrf.mxu0
        %v3677 = vadd.f32 %v987, %v3676
        %3678 = vmatprep.mubr.bf16.mxu0 0
        %3679 = vmatmul.mubr.bf16.gmra.mxu0 %v3533
        %v3680 = vpop.f32.mrf.mxu0
        %v3681 = vadd.f32 %v983, %v3680
        %v3682 = vpop.f32.mrf.mxu0
        %v3683 = vadd.f32 %v987, %v3682
        %v3684 = vpop.f32.mrf.mxu0
        %v3685 = vadd.f32 %v983, %v3684
        %v3686 = vpop.f32.mrf.mxu0
        %v3687 = vadd.f32 %v987, %v3686
        %3688 = vmatprep.mubr.bf16.mxu0 0
        %3689 = vmatmul.mubr.bf16.gmra.mxu0 %v3536
        %v3690 = vpop.f32.mrf.mxu0
        %v3691 = vadd.f32 %v983, %v3690
        %v3692 = vpop.f32.mrf.mxu0
        %v3693 = vadd.f32 %v987, %v3692
        %v3694 = vpop.f32.mrf.mxu0
        %v3695 = vadd.f32 %v983, %v3694
        %v3696 = vpop.f32.mrf.mxu0
        %v3697 = vadd.f32 %v987, %v3696
        %3698 = vdwg.mxu0
        %v3699 = vmax.f32 %v3621, %v3623
        %3700 = vmax.xlane.f32.xlu0 %v3699
        %v3701 = vpop.xlane.xlu0 %3700
        %v3702 = vmax.f32 %v3625, %v3627
        %3703 = vmax.xlane.f32.xlu0 %v3702
        %v3704 = vpop.xlane.xlu0 %3703
        %v3705 = vmax.f32 %v3631, %v3633
        %3706 = vmax.xlane.f32.xlu0 %v3705
        %v3707 = vpop.xlane.xlu0 %3706
        %v3708 = vmax.f32 %v3635, %v3637
        %3709 = vmax.xlane.f32.xlu0 %v3708
        %v3710 = vpop.xlane.xlu0 %3709
        %v3711 = vmax.f32 %v3641, %v3643
        %3712 = vmax.xlane.f32.xlu0 %v3711
        %v3713 = vpop.xlane.xlu0 %3712
        %v3714 = vmax.f32 %v3645, %v3647
        %3715 = vmax.xlane.f32.xlu0 %v3714
        %v3716 = vpop.xlane.xlu0 %3715
        %v3717 = vmax.f32 %v3651, %v3653
        %3718 = vmax.xlane.f32.xlu0 %v3717
        %v3719 = vpop.xlane.xlu0 %3718
        %v3720 = vmax.f32 %v3655, %v3657
        %3721 = vmax.xlane.f32.xlu0 %v3720
        %v3722 = vpop.xlane.xlu0 %3721
        %v3723 = vmax.f32 %v3661, %v3663
        %3724 = vmax.xlane.f32.xlu0 %v3723
        %v3725 = vpop.xlane.xlu0 %3724
        %v3726 = vmax.f32 %v3665, %v3667
        %3727 = vmax.xlane.f32.xlu0 %v3726
        %v3728 = vpop.xlane.xlu0 %3727
        %v3729 = vmax.f32 %v3671, %v3673
        %3730 = vmax.xlane.f32.xlu0 %v3729
        %v3731 = vpop.xlane.xlu0 %3730
        %v3732 = vmax.f32 %v3675, %v3677
        %3733 = vmax.xlane.f32.xlu0 %v3732
        %v3734 = vpop.xlane.xlu0 %3733
        %v3735 = vmax.f32 %v3681, %v3683
        %3736 = vmax.xlane.f32.xlu0 %v3735
        %v3737 = vpop.xlane.xlu0 %3736
        %v3738 = vmax.f32 %v3685, %v3687
        %3739 = vmax.xlane.f32.xlu0 %v3738
        %v3740 = vpop.xlane.xlu0 %3739
        %v3741 = vmax.f32 %v3691, %v3693
        %3742 = vmax.xlane.f32.xlu0 %v3741
        %v3743 = vpop.xlane.xlu0 %3742
        %v3744 = vmax.f32 %v3695, %v3697
        %3745 = vmax.xlane.f32.xlu0 %v3744
        %v3746 = vpop.xlane.xlu0 %3745
        %v3747 = vsub.f32 %v3621, %v3701
        %v3748 = vsub.f32 %v3623, %v3701
        %v3749 = vsub.f32 %v3625, %v3704
        %v3750 = vsub.f32 %v3627, %v3704
        %v3751 = vsub.f32 %v3631, %v3707
        %v3752 = vsub.f32 %v3633, %v3707
        %v3753 = vsub.f32 %v3635, %v3710
        %v3754 = vsub.f32 %v3637, %v3710
        %v3755 = vsub.f32 %v3641, %v3713
        %v3756 = vsub.f32 %v3643, %v3713
        %v3757 = vsub.f32 %v3645, %v3716
        %v3758 = vsub.f32 %v3647, %v3716
        %v3759 = vsub.f32 %v3651, %v3719
        %v3760 = vsub.f32 %v3653, %v3719
        %v3761 = vsub.f32 %v3655, %v3722
        %v3762 = vsub.f32 %v3657, %v3722
        %v3763 = vsub.f32 %v3661, %v3725
        %v3764 = vsub.f32 %v3663, %v3725
        %v3765 = vsub.f32 %v3665, %v3728
        %v3766 = vsub.f32 %v3667, %v3728
        %v3767 = vsub.f32 %v3671, %v3731
        %v3768 = vsub.f32 %v3673, %v3731
        %v3769 = vsub.f32 %v3675, %v3734
        %v3770 = vsub.f32 %v3677, %v3734
        %v3771 = vsub.f32 %v3681, %v3737
        %v3772 = vsub.f32 %v3683, %v3737
        %v3773 = vsub.f32 %v3685, %v3740
        %v3774 = vsub.f32 %v3687, %v3740
        %v3775 = vsub.f32 %v3691, %v3743
        %v3776 = vsub.f32 %v3693, %v3743
        %v3777 = vsub.f32 %v3695, %v3746
        %v3778 = vsub.f32 %v3697, %v3746
        %v3779 = vmul.f32 %v3747, 1.442695
        %v3780 = vpow.pop %v3779
        %v3781 = vmul.f32 %v3748, 1.442695
        %v3782 = vpow.pop %v3781
        %v3783 = vmul.f32 %v3749, 1.442695
        %v3784 = vpow.pop %v3783
        %v3785 = vmul.f32 %v3750, 1.442695
        %v3786 = vpow.pop %v3785
        %v3787 = vmul.f32 %v3751, 1.442695
        %v3788 = vpow.pop %v3787
        %v3789 = vmul.f32 %v3752, 1.442695
        %v3790 = vpow.pop %v3789
        %v3791 = vmul.f32 %v3753, 1.442695
        %v3792 = vpow.pop %v3791
        %v3793 = vmul.f32 %v3754, 1.442695
        %v3794 = vpow.pop %v3793
        %v3795 = vmul.f32 %v3755, 1.442695
        %v3796 = vpow.pop %v3795
        %v3797 = vmul.f32 %v3756, 1.442695
        %v3798 = vpow.pop %v3797
        %v3799 = vmul.f32 %v3757, 1.442695
        %v3800 = vpow.pop %v3799
        %v3801 = vmul.f32 %v3758, 1.442695
        %v3802 = vpow.pop %v3801
        %v3803 = vmul.f32 %v3759, 1.442695
        %v3804 = vpow.pop %v3803
        %v3805 = vmul.f32 %v3760, 1.442695
        %v3806 = vpow.pop %v3805
        %v3807 = vmul.f32 %v3761, 1.442695
        %v3808 = vpow.pop %v3807
        %v3809 = vmul.f32 %v3762, 1.442695
        %v3810 = vpow.pop %v3809
        %v3811 = vmul.f32 %v3763, 1.442695
        %v3812 = vpow.pop %v3811
        %v3813 = vmul.f32 %v3764, 1.442695
        %v3814 = vpow.pop %v3813
        %v3815 = vmul.f32 %v3765, 1.442695
        %v3816 = vpow.pop %v3815
        %v3817 = vmul.f32 %v3766, 1.442695
        %v3818 = vpow.pop %v3817
        %v3819 = vmul.f32 %v3767, 1.442695
        %v3820 = vpow.pop %v3819
        %v3821 = vmul.f32 %v3768, 1.442695
        %v3822 = vpow.pop %v3821
        %v3823 = vmul.f32 %v3769, 1.442695
        %v3824 = vpow.pop %v3823
        %v3825 = vmul.f32 %v3770, 1.442695
        %v3826 = vpow.pop %v3825
        %v3827 = vmul.f32 %v3771, 1.442695
        %v3828 = vpow.pop %v3827
        %v3829 = vmul.f32 %v3772, 1.442695
        %v3830 = vpow.pop %v3829
        %v3831 = vmul.f32 %v3773, 1.442695
        %v3832 = vpow.pop %v3831
        %v3833 = vmul.f32 %v3774, 1.442695
        %v3834 = vpow.pop %v3833
        %v3835 = vmul.f32 %v3775, 1.442695
        %v3836 = vpow.pop %v3835
        %v3837 = vmul.f32 %v3776, 1.442695
        %v3838 = vpow.pop %v3837
        %v3839 = vmul.f32 %v3777, 1.442695
        %v3840 = vpow.pop %v3839
        %v3841 = vmul.f32 %v3778, 1.442695
        %v3842 = vpow.pop %v3841
        %v3843 = vadd.f32 %v3780, %v3782
        %3844 = vadd.xlane.f32.xlu0 %v3843
        %v3845 = vpop.xlane.xlu0 %3844
        %v3846 = vadd.f32 %v3784, %v3786
        %3847 = vadd.xlane.f32.xlu0 %v3846
        %v3848 = vpop.xlane.xlu0 %3847
        %v3849 = vadd.f32 %v3788, %v3790
        %3850 = vadd.xlane.f32.xlu0 %v3849
        %v3851 = vpop.xlane.xlu0 %3850
        %v3852 = vadd.f32 %v3792, %v3794
        %3853 = vadd.xlane.f32.xlu0 %v3852
        %v3854 = vpop.xlane.xlu0 %3853
        %v3855 = vadd.f32 %v3796, %v3798
        %3856 = vadd.xlane.f32.xlu0 %v3855
        %v3857 = vpop.xlane.xlu0 %3856
        %v3858 = vadd.f32 %v3800, %v3802
        %3859 = vadd.xlane.f32.xlu0 %v3858
        %v3860 = vpop.xlane.xlu0 %3859
        %v3861 = vadd.f32 %v3804, %v3806
        %3862 = vadd.xlane.f32.xlu0 %v3861
        %v3863 = vpop.xlane.xlu0 %3862
        %v3864 = vadd.f32 %v3808, %v3810
        %3865 = vadd.xlane.f32.xlu0 %v3864
        %v3866 = vpop.xlane.xlu0 %3865
        %v3867 = vadd.f32 %v3812, %v3814
        %3868 = vadd.xlane.f32.xlu0 %v3867
        %v3869 = vpop.xlane.xlu0 %3868
        %v3870 = vadd.f32 %v3816, %v3818
        %3871 = vadd.xlane.f32.xlu0 %v3870
        %v3872 = vpop.xlane.xlu0 %3871
        %v3873 = vadd.f32 %v3820, %v3822
        %3874 = vadd.xlane.f32.xlu0 %v3873
        %v3875 = vpop.xlane.xlu0 %3874
        %v3876 = vadd.f32 %v3824, %v3826
        %3877 = vadd.xlane.f32.xlu0 %v3876
        %v3878 = vpop.xlane.xlu0 %3877
        %v3879 = vadd.f32 %v3828, %v3830
        %3880 = vadd.xlane.f32.xlu0 %v3879
        %v3881 = vpop.xlane.xlu0 %3880
        %v3882 = vadd.f32 %v3832, %v3834
        %3883 = vadd.xlane.f32.xlu0 %v3882
        %v3884 = vpop.xlane.xlu0 %3883
        %v3885 = vadd.f32 %v3836, %v3838
        %3886 = vadd.xlane.f32.xlu0 %v3885
        %v3887 = vpop.xlane.xlu0 %3886
        %v3888 = vadd.f32 %v3840, %v3842
        %3889 = vadd.xlane.f32.xlu0 %v3888
        %v3890 = vpop.xlane.xlu0 %3889
        %v3891 = vrcp.pop %v3845
        %v3892 = vmul.f32 %v3780, %v3891
        %v3893 = vmul.f32 %v3782, %v3891
        %v3894 = vrcp.pop %v3848
        %v3895 = vmul.f32 %v3784, %v3894
        %v3896 = vmul.f32 %v3786, %v3894
        %v3897 = vrcp.pop %v3851
        %v3898 = vmul.f32 %v3788, %v3897
        %v3899 = vmul.f32 %v3790, %v3897
        %v3900 = vrcp.pop %v3854
        %v3901 = vmul.f32 %v3792, %v3900
        %v3902 = vmul.f32 %v3794, %v3900
        %v3903 = vrcp.pop %v3857
        %v3904 = vmul.f32 %v3796, %v3903
        %v3905 = vmul.f32 %v3798, %v3903
        %v3906 = vrcp.pop %v3860
        %v3907 = vmul.f32 %v3800, %v3906
        %v3908 = vmul.f32 %v3802, %v3906
        %v3909 = vrcp.pop %v3863
        %v3910 = vmul.f32 %v3804, %v3909
        %v3911 = vmul.f32 %v3806, %v3909
        %v3912 = vrcp.pop %v3866
        %v3913 = vmul.f32 %v3808, %v3912
        %v3914 = vmul.f32 %v3810, %v3912
        %v3915 = vrcp.pop %v3869
        %v3916 = vmul.f32 %v3812, %v3915
        %v3917 = vmul.f32 %v3814, %v3915
        %v3918 = vrcp.pop %v3872
        %v3919 = vmul.f32 %v3816, %v3918
        %v3920 = vmul.f32 %v3818, %v3918
        %v3921 = vrcp.pop %v3875
        %v3922 = vmul.f32 %v3820, %v3921
        %v3923 = vmul.f32 %v3822, %v3921
        %v3924 = vrcp.pop %v3878
        %v3925 = vmul.f32 %v3824, %v3924
        %v3926 = vmul.f32 %v3826, %v3924
        %v3927 = vrcp.pop %v3881
        %v3928 = vmul.f32 %v3828, %v3927
        %v3929 = vmul.f32 %v3830, %v3927
        %v3930 = vrcp.pop %v3884
        %v3931 = vmul.f32 %v3832, %v3930
        %v3932 = vmul.f32 %v3834, %v3930
        %v3933 = vrcp.pop %v3887
        %v3934 = vmul.f32 %v3836, %v3933
        %v3935 = vmul.f32 %v3838, %v3933
        %v3936 = vrcp.pop %v3890
        %v3937 = vmul.f32 %v3840, %v3936
        %v3938 = vmul.f32 %v3842, %v3936
        %v3939 = vpack.c.bf16 %v3895, %v3892
        %v3940 = vpack.c.bf16 %v3896, %v3893
        %v3941 = vpack.c.bf16 %v3901, %v3898
        %v3942 = vpack.c.bf16 %v3902, %v3899
        %v3943 = vpack.c.bf16 %v3907, %v3904
        %v3944 = vpack.c.bf16 %v3908, %v3905
        %v3945 = vpack.c.bf16 %v3913, %v3910
        %v3946 = vpack.c.bf16 %v3914, %v3911
        %v3947 = vpack.c.bf16 %v3919, %v3916
        %v3948 = vpack.c.bf16 %v3920, %v3917
        %v3949 = vpack.c.bf16 %v3925, %v3922
        %v3950 = vpack.c.bf16 %v3926, %v3923
        %v3951 = vpack.c.bf16 %v3931, %v3928
        %v3952 = vpack.c.bf16 %v3932, %v3929
        %v3953 = vpack.c.bf16 %v3937, %v3934
        %v3954 = vpack.c.bf16 %v3938, %v3935
        %3955 = vrot.lane.b32.xlu0 %v1616, 32
        %v3956 = vpop.permute.xlu0 %3955
        %3957 = vrot.lane.b32.xlu0 %v1617, 32
        %v3958 = vpop.permute.xlu0 %3957
        %3959 = vrot.lane.b32.xlu0 %v1618, 32
        %v3960 = vpop.permute.xlu0 %3959
        %3961 = vrot.lane.b32.xlu0 %v1619, 32
        %v3962 = vpop.permute.xlu0 %3961
        %3963 = vrot.lane.b32.xlu0 %v1620, 32
        %v3964 = vpop.permute.xlu0 %3963
        %3965 = vrot.lane.b32.xlu0 %v1621, 32
        %v3966 = vpop.permute.xlu0 %3965
        %3967 = vrot.lane.b32.xlu0 %v1622, 32
        %v3968 = vpop.permute.xlu0 %3967
        %3969 = vrot.lane.b32.xlu0 %v1623, 32
        %v3970 = vpop.permute.xlu0 %3969
        %3971 = vrot.lane.b32.xlu0 %v1624, 32
        %v3972 = vpop.permute.xlu0 %3971
        %3973 = vrot.lane.b32.xlu0 %v1625, 32
        %v3974 = vpop.permute.xlu0 %3973
        %3975 = vrot.lane.b32.xlu0 %v1626, 32
        %v3976 = vpop.permute.xlu0 %3975
        %3977 = vrot.lane.b32.xlu0 %v1627, 32
        %v3978 = vpop.permute.xlu0 %3977
        %3979 = vrot.lane.b32.xlu0 %v1628, 32
        %v3980 = vpop.permute.xlu0 %3979
        %3981 = vrot.lane.b32.xlu0 %v1629, 32
        %v3982 = vpop.permute.xlu0 %3981
        %3983 = vrot.lane.b32.xlu0 %v1630, 32
        %v3984 = vpop.permute.xlu0 %3983
        %3985 = vrot.lane.b32.xlu0 %v1631, 32
        %v3986 = vpop.permute.xlu0 %3985
        %4003 = vmatprep.subr.bf16.mxu0 0
        %4004 = vmatpush1.bf16.msra.mxu0 %v3970
        %4005 = vmatprep.subr.bf16.mxu0 0
        %4006 = vmatpush1.bf16.msra.mxu0 %v3968
        %4007 = vmatprep.subr.bf16.mxu0 0
        %4008 = vmatpush1.bf16.msra.mxu0 %v3966
        %4009 = vmatprep.subr.bf16.mxu0 0
        %4010 = vmatpush1.bf16.msra.mxu0 %v3964
        %4011 = vmatprep.subr.bf16.mxu0 0
        %4012 = vmatpush1.bf16.msra.mxu0 %v3962
        %4013 = vmatprep.subr.bf16.mxu0 0
        %4014 = vmatpush1.bf16.msra.mxu0 %v3960
        %4015 = vmatprep.subr.bf16.mxu0 0
        %4016 = vmatpush1.bf16.msra.mxu0 %v3958
        %4017 = vmatprep.subr.bf16.mxu0 0
        %4018 = vmatpush1.bf16.msra.mxu0 %v3956
        %4019 = vmatprep.subr.bf16.mxu0 0
        %4020 = vmatpush2.bf16.msra.mxu0 %v3986
        %4021 = vmatprep.subr.bf16.mxu0 0
        %4022 = vmatpush2.bf16.msra.mxu0 %v3984
        %4023 = vmatprep.subr.bf16.mxu0 0
        %4024 = vmatpush2.bf16.msra.mxu0 %v3982
        %4025 = vmatprep.subr.bf16.mxu0 0
        %4026 = vmatpush2.bf16.msra.mxu0 %v3980
        %4027 = vmatprep.subr.bf16.mxu0 0
        %4028 = vmatpush2.bf16.msra.mxu0 %v3978
        %4029 = vmatprep.subr.bf16.mxu0 0
        %4030 = vmatpush2.bf16.msra.mxu0 %v3976
        %4031 = vmatprep.subr.bf16.mxu0 0
        %4032 = vmatpush2.bf16.msra.mxu0 %v3974
        %4033 = vmatprep.subr.bf16.mxu0 0
        %4034 = vmatpush2.bf16.msra.mxu0 %v3972
        %4035 = vmatprep.mubr.bf16.mxu0 %v3940
        %4036 = vmatmul.mubr.bf16.gmra.mxu0 %v3939
        %v4037 = vpop.f32.mrf.mxu0
        %v4038 = vadd.f32 0.0, %v4037
        %v4039 = vpop.f32.mrf.mxu0
        %v4040 = vpop.f32.mrf.mxu0
        %v4041 = vadd.f32 0.0, %v4040
        %v4042 = vpop.f32.mrf.mxu0
        %4043 = vmatprep.mubr.bf16.mxu0 %v3942
        %4044 = vmatmul.mubr.bf16.gmra.mxu0 %v3941
        %v4045 = vpop.f32.mrf.mxu0
        %v4046 = vadd.f32 0.0, %v4045
        %v4047 = vpop.f32.mrf.mxu0
        %v4048 = vpop.f32.mrf.mxu0
        %v4049 = vadd.f32 0.0, %v4048
        %v4050 = vpop.f32.mrf.mxu0
        %4051 = vmatprep.mubr.bf16.mxu0 %v3944
        %4052 = vmatmul.mubr.bf16.gmra.mxu0 %v3943
        %v4053 = vpop.f32.mrf.mxu0
        %v4054 = vadd.f32 0.0, %v4053
        %v4055 = vpop.f32.mrf.mxu0
        %v4056 = vpop.f32.mrf.mxu0
        %v4057 = vadd.f32 0.0, %v4056
        %v4058 = vpop.f32.mrf.mxu0
        %4059 = vmatprep.mubr.bf16.mxu0 %v3946
        %4060 = vmatmul.mubr.bf16.gmra.mxu0 %v3945
        %v4061 = vpop.f32.mrf.mxu0
        %v4062 = vadd.f32 0.0, %v4061
        %v4063 = vpop.f32.mrf.mxu0
        %v4064 = vpop.f32.mrf.mxu0
        %v4065 = vadd.f32 0.0, %v4064
        %v4066 = vpop.f32.mrf.mxu0
        %4067 = vmatprep.mubr.bf16.mxu0 %v3948
        %4068 = vmatmul.mubr.bf16.gmra.mxu0 %v3947
        %v4069 = vpop.f32.mrf.mxu0
        %v4070 = vadd.f32 0.0, %v4069
        %v4071 = vpop.f32.mrf.mxu0
        %v4072 = vpop.f32.mrf.mxu0
        %v4073 = vadd.f32 0.0, %v4072
        %v4074 = vpop.f32.mrf.mxu0
        %4075 = vmatprep.mubr.bf16.mxu0 %v3950
        %4076 = vmatmul.mubr.bf16.gmra.mxu0 %v3949
        %v4077 = vpop.f32.mrf.mxu0
        %v4078 = vadd.f32 0.0, %v4077
        %v4079 = vpop.f32.mrf.mxu0
        %v4080 = vpop.f32.mrf.mxu0
        %v4081 = vadd.f32 0.0, %v4080
        %v4082 = vpop.f32.mrf.mxu0
        %4083 = vmatprep.mubr.bf16.mxu0 %v3952
        %4084 = vmatmul.mubr.bf16.gmra.mxu0 %v3951
        %v4085 = vpop.f32.mrf.mxu0
        %v4086 = vadd.f32 0.0, %v4085
        %v4087 = vpop.f32.mrf.mxu0
        %v4088 = vpop.f32.mrf.mxu0
        %v4089 = vadd.f32 0.0, %v4088
        %v4090 = vpop.f32.mrf.mxu0
        %4091 = vmatprep.mubr.bf16.mxu0 %v3954
        %4092 = vmatmul.mubr.bf16.gmra.mxu0 %v3953
        %v4093 = vpop.f32.mrf.mxu0
        %v4094 = vadd.f32 0.0, %v4093
        %v4095 = vpop.f32.mrf.mxu0
        %v4096 = vpop.f32.mrf.mxu0
        %v4097 = vadd.f32 0.0, %v4096
        %v4098 = vpop.f32.mrf.mxu0
        %4099 = vdwg.mxu0
        %v4100 = vpack.c.bf16 %v4041, %v4038
        %v4101 = vpack.c.bf16 %v4049, %v4046
        %v4102 = vpack.c.bf16 %v4057, %v4054
        %v4103 = vpack.c.bf16 %v4065, %v4062
        %v4104 = vpack.c.bf16 %v4073, %v4070
        %v4105 = vpack.c.bf16 %v4081, %v4078
        %v4106 = vpack.c.bf16 %v4089, %v4086
        %v4107 = vpack.c.bf16 %v4097, %v4094
        %s4108 = scalar_lea.vmem %s5, 48
        %v4109 = vld [vmem:[%s4108] sm:$0xf]
        %v4110 = vld [vmem:[%s4108 + $0x4] sm:$0xf]
        %v4111 = vld [vmem:[%s4108 + $0x8] sm:$0xf]
        %v4112 = vld [vmem:[%s4108 + $0xc] sm:$0xf]
        %v4117 = vunpack.c.l.b16 %v4109
        %v4118 = vunpack.c.l.b16 %v4110
        %v4119 = vunpack.c.l.b16 %v4111
        %v4120 = vunpack.c.l.b16 %v4112
        %v4121 = vpack.c.b16 %v4118, %v4117
        %v4122 = vpack.c.b16 %v4120, %v4119
        %v4126 = vsel %vm1110, %v4100, 0
        %v4129 = vsel %vm1110, %v4101, 0
        %v4132 = vsel %vm1110, %v4102, 0
        %v4135 = vsel %vm1110, %v4103, 0
        %v4138 = vsel %vm1110, %v4104, 0
        %v4141 = vsel %vm1110, %v4105, 0
        %v4144 = vsel %vm1110, %v4106, 0
        %v4147 = vsel %vm1110, %v4107, 0
        %4149 = vmatprep.subr.bf16.mxu0 0
        %4150 = vmatpush1.bf16.msra.mxu0 0
        %4151 = vmatprep.subr.bf16.mxu0 0
        %4152 = vmatpush1.bf16.msra.mxu0 0
        %4153 = vmatprep.subr.bf16.mxu0 0
        %4154 = vmatpush1.bf16.msra.mxu0 0
        %4155 = vmatprep.subr.bf16.mxu0 0
        %4156 = vmatpush1.bf16.msra.mxu0 0
        %4157 = vmatprep.subr.bf16.mxu0 0
        %4158 = vmatpush1.bf16.msra.mxu0 0
        %4159 = vmatprep.subr.bf16.mxu0 0
        %4160 = vmatpush1.bf16.msra.mxu0 0
        %4161 = vmatprep.subr.bf16.mxu0 0
        %4162 = vmatpush1.bf16.msra.mxu0 %v4122
        %4163 = vmatprep.subr.bf16.mxu0 0
        %4164 = vmatpush1.bf16.msra.mxu0 %v4121
        %4165 = vmatprep.subr.bf16.mxu0 0
        %4166 = vmatpush2.bf16.msra.mxu0 0
        %4167 = vmatprep.subr.bf16.mxu0 0
        %4168 = vmatpush2.bf16.msra.mxu0 0
        %4169 = vmatprep.subr.bf16.mxu0 0
        %4170 = vmatpush2.bf16.msra.mxu0 0
        %4171 = vmatprep.subr.bf16.mxu0 0
        %4172 = vmatpush2.bf16.msra.mxu0 0
        %4173 = vmatprep.subr.bf16.mxu0 0
        %4174 = vmatpush2.bf16.msra.mxu0 0
        %4175 = vmatprep.subr.bf16.mxu0 0
        %4176 = vmatpush2.bf16.msra.mxu0 0
        %4177 = vmatprep.subr.bf16.mxu0 0
        %4178 = vmatpush2.bf16.msra.mxu0 0
        %4179 = vmatprep.subr.bf16.mxu0 0
        %4180 = vmatpush2.bf16.msra.mxu0 0
        %4181 = vmatprep.mubr.bf16.mxu0 0
        %4182 = vmatmul.mubr.bf16.gmra.mxu0 %v4126
        %v4183 = vpop.f32.mrf.mxu0
        %v4184 = vadd.f32 0.0, %v4183
        %v4185 = vpop.f32.mrf.mxu0
        %v4186 = vpop.f32.mrf.mxu0
        %v4187 = vadd.f32 0.0, %v4186
        %v4188 = vpop.f32.mrf.mxu0
        %4189 = vmatprep.mubr.bf16.mxu0 0
        %4190 = vmatmul.mubr.bf16.gmra.mxu0 %v4129
        %v4191 = vpop.f32.mrf.mxu0
        %v4192 = vadd.f32 0.0, %v4191
        %v4193 = vpop.f32.mrf.mxu0
        %v4194 = vpop.f32.mrf.mxu0
        %v4195 = vadd.f32 0.0, %v4194
        %v4196 = vpop.f32.mrf.mxu0
        %4197 = vmatprep.mubr.bf16.mxu0 0
        %4198 = vmatmul.mubr.bf16.gmra.mxu0 %v4132
        %v4199 = vpop.f32.mrf.mxu0
        %v4200 = vadd.f32 0.0, %v4199
        %v4201 = vpop.f32.mrf.mxu0
        %v4202 = vpop.f32.mrf.mxu0
        %v4203 = vadd.f32 0.0, %v4202
        %v4204 = vpop.f32.mrf.mxu0
        %4205 = vmatprep.mubr.bf16.mxu0 0
        %4206 = vmatmul.mubr.bf16.gmra.mxu0 %v4135
        %v4207 = vpop.f32.mrf.mxu0
        %v4208 = vadd.f32 0.0, %v4207
        %v4209 = vpop.f32.mrf.mxu0
        %v4210 = vpop.f32.mrf.mxu0
        %v4211 = vadd.f32 0.0, %v4210
        %v4212 = vpop.f32.mrf.mxu0
        %4213 = vmatprep.mubr.bf16.mxu0 0
        %4214 = vmatmul.mubr.bf16.gmra.mxu0 %v4138
        %v4215 = vpop.f32.mrf.mxu0
        %v4216 = vadd.f32 0.0, %v4215
        %v4217 = vpop.f32.mrf.mxu0
        %v4218 = vpop.f32.mrf.mxu0
        %v4219 = vadd.f32 0.0, %v4218
        %v4220 = vpop.f32.mrf.mxu0
        %4221 = vmatprep.mubr.bf16.mxu0 0
        %4222 = vmatmul.mubr.bf16.gmra.mxu0 %v4141
        %v4223 = vpop.f32.mrf.mxu0
        %v4224 = vadd.f32 0.0, %v4223
        %v4225 = vpop.f32.mrf.mxu0
        %v4226 = vpop.f32.mrf.mxu0
        %v4227 = vadd.f32 0.0, %v4226
        %v4228 = vpop.f32.mrf.mxu0
        %4229 = vmatprep.mubr.bf16.mxu0 0
        %4230 = vmatmul.mubr.bf16.gmra.mxu0 %v4144
        %v4231 = vpop.f32.mrf.mxu0
        %v4232 = vadd.f32 0.0, %v4231
        %v4233 = vpop.f32.mrf.mxu0
        %v4234 = vpop.f32.mrf.mxu0
        %v4235 = vadd.f32 0.0, %v4234
        %v4236 = vpop.f32.mrf.mxu0
        %4237 = vmatprep.mubr.bf16.mxu0 0
        %4238 = vmatmul.mubr.bf16.gmra.mxu0 %v4147
        %v4239 = vpop.f32.mrf.mxu0
        %v4240 = vadd.f32 0.0, %v4239
        %v4241 = vpop.f32.mrf.mxu0
        %v4242 = vpop.f32.mrf.mxu0
        %v4243 = vadd.f32 0.0, %v4242
        %v4244 = vpop.f32.mrf.mxu0
        %4245 = vdwg.mxu0
        %v4246 = vadd.f32 %v3450, %v4184
        %v4247 = vadd.f32 %v3451, %v4187
        %v4248 = vadd.f32 %v3452, %v4192
        %v4249 = vadd.f32 %v3453, %v4195
        %v4250 = vadd.f32 %v3454, %v4200
        %v4251 = vadd.f32 %v3455, %v4203
        %v4252 = vadd.f32 %v3456, %v4208
        %v4253 = vadd.f32 %v3457, %v4211
        %v4254 = vadd.f32 %v3458, %v4216
        %v4255 = vadd.f32 %v3459, %v4219
        %v4256 = vadd.f32 %v3460, %v4224
        %v4257 = vadd.f32 %v3461, %v4227
        %v4258 = vadd.f32 %v3462, %v4232
        %v4259 = vadd.f32 %v3463, %v4235
        %v4260 = vadd.f32 %v3464, %v4240
        %v4261 = vadd.f32 %v3465, %v4243
        %v4262 = vld [vmem:[%s6] sm:$0x1]
        %v4264 = vlaneseq
        %v4265 = vshrl.u32 %v4264, 7
        %v4266 = vsub.s32 0, %v4265
        %v4267 = vrot.slane %v4262, %v4266
        %v4269 = vadd.f32 %v4246, %v4267
        %v4270 = vadd.f32 %v4247, %v4267
        %v4271 = vadd.f32 %v4248, %v4267
        %v4272 = vadd.f32 %v4249, %v4267
        %v4273 = vadd.f32 %v4250, %v4267
        %v4274 = vadd.f32 %v4251, %v4267
        %v4275 = vadd.f32 %v4252, %v4267
        %v4276 = vadd.f32 %v4253, %v4267
        %v4277 = vadd.f32 %v4254, %v4267
        %v4278 = vadd.f32 %v4255, %v4267
        %v4279 = vadd.f32 %v4256, %v4267
        %v4280 = vadd.f32 %v4257, %v4267
        %v4281 = vadd.f32 %v4258, %v4267
        %v4282 = vadd.f32 %v4259, %v4267
        %v4283 = vadd.f32 %v4260, %v4267
        %v4284 = vadd.f32 %v4261, %v4267
        %v4285 = vld [vmem:[%s885] sm:$0xf]
        %v4286 = vld [vmem:[%s885 + $0x4] sm:$0xf]
        %v4287 = vld [vmem:[%s885 + $0x8] sm:$0xf]
        %v4288 = vld [vmem:[%s885 + $0xc] sm:$0xf]
        %v4289 = vld [vmem:[%s885 + $0x10] sm:$0xf]
        %v4290 = vld [vmem:[%s885 + $0x14] sm:$0xf]
        %v4291 = vld [vmem:[%s885 + $0x18] sm:$0xf]
        %v4292 = vld [vmem:[%s885 + $0x1c] sm:$0xf]
        %v4293 = vld [vmem:[%s885 + $0x20] sm:$0xf]
        %v4294 = vld [vmem:[%s885 + $0x24] sm:$0xf]
        %v4295 = vld [vmem:[%s885 + $0x28] sm:$0xf]
        %v4296 = vld [vmem:[%s885 + $0x2c] sm:$0xf]
        %v4297 = vld [vmem:[%s885 + $0x30] sm:$0xf]
        %v4298 = vld [vmem:[%s885 + $0x34] sm:$0xf]
        %v4299 = vld [vmem:[%s885 + $0x38] sm:$0xf]
        %v4300 = vld [vmem:[%s885 + $0x3c] sm:$0xf]
        %v4301 = vunpack.c.l.bf16 %v4285
        %v4302 = vunpack.c.l.bf16 %v4286
        %v4303 = vunpack.c.l.bf16 %v4287
        %v4304 = vunpack.c.l.bf16 %v4288
        %v4305 = vunpack.c.l.bf16 %v4289
        %v4306 = vunpack.c.l.bf16 %v4290
        %v4307 = vunpack.c.l.bf16 %v4291
        %v4308 = vunpack.c.l.bf16 %v4292
        %v4309 = vunpack.c.l.bf16 %v4293
        %v4310 = vunpack.c.l.bf16 %v4294
        %v4311 = vunpack.c.l.bf16 %v4295
        %v4312 = vunpack.c.l.bf16 %v4296
        %v4313 = vunpack.c.l.bf16 %v4297
        %v4314 = vunpack.c.l.bf16 %v4298
        %v4315 = vunpack.c.l.bf16 %v4299
        %v4316 = vunpack.c.l.bf16 %v4300
        %v4317 = vadd.f32 %v4269, %v4301
        %v4318 = vadd.f32 %v4270, %v4302
        %v4319 = vadd.f32 %v4271, %v4303
        %v4320 = vadd.f32 %v4272, %v4304
        %v4321 = vadd.f32 %v4273, %v4305
        %v4322 = vadd.f32 %v4274, %v4306
        %v4323 = vadd.f32 %v4275, %v4307
        %v4324 = vadd.f32 %v4276, %v4308
        %v4325 = vadd.f32 %v4277, %v4309
        %v4326 = vadd.f32 %v4278, %v4310
        %v4327 = vadd.f32 %v4279, %v4311
        %v4328 = vadd.f32 %v4280, %v4312
        %v4329 = vadd.f32 %v4281, %v4313
        %v4330 = vadd.f32 %v4282, %v4314
        %v4331 = vadd.f32 %v4283, %v4315
        %v4332 = vadd.f32 %v4284, %v4316
        %4333 = vadd.xlane.f32.xlu0 %v4317
        %v4334 = vpop.xlane.xlu0 %4333
        %4335 = vadd.xlane.f32.xlu0 %v4318
        %v4336 = vpop.xlane.xlu0 %4335
        %4337 = vadd.xlane.f32.xlu0 %v4319
        %v4338 = vpop.xlane.xlu0 %4337
        %4339 = vadd.xlane.f32.xlu0 %v4320
        %v4340 = vpop.xlane.xlu0 %4339
        %4341 = vadd.xlane.f32.xlu0 %v4321
        %v4342 = vpop.xlane.xlu0 %4341
        %4343 = vadd.xlane.f32.xlu0 %v4322
        %v4344 = vpop.xlane.xlu0 %4343
        %4345 = vadd.xlane.f32.xlu0 %v4323
        %v4346 = vpop.xlane.xlu0 %4345
        %4347 = vadd.xlane.f32.xlu0 %v4324
        %v4348 = vpop.xlane.xlu0 %4347
        %4349 = vadd.xlane.f32.xlu0 %v4325
        %v4350 = vpop.xlane.xlu0 %4349
        %4351 = vadd.xlane.f32.xlu0 %v4326
        %v4352 = vpop.xlane.xlu0 %4351
        %4353 = vadd.xlane.f32.xlu0 %v4327
        %v4354 = vpop.xlane.xlu0 %4353
        %4355 = vadd.xlane.f32.xlu0 %v4328
        %v4356 = vpop.xlane.xlu0 %4355
        %4357 = vadd.xlane.f32.xlu0 %v4329
        %v4358 = vpop.xlane.xlu0 %4357
        %4359 = vadd.xlane.f32.xlu0 %v4330
        %v4360 = vpop.xlane.xlu0 %4359
        %4361 = vadd.xlane.f32.xlu0 %v4331
        %v4362 = vpop.xlane.xlu0 %4361
        %4363 = vadd.xlane.f32.xlu0 %v4332
        %v4364 = vpop.xlane.xlu0 %4363
        %v4365 = vrcp.pop 128.0
        %v4366 = vmul.f32 %v4334, %v4365
        %v4367 = vmul.f32 %v4336, %v4365
        %v4368 = vmul.f32 %v4338, %v4365
        %v4369 = vmul.f32 %v4340, %v4365
        %v4370 = vmul.f32 %v4342, %v4365
        %v4371 = vmul.f32 %v4344, %v4365
        %v4372 = vmul.f32 %v4346, %v4365
        %v4373 = vmul.f32 %v4348, %v4365
        %v4374 = vmul.f32 %v4350, %v4365
        %v4375 = vmul.f32 %v4352, %v4365
        %v4376 = vmul.f32 %v4354, %v4365
        %v4377 = vmul.f32 %v4356, %v4365
        %v4378 = vmul.f32 %v4358, %v4365
        %v4379 = vmul.f32 %v4360, %v4365
        %v4380 = vmul.f32 %v4362, %v4365
        %v4381 = vmul.f32 %v4364, %v4365
        %v4382 = vsub.f32 %v4317, %v4366
        %v4383 = vsub.f32 %v4318, %v4367
        %v4384 = vsub.f32 %v4319, %v4368
        %v4385 = vsub.f32 %v4320, %v4369
        %v4386 = vsub.f32 %v4321, %v4370
        %v4387 = vsub.f32 %v4322, %v4371
        %v4388 = vsub.f32 %v4323, %v4372
        %v4389 = vsub.f32 %v4324, %v4373
        %v4390 = vsub.f32 %v4325, %v4374
        %v4391 = vsub.f32 %v4326, %v4375
        %v4392 = vsub.f32 %v4327, %v4376
        %v4393 = vsub.f32 %v4328, %v4377
        %v4394 = vsub.f32 %v4329, %v4378
        %v4395 = vsub.f32 %v4330, %v4379
        %v4396 = vsub.f32 %v4331, %v4380
        %v4397 = vsub.f32 %v4332, %v4381
        %v4398 = vmul.f32 %v4382, %v4382
        %v4399 = vmul.f32 %v4383, %v4383
        %v4400 = vmul.f32 %v4384, %v4384
        %v4401 = vmul.f32 %v4385, %v4385
        %v4402 = vmul.f32 %v4386, %v4386
        %v4403 = vmul.f32 %v4387, %v4387
        %v4404 = vmul.f32 %v4388, %v4388
        %v4405 = vmul.f32 %v4389, %v4389
        %v4406 = vmul.f32 %v4390, %v4390
        %v4407 = vmul.f32 %v4391, %v4391
        %v4408 = vmul.f32 %v4392, %v4392
        %v4409 = vmul.f32 %v4393, %v4393
        %v4410 = vmul.f32 %v4394, %v4394
        %v4411 = vmul.f32 %v4395, %v4395
        %v4412 = vmul.f32 %v4396, %v4396
        %v4413 = vmul.f32 %v4397, %v4397
        %4414 = vadd.xlane.f32.xlu0 %v4398
        %v4415 = vpop.xlane.xlu0 %4414
        %4416 = vadd.xlane.f32.xlu0 %v4399
        %v4417 = vpop.xlane.xlu0 %4416
        %4418 = vadd.xlane.f32.xlu0 %v4400
        %v4419 = vpop.xlane.xlu0 %4418
        %4420 = vadd.xlane.f32.xlu0 %v4401
        %v4421 = vpop.xlane.xlu0 %4420
        %4422 = vadd.xlane.f32.xlu0 %v4402
        %v4423 = vpop.xlane.xlu0 %4422
        %4424 = vadd.xlane.f32.xlu0 %v4403
        %v4425 = vpop.xlane.xlu0 %4424
        %4426 = vadd.xlane.f32.xlu0 %v4404
        %v4427 = vpop.xlane.xlu0 %4426
        %4428 = vadd.xlane.f32.xlu0 %v4405
        %v4429 = vpop.xlane.xlu0 %4428
        %4430 = vadd.xlane.f32.xlu0 %v4406
        %v4431 = vpop.xlane.xlu0 %4430
        %4432 = vadd.xlane.f32.xlu0 %v4407
        %v4433 = vpop.xlane.xlu0 %4432
        %4434 = vadd.xlane.f32.xlu0 %v4408
        %v4435 = vpop.xlane.xlu0 %4434
        %4436 = vadd.xlane.f32.xlu0 %v4409
        %v4437 = vpop.xlane.xlu0 %4436
        %4438 = vadd.xlane.f32.xlu0 %v4410
        %v4439 = vpop.xlane.xlu0 %4438
        %4440 = vadd.xlane.f32.xlu0 %v4411
        %v4441 = vpop.xlane.xlu0 %4440
        %4442 = vadd.xlane.f32.xlu0 %v4412
        %v4443 = vpop.xlane.xlu0 %4442
        %4444 = vadd.xlane.f32.xlu0 %v4413
        %v4445 = vpop.xlane.xlu0 %4444
        %v4446 = vmul.f32 %v4415, %v4365
        %v4447 = vmul.f32 %v4417, %v4365
        %v4448 = vmul.f32 %v4419, %v4365
        %v4449 = vmul.f32 %v4421, %v4365
        %v4450 = vmul.f32 %v4423, %v4365
        %v4451 = vmul.f32 %v4425, %v4365
        %v4452 = vmul.f32 %v4427, %v4365
        %v4453 = vmul.f32 %v4429, %v4365
        %v4454 = vmul.f32 %v4431, %v4365
        %v4455 = vmul.f32 %v4433, %v4365
        %v4456 = vmul.f32 %v4435, %v4365
        %v4457 = vmul.f32 %v4437, %v4365
        %v4458 = vmul.f32 %v4439, %v4365
        %v4459 = vmul.f32 %v4441, %v4365
        %v4460 = vmul.f32 %v4443, %v4365
        %v4461 = vmul.f32 %v4445, %v4365
        %v4462 = vadd.f32 %v4446, 1e-05
        %v4463 = vadd.f32 %v4447, 1e-05
        %v4464 = vadd.f32 %v4448, 1e-05
        %v4465 = vadd.f32 %v4449, 1e-05
        %v4466 = vadd.f32 %v4450, 1e-05
        %v4467 = vadd.f32 %v4451, 1e-05
        %v4468 = vadd.f32 %v4452, 1e-05
        %v4469 = vadd.f32 %v4453, 1e-05
        %v4470 = vadd.f32 %v4454, 1e-05
        %v4471 = vadd.f32 %v4455, 1e-05
        %v4472 = vadd.f32 %v4456, 1e-05
        %v4473 = vadd.f32 %v4457, 1e-05
        %v4474 = vadd.f32 %v4458, 1e-05
        %v4475 = vadd.f32 %v4459, 1e-05
        %v4476 = vadd.f32 %v4460, 1e-05
        %v4477 = vadd.f32 %v4461, 1e-05
        %v4478 = vrsqrt.pop %v4462
        %v4479 = vrsqrt.pop %v4463
        %v4480 = vrsqrt.pop %v4464
        %v4481 = vrsqrt.pop %v4465
        %v4482 = vrsqrt.pop %v4466
        %v4483 = vrsqrt.pop %v4467
        %v4484 = vrsqrt.pop %v4468
        %v4485 = vrsqrt.pop %v4469
        %v4486 = vrsqrt.pop %v4470
        %v4487 = vrsqrt.pop %v4471
        %v4488 = vrsqrt.pop %v4472
        %v4489 = vrsqrt.pop %v4473
        %v4490 = vrsqrt.pop %v4474
        %v4491 = vrsqrt.pop %v4475
        %v4492 = vrsqrt.pop %v4476
        %v4493 = vrsqrt.pop %v4477
        %v4494 = vmul.f32 %v4382, %v4478
        %v4495 = vmul.f32 %v4383, %v4479
        %v4496 = vmul.f32 %v4384, %v4480
        %v4497 = vmul.f32 %v4385, %v4481
        %v4498 = vmul.f32 %v4386, %v4482
        %v4499 = vmul.f32 %v4387, %v4483
        %v4500 = vmul.f32 %v4388, %v4484
        %v4501 = vmul.f32 %v4389, %v4485
        %v4502 = vmul.f32 %v4390, %v4486
        %v4503 = vmul.f32 %v4391, %v4487
        %v4504 = vmul.f32 %v4392, %v4488
        %v4505 = vmul.f32 %v4393, %v4489
        %v4506 = vmul.f32 %v4394, %v4490
        %v4507 = vmul.f32 %v4395, %v4491
        %v4508 = vmul.f32 %v4396, %v4492
        %v4509 = vmul.f32 %v4397, %v4493
        %v4510 = vld [vmem:[%s7] sm:$0x1]
        %v4512 = vlaneseq
        %v4513 = vshrl.u32 %v4512, 7
        %v4514 = vsub.s32 0, %v4513
        %v4515 = vrot.slane %v4510, %v4514
        %v4517 = vmul.f32 %v4494, %v4515
        %v4518 = vmul.f32 %v4495, %v4515
        %v4519 = vmul.f32 %v4496, %v4515
        %v4520 = vmul.f32 %v4497, %v4515
        %v4521 = vmul.f32 %v4498, %v4515
        %v4522 = vmul.f32 %v4499, %v4515
        %v4523 = vmul.f32 %v4500, %v4515
        %v4524 = vmul.f32 %v4501, %v4515
        %v4525 = vmul.f32 %v4502, %v4515
        %v4526 = vmul.f32 %v4503, %v4515
        %v4527 = vmul.f32 %v4504, %v4515
        %v4528 = vmul.f32 %v4505, %v4515
        %v4529 = vmul.f32 %v4506, %v4515
        %v4530 = vmul.f32 %v4507, %v4515
        %v4531 = vmul.f32 %v4508, %v4515
        %v4532 = vmul.f32 %v4509, %v4515
        %v4533 = vld [vmem:[%s8] sm:$0x1]
        %v4535 = vlaneseq
        %v4536 = vshrl.u32 %v4535, 7
        %v4537 = vsub.s32 0, %v4536
        %v4538 = vrot.slane %v4533, %v4537
        %v4540 = vadd.f32 %v4517, %v4538
        %v4541 = vadd.f32 %v4518, %v4538
        %v4542 = vadd.f32 %v4519, %v4538
        %v4543 = vadd.f32 %v4520, %v4538
        %v4544 = vadd.f32 %v4521, %v4538
        %v4545 = vadd.f32 %v4522, %v4538
        %v4546 = vadd.f32 %v4523, %v4538
        %v4547 = vadd.f32 %v4524, %v4538
        %v4548 = vadd.f32 %v4525, %v4538
        %v4549 = vadd.f32 %v4526, %v4538
        %v4550 = vadd.f32 %v4527, %v4538
        %v4551 = vadd.f32 %v4528, %v4538
        %v4552 = vadd.f32 %v4529, %v4538
        %v4553 = vadd.f32 %v4530, %v4538
        %v4554 = vadd.f32 %v4531, %v4538
        %v4555 = vadd.f32 %v4532, %v4538
        %v4556 = vpack.c.bf16 %v4541, %v4540
        %v4557 = vpack.c.bf16 %v4543, %v4542
        %v4558 = vpack.c.bf16 %v4545, %v4544
        %v4559 = vpack.c.bf16 %v4547, %v4546
        %v4560 = vpack.c.bf16 %v4549, %v4548
        %v4561 = vpack.c.bf16 %v4551, %v4550
        %v4562 = vpack.c.bf16 %v4553, %v4552
        %v4563 = vpack.c.bf16 %v4555, %v4554
        %v4572 = vunpack.c.l.b16 %v4556
        %v4573 = vunpack.c.h.b16 %v4556
        %v4574 = vunpack.c.l.b16 %v4557
        %v4575 = vunpack.c.h.b16 %v4557
        %v4576 = vunpack.c.l.b16 %v4558
        %v4577 = vunpack.c.h.b16 %v4558
        %v4578 = vunpack.c.l.b16 %v4559
        %v4579 = vunpack.c.h.b16 %v4559
        %v4580 = vunpack.c.l.b16 %v4560
        %v4581 = vunpack.c.h.b16 %v4560
        %v4582 = vunpack.c.l.b16 %v4561
        %v4583 = vunpack.c.h.b16 %v4561
        %v4584 = vunpack.c.l.b16 %v4562
        %v4585 = vunpack.c.h.b16 %v4562
        %v4586 = vunpack.c.l.b16 %v4563
        %v4587 = vunpack.c.h.b16 %v4563
        %v4588 = vpack.c.b16 %v4572, %v4572
        %v4589 = vpack.c.b16 %v4573, %v4573
        %v4590 = vpack.c.b16 %v4574, %v4574
        %v4591 = vpack.c.b16 %v4575, %v4575
        %v4592 = vpack.c.b16 %v4576, %v4576
        %v4593 = vpack.c.b16 %v4577, %v4577
        %v4594 = vpack.c.b16 %v4578, %v4578
        %v4595 = vpack.c.b16 %v4579, %v4579
        %v4596 = vpack.c.b16 %v4580, %v4580
        %v4597 = vpack.c.b16 %v4581, %v4581
        %v4598 = vpack.c.b16 %v4582, %v4582
        %v4599 = vpack.c.b16 %v4583, %v4583
        %v4600 = vpack.c.b16 %v4584, %v4584
        %v4601 = vpack.c.b16 %v4585, %v4585
        %v4602 = vpack.c.b16 %v4586, %v4586
        %v4603 = vpack.c.b16 %v4587, %v4587
        %4620 = vst [vmem:[%s895] sm:$0xf] %v4588
        %4621 = vst [vmem:[%s895 + $0x4] sm:$0xf] %v4589
        %4622 = vst [vmem:[%s895 + $0x8] sm:$0xf] %v4590
        %4623 = vst [vmem:[%s895 + $0xc] sm:$0xf] %v4591
        %4624 = vst [vmem:[%s895 + $0x10] sm:$0xf] %v4592
        %4625 = vst [vmem:[%s895 + $0x14] sm:$0xf] %v4593
        %4626 = vst [vmem:[%s895 + $0x18] sm:$0xf] %v4594
        %4627 = vst [vmem:[%s895 + $0x1c] sm:$0xf] %v4595
        %4628 = vst [vmem:[%s895 + $0x20] sm:$0xf] %v4596
        %4629 = vst [vmem:[%s895 + $0x24] sm:$0xf] %v4597
        %4630 = vst [vmem:[%s895 + $0x28] sm:$0xf] %v4598
        %4631 = vst [vmem:[%s895 + $0x2c] sm:$0xf] %v4599
        %4632 = vst [vmem:[%s895 + $0x30] sm:$0xf] %v4600
        %4633 = vst [vmem:[%s895 + $0x34] sm:$0xf] %v4601
        %4634 = vst [vmem:[%s895 + $0x38] sm:$0xf] %v4602
        %4635 = vst [vmem:[%s895 + $0x3c] sm:$0xf] %v4603
        %s4636 = smul.u32 16, %s25
        %p4637 = scmp.lt.s32.totalorder %s24, 1
        %s4638 = scalar_select %p4637, %s24, 1
        %p4639 = scmp.lt.s32.totalorder %s4636, 31
        %s4640 = scalar_select %p4639, %s4636, 31
        %s4641 = smul.addr %s4638, 32
        %s4642 = sadd.s32 %s4640, %s4641
        %s4643 = smul.addr %s4642, 4
        %s4644 = scalar_lea.vmem %s9, %s4643
        // Predicated region
        $region180: #{language_model_forward.10} parent=166 // pred_check
          %p4645 = pneg %p270
        $region181: #{language_model_forward.10} parent=166 // pred_check_branch
          %4647 = sbr.rel (%p4645) target = $region183
        $region182: #{language_model_forward.10} parent=166 // pred_region
          %s4648 = smul.u32 16, %s25
        $region183: #{language_model_forward.10} parent=166 // pred_fallthru
          _
      $region167: #{language_model_forward.10} parent=5 // pred_fallthru
        _
      %p4649 = scmp.le.s32.totalorder 2, %s15
      // Predicated region
      $region184: #{language_model_forward.10} parent=5 // pred_check
        %p4650 = pneg %p4649
      $region185: #{language_model_forward.10} parent=5 // pred_check_branch
        %4652 = sbr.rel (%p4650) target = $region187
      $region186: #{language_model_forward.10} parent=5 // pred_region
        %s4653 = ssub.s32 %s15, 2
        // Predicated region
        $region188: #{language_model_forward.10} parent=186 // pred_check
          %p4654 = pneg %p276
        $region189: #{language_model_forward.10} parent=186 // pred_check_branch
          %4656 = sbr.rel (%p4654) target = $region191
        $region190: #{language_model_forward.10} parent=186 // pred_region
          %s4657 = smul.u32 16, %s27
          %p4658 = scmp.lt.s32.totalorder %s26, 1
          %s4659 = scalar_select %p4658, %s26, 1
          %p4660 = scmp.lt.s32.totalorder %s4657, 31
          %s4661 = scalar_select %p4660, %s4657, 31
          %s4662 = smul.addr %s4659, 32
          %s4663 = sadd.s32 %s4661, %s4662
          %s4664 = smul.addr %s4663, 4
          %s4665 = scalar_lea.vmem %s9, %s4664
        $region191: #{language_model_forward.10} parent=186 // pred_fallthru
          _
      $region187: #{language_model_forward.10} parent=5 // pred_fallthru
        _
    $region6: #{language_model_forward.10} parent=1 // loop_footer
      %s19 = sadd.s32 1, %s15
    $region7: #{language_model_forward.10} parent=1 // loop_footer_branch
      %14 = sbr.rel target = $region3
    $region8: #{language_model_forward.10} parent=1 // loop_exit
      _

</llo_original>
